<compile_context>
chip_gen: v7x
topology: tpu7x:2x2x1
jax: 0.10.0
libtpu: 0.0.40
codegen_flags: <defaults>
</compile_context>

<pallas_src>
import numpy as np

import jax
import jax.numpy as jnp
from jax.experimental import pallas as pl
from jax.experimental.pallas import tpu as pltpu


# ------------------------------ fused kernel --------------------------------

def _cnn_kernel(x_ref, x2_ref,
                w1_ref, b1_ref, w2_ref, b2_ref, w3_ref, b3_ref,
                wf1_ref, bf1_ref, wf2_ref, bf2_ref,
                wf3a_ref, wf3b_ref, bf3_ref,
                o_ref, p2_ref, a2_ref, flat_ref):
    f32 = jnp.float32
    bf16 = jnp.bfloat16

    # ---- maxpool(3) + conv1(k=10,s=2) + relu + maxpool(4) -------------------
    # x_ref lanes: tap r at [r*1024, r*1024+1000).  4 groups of 31 post-pool
    # positions; group weight encodes the 10 taps x 4 pool offsets (m).
    w1 = w1_ref[...]                               # (256, 992) bf16
    b1 = b1_ref[...]                               # (1, 248)   f32
    for g in range(4):
        lo = 248 * g                               # = 8 * 31 * g
        pooled = jnp.maximum(
            jnp.maximum(x_ref[:, lo:lo + 256],
                        x_ref[:, 1024 + lo:1024 + lo + 256]),
            x_ref[:, 2048 + lo:2048 + lo + 256])                     # (TB, 256)
        pre = jnp.dot(pooled.astype(bf16), w1,
                      preferred_element_type=f32)                    # (TB, 992)
        mx = jnp.maximum(jnp.maximum(pre[:, 0:248], pre[:, 248:496]),
                         jnp.maximum(pre[:, 496:744], pre[:, 744:992]))
        p2_ref[:, lo:lo + 248] = jnp.maximum(mx + b1, 0.0)           # (TB, 248)

    # ---- conv2 (k=10, s=2) + relu : 2 groups of 29 positions ---------------
    # p2 layout: lane = 8*pos + chan  -> each group patch is one lane slice.
    w2 = w2_ref[...]                               # (528, 928) bf16
    b2 = b2_ref[...]                               # (1, 928)   f32
    for g in range(2):
        patch = p2_ref[:, 464 * g:464 * g + 528].astype(bf16)        # (TB, 528)
        acc = jnp.dot(patch, w2, preferred_element_type=f32)         # (TB, 928)
        a2_ref[:, 928 * g:928 * g + 928] = jnp.maximum(acc + b2, 0.0)

    # ---- conv3 (k=10, s=2) + relu : 5 groups of 5 positions ----------------
    # Writes straight into the fc1 input layout (lane = 32*pos + chan), so the
    # torch flatten is free (its channel-major order is folded into wf1).
    w3 = w3_ref[...]                               # (576, 160) bf16
    b3 = b3_ref[...]                               # (1, 160)   f32
    for g in range(5):
        patch = a2_ref[:, 320 * g:320 * g + 576].astype(bf16)        # (TB, 576)
        acc = jnp.dot(patch, w3, preferred_element_type=f32)         # (TB, 160)
        flat_ref[:, 160 * g:160 * g + 160] = jnp.maximum(acc + b3, 0.0)

    # ---- fc1 / fc2 (bf16 MXU operands, f32 accumulation) -------------------
    h = jnp.dot(flat_ref[...].astype(bf16), wf1_ref[...],
                preferred_element_type=f32) + bf1_ref[...]
    h = jnp.maximum(h, 0.0)                                          # (TB, 400)
    h = jnp.dot(h.astype(bf16), wf2_ref[...],
                preferred_element_type=f32) + bf2_ref[...]
    h = jnp.maximum(h, 0.0)                                          # (TB, 32)

    # ---- fc3 with the concatenated x2 (weight split: no in-kernel concat) ---
    out = jnp.dot(h, wf3a_ref[...], preferred_element_type=f32)
    out = out + x2_ref[...] * wf3b_ref[...] + bf3_ref[...]
    o_ref[...] = jnp.maximum(out, 0.0)                               # (TB, 2)


def _round_up(x, m):
    return (x + m - 1) // m * m


def forward(kp, x1_nchw, x2):
    n = x1_nchw.shape[0]

    # Host-side layout permute only (no compute): lane = tap*1024 + pooled_pos.
    xr = x1_nchw.reshape(n, 1000, 3).transpose(0, 2, 1)              # (n,3,1000)
    xr = jnp.pad(xr, ((0, 0), (0, 0), (0, 24))).reshape(n, 3072)
    x2r = x2.reshape(n, 1).astype(jnp.float32)

    tb = min(128, _round_up(n, 16))
    n_pad = _round_up(n, tb)
    if n_pad != n:
        xr = jnp.pad(xr, ((0, n_pad - n), (0, 0)))
        x2r = jnp.pad(x2r, ((0, n_pad - n), (0, 0)))

    def full(a):
        nd = a.ndim
        return pl.BlockSpec(a.shape, lambda i, _nd=nd: (0,) * _nd)

    weight_names = ["w1", "b1", "w2", "b2", "w3", "b3",
                    "wf1", "bf1", "wf2", "bf2", "wf3a", "wf3b", "bf3"]
    weights = [kp[k] for k in weight_names]

    out = pl.pallas_call(
        _cnn_kernel,
        out_shape=jax.ShapeDtypeStruct((n_pad, 2), jnp.float32),
        grid=(n_pad // tb,),
        in_specs=[pl.BlockSpec((tb, 3072), lambda i: (i, 0)),
                  pl.BlockSpec((tb, 1), lambda i: (i, 0))]
                 + [full(w) for w in weights],
        out_specs=pl.BlockSpec((tb, 2), lambda i: (i, 0)),
        scratch_shapes=[pltpu.VMEM((tb, 992), jnp.float32),    # p2
                        pltpu.VMEM((tb, 1856), jnp.float32),   # a2
                        pltpu.VMEM((tb, 800), jnp.float32)],   # fc1 input
        compiler_params=pltpu.CompilerParams(
            dimension_semantics=("parallel",),
            vmem_limit_bytes=32 * 1024 * 1024),
    )(xr, x2r, *weights)
    return out[:n]


# ------------------------ parameters (torch layout) --------------------------

def init_params(key):
    def conv_w(k, cout, cin, kh):
        return jax.random.normal(k, (cout, cin, kh, 1), jnp.float32) / jnp.sqrt(cin * kh)

    def fc_w(k, out, inp):
        return jax.random.normal(k, (out, inp), jnp.float32) / jnp.sqrt(inp)

    ks = jax.random.split(key, 12)
    return dict(
        w1=conv_w(ks[0], 8, 1, 10),    b1=0.1 * jax.random.normal(ks[1], (8,), jnp.float32),
        w2=conv_w(ks[2], 32, 8, 10),   b2=0.1 * jax.random.normal(ks[3], (32,), jnp.float32),
        w3=conv_w(ks[4], 32, 32, 10),  b3=0.1 * jax.random.normal(ks[5], (32,), jnp.float32),
        wf1=fc_w(ks[6], 400, 800),     bf1=0.1 * jax.random.normal(ks[7], (400,), jnp.float32),
        wf2=fc_w(ks[8], 32, 400),      bf2=0.1 * jax.random.normal(ks[9], (32,), jnp.float32),
        wf3=fc_w(ks[10], 2, 33),       bf3=0.1 * jax.random.normal(ks[11], (2,), jnp.float32),
    )


def to_kernel_layout(p):
    f32 = np.float32
    w1 = np.asarray(p["w1"])[:, 0, :, 0]           # (8, 10)     [c, k]
    w2 = np.asarray(p["w2"])[:, :, :, 0]           # (32, 8, 10) [co, ci, k]
    w3 = np.asarray(p["w3"])[:, :, :, 0]           # (32, 32, 10)

    # conv1 group weight: 31 post-pool positions/group, 4 pool offsets m,
    # 8 channels.  W1[8j+2m+k, 248m+8j+c] = w1[c, k]
    W1 = np.zeros((256, 992), f32)
    for m in range(4):
        for j in range(31):
            W1[8 * j + 2 * m: 8 * j + 2 * m + 10,
               248 * m + 8 * j: 248 * m + 8 * j + 8] = w1.T

    # conv2 group weight: 29 positions/group.  W2[16j+8k+ci, 32j+co] = w2[co,ci,k]
    w2f = np.transpose(w2, (2, 1, 0)).reshape(80, 32)
    W2 = np.zeros((528, 928), f32)
    for j in range(29):
        W2[16 * j: 16 * j + 80, 32 * j: 32 * j + 32] = w2f

    # conv3 group weight: 5 positions/group.  W3[64j+32k+ci, 32j+co] = w3[co,ci,k]
    w3f = np.transpose(w3, (2, 1, 0)).reshape(320, 32)
    W3 = np.zeros((576, 160), f32)
    for j in range(5):
        W3[64 * j: 64 * j + 320, 32 * j: 32 * j + 32] = w3f

    # fc1: fold torch's channel-major view(-1,800) into a row permutation so it
    # matches the kernel's position-major flatten (lane = 32*pos + chan).
    wf1 = np.asarray(p["wf1"]).T.reshape(32, 25, 400).transpose(1, 0, 2).reshape(800, 400)

    bf16 = jnp.bfloat16
    return dict(
        w1=jnp.asarray(W1, bf16),
        b1=jnp.asarray(np.tile(np.asarray(p["b1"]), 31)[None, :], f32),
        w2=jnp.asarray(W2, bf16),
        b2=jnp.asarray(np.tile(np.asarray(p["b2"]), 29)[None, :], f32),
        w3=jnp.asarray(W3, bf16),
        b3=jnp.asarray(np.tile(np.asarray(p["b3"]), 5)[None, :], f32),
        wf1=jnp.asarray(wf1, bf16),
        bf1=jnp.asarray(np.asarray(p["bf1"])[None, :], f32),
        wf2=jnp.asarray(np.asarray(p["wf2"]).T, bf16),
        bf2=jnp.asarray(np.asarray(p["bf2"])[None, :], f32),
        wf3a=jnp.asarray(np.asarray(p["wf3"])[:, :32].T, f32),      # (32, 2)
        wf3b=jnp.asarray(np.asarray(p["wf3"])[:, 32:33].T, f32),    # (1, 2)
        bf3=jnp.asarray(np.asarray(p["bf3"])[None, :], f32),
    )


# ---------------------- pure-JAX reference (torch semantics) -----------------

def reference(p, x1_nchw, x2):
    relu = jax.nn.relu

    def maxp(x, k):
        nn_, c, h, w = x.shape
        hp = h // k
        return jnp.max(x[:, :, : hp * k, :].reshape(nn_, c, hp, k, w), axis=3)

    def conv(x, w, b, s):
        y = jax.lax.conv_general_dilated(
            x, w, window_strides=(s, 1), padding="VALID",
            dimension_numbers=("NCHW", "OIHW", "NCHW"),
            precision=jax.lax.Precision.HIGHEST)
        return y + b.reshape(1, -1, 1, 1)

    x = maxp(x1_nchw, 3)
    x = relu(conv(x, p["w1"], p["b1"], 2))
    x = maxp(x, 4)
    x = relu(conv(x, p["w2"], p["b2"], 2))
    x = relu(conv(x, p["w3"], p["b3"], 2))
    x = x.reshape(-1, 800)
    x = relu(x @ p["wf1"].T + p["bf1"])
    x = relu(x @ p["wf2"].T + p["bf2"])
    x = jnp.concatenate([x, x2.reshape(-1, 1)], axis=1)
    x = relu(x @ p["wf3"].T + p["bf3"])
    return x


# ----------------------------------- main ------------------------------------

if __name__ == "__main__":
    key = jax.random.PRNGKey(0)
    k_par, k_x1, k_x2 = jax.random.split(key, 3)

    # Smallest shapes consistent with the module: view(-1, 800) forces H = 3000
    # (3000 -> pool3 -> 1000 -> conv -> 496 -> pool4 -> 124 -> conv -> 58
    #  -> conv -> 25; 32*25 = 800). batch = 2.
    N = 2
    x1 = jax.random.normal(k_x1, (N, 1, 3000, 1), jnp.float32)   # PyTorch NCHW input
    x2 = jax.random.normal(k_x2, (N, 1), jnp.float32)

    params = init_params(k_par)
    kparams = to_kernel_layout(params)

    out = jax.jit(forward)(kparams, x1, x2)
    out = jax.block_until_ready(out)

    ref = reference(params, x1, x2)
    rel_err = float(jnp.max(jnp.abs(out - ref)) / (jnp.max(jnp.abs(ref)) + 1e-6))
    assert out.shape == (N, 2), out.shape
    assert rel_err < 5e-2, f"mismatch vs reference: rel_err={rel_err}"

    print("KERNEL_OK")
</pallas_src>

<mosaic_0001>
module attributes {stable_mosaic.version = 11 : i64} {
  func.func @_cnn_kernel(%arg0: i32, %arg1: memref<16x3072xf32, #tpu.memory_space<vmem>>, %arg2: memref<16x1xf32, #tpu.memory_space<vmem>>, %arg3: memref<256x992xbf16, #tpu.memory_space<vmem>>, %arg4: memref<1x248xf32, #tpu.memory_space<vmem>>, %arg5: memref<528x928xbf16, #tpu.memory_space<vmem>>, %arg6: memref<1x928xf32, #tpu.memory_space<vmem>>, %arg7: memref<576x160xbf16, #tpu.memory_space<vmem>>, %arg8: memref<1x160xf32, #tpu.memory_space<vmem>>, %arg9: memref<800x400xbf16, #tpu.memory_space<vmem>>, %arg10: memref<1x400xf32, #tpu.memory_space<vmem>>, %arg11: memref<400x32xbf16, #tpu.memory_space<vmem>>, %arg12: memref<1x32xf32, #tpu.memory_space<vmem>>, %arg13: memref<32x2xf32, #tpu.memory_space<vmem>>, %arg14: memref<1x2xf32, #tpu.memory_space<vmem>>, %arg15: memref<1x2xf32, #tpu.memory_space<vmem>>, %arg16: memref<16x2xf32, #tpu.memory_space<vmem>>, %arg17: memref<16x992xf32, #tpu.memory_space<vmem>>, %arg18: memref<16x1856xf32, #tpu.memory_space<vmem>>, %arg19: memref<16x800xf32, #tpu.memory_space<vmem>>) attributes {dimension_semantics = [#tpu.dimension_semantics<parallel>], iteration_bounds = array<i64: 1>, scalar_prefetch = 0 : i64, scratch_operands = 3 : i64, tpu.core_type = #tpu.core_type<tc>, window_params = [{transform_indices = @transform_0, window_bounds = array<i64: 16, 3072>}, {transform_indices = @transform_1, window_bounds = array<i64: 16, 1>}, {pipeline_mode = #tpu.pipeline_mode<synchronous>, transform_indices = @transform_2, window_bounds = array<i64: 256, 992>}, {pipeline_mode = #tpu.pipeline_mode<synchronous>, transform_indices = @transform_3, window_bounds = array<i64: 1, 248>}, {pipeline_mode = #tpu.pipeline_mode<synchronous>, transform_indices = @transform_4, window_bounds = array<i64: 528, 928>}, {pipeline_mode = #tpu.pipeline_mode<synchronous>, transform_indices = @transform_5, window_bounds = array<i64: 1, 928>}, {pipeline_mode = #tpu.pipeline_mode<synchronous>, transform_indices = @transform_6, window_bounds = array<i64: 576, 160>}, {pipeline_mode = #tpu.pipeline_mode<synchronous>, transform_indices = @transform_7, window_bounds = array<i64: 1, 160>}, {pipeline_mode = #tpu.pipeline_mode<synchronous>, transform_indices = @transform_8, window_bounds = array<i64: 800, 400>}, {pipeline_mode = #tpu.pipeline_mode<synchronous>, transform_indices = @transform_9, window_bounds = array<i64: 1, 400>}, {pipeline_mode = #tpu.pipeline_mode<synchronous>, transform_indices = @transform_10, window_bounds = array<i64: 400, 32>}, {pipeline_mode = #tpu.pipeline_mode<synchronous>, transform_indices = @transform_11, window_bounds = array<i64: 1, 32>}, {pipeline_mode = #tpu.pipeline_mode<synchronous>, transform_indices = @transform_12, window_bounds = array<i64: 32, 2>}, {pipeline_mode = #tpu.pipeline_mode<synchronous>, transform_indices = @transform_13, window_bounds = array<i64: 1, 2>}, {pipeline_mode = #tpu.pipeline_mode<synchronous>, transform_indices = @transform_14, window_bounds = array<i64: 1, 2>}, {transform_indices = @transform_15, window_bounds = array<i64: 16, 2>}]} {
    %c0 = arith.constant 0 : index
    %c0_0 = arith.constant 0 : index
    %0 = vector.load %arg3[%c0, %c0_0] : memref<256x992xbf16, #tpu.memory_space<vmem>>, vector<256x992xbf16>
    %c0_1 = arith.constant 0 : index
    %c0_2 = arith.constant 0 : index
    %1 = vector.load %arg4[%c0_1, %c0_2] : memref<1x248xf32, #tpu.memory_space<vmem>>, vector<1x248xf32>
    %c0_3 = arith.constant 0 : index
    %c0_4 = arith.constant 0 : index
    %2 = vector.load %arg1[%c0_3, %c0_4] : memref<16x3072xf32, #tpu.memory_space<vmem>>, vector<16x256xf32>
    %c0_5 = arith.constant 0 : index
    %c1024 = arith.constant 1024 : index
    %3 = vector.load %arg1[%c0_5, %c1024] : memref<16x3072xf32, #tpu.memory_space<vmem>>, vector<16x256xf32>
    %4 = arith.maximumf %2, %3 : vector<16x256xf32>
    %c0_6 = arith.constant 0 : index
    %c2048 = arith.constant 2048 : index
    %5 = vector.load %arg1[%c0_6, %c2048] : memref<16x3072xf32, #tpu.memory_space<vmem>>, vector<16x256xf32>
    %6 = arith.maximumf %4, %5 : vector<16x256xf32>
    %7 = arith.truncf %6 : vector<16x256xf32> to vector<16x256xbf16>
    %cst = arith.constant dense<0.000000e+00> : vector<16x992xf32>
    %8 = tpu.matmul %7, %0, %cst {dimension_numbers = #tpu.dot_dimension_numbers<[1], [0], [0], [1], [0, 0, 1, 1], [], []>} : vector<16x256xbf16>, vector<256x992xbf16>, vector<16x992xf32> -> vector<16x992xf32>
    %9 = vector.extract_strided_slice %8 {offsets = [0, 0], sizes = [16, 248], strides = [1, 1]} : vector<16x992xf32> to vector<16x248xf32>
    %10 = vector.extract_strided_slice %8 {offsets = [0, 248], sizes = [16, 248], strides = [1, 1]} : vector<16x992xf32> to vector<16x248xf32>
    %11 = arith.maximumf %9, %10 : vector<16x248xf32>
    %12 = vector.extract_strided_slice %8 {offsets = [0, 496], sizes = [16, 248], strides = [1, 1]} : vector<16x992xf32> to vector<16x248xf32>
    %13 = vector.extract_strided_slice %8 {offsets = [0, 744], sizes = [16, 248], strides = [1, 1]} : vector<16x992xf32> to vector<16x248xf32>
    %14 = arith.maximumf %12, %13 : vector<16x248xf32>
    %15 = arith.maximumf %11, %14 : vector<16x248xf32>
    %16 = vector.broadcast %1 : vector<1x248xf32> to vector<16x248xf32>
    %17 = arith.addf %15, %16 : vector<16x248xf32>
    %cst_7 = arith.constant 0.000000e+00 : f32
    %18 = vector.broadcast %cst_7 : f32 to vector<16x248xf32>
    %19 = arith.maximumf %17, %18 : vector<16x248xf32>
    %c0_8 = arith.constant 0 : index
    %c0_9 = arith.constant 0 : index
    %20 = vector.load %arg17[%c0_8, %c0_9] : memref<16x992xf32, #tpu.memory_space<vmem>>, vector<16x248xf32>
    tpu.vector_store %arg17[%c0_8, %c0_9], %19 {strides = array<i32>} : memref<16x992xf32, #tpu.memory_space<vmem>>, vector<16x248xf32>,
    %c0_10 = arith.constant 0 : index
    %c248 = arith.constant 248 : index
    %21 = vector.load %arg1[%c0_10, %c248] : memref<16x3072xf32, #tpu.memory_space<vmem>>, vector<16x256xf32>
    %c0_11 = arith.constant 0 : index
    %c1272 = arith.constant 1272 : index
    %22 = vector.load %arg1[%c0_11, %c1272] : memref<16x3072xf32, #tpu.memory_space<vmem>>, vector<16x256xf32>
    %23 = arith.maximumf %21, %22 : vector<16x256xf32>
    %c0_12 = arith.constant 0 : index
    %c2296 = arith.constant 2296 : index
    %24 = vector.load %arg1[%c0_12, %c2296] : memref<16x3072xf32, #tpu.memory_space<vmem>>, vector<16x256xf32>
    %25 = arith.maximumf %23, %24 : vector<16x256xf32>
    %26 = arith.truncf %25 : vector<16x256xf32> to vector<16x256xbf16>
    %cst_13 = arith.constant dense<0.000000e+00> : vector<16x992xf32>
    %27 = tpu.matmul %26, %0, %cst_13 {dimension_numbers = #tpu.dot_dimension_numbers<[1], [0], [0], [1], [0, 0, 1, 1], [], []>} : vector<16x256xbf16>, vector<256x992xbf16>, vector<16x992xf32> -> vector<16x992xf32>
    %28 = vector.extract_strided_slice %27 {offsets = [0, 0], sizes = [16, 248], strides = [1, 1]} : vector<16x992xf32> to vector<16x248xf32>
    %29 = vector.extract_strided_slice %27 {offsets = [0, 248], sizes = [16, 248], strides = [1, 1]} : vector<16x992xf32> to vector<16x248xf32>
    %30 = arith.maximumf %28, %29 : vector<16x248xf32>
    %31 = vector.extract_strided_slice %27 {offsets = [0, 496], sizes = [16, 248], strides = [1, 1]} : vector<16x992xf32> to vector<16x248xf32>
    %32 = vector.extract_strided_slice %27 {offsets = [0, 744], sizes = [16, 248], strides = [1, 1]} : vector<16x992xf32> to vector<16x248xf32>
    %33 = arith.maximumf %31, %32 : vector<16x248xf32>
    %34 = arith.maximumf %30, %33 : vector<16x248xf32>
    %35 = vector.broadcast %1 : vector<1x248xf32> to vector<16x248xf32>
    %36 = arith.addf %34, %35 : vector<16x248xf32>
    %cst_14 = arith.constant 0.000000e+00 : f32
    %37 = vector.broadcast %cst_14 : f32 to vector<16x248xf32>
    %38 = arith.maximumf %36, %37 : vector<16x248xf32>
    %c0_15 = arith.constant 0 : index
    %c248_16 = arith.constant 248 : index
    %39 = vector.load %arg17[%c0_15, %c248_16] : memref<16x992xf32, #tpu.memory_space<vmem>>, vector<16x248xf32>
    tpu.vector_store %arg17[%c0_15, %c248_16], %38 {strides = array<i32>} : memref<16x992xf32, #tpu.memory_space<vmem>>, vector<16x248xf32>,
    %c0_17 = arith.constant 0 : index
    %c496 = arith.constant 496 : index
    %40 = vector.load %arg1[%c0_17, %c496] : memref<16x3072xf32, #tpu.memory_space<vmem>>, vector<16x256xf32>
    %c0_18 = arith.constant 0 : index
    %c1520 = arith.constant 1520 : index
    %41 = vector.load %arg1[%c0_18, %c1520] : memref<16x3072xf32, #tpu.memory_space<vmem>>, vector<16x256xf32>
    %42 = arith.maximumf %40, %41 : vector<16x256xf32>
    %c0_19 = arith.constant 0 : index
    %c2544 = arith.constant 2544 : index
    %43 = vector.load %arg1[%c0_19, %c2544] : memref<16x3072xf32, #tpu.memory_space<vmem>>, vector<16x256xf32>
    %44 = arith.maximumf %42, %43 : vector<16x256xf32>
    %45 = arith.truncf %44 : vector<16x256xf32> to vector<16x256xbf16>
    %cst_20 = arith.constant dense<0.000000e+00> : vector<16x992xf32>
    %46 = tpu.matmul %45, %0, %cst_20 {dimension_numbers = #tpu.dot_dimension_numbers<[1], [0], [0], [1], [0, 0, 1, 1], [], []>} : vector<16x256xbf16>, vector<256x992xbf16>, vector<16x992xf32> -> vector<16x992xf32>
    %47 = vector.extract_strided_slice %46 {offsets = [0, 0], sizes = [16, 248], strides = [1, 1]} : vector<16x992xf32> to vector<16x248xf32>
    %48 = vector.extract_strided_slice %46 {offsets = [0, 248], sizes = [16, 248], strides = [1, 1]} : vector<16x992xf32> to vector<16x248xf32>
    %49 = arith.maximumf %47, %48 : vector<16x248xf32>
    %50 = vector.extract_strided_slice %46 {offsets = [0, 496], sizes = [16, 248], strides = [1, 1]} : vector<16x992xf32> to vector<16x248xf32>
    %51 = vector.extract_strided_slice %46 {offsets = [0, 744], sizes = [16, 248], strides = [1, 1]} : vector<16x992xf32> to vector<16x248xf32>
    %52 = arith.maximumf %50, %51 : vector<16x248xf32>
    %53 = arith.maximumf %49, %52 : vector<16x248xf32>
    %54 = vector.broadcast %1 : vector<1x248xf32> to vector<16x248xf32>
    %55 = arith.addf %53, %54 : vector<16x248xf32>
    %cst_21 = arith.constant 0.000000e+00 : f32
    %56 = vector.broadcast %cst_21 : f32 to vector<16x248xf32>
    %57 = arith.maximumf %55, %56 : vector<16x248xf32>
    %c0_22 = arith.constant 0 : index
    %c496_23 = arith.constant 496 : index
    %58 = vector.load %arg17[%c0_22, %c496_23] : memref<16x992xf32, #tpu.memory_space<vmem>>, vector<16x248xf32>
    tpu.vector_store %arg17[%c0_22, %c496_23], %57 {strides = array<i32>} : memref<16x992xf32, #tpu.memory_space<vmem>>, vector<16x248xf32>,
    %c0_24 = arith.constant 0 : index
    %c744 = arith.constant 744 : index
    %59 = vector.load %arg1[%c0_24, %c744] : memref<16x3072xf32, #tpu.memory_space<vmem>>, vector<16x256xf32>
    %c0_25 = arith.constant 0 : index
    %c1768 = arith.constant 1768 : index
    %60 = vector.load %arg1[%c0_25, %c1768] : memref<16x3072xf32, #tpu.memory_space<vmem>>, vector<16x256xf32>
    %61 = arith.maximumf %59, %60 : vector<16x256xf32>
    %c0_26 = arith.constant 0 : index
    %c2792 = arith.constant 2792 : index
    %62 = vector.load %arg1[%c0_26, %c2792] : memref<16x3072xf32, #tpu.memory_space<vmem>>, vector<16x256xf32>
    %63 = arith.maximumf %61, %62 : vector<16x256xf32>
    %64 = arith.truncf %63 : vector<16x256xf32> to vector<16x256xbf16>
    %cst_27 = arith.constant dense<0.000000e+00> : vector<16x992xf32>
    %65 = tpu.matmul %64, %0, %cst_27 {dimension_numbers = #tpu.dot_dimension_numbers<[1], [0], [0], [1], [0, 0, 1, 1], [], []>} : vector<16x256xbf16>, vector<256x992xbf16>, vector<16x992xf32> -> vector<16x992xf32>
    %66 = vector.extract_strided_slice %65 {offsets = [0, 0], sizes = [16, 248], strides = [1, 1]} : vector<16x992xf32> to vector<16x248xf32>
    %67 = vector.extract_strided_slice %65 {offsets = [0, 248], sizes = [16, 248], strides = [1, 1]} : vector<16x992xf32> to vector<16x248xf32>
    %68 = arith.maximumf %66, %67 : vector<16x248xf32>
    %69 = vector.extract_strided_slice %65 {offsets = [0, 496], sizes = [16, 248], strides = [1, 1]} : vector<16x992xf32> to vector<16x248xf32>
    %70 = vector.extract_strided_slice %65 {offsets = [0, 744], sizes = [16, 248], strides = [1, 1]} : vector<16x992xf32> to vector<16x248xf32>
    %71 = arith.maximumf %69, %70 : vector<16x248xf32>
    %72 = arith.maximumf %68, %71 : vector<16x248xf32>
    %73 = vector.broadcast %1 : vector<1x248xf32> to vector<16x248xf32>
    %74 = arith.addf %72, %73 : vector<16x248xf32>
    %cst_28 = arith.constant 0.000000e+00 : f32
    %75 = vector.broadcast %cst_28 : f32 to vector<16x248xf32>
    %76 = arith.maximumf %74, %75 : vector<16x248xf32>
    %c0_29 = arith.constant 0 : index
    %c744_30 = arith.constant 744 : index
    %77 = vector.load %arg17[%c0_29, %c744_30] : memref<16x992xf32, #tpu.memory_space<vmem>>, vector<16x248xf32>
    tpu.vector_store %arg17[%c0_29, %c744_30], %76 {strides = array<i32>} : memref<16x992xf32, #tpu.memory_space<vmem>>, vector<16x248xf32>,
    %c0_31 = arith.constant 0 : index
    %c0_32 = arith.constant 0 : index
    %78 = vector.load %arg5[%c0_31, %c0_32] : memref<528x928xbf16, #tpu.memory_space<vmem>>, vector<528x928xbf16>
    %c0_33 = arith.constant 0 : index
    %c0_34 = arith.constant 0 : index
    %79 = vector.load %arg6[%c0_33, %c0_34] : memref<1x928xf32, #tpu.memory_space<vmem>>, vector<1x928xf32>
    %c0_35 = arith.constant 0 : index
    %c0_36 = arith.constant 0 : index
    %80 = vector.load %arg17[%c0_35, %c0_36] : memref<16x992xf32, #tpu.memory_space<vmem>>, vector<16x528xf32>
    %81 = arith.truncf %80 : vector<16x528xf32> to vector<16x528xbf16>
    %cst_37 = arith.constant dense<0.000000e+00> : vector<16x928xf32>
    %82 = tpu.matmul %81, %78, %cst_37 {dimension_numbers = #tpu.dot_dimension_numbers<[1], [0], [0], [1], [0, 0, 1, 1], [], []>} : vector<16x528xbf16>, vector<528x928xbf16>, vector<16x928xf32> -> vector<16x928xf32>
    %83 = vector.broadcast %79 : vector<1x928xf32> to vector<16x928xf32>
    %84 = arith.addf %82, %83 : vector<16x928xf32>
    %cst_38 = arith.constant 0.000000e+00 : f32
    %85 = vector.broadcast %cst_38 : f32 to vector<16x928xf32>
    %86 = arith.maximumf %84, %85 : vector<16x928xf32>
    %c0_39 = arith.constant 0 : index
    %c0_40 = arith.constant 0 : index
    %87 = vector.load %arg18[%c0_39, %c0_40] : memref<16x1856xf32, #tpu.memory_space<vmem>>, vector<16x928xf32>
    tpu.vector_store %arg18[%c0_39, %c0_40], %86 {strides = array<i32>} : memref<16x1856xf32, #tpu.memory_space<vmem>>, vector<16x928xf32>,
    %c0_41 = arith.constant 0 : index
    %c464 = arith.constant 464 : index
    %88 = vector.load %arg17[%c0_41, %c464] : memref<16x992xf32, #tpu.memory_space<vmem>>, vector<16x528xf32>
    %89 = arith.truncf %88 : vector<16x528xf32> to vector<16x528xbf16>
    %cst_42 = arith.constant dense<0.000000e+00> : vector<16x928xf32>
    %90 = tpu.matmul %89, %78, %cst_42 {dimension_numbers = #tpu.dot_dimension_numbers<[1], [0], [0], [1], [0, 0, 1, 1], [], []>} : vector<16x528xbf16>, vector<528x928xbf16>, vector<16x928xf32> -> vector<16x928xf32>
    %91 = vector.broadcast %79 : vector<1x928xf32> to vector<16x928xf32>
    %92 = arith.addf %90, %91 : vector<16x928xf32>
    %cst_43 = arith.constant 0.000000e+00 : f32
    %93 = vector.broadcast %cst_43 : f32 to vector<16x928xf32>
    %94 = arith.maximumf %92, %93 : vector<16x928xf32>
    %c0_44 = arith.constant 0 : index
    %c928 = arith.constant 928 : index
    %95 = vector.load %arg18[%c0_44, %c928] : memref<16x1856xf32, #tpu.memory_space<vmem>>, vector<16x928xf32>
    tpu.vector_store %arg18[%c0_44, %c928], %94 {strides = array<i32>} : memref<16x1856xf32, #tpu.memory_space<vmem>>, vector<16x928xf32>,
    %c0_45 = arith.constant 0 : index
    %c0_46 = arith.constant 0 : index
    %96 = vector.load %arg7[%c0_45, %c0_46] : memref<576x160xbf16, #tpu.memory_space<vmem>>, vector<576x160xbf16>
    %c0_47 = arith.constant 0 : index
    %c0_48 = arith.constant 0 : index
    %97 = vector.load %arg8[%c0_47, %c0_48] : memref<1x160xf32, #tpu.memory_space<vmem>>, vector<1x160xf32>
    %c0_49 = arith.constant 0 : index
    %c0_50 = arith.constant 0 : index
    %98 = vector.load %arg18[%c0_49, %c0_50] : memref<16x1856xf32, #tpu.memory_space<vmem>>, vector<16x576xf32>
    %99 = arith.truncf %98 : vector<16x576xf32> to vector<16x576xbf16>
    %cst_51 = arith.constant dense<0.000000e+00> : vector<16x160xf32>
    %100 = tpu.matmul %99, %96, %cst_51 {dimension_numbers = #tpu.dot_dimension_numbers<[1], [0], [0], [1], [0, 0, 1, 1], [], []>} : vector<16x576xbf16>, vector<576x160xbf16>, vector<16x160xf32> -> vector<16x160xf32>
    %101 = vector.broadcast %97 : vector<1x160xf32> to vector<16x160xf32>
    %102 = arith.addf %100, %101 : vector<16x160xf32>
    %cst_52 = arith.constant 0.000000e+00 : f32
    %103 = vector.broadcast %cst_52 : f32 to vector<16x160xf32>
    %104 = arith.maximumf %102, %103 : vector<16x160xf32>
    %c0_53 = arith.constant 0 : index
    %c0_54 = arith.constant 0 : index
    %105 = vector.load %arg19[%c0_53, %c0_54] : memref<16x800xf32, #tpu.memory_space<vmem>>, vector<16x160xf32>
    tpu.vector_store %arg19[%c0_53, %c0_54], %104 {strides = array<i32>} : memref<16x800xf32, #tpu.memory_space<vmem>>, vector<16x160xf32>,
    %c0_55 = arith.constant 0 : index
    %c320 = arith.constant 320 : index
    %106 = vector.load %arg18[%c0_55, %c320] : memref<16x1856xf32, #tpu.memory_space<vmem>>, vector<16x576xf32>
    %107 = arith.truncf %106 : vector<16x576xf32> to vector<16x576xbf16>
    %cst_56 = arith.constant dense<0.000000e+00> : vector<16x160xf32>
    %108 = tpu.matmul %107, %96, %cst_56 {dimension_numbers = #tpu.dot_dimension_numbers<[1], [0], [0], [1], [0, 0, 1, 1], [], []>} : vector<16x576xbf16>, vector<576x160xbf16>, vector<16x160xf32> -> vector<16x160xf32>
    %109 = vector.broadcast %97 : vector<1x160xf32> to vector<16x160xf32>
    %110 = arith.addf %108, %109 : vector<16x160xf32>
    %cst_57 = arith.constant 0.000000e+00 : f32
    %111 = vector.broadcast %cst_57 : f32 to vector<16x160xf32>
    %112 = arith.maximumf %110, %111 : vector<16x160xf32>
    %c0_58 = arith.constant 0 : index
    %c160 = arith.constant 160 : index
    %113 = vector.load %arg19[%c0_58, %c160] : memref<16x800xf32, #tpu.memory_space<vmem>>, vector<16x160xf32>
    tpu.vector_store %arg19[%c0_58, %c160], %112 {strides = array<i32>} : memref<16x800xf32, #tpu.memory_space<vmem>>, vector<16x160xf32>,
    %c0_59 = arith.constant 0 : index
    %c640 = arith.constant 640 : index
    %114 = vector.load %arg18[%c0_59, %c640] : memref<16x1856xf32, #tpu.memory_space<vmem>>, vector<16x576xf32>
    %115 = arith.truncf %114 : vector<16x576xf32> to vector<16x576xbf16>
    %cst_60 = arith.constant dense<0.000000e+00> : vector<16x160xf32>
    %116 = tpu.matmul %115, %96, %cst_60 {dimension_numbers = #tpu.dot_dimension_numbers<[1], [0], [0], [1], [0, 0, 1, 1], [], []>} : vector<16x576xbf16>, vector<576x160xbf16>, vector<16x160xf32> -> vector<16x160xf32>
    %117 = vector.broadcast %97 : vector<1x160xf32> to vector<16x160xf32>
    %118 = arith.addf %116, %117 : vector<16x160xf32>
    %cst_61 = arith.constant 0.000000e+00 : f32
    %119 = vector.broadcast %cst_61 : f32 to vector<16x160xf32>
    %120 = arith.maximumf %118, %119 : vector<16x160xf32>
    %c0_62 = arith.constant 0 : index
    %c320_63 = arith.constant 320 : index
    %121 = vector.load %arg19[%c0_62, %c320_63] : memref<16x800xf32, #tpu.memory_space<vmem>>, vector<16x160xf32>
    tpu.vector_store %arg19[%c0_62, %c320_63], %120 {strides = array<i32>} : memref<16x800xf32, #tpu.memory_space<vmem>>, vector<16x160xf32>,
    %c0_64 = arith.constant 0 : index
    %c960 = arith.constant 960 : index
    %122 = vector.load %arg18[%c0_64, %c960] : memref<16x1856xf32, #tpu.memory_space<vmem>>, vector<16x576xf32>
    %123 = arith.truncf %122 : vector<16x576xf32> to vector<16x576xbf16>
    %cst_65 = arith.constant dense<0.000000e+00> : vector<16x160xf32>
    %124 = tpu.matmul %123, %96, %cst_65 {dimension_numbers = #tpu.dot_dimension_numbers<[1], [0], [0], [1], [0, 0, 1, 1], [], []>} : vector<16x576xbf16>, vector<576x160xbf16>, vector<16x160xf32> -> vector<16x160xf32>
    %125 = vector.broadcast %97 : vector<1x160xf32> to vector<16x160xf32>
    %126 = arith.addf %124, %125 : vector<16x160xf32>
    %cst_66 = arith.constant 0.000000e+00 : f32
    %127 = vector.broadcast %cst_66 : f32 to vector<16x160xf32>
    %128 = arith.maximumf %126, %127 : vector<16x160xf32>
    %c0_67 = arith.constant 0 : index
    %c480 = arith.constant 480 : index
    %129 = vector.load %arg19[%c0_67, %c480] : memref<16x800xf32, #tpu.memory_space<vmem>>, vector<16x160xf32>
    tpu.vector_store %arg19[%c0_67, %c480], %128 {strides = array<i32>} : memref<16x800xf32, #tpu.memory_space<vmem>>, vector<16x160xf32>,
    %c0_68 = arith.constant 0 : index
    %c1280 = arith.constant 1280 : index
    %130 = vector.load %arg18[%c0_68, %c1280] : memref<16x1856xf32, #tpu.memory_space<vmem>>, vector<16x576xf32>
    %131 = arith.truncf %130 : vector<16x576xf32> to vector<16x576xbf16>
    %cst_69 = arith.constant dense<0.000000e+00> : vector<16x160xf32>
    %132 = tpu.matmul %131, %96, %cst_69 {dimension_numbers = #tpu.dot_dimension_numbers<[1], [0], [0], [1], [0, 0, 1, 1], [], []>} : vector<16x576xbf16>, vector<576x160xbf16>, vector<16x160xf32> -> vector<16x160xf32>
    %133 = vector.broadcast %97 : vector<1x160xf32> to vector<16x160xf32>
    %134 = arith.addf %132, %133 : vector<16x160xf32>
    %cst_70 = arith.constant 0.000000e+00 : f32
    %135 = vector.broadcast %cst_70 : f32 to vector<16x160xf32>
    %136 = arith.maximumf %134, %135 : vector<16x160xf32>
    %c0_71 = arith.constant 0 : index
    %c640_72 = arith.constant 640 : index
    %137 = vector.load %arg19[%c0_71, %c640_72] : memref<16x800xf32, #tpu.memory_space<vmem>>, vector<16x160xf32>
    tpu.vector_store %arg19[%c0_71, %c640_72], %136 {strides = array<i32>} : memref<16x800xf32, #tpu.memory_space<vmem>>, vector<16x160xf32>,
    %c0_73 = arith.constant 0 : index
    %c0_74 = arith.constant 0 : index
    %138 = vector.load %arg19[%c0_73, %c0_74] : memref<16x800xf32, #tpu.memory_space<vmem>>, vector<16x800xf32>
    %139 = arith.truncf %138 : vector<16x800xf32> to vector<16x800xbf16>
    %c0_75 = arith.constant 0 : index
    %c0_76 = arith.constant 0 : index
    %140 = vector.load %arg9[%c0_75, %c0_76] : memref<800x400xbf16, #tpu.memory_space<vmem>>, vector<800x400xbf16>
    %cst_77 = arith.constant dense<0.000000e+00> : vector<16x400xf32>
    %141 = tpu.matmul %139, %140, %cst_77 {dimension_numbers = #tpu.dot_dimension_numbers<[1], [0], [0], [1], [0, 0, 1, 1], [], []>} : vector<16x800xbf16>, vector<800x400xbf16>, vector<16x400xf32> -> vector<16x400xf32>
    %c0_78 = arith.constant 0 : index
    %c0_79 = arith.constant 0 : index
    %142 = vector.load %arg10[%c0_78, %c0_79] : memref<1x400xf32, #tpu.memory_space<vmem>>, vector<1x400xf32>
    %143 = vector.broadcast %142 : vector<1x400xf32> to vector<16x400xf32>
    %144 = arith.addf %141, %143 : vector<16x400xf32>
    %cst_80 = arith.constant 0.000000e+00 : f32
    %145 = vector.broadcast %cst_80 : f32 to vector<16x400xf32>
    %146 = arith.maximumf %144, %145 : vector<16x400xf32>
    %147 = arith.truncf %146 : vector<16x400xf32> to vector<16x400xbf16>
    %c0_81 = arith.constant 0 : index
    %c0_82 = arith.constant 0 : index
    %148 = vector.load %arg11[%c0_81, %c0_82] : memref<400x32xbf16, #tpu.memory_space<vmem>>, vector<400x32xbf16>
    %cst_83 = arith.constant dense<0.000000e+00> : vector<16x32xf32>
    %149 = tpu.matmul %147, %148, %cst_83 {dimension_numbers = #tpu.dot_dimension_numbers<[1], [0], [0], [1], [0, 0, 1, 1], [], []>} : vector<16x400xbf16>, vector<400x32xbf16>, vector<16x32xf32> -> vector<16x32xf32>
    %c0_84 = arith.constant 0 : index
    %c0_85 = arith.constant 0 : index
    %150 = vector.load %arg12[%c0_84, %c0_85] : memref<1x32xf32, #tpu.memory_space<vmem>>, vector<1x32xf32>
    %151 = vector.broadcast %150 : vector<1x32xf32> to vector<16x32xf32>
    %152 = arith.addf %149, %151 : vector<16x32xf32>
    %cst_86 = arith.constant 0.000000e+00 : f32
    %153 = vector.broadcast %cst_86 : f32 to vector<16x32xf32>
    %154 = arith.maximumf %152, %153 : vector<16x32xf32>
    %c0_87 = arith.constant 0 : index
    %c0_88 = arith.constant 0 : index
    %155 = vector.load %arg13[%c0_87, %c0_88] : memref<32x2xf32, #tpu.memory_space<vmem>>, vector<32x2xf32>
    %cst_89 = arith.constant dense<0.000000e+00> : vector<16x2xf32>
    %156 = tpu.matmul %154, %155, %cst_89 {dimension_numbers = #tpu.dot_dimension_numbers<[1], [0], [0], [1], [0, 0, 1, 1], [], []>} : vector<16x32xf32>, vector<32x2xf32>, vector<16x2xf32> -> vector<16x2xf32>
    %c0_90 = arith.constant 0 : index
    %c0_91 = arith.constant 0 : index
    %157 = vector.load %arg2[%c0_90, %c0_91] : memref<16x1xf32, #tpu.memory_space<vmem>>, vector<16x1xf32>
    %c0_92 = arith.constant 0 : index
    %c0_93 = arith.constant 0 : index
    %158 = vector.load %arg14[%c0_92, %c0_93] : memref<1x2xf32, #tpu.memory_space<vmem>>, vector<1x2xf32>
    %159 = vector.broadcast %157 : vector<16x1xf32> to vector<16x2xf32>
    %160 = vector.broadcast %158 : vector<1x2xf32> to vector<16x2xf32>
    %161 = arith.mulf %159, %160 : vector<16x2xf32>
    %162 = arith.addf %156, %161 : vector<16x2xf32>
    %c0_94 = arith.constant 0 : index
    %c0_95 = arith.constant 0 : index
    %163 = vector.load %arg15[%c0_94, %c0_95] : memref<1x2xf32, #tpu.memory_space<vmem>>, vector<1x2xf32>
    %164 = vector.broadcast %163 : vector<1x2xf32> to vector<16x2xf32>
    %165 = arith.addf %162, %164 : vector<16x2xf32>
    %cst_96 = arith.constant 0.000000e+00 : f32
    %166 = vector.broadcast %cst_96 : f32 to vector<16x2xf32>
    %167 = arith.maximumf %165, %166 : vector<16x2xf32>
    %c0_97 = arith.constant 0 : index
    %c0_98 = arith.constant 0 : index
    %168 = vector.load %arg16[%c0_97, %c0_98] : memref<16x2xf32, #tpu.memory_space<vmem>>, vector<16x2xf32>
    tpu.vector_store %arg16[%c0_97, %c0_98], %167 {strides = array<i32>} : memref<16x2xf32, #tpu.memory_space<vmem>>, vector<16x2xf32>,
    return
  }
  func.func @transform_0(%arg0: i32) -> (i32, i32) {
    %c0_i32 = arith.constant 0 : i32
    %c0_i32_0 = arith.constant 0 : i32
    return %arg0, %c0_i32 : i32, i32
  }
  func.func @transform_1(%arg0: i32) -> (i32, i32) {
    %c0_i32 = arith.constant 0 : i32
    %c0_i32_0 = arith.constant 0 : i32
    return %arg0, %c0_i32 : i32, i32
  }
  func.func @transform_2(%arg0: i32) -> (i32, i32) {
    %c0_i32 = arith.constant 0 : i32
    %c0_i32_0 = arith.constant 0 : i32
    %c0_i32_1 = arith.constant 0 : i32
    return %c0_i32, %c0_i32_0 : i32, i32
  }
  func.func @transform_3(%arg0: i32) -> (i32, i32) {
    %c0_i32 = arith.constant 0 : i32
    %c0_i32_0 = arith.constant 0 : i32
    %c0_i32_1 = arith.constant 0 : i32
    return %c0_i32, %c0_i32_0 : i32, i32
  }
  func.func @transform_4(%arg0: i32) -> (i32, i32) {
    %c0_i32 = arith.constant 0 : i32
    %c0_i32_0 = arith.constant 0 : i32
    %c0_i32_1 = arith.constant 0 : i32
    return %c0_i32, %c0_i32_0 : i32, i32
  }
  func.func @transform_5(%arg0: i32) -> (i32, i32) {
    %c0_i32 = arith.constant 0 : i32
    %c0_i32_0 = arith.constant 0 : i32
    %c0_i32_1 = arith.constant 0 : i32
    return %c0_i32, %c0_i32_0 : i32, i32
  }
  func.func @transform_6(%arg0: i32) -> (i32, i32) {
    %c0_i32 = arith.constant 0 : i32
    %c0_i32_0 = arith.constant 0 : i32
    %c0_i32_1 = arith.constant 0 : i32
    return %c0_i32, %c0_i32_0 : i32, i32
  }
  func.func @transform_7(%arg0: i32) -> (i32, i32) {
    %c0_i32 = arith.constant 0 : i32
    %c0_i32_0 = arith.constant 0 : i32
    %c0_i32_1 = arith.constant 0 : i32
    return %c0_i32, %c0_i32_0 : i32, i32
  }
  func.func @transform_8(%arg0: i32) -> (i32, i32) {
    %c0_i32 = arith.constant 0 : i32
    %c0_i32_0 = arith.constant 0 : i32
    %c0_i32_1 = arith.constant 0 : i32
    return %c0_i32, %c0_i32_0 : i32, i32
  }
  func.func @transform_9(%arg0: i32) -> (i32, i32) {
    %c0_i32 = arith.constant 0 : i32
    %c0_i32_0 = arith.constant 0 : i32
    %c0_i32_1 = arith.constant 0 : i32
    return %c0_i32, %c0_i32_0 : i32, i32
  }
  func.func @transform_10(%arg0: i32) -> (i32, i32) {
    %c0_i32 = arith.constant 0 : i32
    %c0_i32_0 = arith.constant 0 : i32
    %c0_i32_1 = arith.constant 0 : i32
    return %c0_i32, %c0_i32_0 : i32, i32
  }
  func.func @transform_11(%arg0: i32) -> (i32, i32) {
    %c0_i32 = arith.constant 0 : i32
    %c0_i32_0 = arith.constant 0 : i32
    %c0_i32_1 = arith.constant 0 : i32
    return %c0_i32, %c0_i32_0 : i32, i32
  }
  func.func @transform_12(%arg0: i32) -> (i32, i32) {
    %c0_i32 = arith.constant 0 : i32
    %c0_i32_0 = arith.constant 0 : i32
    %c0_i32_1 = arith.constant 0 : i32
    return %c0_i32, %c0_i32_0 : i32, i32
  }
  func.func @transform_13(%arg0: i32) -> (i32, i32) {
    %c0_i32 = arith.constant 0 : i32
    %c0_i32_0 = arith.constant 0 : i32
    %c0_i32_1 = arith.constant 0 : i32
    return %c0_i32, %c0_i32_0 : i32, i32
  }
  func.func @transform_14(%arg0: i32) -> (i32, i32) {
    %c0_i32 = arith.constant 0 : i32
    %c0_i32_0 = arith.constant 0 : i32
    %c0_i32_1 = arith.constant 0 : i32
    return %c0_i32, %c0_i32_0 : i32, i32
  }
  func.func @transform_15(%arg0: i32) -> (i32, i32) {
    %c0_i32 = arith.constant 0 : i32
    %c0_i32_0 = arith.constant 0 : i32
    return %arg0, %c0_i32 : i32, i32
  }
}

</mosaic_0001>

<llo_original>
// kernel: forward.1
$region0: #{forward.1}
  #allocation0 [shape = 'u32[]', space=smem, size = 0x4, offset = 0x4, fixed_abs, tag = 'smem constant byte address 0x4 - core index']
  #allocation1 [shape = 'u32[144,128]{1,0:T(1,128)}', space=vmem, size = 0x12000, scoped, tag = 'internal scratch']
  #allocation2 [shape = 'f32[16,992]{1,0:T(8,128)}', space=vmem, size = 0x10000, scoped, tag = 'scratch operand']
  #allocation3 [shape = 'f32[16,1856]{1,0:T(8,128)}', space=vmem, size = 0x1e000, scoped, tag = 'scratch operand']
  #allocation4 [shape = 'f32[16,800]{1,0:T(8,128)}', space=vmem, size = 0xe000, scoped, tag = 'scratch operand']
  %s0 = inlined_call_operand.vmem [shape: f32[16,3072], index: 0, kind: input, shape index: {}]
  %s1 = inlined_call_operand.vmem [shape: f32[16,1], index: 1, kind: input, shape index: {}]
  %s2 = inlined_call_operand.vmem [shape: bf16[256,992], index: 2, kind: input, shape index: {}]
  %s3 = inlined_call_operand.vmem [shape: f32[1,248], index: 3, kind: input, shape index: {}]
  %s4 = inlined_call_operand.vmem [shape: bf16[528,928], index: 4, kind: input, shape index: {}]
  %s5 = inlined_call_operand.vmem [shape: f32[1,928], index: 5, kind: input, shape index: {}]
  %s6 = inlined_call_operand.vmem [shape: bf16[576,160], index: 6, kind: input, shape index: {}]
  %s7 = inlined_call_operand.vmem [shape: f32[1,160], index: 7, kind: input, shape index: {}]
  %s8 = inlined_call_operand.vmem [shape: bf16[800,400], index: 8, kind: input, shape index: {}]
  %s9 = inlined_call_operand.vmem [shape: f32[1,400], index: 9, kind: input, shape index: {}]
  %s10 = inlined_call_operand.vmem [shape: bf16[400,32], index: 10, kind: input, shape index: {}]
  %s11 = inlined_call_operand.vmem [shape: f32[1,32], index: 11, kind: input, shape index: {}]
  %s12 = inlined_call_operand.vmem [shape: f32[32,2], index: 12, kind: input, shape index: {}]
  %s13 = inlined_call_operand.vmem [shape: f32[1,2], index: 13, kind: input, shape index: {}]
  %s14 = inlined_call_operand.vmem [shape: f32[1,2], index: 14, kind: input, shape index: {}]
  %s15 = inlined_call_operand.vmem [shape: f32[16,2], index: 15, kind: output, shape index: {}]
  %s16 = sld [smem:[#allocation0]]
  $region70: #{forward.1} parent=0
    _
  %s18 = ssub.s32 1, %s16
  %s19 = scalar_select 0, %s18, %s16
  // Predicated region
  $region2: #{forward.1} parent=0 // pred_check
    _
  $region3: #{forward.1} parent=0 // pred_check_branch
    %21 = sbr.rel (0) target = $region5
  $region4: #{forward.1} parent=0 // pred_region
    _
  $region5: #{forward.1} parent=0 // pred_fallthru
    _
  // Predicated region
  $region6: #{forward.1} parent=0 // pred_check
    _
  $region7: #{forward.1} parent=0 // pred_check_branch
    %23 = sbr.rel (0) target = $region9
  $region8: #{forward.1} parent=0 // pred_region
    _
  $region9: #{forward.1} parent=0 // pred_fallthru
    _
  // Predicated region
  $region10: #{forward.1} parent=0 // pred_check
    _
  $region11: #{forward.1} parent=0 // pred_check_branch
    %25 = sbr.rel (0) target = $region13
  $region12: #{forward.1} parent=0 // pred_region
    _
  $region13: #{forward.1} parent=0 // pred_fallthru
    _
  // Predicated region
  $region14: #{forward.1} parent=0 // pred_check
    _
  $region15: #{forward.1} parent=0 // pred_check_branch
    %27 = sbr.rel (0) target = $region17
  $region16: #{forward.1} parent=0 // pred_region
    _
  $region17: #{forward.1} parent=0 // pred_fallthru
    _
  // Predicated region
  $region18: #{forward.1} parent=0 // pred_check
    _
  $region19: #{forward.1} parent=0 // pred_check_branch
    %29 = sbr.rel (0) target = $region21
  $region20: #{forward.1} parent=0 // pred_region
    _
  $region21: #{forward.1} parent=0 // pred_fallthru
    _
  // Predicated region
  $region22: #{forward.1} parent=0 // pred_check
    _
  $region23: #{forward.1} parent=0 // pred_check_branch
    %31 = sbr.rel (0) target = $region25
  $region24: #{forward.1} parent=0 // pred_region
    _
  $region25: #{forward.1} parent=0 // pred_fallthru
    _
  // Predicated region
  $region26: #{forward.1} parent=0 // pred_check
    _
  $region27: #{forward.1} parent=0 // pred_check_branch
    %33 = sbr.rel (0) target = $region29
  $region28: #{forward.1} parent=0 // pred_region
    _
  $region29: #{forward.1} parent=0 // pred_fallthru
    _
  // Predicated region
  $region30: #{forward.1} parent=0 // pred_check
    _
  $region31: #{forward.1} parent=0 // pred_check_branch
    %35 = sbr.rel (0) target = $region33
  $region32: #{forward.1} parent=0 // pred_region
    _
  $region33: #{forward.1} parent=0 // pred_fallthru
    _
  // Predicated region
  $region34: #{forward.1} parent=0 // pred_check
    _
  $region35: #{forward.1} parent=0 // pred_check_branch
    %37 = sbr.rel (0) target = $region37
  $region36: #{forward.1} parent=0 // pred_region
    _
  $region37: #{forward.1} parent=0 // pred_fallthru
    _
  // Predicated region
  $region38: #{forward.1} parent=0 // pred_check
    _
  $region39: #{forward.1} parent=0 // pred_check_branch
    %39 = sbr.rel (0) target = $region41
  $region40: #{forward.1} parent=0 // pred_region
    _
  $region41: #{forward.1} parent=0 // pred_fallthru
    _
  // Predicated region
  $region42: #{forward.1} parent=0 // pred_check
    _
  $region43: #{forward.1} parent=0 // pred_check_branch
    %41 = sbr.rel (0) target = $region45
  $region44: #{forward.1} parent=0 // pred_region
    _
  $region45: #{forward.1} parent=0 // pred_fallthru
    _
  // Predicated region
  $region46: #{forward.1} parent=0 // pred_check
    _
  $region47: #{forward.1} parent=0 // pred_check_branch
    %43 = sbr.rel (0) target = $region49
  $region48: #{forward.1} parent=0 // pred_region
    _
  $region49: #{forward.1} parent=0 // pred_fallthru
    _
  // Predicated region
  $region50: #{forward.1} parent=0 // pred_check
    _
  $region51: #{forward.1} parent=0 // pred_check_branch
    %45 = sbr.rel (0) target = $region53
  $region52: #{forward.1} parent=0 // pred_region
    _
  $region53: #{forward.1} parent=0 // pred_fallthru
    _
  // Predicated region
  $region54: #{forward.1} parent=0 // pred_check
    _
  $region55: #{forward.1} parent=0 // pred_check_branch
    %47 = sbr.rel (0) target = $region57
  $region56: #{forward.1} parent=0 // pred_region
    _
  $region57: #{forward.1} parent=0 // pred_fallthru
    _
  // Predicated region
  $region58: #{forward.1} parent=0 // pred_check
    _
  $region59: #{forward.1} parent=0 // pred_check_branch
    %49 = sbr.rel (0) target = $region61
  $region60: #{forward.1} parent=0 // pred_region
    _
  $region61: #{forward.1} parent=0 // pred_fallthru
    _
  %v51 = vld [vmem:[%s2] sm:$0xff]
  %v52 = vld [vmem:[%s2 + $0x8] sm:$0xff]
  %v53 = vld [vmem:[%s2 + $0x10] sm:$0xff]
  %v54 = vld [vmem:[%s2 + $0x18] sm:$0xff]
  %v55 = vld [vmem:[%s2 + $0x20] sm:$0xff]
  %v56 = vld [vmem:[%s2 + $0x28] sm:$0xff]
  %v57 = vld [vmem:[%s2 + $0x30] sm:$0xff]
  %v58 = vld [vmem:[%s2 + $0x38] sm:$0xff]
  %v59 = vld [vmem:[%s2 + $0x40] sm:$0xff]
  %v60 = vld [vmem:[%s2 + $0x48] sm:$0xff]
  %v61 = vld [vmem:[%s2 + $0x50] sm:$0xff]
  %v62 = vld [vmem:[%s2 + $0x58] sm:$0xff]
  %v63 = vld [vmem:[%s2 + $0x60] sm:$0xff]
  %v64 = vld [vmem:[%s2 + $0x68] sm:$0xff]
  %v65 = vld [vmem:[%s2 + $0x70] sm:$0xff]
  %v66 = vld [vmem:[%s2 + $0x78] sm:$0xff]
  %v67 = vld [vmem:[%s2 + $0x80] sm:$0xff]
  %v68 = vld [vmem:[%s2 + $0x88] sm:$0xff]
  %v69 = vld [vmem:[%s2 + $0x90] sm:$0xff]
  %v70 = vld [vmem:[%s2 + $0x98] sm:$0xff]
  %v71 = vld [vmem:[%s2 + $0xa0] sm:$0xff]
  %v72 = vld [vmem:[%s2 + $0xa8] sm:$0xff]
  %v73 = vld [vmem:[%s2 + $0xb0] sm:$0xff]
  %v74 = vld [vmem:[%s2 + $0xb8] sm:$0xff]
  %v75 = vld [vmem:[%s2 + $0xc0] sm:$0xff]
  %v76 = vld [vmem:[%s2 + $0xc8] sm:$0xff]
  %v77 = vld [vmem:[%s2 + $0xd0] sm:$0xff]
  %v78 = vld [vmem:[%s2 + $0xd8] sm:$0xff]
  %v79 = vld [vmem:[%s2 + $0xe0] sm:$0xff]
  %v80 = vld [vmem:[%s2 + $0xe8] sm:$0xff]
  %v81 = vld [vmem:[%s2 + $0xf0] sm:$0xff]
  %v82 = vld [vmem:[%s2 + $0xf8] sm:$0xff]
  %v83 = vld [vmem:[%s2 + $0x100] sm:$0xff]
  %v84 = vld [vmem:[%s2 + $0x108] sm:$0xff]
  %v85 = vld [vmem:[%s2 + $0x110] sm:$0xff]
  %v86 = vld [vmem:[%s2 + $0x118] sm:$0xff]
  %v87 = vld [vmem:[%s2 + $0x120] sm:$0xff]
  %v88 = vld [vmem:[%s2 + $0x128] sm:$0xff]
  %v89 = vld [vmem:[%s2 + $0x130] sm:$0xff]
  %v90 = vld [vmem:[%s2 + $0x138] sm:$0xff]
  %v91 = vld [vmem:[%s2 + $0x140] sm:$0xff]
  %v92 = vld [vmem:[%s2 + $0x148] sm:$0xff]
  %v93 = vld [vmem:[%s2 + $0x150] sm:$0xff]
  %v94 = vld [vmem:[%s2 + $0x158] sm:$0xff]
  %v95 = vld [vmem:[%s2 + $0x160] sm:$0xff]
  %v96 = vld [vmem:[%s2 + $0x168] sm:$0xff]
  %v97 = vld [vmem:[%s2 + $0x170] sm:$0xff]
  %v98 = vld [vmem:[%s2 + $0x178] sm:$0xff]
  %v99 = vld [vmem:[%s2 + $0x180] sm:$0xff]
  %v100 = vld [vmem:[%s2 + $0x188] sm:$0xff]
  %v101 = vld [vmem:[%s2 + $0x190] sm:$0xff]
  %v102 = vld [vmem:[%s2 + $0x198] sm:$0xff]
  %v103 = vld [vmem:[%s2 + $0x1a0] sm:$0xff]
  %v104 = vld [vmem:[%s2 + $0x1a8] sm:$0xff]
  %v105 = vld [vmem:[%s2 + $0x1b0] sm:$0xff]
  %v106 = vld [vmem:[%s2 + $0x1b8] sm:$0xff]
  %v107 = vld [vmem:[%s2 + $0x1c0] sm:$0xff]
  %v108 = vld [vmem:[%s2 + $0x1c8] sm:$0xff]
  %v109 = vld [vmem:[%s2 + $0x1d0] sm:$0xff]
  %v110 = vld [vmem:[%s2 + $0x1d8] sm:$0xff]
  %v111 = vld [vmem:[%s2 + $0x1e0] sm:$0xff]
  %v112 = vld [vmem:[%s2 + $0x1e8] sm:$0xff]
  %v113 = vld [vmem:[%s2 + $0x1f0] sm:$0xff]
  %v114 = vld [vmem:[%s2 + $0x1f8] sm:$0xff]
  %v115 = vld [vmem:[%s2 + $0x200] sm:$0xff]
  %v116 = vld [vmem:[%s2 + $0x208] sm:$0xff]
  %v117 = vld [vmem:[%s2 + $0x210] sm:$0xff]
  %v118 = vld [vmem:[%s2 + $0x218] sm:$0xff]
  %v119 = vld [vmem:[%s2 + $0x220] sm:$0xff]
  %v120 = vld [vmem:[%s2 + $0x228] sm:$0xff]
  %v121 = vld [vmem:[%s2 + $0x230] sm:$0xff]
  %v122 = vld [vmem:[%s2 + $0x238] sm:$0xff]
  %v123 = vld [vmem:[%s2 + $0x240] sm:$0xff]
  %v124 = vld [vmem:[%s2 + $0x248] sm:$0xff]
  %v125 = vld [vmem:[%s2 + $0x250] sm:$0xff]
  %v126 = vld [vmem:[%s2 + $0x258] sm:$0xff]
  %v127 = vld [vmem:[%s2 + $0x260] sm:$0xff]
  %v128 = vld [vmem:[%s2 + $0x268] sm:$0xff]
  %v129 = vld [vmem:[%s2 + $0x270] sm:$0xff]
  %v130 = vld [vmem:[%s2 + $0x278] sm:$0xff]
  %v131 = vld [vmem:[%s2 + $0x280] sm:$0xff]
  %v132 = vld [vmem:[%s2 + $0x288] sm:$0xff]
  %v133 = vld [vmem:[%s2 + $0x290] sm:$0xff]
  %v134 = vld [vmem:[%s2 + $0x298] sm:$0xff]
  %v135 = vld [vmem:[%s2 + $0x2a0] sm:$0xff]
  %v136 = vld [vmem:[%s2 + $0x2a8] sm:$0xff]
  %v137 = vld [vmem:[%s2 + $0x2b0] sm:$0xff]
  %v138 = vld [vmem:[%s2 + $0x2b8] sm:$0xff]
  %v139 = vld [vmem:[%s2 + $0x2c0] sm:$0xff]
  %v140 = vld [vmem:[%s2 + $0x2c8] sm:$0xff]
  %v141 = vld [vmem:[%s2 + $0x2d0] sm:$0xff]
  %v142 = vld [vmem:[%s2 + $0x2d8] sm:$0xff]
  %v143 = vld [vmem:[%s2 + $0x2e0] sm:$0xff]
  %v144 = vld [vmem:[%s2 + $0x2e8] sm:$0xff]
  %v145 = vld [vmem:[%s2 + $0x2f0] sm:$0xff]
  %v146 = vld [vmem:[%s2 + $0x2f8] sm:$0xff]
  %v147 = vld [vmem:[%s2 + $0x300] sm:$0xff]
  %v148 = vld [vmem:[%s2 + $0x308] sm:$0xff]
  %v149 = vld [vmem:[%s2 + $0x310] sm:$0xff]
  %v150 = vld [vmem:[%s2 + $0x318] sm:$0xff]
  %v151 = vld [vmem:[%s2 + $0x320] sm:$0xff]
  %v152 = vld [vmem:[%s2 + $0x328] sm:$0xff]
  %v153 = vld [vmem:[%s2 + $0x330] sm:$0xff]
  %v154 = vld [vmem:[%s2 + $0x338] sm:$0xff]
  %v155 = vld [vmem:[%s2 + $0x340] sm:$0xff]
  %v156 = vld [vmem:[%s2 + $0x348] sm:$0xff]
  %v157 = vld [vmem:[%s2 + $0x350] sm:$0xff]
  %v158 = vld [vmem:[%s2 + $0x358] sm:$0xff]
  %v159 = vld [vmem:[%s2 + $0x360] sm:$0xff]
  %v160 = vld [vmem:[%s2 + $0x368] sm:$0xff]
  %v161 = vld [vmem:[%s2 + $0x370] sm:$0xff]
  %v162 = vld [vmem:[%s2 + $0x378] sm:$0xff]
  %v163 = vld [vmem:[%s2 + $0x380] sm:$0xff]
  %v164 = vld [vmem:[%s2 + $0x388] sm:$0xff]
  %v165 = vld [vmem:[%s2 + $0x390] sm:$0xff]
  %v166 = vld [vmem:[%s2 + $0x398] sm:$0xff]
  %v167 = vld [vmem:[%s2 + $0x3a0] sm:$0xff]
  %v168 = vld [vmem:[%s2 + $0x3a8] sm:$0xff]
  %v169 = vld [vmem:[%s2 + $0x3b0] sm:$0xff]
  %v170 = vld [vmem:[%s2 + $0x3b8] sm:$0xff]
  %v171 = vld [vmem:[%s2 + $0x3c0] sm:$0xff]
  %v172 = vld [vmem:[%s2 + $0x3c8] sm:$0xff]
  %v173 = vld [vmem:[%s2 + $0x3d0] sm:$0xff]
  %v174 = vld [vmem:[%s2 + $0x3d8] sm:$0xff]
  %v175 = vld [vmem:[%s2 + $0x3e0] sm:$0xff]
  %v176 = vld [vmem:[%s2 + $0x3e8] sm:$0xff]
  %v177 = vld [vmem:[%s2 + $0x3f0] sm:$0xff]
  %v178 = vld [vmem:[%s2 + $0x3f8] sm:$0xff]
  %v179 = vld [vmem:[%s3] sm:$0x3]
  %v180 = vld [vmem:[%s0] sm:$0xff]
  %v181 = vld [vmem:[%s0 + $0x8] sm:$0xff]
  %v182 = vld [vmem:[%s0 + $0xc0] sm:$0xff]
  %v183 = vld [vmem:[%s0 + $0xc8] sm:$0xff]
  %v184 = vld [vmem:[%s0 + $0x40] sm:$0xff]
  %v185 = vld [vmem:[%s0 + $0x48] sm:$0xff]
  %v186 = vld [vmem:[%s0 + $0x100] sm:$0xff]
  %v187 = vld [vmem:[%s0 + $0x108] sm:$0xff]
  %v188 = vmax.f32 %v180, %v184
  %v189 = vmax.f32 %v181, %v185
  %v190 = vmax.f32 %v182, %v186
  %v191 = vmax.f32 %v183, %v187
  %v192 = vld [vmem:[%s0 + $0x80] sm:$0xff]
  %v193 = vld [vmem:[%s0 + $0x88] sm:$0xff]
  %v194 = vld [vmem:[%s0 + $0x140] sm:$0xff]
  %v195 = vld [vmem:[%s0 + $0x148] sm:$0xff]
  %v196 = vmax.f32 %v188, %v192
  %v197 = vmax.f32 %v189, %v193
  %v198 = vmax.f32 %v190, %v194
  %v199 = vmax.f32 %v191, %v195
  %v200 = vpack.c.bf16 %v198, %v196
  %v201 = vpack.c.bf16 %v199, %v197
  %v330 = vunpack.c.l.b16 %v51
  %v331 = vunpack.c.h.b16 %v51
  %v332 = vunpack.c.l.b16 %v52
  %v333 = vunpack.c.h.b16 %v52
  %v334 = vunpack.c.l.b16 %v53
  %v335 = vunpack.c.h.b16 %v53
  %v336 = vunpack.c.l.b16 %v54
  %v337 = vunpack.c.h.b16 %v54
  %v338 = vunpack.c.l.b16 %v55
  %v339 = vunpack.c.h.b16 %v55
  %v340 = vunpack.c.l.b16 %v56
  %v341 = vunpack.c.h.b16 %v56
  %v342 = vunpack.c.l.b16 %v57
  %v343 = vunpack.c.h.b16 %v57
  %v344 = vunpack.c.l.b16 %v58
  %v345 = vunpack.c.h.b16 %v58
  %v346 = vunpack.c.l.b16 %v59
  %v347 = vunpack.c.h.b16 %v59
  %v348 = vunpack.c.l.b16 %v60
  %v349 = vunpack.c.h.b16 %v60
  %v350 = vunpack.c.l.b16 %v61
  %v351 = vunpack.c.h.b16 %v61
  %v352 = vunpack.c.l.b16 %v62
  %v353 = vunpack.c.h.b16 %v62
  %v354 = vunpack.c.l.b16 %v63
  %v355 = vunpack.c.h.b16 %v63
  %v356 = vunpack.c.l.b16 %v64
  %v357 = vunpack.c.h.b16 %v64
  %v358 = vunpack.c.l.b16 %v65
  %v359 = vunpack.c.h.b16 %v65
  %v360 = vunpack.c.l.b16 %v66
  %v361 = vunpack.c.h.b16 %v66
  %v362 = vunpack.c.l.b16 %v67
  %v363 = vunpack.c.h.b16 %v67
  %v364 = vunpack.c.l.b16 %v68
  %v365 = vunpack.c.h.b16 %v68
  %v366 = vunpack.c.l.b16 %v69
  %v367 = vunpack.c.h.b16 %v69
  %v368 = vunpack.c.l.b16 %v70
  %v369 = vunpack.c.h.b16 %v70
  %v370 = vunpack.c.l.b16 %v71
  %v371 = vunpack.c.h.b16 %v71
  %v372 = vunpack.c.l.b16 %v72
  %v373 = vunpack.c.h.b16 %v72
  %v374 = vunpack.c.l.b16 %v73
  %v375 = vunpack.c.h.b16 %v73
  %v376 = vunpack.c.l.b16 %v74
  %v377 = vunpack.c.h.b16 %v74
  %v378 = vunpack.c.l.b16 %v75
  %v379 = vunpack.c.h.b16 %v75
  %v380 = vunpack.c.l.b16 %v76
  %v381 = vunpack.c.h.b16 %v76
  %v382 = vunpack.c.l.b16 %v77
  %v383 = vunpack.c.h.b16 %v77
  %v384 = vunpack.c.l.b16 %v78
  %v385 = vunpack.c.h.b16 %v78
  %v386 = vunpack.c.l.b16 %v79
  %v387 = vunpack.c.h.b16 %v79
  %v388 = vunpack.c.l.b16 %v80
  %v389 = vunpack.c.h.b16 %v80
  %v390 = vunpack.c.l.b16 %v81
  %v391 = vunpack.c.h.b16 %v81
  %v392 = vunpack.c.l.b16 %v82
  %v393 = vunpack.c.h.b16 %v82
  %v394 = vunpack.c.l.b16 %v83
  %v395 = vunpack.c.h.b16 %v83
  %v396 = vunpack.c.l.b16 %v84
  %v397 = vunpack.c.h.b16 %v84
  %v398 = vunpack.c.l.b16 %v85
  %v399 = vunpack.c.h.b16 %v85
  %v400 = vunpack.c.l.b16 %v86
  %v401 = vunpack.c.h.b16 %v86
  %v402 = vunpack.c.l.b16 %v87
  %v403 = vunpack.c.h.b16 %v87
  %v404 = vunpack.c.l.b16 %v88
  %v405 = vunpack.c.h.b16 %v88
  %v406 = vunpack.c.l.b16 %v89
  %v407 = vunpack.c.h.b16 %v89
  %v408 = vunpack.c.l.b16 %v90
  %v409 = vunpack.c.h.b16 %v90
  %v410 = vunpack.c.l.b16 %v91
  %v411 = vunpack.c.h.b16 %v91
  %v412 = vunpack.c.l.b16 %v92
  %v413 = vunpack.c.h.b16 %v92
  %v414 = vunpack.c.l.b16 %v93
  %v415 = vunpack.c.h.b16 %v93
  %v416 = vunpack.c.l.b16 %v94
  %v417 = vunpack.c.h.b16 %v94
  %v418 = vunpack.c.l.b16 %v95
  %v419 = vunpack.c.h.b16 %v95
  %v420 = vunpack.c.l.b16 %v96
  %v421 = vunpack.c.h.b16 %v96
  %v422 = vunpack.c.l.b16 %v97
  %v423 = vunpack.c.h.b16 %v97
  %v424 = vunpack.c.l.b16 %v98
  %v425 = vunpack.c.h.b16 %v98
  %v426 = vunpack.c.l.b16 %v99
  %v427 = vunpack.c.h.b16 %v99
  %v428 = vunpack.c.l.b16 %v100
  %v429 = vunpack.c.h.b16 %v100
  %v430 = vunpack.c.l.b16 %v101
  %v431 = vunpack.c.h.b16 %v101
  %v432 = vunpack.c.l.b16 %v102
  %v433 = vunpack.c.h.b16 %v102
  %v434 = vunpack.c.l.b16 %v103
  %v435 = vunpack.c.h.b16 %v103
  %v436 = vunpack.c.l.b16 %v104
  %v437 = vunpack.c.h.b16 %v104
  %v438 = vunpack.c.l.b16 %v105
  %v439 = vunpack.c.h.b16 %v105
  %v440 = vunpack.c.l.b16 %v106
  %v441 = vunpack.c.h.b16 %v106
  %v442 = vunpack.c.l.b16 %v107
  %v443 = vunpack.c.h.b16 %v107
  %v444 = vunpack.c.l.b16 %v108
  %v445 = vunpack.c.h.b16 %v108
  %v446 = vunpack.c.l.b16 %v109
  %v447 = vunpack.c.h.b16 %v109
  %v448 = vunpack.c.l.b16 %v110
  %v449 = vunpack.c.h.b16 %v110
  %v450 = vunpack.c.l.b16 %v111
  %v451 = vunpack.c.h.b16 %v111
  %v452 = vunpack.c.l.b16 %v112
  %v453 = vunpack.c.h.b16 %v112
  %v454 = vunpack.c.l.b16 %v113
  %v455 = vunpack.c.h.b16 %v113
  %v456 = vunpack.c.l.b16 %v114
  %v457 = vunpack.c.h.b16 %v114
  %v458 = vunpack.c.l.b16 %v115
  %v459 = vunpack.c.h.b16 %v115
  %v460 = vunpack.c.l.b16 %v116
  %v461 = vunpack.c.h.b16 %v116
  %v462 = vunpack.c.l.b16 %v117
  %v463 = vunpack.c.h.b16 %v117
  %v464 = vunpack.c.l.b16 %v118
  %v465 = vunpack.c.h.b16 %v118
  %v466 = vunpack.c.l.b16 %v119
  %v467 = vunpack.c.h.b16 %v119
  %v468 = vunpack.c.l.b16 %v120
  %v469 = vunpack.c.h.b16 %v120
  %v470 = vunpack.c.l.b16 %v121
  %v471 = vunpack.c.h.b16 %v121
  %v472 = vunpack.c.l.b16 %v122
  %v473 = vunpack.c.h.b16 %v122
  %v474 = vunpack.c.l.b16 %v123
  %v475 = vunpack.c.h.b16 %v123
  %v476 = vunpack.c.l.b16 %v124
  %v477 = vunpack.c.h.b16 %v124
  %v478 = vunpack.c.l.b16 %v125
  %v479 = vunpack.c.h.b16 %v125
  %v480 = vunpack.c.l.b16 %v126
  %v481 = vunpack.c.h.b16 %v126
  %v482 = vunpack.c.l.b16 %v127
  %v483 = vunpack.c.h.b16 %v127
  %v484 = vunpack.c.l.b16 %v128
  %v485 = vunpack.c.h.b16 %v128
  %v486 = vunpack.c.l.b16 %v129
  %v487 = vunpack.c.h.b16 %v129
  %v488 = vunpack.c.l.b16 %v130
  %v489 = vunpack.c.h.b16 %v130
  %v490 = vunpack.c.l.b16 %v131
  %v491 = vunpack.c.h.b16 %v131
  %v492 = vunpack.c.l.b16 %v132
  %v493 = vunpack.c.h.b16 %v132
  %v494 = vunpack.c.l.b16 %v133
  %v495 = vunpack.c.h.b16 %v133
  %v496 = vunpack.c.l.b16 %v134
  %v497 = vunpack.c.h.b16 %v134
  %v498 = vunpack.c.l.b16 %v135
  %v499 = vunpack.c.h.b16 %v135
  %v500 = vunpack.c.l.b16 %v136
  %v501 = vunpack.c.h.b16 %v136
  %v502 = vunpack.c.l.b16 %v137
  %v503 = vunpack.c.h.b16 %v137
  %v504 = vunpack.c.l.b16 %v138
  %v505 = vunpack.c.h.b16 %v138
  %v506 = vunpack.c.l.b16 %v139
  %v507 = vunpack.c.h.b16 %v139
  %v508 = vunpack.c.l.b16 %v140
  %v509 = vunpack.c.h.b16 %v140
  %v510 = vunpack.c.l.b16 %v141
  %v511 = vunpack.c.h.b16 %v141
  %v512 = vunpack.c.l.b16 %v142
  %v513 = vunpack.c.h.b16 %v142
  %v514 = vunpack.c.l.b16 %v143
  %v515 = vunpack.c.h.b16 %v143
  %v516 = vunpack.c.l.b16 %v144
  %v517 = vunpack.c.h.b16 %v144
  %v518 = vunpack.c.l.b16 %v145
  %v519 = vunpack.c.h.b16 %v145
  %v520 = vunpack.c.l.b16 %v146
  %v521 = vunpack.c.h.b16 %v146
  %v522 = vunpack.c.l.b16 %v147
  %v523 = vunpack.c.h.b16 %v147
  %v524 = vunpack.c.l.b16 %v148
  %v525 = vunpack.c.h.b16 %v148
  %v526 = vunpack.c.l.b16 %v149
  %v527 = vunpack.c.h.b16 %v149
  %v528 = vunpack.c.l.b16 %v150
  %v529 = vunpack.c.h.b16 %v150
  %v530 = vunpack.c.l.b16 %v151
  %v531 = vunpack.c.h.b16 %v151
  %v532 = vunpack.c.l.b16 %v152
  %v533 = vunpack.c.h.b16 %v152
  %v534 = vunpack.c.l.b16 %v153
  %v535 = vunpack.c.h.b16 %v153
  %v536 = vunpack.c.l.b16 %v154
  %v537 = vunpack.c.h.b16 %v154
  %v538 = vunpack.c.l.b16 %v155
  %v539 = vunpack.c.h.b16 %v155
  %v540 = vunpack.c.l.b16 %v156
  %v541 = vunpack.c.h.b16 %v156
  %v542 = vunpack.c.l.b16 %v157
  %v543 = vunpack.c.h.b16 %v157
  %v544 = vunpack.c.l.b16 %v158
  %v545 = vunpack.c.h.b16 %v158
  %v546 = vunpack.c.l.b16 %v159
  %v547 = vunpack.c.h.b16 %v159
  %v548 = vunpack.c.l.b16 %v160
  %v549 = vunpack.c.h.b16 %v160
  %v550 = vunpack.c.l.b16 %v161
  %v551 = vunpack.c.h.b16 %v161
  %v552 = vunpack.c.l.b16 %v162
  %v553 = vunpack.c.h.b16 %v162
  %v554 = vunpack.c.l.b16 %v163
  %v555 = vunpack.c.h.b16 %v163
  %v556 = vunpack.c.l.b16 %v164
  %v557 = vunpack.c.h.b16 %v164
  %v558 = vunpack.c.l.b16 %v165
  %v559 = vunpack.c.h.b16 %v165
  %v560 = vunpack.c.l.b16 %v166
  %v561 = vunpack.c.h.b16 %v166
  %v562 = vunpack.c.l.b16 %v167
  %v563 = vunpack.c.h.b16 %v167
  %v564 = vunpack.c.l.b16 %v168
  %v565 = vunpack.c.h.b16 %v168
  %v566 = vunpack.c.l.b16 %v169
  %v567 = vunpack.c.h.b16 %v169
  %v568 = vunpack.c.l.b16 %v170
  %v569 = vunpack.c.h.b16 %v170
  %v570 = vunpack.c.l.b16 %v171
  %v571 = vunpack.c.h.b16 %v171
  %v572 = vunpack.c.l.b16 %v172
  %v573 = vunpack.c.h.b16 %v172
  %v574 = vunpack.c.l.b16 %v173
  %v575 = vunpack.c.h.b16 %v173
  %v576 = vunpack.c.l.b16 %v174
  %v577 = vunpack.c.h.b16 %v174
  %v578 = vunpack.c.l.b16 %v175
  %v579 = vunpack.c.h.b16 %v175
  %v580 = vunpack.c.l.b16 %v176
  %v581 = vunpack.c.h.b16 %v176
  %v582 = vunpack.c.l.b16 %v177
  %v583 = vunpack.c.h.b16 %v177
  %v584 = vunpack.c.l.b16 %v178
  %v585 = vunpack.c.h.b16 %v178
  %v586 = vpack.c.b16 %v338, %v330
  %v587 = vpack.c.b16 %v339, %v331
  %v588 = vpack.c.b16 %v340, %v332
  %v589 = vpack.c.b16 %v341, %v333
  %v590 = vpack.c.b16 %v342, %v334
  %v591 = vpack.c.b16 %v343, %v335
  %v592 = vpack.c.b16 %v344, %v336
  %v593 = vpack.c.b16 %v345, %v337
  %v594 = vpack.c.b16 %v354, %v346
  %v595 = vpack.c.b16 %v355, %v347
  %v596 = vpack.c.b16 %v356, %v348
  %v597 = vpack.c.b16 %v357, %v349
  %v598 = vpack.c.b16 %v358, %v350
  %v599 = vpack.c.b16 %v359, %v351
  %v600 = vpack.c.b16 %v360, %v352
  %v601 = vpack.c.b16 %v361, %v353
  %v602 = vpack.c.b16 %v370, %v362
  %v603 = vpack.c.b16 %v371, %v363
  %v604 = vpack.c.b16 %v372, %v364
  %v605 = vpack.c.b16 %v373, %v365
  %v606 = vpack.c.b16 %v374, %v366
  %v607 = vpack.c.b16 %v375, %v367
  %v608 = vpack.c.b16 %v376, %v368
  %v609 = vpack.c.b16 %v377, %v369
  %v610 = vpack.c.b16 %v386, %v378
  %v611 = vpack.c.b16 %v387, %v379
  %v612 = vpack.c.b16 %v388, %v380
  %v613 = vpack.c.b16 %v389, %v381
  %v614 = vpack.c.b16 %v390, %v382
  %v615 = vpack.c.b16 %v391, %v383
  %v616 = vpack.c.b16 %v392, %v384
  %v617 = vpack.c.b16 %v393, %v385
  %v618 = vpack.c.b16 %v402, %v394
  %v619 = vpack.c.b16 %v403, %v395
  %v620 = vpack.c.b16 %v404, %v396
  %v621 = vpack.c.b16 %v405, %v397
  %v622 = vpack.c.b16 %v406, %v398
  %v623 = vpack.c.b16 %v407, %v399
  %v624 = vpack.c.b16 %v408, %v400
  %v625 = vpack.c.b16 %v409, %v401
  %v626 = vpack.c.b16 %v418, %v410
  %v627 = vpack.c.b16 %v419, %v411
  %v628 = vpack.c.b16 %v420, %v412
  %v629 = vpack.c.b16 %v421, %v413
  %v630 = vpack.c.b16 %v422, %v414
  %v631 = vpack.c.b16 %v423, %v415
  %v632 = vpack.c.b16 %v424, %v416
  %v633 = vpack.c.b16 %v425, %v417
  %v634 = vpack.c.b16 %v434, %v426
  %v635 = vpack.c.b16 %v435, %v427
  %v636 = vpack.c.b16 %v436, %v428
  %v637 = vpack.c.b16 %v437, %v429
  %v638 = vpack.c.b16 %v438, %v430
  %v639 = vpack.c.b16 %v439, %v431
  %v640 = vpack.c.b16 %v440, %v432
  %v641 = vpack.c.b16 %v441, %v433
  %v642 = vpack.c.b16 %v450, %v442
  %v643 = vpack.c.b16 %v451, %v443
  %v644 = vpack.c.b16 %v452, %v444
  %v645 = vpack.c.b16 %v453, %v445
  %v646 = vpack.c.b16 %v454, %v446
  %v647 = vpack.c.b16 %v455, %v447
  %v648 = vpack.c.b16 %v456, %v448
  %v649 = vpack.c.b16 %v457, %v449
  %v650 = vpack.c.b16 %v466, %v458
  %v651 = vpack.c.b16 %v467, %v459
  %v652 = vpack.c.b16 %v468, %v460
  %v653 = vpack.c.b16 %v469, %v461
  %v654 = vpack.c.b16 %v470, %v462
  %v655 = vpack.c.b16 %v471, %v463
  %v656 = vpack.c.b16 %v472, %v464
  %v657 = vpack.c.b16 %v473, %v465
  %v658 = vpack.c.b16 %v482, %v474
  %v659 = vpack.c.b16 %v483, %v475
  %v660 = vpack.c.b16 %v484, %v476
  %v661 = vpack.c.b16 %v485, %v477
  %v662 = vpack.c.b16 %v486, %v478
  %v663 = vpack.c.b16 %v487, %v479
  %v664 = vpack.c.b16 %v488, %v480
  %v665 = vpack.c.b16 %v489, %v481
  %v666 = vpack.c.b16 %v498, %v490
  %v667 = vpack.c.b16 %v499, %v491
  %v668 = vpack.c.b16 %v500, %v492
  %v669 = vpack.c.b16 %v501, %v493
  %v670 = vpack.c.b16 %v502, %v494
  %v671 = vpack.c.b16 %v503, %v495
  %v672 = vpack.c.b16 %v504, %v496
  %v673 = vpack.c.b16 %v505, %v497
  %v674 = vpack.c.b16 %v514, %v506
  %v675 = vpack.c.b16 %v515, %v507
  %v676 = vpack.c.b16 %v516, %v508
  %v677 = vpack.c.b16 %v517, %v509
  %v678 = vpack.c.b16 %v518, %v510
  %v679 = vpack.c.b16 %v519, %v511
  %v680 = vpack.c.b16 %v520, %v512
  %v681 = vpack.c.b16 %v521, %v513
  %v682 = vpack.c.b16 %v530, %v522
  %v683 = vpack.c.b16 %v531, %v523
  %v684 = vpack.c.b16 %v532, %v524
  %v685 = vpack.c.b16 %v533, %v525
  %v686 = vpack.c.b16 %v534, %v526
  %v687 = vpack.c.b16 %v535, %v527
  %v688 = vpack.c.b16 %v536, %v528
  %v689 = vpack.c.b16 %v537, %v529
  %v690 = vpack.c.b16 %v546, %v538
  %v691 = vpack.c.b16 %v547, %v539
  %v692 = vpack.c.b16 %v548, %v540
  %v693 = vpack.c.b16 %v549, %v541
  %v694 = vpack.c.b16 %v550, %v542
  %v695 = vpack.c.b16 %v551, %v543
  %v696 = vpack.c.b16 %v552, %v544
  %v697 = vpack.c.b16 %v553, %v545
  %v698 = vpack.c.b16 %v562, %v554
  %v699 = vpack.c.b16 %v563, %v555
  %v700 = vpack.c.b16 %v564, %v556
  %v701 = vpack.c.b16 %v565, %v557
  %v702 = vpack.c.b16 %v566, %v558
  %v703 = vpack.c.b16 %v567, %v559
  %v704 = vpack.c.b16 %v568, %v560
  %v705 = vpack.c.b16 %v569, %v561
  %v706 = vpack.c.b16 %v578, %v570
  %v707 = vpack.c.b16 %v579, %v571
  %v708 = vpack.c.b16 %v580, %v572
  %v709 = vpack.c.b16 %v581, %v573
  %v710 = vpack.c.b16 %v582, %v574
  %v711 = vpack.c.b16 %v583, %v575
  %v712 = vpack.c.b16 %v584, %v576
  %v713 = vpack.c.b16 %v585, %v577
  %842 = vmatprep.subr.bf16.mxu0 %v587
  %843 = vmatpush1.bf16.msra.mxu0 %v586
  %844 = vmatprep.subr.bf16.mxu0 %v595
  %845 = vmatpush1.bf16.msra.mxu0 %v594
  %846 = vmatprep.subr.bf16.mxu0 %v603
  %847 = vmatpush1.bf16.msra.mxu0 %v602
  %848 = vmatprep.subr.bf16.mxu0 %v611
  %849 = vmatpush1.bf16.msra.mxu0 %v610
  %850 = vmatprep.subr.bf16.mxu0 %v619
  %851 = vmatpush1.bf16.msra.mxu0 %v618
  %852 = vmatprep.subr.bf16.mxu0 %v627
  %853 = vmatpush1.bf16.msra.mxu0 %v626
  %854 = vmatprep.subr.bf16.mxu0 %v635
  %855 = vmatpush1.bf16.msra.mxu0 %v634
  %856 = vmatprep.subr.bf16.mxu0 %v643
  %857 = vmatpush1.bf16.msra.mxu0 %v642
  %858 = vmatprep.subr.bf16.mxu0 %v651
  %859 = vmatpush1.bf16.msra.mxu0 %v650
  %860 = vmatprep.subr.bf16.mxu0 %v659
  %861 = vmatpush1.bf16.msra.mxu0 %v658
  %862 = vmatprep.subr.bf16.mxu0 %v667
  %863 = vmatpush1.bf16.msra.mxu0 %v666
  %864 = vmatprep.subr.bf16.mxu0 %v675
  %865 = vmatpush1.bf16.msra.mxu0 %v674
  %866 = vmatprep.subr.bf16.mxu0 %v683
  %867 = vmatpush1.bf16.msra.mxu0 %v682
  %868 = vmatprep.subr.bf16.mxu0 %v691
  %869 = vmatpush1.bf16.msra.mxu0 %v690
  %870 = vmatprep.subr.bf16.mxu0 %v699
  %871 = vmatpush1.bf16.msra.mxu0 %v698
  %872 = vmatprep.subr.bf16.mxu0 %v707
  %873 = vmatpush1.bf16.msra.mxu0 %v706
  %874 = vmatprep.mubr.bf16.mxu0 %v201
  %875 = vmatmul.mubr.bf16.gmra.mrb[0].mxu0 %v200
  %v876 = vpop.f32.mrb[0].mxu0
  %v877 = vadd.f32 0.0, %v876
  %v878 = vpop.f32.mrb[0].mxu0
  %v879 = vadd.f32 0.0, %v878
  %v880 = vpop.f32.mrb[0].mxu0
  %v881 = vadd.f32 0.0, %v880
  %v882 = vpop.f32.mrb[0].mxu0
  %v883 = vadd.f32 0.0, %v882
  %884 = vdwg.mxu0
  %885 = vmatprep.subr.bf16.mxu0 %v589
  %886 = vmatpush1.bf16.msra.mxu0 %v588
  %887 = vmatprep.subr.bf16.mxu0 %v597
  %888 = vmatpush1.bf16.msra.mxu0 %v596
  %889 = vmatprep.subr.bf16.mxu0 %v605
  %890 = vmatpush1.bf16.msra.mxu0 %v604
  %891 = vmatprep.subr.bf16.mxu0 %v613
  %892 = vmatpush1.bf16.msra.mxu0 %v612
  %893 = vmatprep.subr.bf16.mxu0 %v621
  %894 = vmatpush1.bf16.msra.mxu0 %v620
  %895 = vmatprep.subr.bf16.mxu0 %v629
  %896 = vmatpush1.bf16.msra.mxu0 %v628
  %897 = vmatprep.subr.bf16.mxu0 %v637
  %898 = vmatpush1.bf16.msra.mxu0 %v636
  %899 = vmatprep.subr.bf16.mxu0 %v645
  %900 = vmatpush1.bf16.msra.mxu0 %v644
  %901 = vmatprep.subr.bf16.mxu0 %v653
  %902 = vmatpush1.bf16.msra.mxu0 %v652
  %903 = vmatprep.subr.bf16.mxu0 %v661
  %904 = vmatpush1.bf16.msra.mxu0 %v660
  %905 = vmatprep.subr.bf16.mxu0 %v669
  %906 = vmatpush1.bf16.msra.mxu0 %v668
  %907 = vmatprep.subr.bf16.mxu0 %v677
  %908 = vmatpush1.bf16.msra.mxu0 %v676
  %909 = vmatprep.subr.bf16.mxu0 %v685
  %910 = vmatpush1.bf16.msra.mxu0 %v684
  %911 = vmatprep.subr.bf16.mxu0 %v693
  %912 = vmatpush1.bf16.msra.mxu0 %v692
  %913 = vmatprep.subr.bf16.mxu0 %v701
  %914 = vmatpush1.bf16.msra.mxu0 %v700
  %915 = vmatprep.subr.bf16.mxu0 %v709
  %916 = vmatpush1.bf16.msra.mxu0 %v708
  %917 = vmatprep.mubr.bf16.mxu0 %v201
  %918 = vmatmul.mubr.bf16.gmra.mrb[0].mxu0 %v200
  %v919 = vpop.f32.mrb[0].mxu0
  %v920 = vadd.f32 0.0, %v919
  %v921 = vpop.f32.mrb[0].mxu0
  %v922 = vadd.f32 0.0, %v921
  %v923 = vpop.f32.mrb[0].mxu0
  %v924 = vadd.f32 0.0, %v923
  %v925 = vpop.f32.mrb[0].mxu0
  %v926 = vadd.f32 0.0, %v925
  %927 = vdwg.mxu0
  %928 = vmatprep.subr.bf16.mxu0 %v591
  %929 = vmatpush1.bf16.msra.mxu0 %v590
  %930 = vmatprep.subr.bf16.mxu0 %v599
  %931 = vmatpush1.bf16.msra.mxu0 %v598
  %932 = vmatprep.subr.bf16.mxu0 %v607
  %933 = vmatpush1.bf16.msra.mxu0 %v606
  %934 = vmatprep.subr.bf16.mxu0 %v615
  %935 = vmatpush1.bf16.msra.mxu0 %v614
  %936 = vmatprep.subr.bf16.mxu0 %v623
  %937 = vmatpush1.bf16.msra.mxu0 %v622
  %938 = vmatprep.subr.bf16.mxu0 %v631
  %939 = vmatpush1.bf16.msra.mxu0 %v630
  %940 = vmatprep.subr.bf16.mxu0 %v639
  %941 = vmatpush1.bf16.msra.mxu0 %v638
  %942 = vmatprep.subr.bf16.mxu0 %v647
  %943 = vmatpush1.bf16.msra.mxu0 %v646
  %944 = vmatprep.subr.bf16.mxu0 %v655
  %945 = vmatpush1.bf16.msra.mxu0 %v654
  %946 = vmatprep.subr.bf16.mxu0 %v663
  %947 = vmatpush1.bf16.msra.mxu0 %v662
  %948 = vmatprep.subr.bf16.mxu0 %v671
  %949 = vmatpush1.bf16.msra.mxu0 %v670
  %950 = vmatprep.subr.bf16.mxu0 %v679
  %951 = vmatpush1.bf16.msra.mxu0 %v678
  %952 = vmatprep.subr.bf16.mxu0 %v687
  %953 = vmatpush1.bf16.msra.mxu0 %v686
  %954 = vmatprep.subr.bf16.mxu0 %v695
  %955 = vmatpush1.bf16.msra.mxu0 %v694
  %956 = vmatprep.subr.bf16.mxu0 %v703
  %957 = vmatpush1.bf16.msra.mxu0 %v702
  %958 = vmatprep.subr.bf16.mxu0 %v711
  %959 = vmatpush1.bf16.msra.mxu0 %v710
  %960 = vmatprep.mubr.bf16.mxu0 %v201
  %961 = vmatmul.mubr.bf16.gmra.mrb[0].mxu0 %v200
  %v962 = vpop.f32.mrb[0].mxu0
  %v963 = vadd.f32 0.0, %v962
  %v964 = vpop.f32.mrb[0].mxu0
  %v965 = vadd.f32 0.0, %v964
  %v966 = vpop.f32.mrb[0].mxu0
  %v967 = vadd.f32 0.0, %v966
  %v968 = vpop.f32.mrb[0].mxu0
  %v969 = vadd.f32 0.0, %v968
  %970 = vdwg.mxu0
  %971 = vmatprep.subr.bf16.mxu0 %v593
  %972 = vmatpush1.bf16.msra.mxu0 %v592
  %973 = vmatprep.subr.bf16.mxu0 %v601
  %974 = vmatpush1.bf16.msra.mxu0 %v600
  %975 = vmatprep.subr.bf16.mxu0 %v609
  %976 = vmatpush1.bf16.msra.mxu0 %v608
  %977 = vmatprep.subr.bf16.mxu0 %v617
  %978 = vmatpush1.bf16.msra.mxu0 %v616
  %979 = vmatprep.subr.bf16.mxu0 %v625
  %980 = vmatpush1.bf16.msra.mxu0 %v624
  %981 = vmatprep.subr.bf16.mxu0 %v633
  %982 = vmatpush1.bf16.msra.mxu0 %v632
  %983 = vmatprep.subr.bf16.mxu0 %v641
  %984 = vmatpush1.bf16.msra.mxu0 %v640
  %985 = vmatprep.subr.bf16.mxu0 %v649
  %986 = vmatpush1.bf16.msra.mxu0 %v648
  %987 = vmatprep.subr.bf16.mxu0 %v657
  %988 = vmatpush1.bf16.msra.mxu0 %v656
  %989 = vmatprep.subr.bf16.mxu0 %v665
  %990 = vmatpush1.bf16.msra.mxu0 %v664
  %991 = vmatprep.subr.bf16.mxu0 %v673
  %992 = vmatpush1.bf16.msra.mxu0 %v672
  %993 = vmatprep.subr.bf16.mxu0 %v681
  %994 = vmatpush1.bf16.msra.mxu0 %v680
  %995 = vmatprep.subr.bf16.mxu0 %v689
  %996 = vmatpush1.bf16.msra.mxu0 %v688
  %997 = vmatprep.subr.bf16.mxu0 %v697
  %998 = vmatpush1.bf16.msra.mxu0 %v696
  %999 = vmatprep.subr.bf16.mxu0 %v705
  %1000 = vmatpush1.bf16.msra.mxu0 %v704
  %1001 = vmatprep.subr.bf16.mxu0 %v713
  %1002 = vmatpush1.bf16.msra.mxu0 %v712
  %1003 = vmatprep.mubr.bf16.mxu0 %v201
  %1004 = vmatmul.mubr.bf16.gmra.mrb[0].mxu0 %v200
  %v1005 = vpop.f32.mrb[0].mxu0
  %v1006 = vadd.f32 0.0, %v1005
  %v1007 = vpop.f32.mrb[0].mxu0
  %v1008 = vadd.f32 0.0, %v1007
  %v1009 = vpop.f32.mrb[0].mxu0
  %v1010 = vadd.f32 0.0, %v1009
  %v1011 = vpop.f32.mrb[0].mxu0
  %v1012 = vadd.f32 0.0, %v1011
  %1013 = vdwg.mxu0
  %1020 = vrot.lane.b32.xlu0 %v879, 8
  %v1021 = vpop.permute.xlu0 %1020
  %1022 = vrot.lane.b32.xlu0 %v920, 8
  %v1023 = vpop.permute.xlu0 %1022
  %1024 = vrot.lane.b32.xlu0 %v922, 8
  %v1025 = vpop.permute.xlu0 %1024
  %1026 = vrot.lane.b32.xlu0 %v883, 8
  %v1027 = vpop.permute.xlu0 %1026
  %1028 = vrot.lane.b32.xlu0 %v924, 8
  %v1029 = vpop.permute.xlu0 %1028
  %1030 = vrot.lane.b32.xlu0 %v926, 8
  %v1031 = vpop.permute.xlu0 %1030
  %vm1032 = vcmask 64512
  %v1033 = vsel %vm1032, %v1021, %v1023
  %v1034 = vsel %vm1032, %v1023, %v1025
  %v1035 = vsel %vm1032, %v1027, %v1029
  %v1036 = vsel %vm1032, %v1029, %v1031
  %v1041 = vmax.f32 %v877, %v1033
  %v1042 = vmax.f32 %v879, %v1034
  %v1043 = vmax.f32 %v881, %v1035
  %v1044 = vmax.f32 %v883, %v1036
  %1051 = vrot.lane.b32.xlu0 %v965, 8
  %v1052 = vpop.permute.xlu0 %1051
  %1053 = vrot.lane.b32.xlu0 %v1006, 8
  %v1054 = vpop.permute.xlu0 %1053
  %1055 = vrot.lane.b32.xlu0 %v1008, 8
  %v1056 = vpop.permute.xlu0 %1055
  %1057 = vrot.lane.b32.xlu0 %v969, 8
  %v1058 = vpop.permute.xlu0 %1057
  %1059 = vrot.lane.b32.xlu0 %v1010, 8
  %v1060 = vpop.permute.xlu0 %1059
  %1061 = vrot.lane.b32.xlu0 %v1012, 8
  %v1062 = vpop.permute.xlu0 %1061
  %v1063 = vsel %vm1032, %v1052, %v1054
  %v1064 = vsel %vm1032, %v1054, %v1056
  %v1065 = vsel %vm1032, %v1058, %v1060
  %v1066 = vsel %vm1032, %v1060, %v1062
  %v1073 = vmax.f32 %v922, %v1052
  %v1074 = vmax.f32 %v963, %v1063
  %v1075 = vmax.f32 %v965, %v1064
  %v1076 = vmax.f32 %v926, %v1058
  %v1077 = vmax.f32 %v967, %v1065
  %v1078 = vmax.f32 %v969, %v1066
  %1085 = vrot.lane.b32.xlu0 %v1073, 16
  %v1086 = vpop.permute.xlu0 %1085
  %1087 = vrot.lane.b32.xlu0 %v1074, 16
  %v1088 = vpop.permute.xlu0 %1087
  %1089 = vrot.lane.b32.xlu0 %v1075, 16
  %v1090 = vpop.permute.xlu0 %1089
  %1091 = vrot.lane.b32.xlu0 %v1076, 16
  %v1092 = vpop.permute.xlu0 %1091
  %1093 = vrot.lane.b32.xlu0 %v1077, 16
  %v1094 = vpop.permute.xlu0 %1093
  %1095 = vrot.lane.b32.xlu0 %v1078, 16
  %v1096 = vpop.permute.xlu0 %1095
  %vm1097 = vcmask 130048
  %v1098 = vsel %vm1097, %v1086, %v1088
  %v1099 = vsel %vm1097, %v1088, %v1090
  %v1100 = vsel %vm1097, %v1092, %v1094
  %v1101 = vsel %vm1097, %v1094, %v1096
  %v1106 = vmax.f32 %v1041, %v1098
  %v1107 = vmax.f32 %v1042, %v1099
  %v1108 = vmax.f32 %v1043, %v1100
  %v1109 = vmax.f32 %v1044, %v1101
  %v1111 = vlaneseq
  %v1112 = vshrl.u32 %v1111, 7
  %v1113 = vsub.s32 0, %v1112
  %v1114 = vrot.slane %v179, %v1113
  %v1115 = vlaneseq
  %v1116 = vshrl.u32 %v1115, 7
  %v1117 = vsub.s32 1, %v1116
  %v1118 = vrot.slane %v179, %v1117
  %v1121 = vadd.f32 %v1106, %v1114
  %v1122 = vadd.f32 %v1107, %v1118
  %v1123 = vadd.f32 %v1108, %v1114
  %v1124 = vadd.f32 %v1109, %v1118
  %v1125 = vmax.f32 %v1121, 0.0
  %v1126 = vmax.f32 %v1122, 0.0
  %v1127 = vmax.f32 %v1123, 0.0
  %v1128 = vmax.f32 %v1124, 0.0
  %1129 = vst [vmem:[#allocation2] sm:$0xff] %v1125
  %vm1130 = vcmask 982016
  %1131 = vst.msk [vmem:[#allocation2 + $0x8] sm:$0xff] %vm1130, %v1126
  %1132 = vst [vmem:[#allocation2 + $0x40] sm:$0xff] %v1127
  %1133 = vst.msk [vmem:[#allocation2 + $0x48] sm:$0xff] %vm1130, %v1128
  %v1134 = vld [vmem:[%s0 + $0x8] sm:$0xff]
  %v1135 = vld [vmem:[%s0 + $0x10] sm:$0xff]
  %v1136 = vld [vmem:[%s0 + $0x18] sm:$0xff]
  %v1137 = vld [vmem:[%s0 + $0xc8] sm:$0xff]
  %v1138 = vld [vmem:[%s0 + $0xd0] sm:$0xff]
  %v1139 = vld [vmem:[%s0 + $0xd8] sm:$0xff]
  %v1140 = vld [vmem:[%s0 + $0x48] sm:$0xff]
  %v1141 = vld [vmem:[%s0 + $0x50] sm:$0xff]
  %v1142 = vld [vmem:[%s0 + $0x58] sm:$0xff]
  %v1143 = vld [vmem:[%s0 + $0x108] sm:$0xff]
  %v1144 = vld [vmem:[%s0 + $0x110] sm:$0xff]
  %v1145 = vld [vmem:[%s0 + $0x118] sm:$0xff]
  %v1146 = vmax.f32 %v1134, %v1140
  %v1147 = vmax.f32 %v1135, %v1141
  %v1148 = vmax.f32 %v1136, %v1142
  %v1149 = vmax.f32 %v1137, %v1143
  %v1150 = vmax.f32 %v1138, %v1144
  %v1151 = vmax.f32 %v1139, %v1145
  %v1152 = vld [vmem:[%s0 + $0x88] sm:$0xff]
  %v1153 = vld [vmem:[%s0 + $0x90] sm:$0xff]
  %v1154 = vld [vmem:[%s0 + $0x98] sm:$0xff]
  %v1155 = vld [vmem:[%s0 + $0x148] sm:$0xff]
  %v1156 = vld [vmem:[%s0 + $0x150] sm:$0xff]
  %v1157 = vld [vmem:[%s0 + $0x158] sm:$0xff]
  %v1158 = vmax.f32 %v1146, %v1152
  %v1159 = vmax.f32 %v1147, %v1153
  %v1160 = vmax.f32 %v1148, %v1154
  %v1161 = vmax.f32 %v1149, %v1155
  %v1162 = vmax.f32 %v1150, %v1156
  %v1163 = vmax.f32 %v1151, %v1157
  %v1164 = vpack.c.bf16 %v1161, %v1158
  %v1165 = vpack.c.bf16 %v1162, %v1159
  %v1166 = vpack.c.bf16 %v1163, %v1160
  %1170 = vrot.lane.b32.xlu0 %v1164, 8
  %v1171 = vpop.permute.xlu0 %1170
  %1172 = vrot.lane.b32.xlu0 %v1165, 8
  %v1173 = vpop.permute.xlu0 %1172
  %1174 = vrot.lane.b32.xlu0 %v1166, 8
  %v1175 = vpop.permute.xlu0 %1174
  %vm1176 = vcmask 64512
  %v1177 = vsel %vm1176, %v1171, %v1173
  %v1178 = vsel %vm1176, %v1173, %v1175
  %1181 = vmatprep.subr.bf16.mxu0 %v587
  %1182 = vmatpush1.bf16.msra.mxu0 %v586
  %1183 = vmatprep.subr.bf16.mxu0 %v595
  %1184 = vmatpush1.bf16.msra.mxu0 %v594
  %1185 = vmatprep.subr.bf16.mxu0 %v603
  %1186 = vmatpush1.bf16.msra.mxu0 %v602
  %1187 = vmatprep.subr.bf16.mxu0 %v611
  %1188 = vmatpush1.bf16.msra.mxu0 %v610
  %1189 = vmatprep.subr.bf16.mxu0 %v619
  %1190 = vmatpush1.bf16.msra.mxu0 %v618
  %1191 = vmatprep.subr.bf16.mxu0 %v627
  %1192 = vmatpush1.bf16.msra.mxu0 %v626
  %1193 = vmatprep.subr.bf16.mxu0 %v635
  %1194 = vmatpush1.bf16.msra.mxu0 %v634
  %1195 = vmatprep.subr.bf16.mxu0 %v643
  %1196 = vmatpush1.bf16.msra.mxu0 %v642
  %1197 = vmatprep.subr.bf16.mxu0 %v651
  %1198 = vmatpush1.bf16.msra.mxu0 %v650
  %1199 = vmatprep.subr.bf16.mxu0 %v659
  %1200 = vmatpush1.bf16.msra.mxu0 %v658
  %1201 = vmatprep.subr.bf16.mxu0 %v667
  %1202 = vmatpush1.bf16.msra.mxu0 %v666
  %1203 = vmatprep.subr.bf16.mxu0 %v675
  %1204 = vmatpush1.bf16.msra.mxu0 %v674
  %1205 = vmatprep.subr.bf16.mxu0 %v683
  %1206 = vmatpush1.bf16.msra.mxu0 %v682
  %1207 = vmatprep.subr.bf16.mxu0 %v691
  %1208 = vmatpush1.bf16.msra.mxu0 %v690
  %1209 = vmatprep.subr.bf16.mxu0 %v699
  %1210 = vmatpush1.bf16.msra.mxu0 %v698
  %1211 = vmatprep.subr.bf16.mxu0 %v707
  %1212 = vmatpush1.bf16.msra.mxu0 %v706
  %1213 = vmatprep.mubr.bf16.mxu0 %v1178
  %1214 = vmatmul.mubr.bf16.gmra.mrb[0].mxu0 %v1177
  %v1215 = vpop.f32.mrb[0].mxu0
  %v1216 = vadd.f32 0.0, %v1215
  %v1217 = vpop.f32.mrb[0].mxu0
  %v1218 = vadd.f32 0.0, %v1217
  %v1219 = vpop.f32.mrb[0].mxu0
  %v1220 = vadd.f32 0.0, %v1219
  %v1221 = vpop.f32.mrb[0].mxu0
  %v1222 = vadd.f32 0.0, %v1221
  %1223 = vdwg.mxu0
  %1224 = vmatprep.subr.bf16.mxu0 %v589
  %1225 = vmatpush1.bf16.msra.mxu0 %v588
  %1226 = vmatprep.subr.bf16.mxu0 %v597
  %1227 = vmatpush1.bf16.msra.mxu0 %v596
  %1228 = vmatprep.subr.bf16.mxu0 %v605
  %1229 = vmatpush1.bf16.msra.mxu0 %v604
  %1230 = vmatprep.subr.bf16.mxu0 %v613
  %1231 = vmatpush1.bf16.msra.mxu0 %v612
  %1232 = vmatprep.subr.bf16.mxu0 %v621
  %1233 = vmatpush1.bf16.msra.mxu0 %v620
  %1234 = vmatprep.subr.bf16.mxu0 %v629
  %1235 = vmatpush1.bf16.msra.mxu0 %v628
  %1236 = vmatprep.subr.bf16.mxu0 %v637
  %1237 = vmatpush1.bf16.msra.mxu0 %v636
  %1238 = vmatprep.subr.bf16.mxu0 %v645
  %1239 = vmatpush1.bf16.msra.mxu0 %v644
  %1240 = vmatprep.subr.bf16.mxu0 %v653
  %1241 = vmatpush1.bf16.msra.mxu0 %v652
  %1242 = vmatprep.subr.bf16.mxu0 %v661
  %1243 = vmatpush1.bf16.msra.mxu0 %v660
  %1244 = vmatprep.subr.bf16.mxu0 %v669
  %1245 = vmatpush1.bf16.msra.mxu0 %v668
  %1246 = vmatprep.subr.bf16.mxu0 %v677
  %1247 = vmatpush1.bf16.msra.mxu0 %v676
  %1248 = vmatprep.subr.bf16.mxu0 %v685
  %1249 = vmatpush1.bf16.msra.mxu0 %v684
  %1250 = vmatprep.subr.bf16.mxu0 %v693
  %1251 = vmatpush1.bf16.msra.mxu0 %v692
  %1252 = vmatprep.subr.bf16.mxu0 %v701
  %1253 = vmatpush1.bf16.msra.mxu0 %v700
  %1254 = vmatprep.subr.bf16.mxu0 %v709
  %1255 = vmatpush1.bf16.msra.mxu0 %v708
  %1256 = vmatprep.mubr.bf16.mxu0 %v1178
  %1257 = vmatmul.mubr.bf16.gmra.mrb[0].mxu0 %v1177
  %v1258 = vpop.f32.mrb[0].mxu0
  %v1259 = vadd.f32 0.0, %v1258
  %v1260 = vpop.f32.mrb[0].mxu0
  %v1261 = vadd.f32 0.0, %v1260
  %v1262 = vpop.f32.mrb[0].mxu0
  %v1263 = vadd.f32 0.0, %v1262
  %v1264 = vpop.f32.mrb[0].mxu0
  %v1265 = vadd.f32 0.0, %v1264
  %1266 = vdwg.mxu0
  %1267 = vmatprep.subr.bf16.mxu0 %v591
  %1268 = vmatpush1.bf16.msra.mxu0 %v590
  %1269 = vmatprep.subr.bf16.mxu0 %v599
  %1270 = vmatpush1.bf16.msra.mxu0 %v598
  %1271 = vmatprep.subr.bf16.mxu0 %v607
  %1272 = vmatpush1.bf16.msra.mxu0 %v606
  %1273 = vmatprep.subr.bf16.mxu0 %v615
  %1274 = vmatpush1.bf16.msra.mxu0 %v614
  %1275 = vmatprep.subr.bf16.mxu0 %v623
  %1276 = vmatpush1.bf16.msra.mxu0 %v622
  %1277 = vmatprep.subr.bf16.mxu0 %v631
  %1278 = vmatpush1.bf16.msra.mxu0 %v630
  %1279 = vmatprep.subr.bf16.mxu0 %v639
  %1280 = vmatpush1.bf16.msra.mxu0 %v638
  %1281 = vmatprep.subr.bf16.mxu0 %v647
  %1282 = vmatpush1.bf16.msra.mxu0 %v646
  %1283 = vmatprep.subr.bf16.mxu0 %v655
  %1284 = vmatpush1.bf16.msra.mxu0 %v654
  %1285 = vmatprep.subr.bf16.mxu0 %v663
  %1286 = vmatpush1.bf16.msra.mxu0 %v662
  %1287 = vmatprep.subr.bf16.mxu0 %v671
  %1288 = vmatpush1.bf16.msra.mxu0 %v670
  %1289 = vmatprep.subr.bf16.mxu0 %v679
  %1290 = vmatpush1.bf16.msra.mxu0 %v678
  %1291 = vmatprep.subr.bf16.mxu0 %v687
  %1292 = vmatpush1.bf16.msra.mxu0 %v686
  %1293 = vmatprep.subr.bf16.mxu0 %v695
  %1294 = vmatpush1.bf16.msra.mxu0 %v694
  %1295 = vmatprep.subr.bf16.mxu0 %v703
  %1296 = vmatpush1.bf16.msra.mxu0 %v702
  %1297 = vmatprep.subr.bf16.mxu0 %v711
  %1298 = vmatpush1.bf16.msra.mxu0 %v710
  %1299 = vmatprep.mubr.bf16.mxu0 %v1178
  %1300 = vmatmul.mubr.bf16.gmra.mrb[0].mxu0 %v1177
  %v1301 = vpop.f32.mrb[0].mxu0
  %v1302 = vadd.f32 0.0, %v1301
  %v1303 = vpop.f32.mrb[0].mxu0
  %v1304 = vadd.f32 0.0, %v1303
  %v1305 = vpop.f32.mrb[0].mxu0
  %v1306 = vadd.f32 0.0, %v1305
  %v1307 = vpop.f32.mrb[0].mxu0
  %v1308 = vadd.f32 0.0, %v1307
  %1309 = vdwg.mxu0
  %1310 = vmatprep.subr.bf16.mxu0 %v593
  %1311 = vmatpush1.bf16.msra.mxu0 %v592
  %1312 = vmatprep.subr.bf16.mxu0 %v601
  %1313 = vmatpush1.bf16.msra.mxu0 %v600
  %1314 = vmatprep.subr.bf16.mxu0 %v609
  %1315 = vmatpush1.bf16.msra.mxu0 %v608
  %1316 = vmatprep.subr.bf16.mxu0 %v617
  %1317 = vmatpush1.bf16.msra.mxu0 %v616
  %1318 = vmatprep.subr.bf16.mxu0 %v625
  %1319 = vmatpush1.bf16.msra.mxu0 %v624
  %1320 = vmatprep.subr.bf16.mxu0 %v633
  %1321 = vmatpush1.bf16.msra.mxu0 %v632
  %1322 = vmatprep.subr.bf16.mxu0 %v641
  %1323 = vmatpush1.bf16.msra.mxu0 %v640
  %1324 = vmatprep.subr.bf16.mxu0 %v649
  %1325 = vmatpush1.bf16.msra.mxu0 %v648
  %1326 = vmatprep.subr.bf16.mxu0 %v657
  %1327 = vmatpush1.bf16.msra.mxu0 %v656
  %1328 = vmatprep.subr.bf16.mxu0 %v665
  %1329 = vmatpush1.bf16.msra.mxu0 %v664
  %1330 = vmatprep.subr.bf16.mxu0 %v673
  %1331 = vmatpush1.bf16.msra.mxu0 %v672
  %1332 = vmatprep.subr.bf16.mxu0 %v681
  %1333 = vmatpush1.bf16.msra.mxu0 %v680
  %1334 = vmatprep.subr.bf16.mxu0 %v689
  %1335 = vmatpush1.bf16.msra.mxu0 %v688
  %1336 = vmatprep.subr.bf16.mxu0 %v697
  %1337 = vmatpush1.bf16.msra.mxu0 %v696
  %1338 = vmatprep.subr.bf16.mxu0 %v705
  %1339 = vmatpush1.bf16.msra.mxu0 %v704
  %1340 = vmatprep.subr.bf16.mxu0 %v713
  %1341 = vmatpush1.bf16.msra.mxu0 %v712
  %1342 = vmatprep.mubr.bf16.mxu0 %v1178
  %1343 = vmatmul.mubr.bf16.gmra.mrb[0].mxu0 %v1177
  %v1344 = vpop.f32.mrb[0].mxu0
  %v1345 = vadd.f32 0.0, %v1344
  %v1346 = vpop.f32.mrb[0].mxu0
  %v1347 = vadd.f32 0.0, %v1346
  %v1348 = vpop.f32.mrb[0].mxu0
  %v1349 = vadd.f32 0.0, %v1348
  %v1350 = vpop.f32.mrb[0].mxu0
  %v1351 = vadd.f32 0.0, %v1350
  %1352 = vdwg.mxu0
  %1359 = vrot.lane.b32.xlu0 %v1218, 8
  %v1360 = vpop.permute.xlu0 %1359
  %1361 = vrot.lane.b32.xlu0 %v1259, 8
  %v1362 = vpop.permute.xlu0 %1361
  %1363 = vrot.lane.b32.xlu0 %v1261, 8
  %v1364 = vpop.permute.xlu0 %1363
  %1365 = vrot.lane.b32.xlu0 %v1222, 8
  %v1366 = vpop.permute.xlu0 %1365
  %1367 = vrot.lane.b32.xlu0 %v1263, 8
  %v1368 = vpop.permute.xlu0 %1367
  %1369 = vrot.lane.b32.xlu0 %v1265, 8
  %v1370 = vpop.permute.xlu0 %1369
  %v1371 = vsel %vm1032, %v1360, %v1362
  %v1372 = vsel %vm1032, %v1362, %v1364
  %v1373 = vsel %vm1032, %v1366, %v1368
  %v1374 = vsel %vm1032, %v1368, %v1370
  %v1379 = vmax.f32 %v1216, %v1371
  %v1380 = vmax.f32 %v1218, %v1372
  %v1381 = vmax.f32 %v1220, %v1373
  %v1382 = vmax.f32 %v1222, %v1374
  %1389 = vrot.lane.b32.xlu0 %v1304, 8
  %v1390 = vpop.permute.xlu0 %1389
  %1391 = vrot.lane.b32.xlu0 %v1345, 8
  %v1392 = vpop.permute.xlu0 %1391
  %1393 = vrot.lane.b32.xlu0 %v1347, 8
  %v1394 = vpop.permute.xlu0 %1393
  %1395 = vrot.lane.b32.xlu0 %v1308, 8
  %v1396 = vpop.permute.xlu0 %1395
  %1397 = vrot.lane.b32.xlu0 %v1349, 8
  %v1398 = vpop.permute.xlu0 %1397
  %1399 = vrot.lane.b32.xlu0 %v1351, 8
  %v1400 = vpop.permute.xlu0 %1399
  %v1401 = vsel %vm1032, %v1390, %v1392
  %v1402 = vsel %vm1032, %v1392, %v1394
  %v1403 = vsel %vm1032, %v1396, %v1398
  %v1404 = vsel %vm1032, %v1398, %v1400
  %v1411 = vmax.f32 %v1261, %v1390
  %v1412 = vmax.f32 %v1302, %v1401
  %v1413 = vmax.f32 %v1304, %v1402
  %v1414 = vmax.f32 %v1265, %v1396
  %v1415 = vmax.f32 %v1306, %v1403
  %v1416 = vmax.f32 %v1308, %v1404
  %1423 = vrot.lane.b32.xlu0 %v1411, 16
  %v1424 = vpop.permute.xlu0 %1423
  %1425 = vrot.lane.b32.xlu0 %v1412, 16
  %v1426 = vpop.permute.xlu0 %1425
  %1427 = vrot.lane.b32.xlu0 %v1413, 16
  %v1428 = vpop.permute.xlu0 %1427
  %1429 = vrot.lane.b32.xlu0 %v1414, 16
  %v1430 = vpop.permute.xlu0 %1429
  %1431 = vrot.lane.b32.xlu0 %v1415, 16
  %v1432 = vpop.permute.xlu0 %1431
  %1433 = vrot.lane.b32.xlu0 %v1416, 16
  %v1434 = vpop.permute.xlu0 %1433
  %v1435 = vsel %vm1097, %v1424, %v1426
  %v1436 = vsel %vm1097, %v1426, %v1428
  %v1437 = vsel %vm1097, %v1430, %v1432
  %v1438 = vsel %vm1097, %v1432, %v1434
  %v1443 = vmax.f32 %v1379, %v1435
  %v1444 = vmax.f32 %v1380, %v1436
  %v1445 = vmax.f32 %v1381, %v1437
  %v1446 = vmax.f32 %v1382, %v1438
  %v1447 = vadd.f32 %v1443, %v1114
  %v1448 = vadd.f32 %v1444, %v1118
  %v1449 = vadd.f32 %v1445, %v1114
  %v1450 = vadd.f32 %v1446, %v1118
  %v1451 = vmax.f32 %v1447, 0.0
  %v1452 = vmax.f32 %v1448, 0.0
  %v1453 = vmax.f32 %v1449, 0.0
  %v1454 = vmax.f32 %v1450, 0.0
  %1459 = vrot.lane.b32.xlu0 %v1451, 120
  %v1460 = vpop.permute.xlu0 %1459
  %1461 = vrot.lane.b32.xlu0 %v1452, 120
  %v1462 = vpop.permute.xlu0 %1461
  %1463 = vrot.lane.b32.xlu0 %v1453, 120
  %v1464 = vpop.permute.xlu0 %1463
  %1465 = vrot.lane.b32.xlu0 %v1454, 120
  %v1466 = vpop.permute.xlu0 %1465
  %v1467 = vsel %vm1130, %v1460, %v1462
  %v1468 = vsel %vm1130, %v1464, %v1466
  %vm1475 = vcmask 1048512
  %1476 = vst.msk [vmem:[#allocation2 + $0x8] sm:$0xff] %vm1475, %v1460
  %1477 = vst [vmem:[#allocation2 + $0x10] sm:$0xff] %v1467
  %vm1478 = vcmask 916480
  %1479 = vst.msk [vmem:[#allocation2 + $0x18] sm:$0xff] %vm1478, %v1462
  %1480 = vst.msk [vmem:[#allocation2 + $0x48] sm:$0xff] %vm1475, %v1464
  %1481 = vst [vmem:[#allocation2 + $0x50] sm:$0xff] %v1468
  %1482 = vst.msk [vmem:[#allocation2 + $0x58] sm:$0xff] %vm1478, %v1466
  %v1483 = vld [vmem:[%s0 + $0x18] sm:$0xff]
  %v1484 = vld [vmem:[%s0 + $0x20] sm:$0xff]
  %v1485 = vld [vmem:[%s0 + $0x28] sm:$0xff]
  %v1486 = vld [vmem:[%s0 + $0xd8] sm:$0xff]
  %v1487 = vld [vmem:[%s0 + $0xe0] sm:$0xff]
  %v1488 = vld [vmem:[%s0 + $0xe8] sm:$0xff]
  %v1489 = vld [vmem:[%s0 + $0x58] sm:$0xff]
  %v1490 = vld [vmem:[%s0 + $0x60] sm:$0xff]
  %v1491 = vld [vmem:[%s0 + $0x68] sm:$0xff]
  %v1492 = vld [vmem:[%s0 + $0x118] sm:$0xff]
  %v1493 = vld [vmem:[%s0 + $0x120] sm:$0xff]
  %v1494 = vld [vmem:[%s0 + $0x128] sm:$0xff]
  %v1495 = vmax.f32 %v1483, %v1489
  %v1496 = vmax.f32 %v1484, %v1490
  %v1497 = vmax.f32 %v1485, %v1491
  %v1498 = vmax.f32 %v1486, %v1492
  %v1499 = vmax.f32 %v1487, %v1493
  %v1500 = vmax.f32 %v1488, %v1494
  %v1501 = vld [vmem:[%s0 + $0x98] sm:$0xff]
  %v1502 = vld [vmem:[%s0 + $0xa0] sm:$0xff]
  %v1503 = vld [vmem:[%s0 + $0xa8] sm:$0xff]
  %v1504 = vld [vmem:[%s0 + $0x158] sm:$0xff]
  %v1505 = vld [vmem:[%s0 + $0x160] sm:$0xff]
  %v1506 = vld [vmem:[%s0 + $0x168] sm:$0xff]
  %v1507 = vmax.f32 %v1495, %v1501
  %v1508 = vmax.f32 %v1496, %v1502
  %v1509 = vmax.f32 %v1497, %v1503
  %v1510 = vmax.f32 %v1498, %v1504
  %v1511 = vmax.f32 %v1499, %v1505
  %v1512 = vmax.f32 %v1500, %v1506
  %v1513 = vpack.c.bf16 %v1510, %v1507
  %v1514 = vpack.c.bf16 %v1511, %v1508
  %v1515 = vpack.c.bf16 %v1512, %v1509
  %1519 = vrot.lane.b32.xlu0 %v1513, 16
  %v1520 = vpop.permute.xlu0 %1519
  %1521 = vrot.lane.b32.xlu0 %v1514, 16
  %v1522 = vpop.permute.xlu0 %1521
  %1523 = vrot.lane.b32.xlu0 %v1515, 16
  %v1524 = vpop.permute.xlu0 %1523
  %vm1525 = vcmask 130048
  %v1526 = vsel %vm1525, %v1520, %v1522
  %v1527 = vsel %vm1525, %v1522, %v1524
  %1530 = vmatprep.subr.bf16.mxu0 %v587
  %1531 = vmatpush1.bf16.msra.mxu0 %v586
  %1532 = vmatprep.subr.bf16.mxu0 %v595
  %1533 = vmatpush1.bf16.msra.mxu0 %v594
  %1534 = vmatprep.subr.bf16.mxu0 %v603
  %1535 = vmatpush1.bf16.msra.mxu0 %v602
  %1536 = vmatprep.subr.bf16.mxu0 %v611
  %1537 = vmatpush1.bf16.msra.mxu0 %v610
  %1538 = vmatprep.subr.bf16.mxu0 %v619
  %1539 = vmatpush1.bf16.msra.mxu0 %v618
  %1540 = vmatprep.subr.bf16.mxu0 %v627
  %1541 = vmatpush1.bf16.msra.mxu0 %v626
  %1542 = vmatprep.subr.bf16.mxu0 %v635
  %1543 = vmatpush1.bf16.msra.mxu0 %v634
  %1544 = vmatprep.subr.bf16.mxu0 %v643
  %1545 = vmatpush1.bf16.msra.mxu0 %v642
  %1546 = vmatprep.subr.bf16.mxu0 %v651
  %1547 = vmatpush1.bf16.msra.mxu0 %v650
  %1548 = vmatprep.subr.bf16.mxu0 %v659
  %1549 = vmatpush1.bf16.msra.mxu0 %v658
  %1550 = vmatprep.subr.bf16.mxu0 %v667
  %1551 = vmatpush1.bf16.msra.mxu0 %v666
  %1552 = vmatprep.subr.bf16.mxu0 %v675
  %1553 = vmatpush1.bf16.msra.mxu0 %v674
  %1554 = vmatprep.subr.bf16.mxu0 %v683
  %1555 = vmatpush1.bf16.msra.mxu0 %v682
  %1556 = vmatprep.subr.bf16.mxu0 %v691
  %1557 = vmatpush1.bf16.msra.mxu0 %v690
  %1558 = vmatprep.subr.bf16.mxu0 %v699
  %1559 = vmatpush1.bf16.msra.mxu0 %v698
  %1560 = vmatprep.subr.bf16.mxu0 %v707
  %1561 = vmatpush1.bf16.msra.mxu0 %v706
  %1562 = vmatprep.mubr.bf16.mxu0 %v1527
  %1563 = vmatmul.mubr.bf16.gmra.mrb[0].mxu0 %v1526
  %v1564 = vpop.f32.mrb[0].mxu0
  %v1565 = vadd.f32 0.0, %v1564
  %v1566 = vpop.f32.mrb[0].mxu0
  %v1567 = vadd.f32 0.0, %v1566
  %v1568 = vpop.f32.mrb[0].mxu0
  %v1569 = vadd.f32 0.0, %v1568
  %v1570 = vpop.f32.mrb[0].mxu0
  %v1571 = vadd.f32 0.0, %v1570
  %1572 = vdwg.mxu0
  %1573 = vmatprep.subr.bf16.mxu0 %v589
  %1574 = vmatpush1.bf16.msra.mxu0 %v588
  %1575 = vmatprep.subr.bf16.mxu0 %v597
  %1576 = vmatpush1.bf16.msra.mxu0 %v596
  %1577 = vmatprep.subr.bf16.mxu0 %v605
  %1578 = vmatpush1.bf16.msra.mxu0 %v604
  %1579 = vmatprep.subr.bf16.mxu0 %v613
  %1580 = vmatpush1.bf16.msra.mxu0 %v612
  %1581 = vmatprep.subr.bf16.mxu0 %v621
  %1582 = vmatpush1.bf16.msra.mxu0 %v620
  %1583 = vmatprep.subr.bf16.mxu0 %v629
  %1584 = vmatpush1.bf16.msra.mxu0 %v628
  %1585 = vmatprep.subr.bf16.mxu0 %v637
  %1586 = vmatpush1.bf16.msra.mxu0 %v636
  %1587 = vmatprep.subr.bf16.mxu0 %v645
  %1588 = vmatpush1.bf16.msra.mxu0 %v644
  %1589 = vmatprep.subr.bf16.mxu0 %v653
  %1590 = vmatpush1.bf16.msra.mxu0 %v652
  %1591 = vmatprep.subr.bf16.mxu0 %v661
  %1592 = vmatpush1.bf16.msra.mxu0 %v660
  %1593 = vmatprep.subr.bf16.mxu0 %v669
  %1594 = vmatpush1.bf16.msra.mxu0 %v668
  %1595 = vmatprep.subr.bf16.mxu0 %v677
  %1596 = vmatpush1.bf16.msra.mxu0 %v676
  %1597 = vmatprep.subr.bf16.mxu0 %v685
  %1598 = vmatpush1.bf16.msra.mxu0 %v684
  %1599 = vmatprep.subr.bf16.mxu0 %v693
  %1600 = vmatpush1.bf16.msra.mxu0 %v692
  %1601 = vmatprep.subr.bf16.mxu0 %v701
  %1602 = vmatpush1.bf16.msra.mxu0 %v700
  %1603 = vmatprep.subr.bf16.mxu0 %v709
  %1604 = vmatpush1.bf16.msra.mxu0 %v708
  %1605 = vmatprep.mubr.bf16.mxu0 %v1527
  %1606 = vmatmul.mubr.bf16.gmra.mrb[0].mxu0 %v1526
  %v1607 = vpop.f32.mrb[0].mxu0
  %v1608 = vadd.f32 0.0, %v1607
  %v1609 = vpop.f32.mrb[0].mxu0
  %v1610 = vadd.f32 0.0, %v1609
  %v1611 = vpop.f32.mrb[0].mxu0
  %v1612 = vadd.f32 0.0, %v1611
  %v1613 = vpop.f32.mrb[0].mxu0
  %v1614 = vadd.f32 0.0, %v1613
  %1615 = vdwg.mxu0
  %1616 = vmatprep.subr.bf16.mxu0 %v591
  %1617 = vmatpush1.bf16.msra.mxu0 %v590
  %1618 = vmatprep.subr.bf16.mxu0 %v599
  %1619 = vmatpush1.bf16.msra.mxu0 %v598
  %1620 = vmatprep.subr.bf16.mxu0 %v607
  %1621 = vmatpush1.bf16.msra.mxu0 %v606
  %1622 = vmatprep.subr.bf16.mxu0 %v615
  %1623 = vmatpush1.bf16.msra.mxu0 %v614
  %1624 = vmatprep.subr.bf16.mxu0 %v623
  %1625 = vmatpush1.bf16.msra.mxu0 %v622
  %1626 = vmatprep.subr.bf16.mxu0 %v631
  %1627 = vmatpush1.bf16.msra.mxu0 %v630
  %1628 = vmatprep.subr.bf16.mxu0 %v639
  %1629 = vmatpush1.bf16.msra.mxu0 %v638
  %1630 = vmatprep.subr.bf16.mxu0 %v647
  %1631 = vmatpush1.bf16.msra.mxu0 %v646
  %1632 = vmatprep.subr.bf16.mxu0 %v655
  %1633 = vmatpush1.bf16.msra.mxu0 %v654
  %1634 = vmatprep.subr.bf16.mxu0 %v663
  %1635 = vmatpush1.bf16.msra.mxu0 %v662
  %1636 = vmatprep.subr.bf16.mxu0 %v671
  %1637 = vmatpush1.bf16.msra.mxu0 %v670
  %1638 = vmatprep.subr.bf16.mxu0 %v679
  %1639 = vmatpush1.bf16.msra.mxu0 %v678
  %1640 = vmatprep.subr.bf16.mxu0 %v687
  %1641 = vmatpush1.bf16.msra.mxu0 %v686
  %1642 = vmatprep.subr.bf16.mxu0 %v695
  %1643 = vmatpush1.bf16.msra.mxu0 %v694
  %1644 = vmatprep.subr.bf16.mxu0 %v703
  %1645 = vmatpush1.bf16.msra.mxu0 %v702
  %1646 = vmatprep.subr.bf16.mxu0 %v711
  %1647 = vmatpush1.bf16.msra.mxu0 %v710
  %1648 = vmatprep.mubr.bf16.mxu0 %v1527
  %1649 = vmatmul.mubr.bf16.gmra.mrb[0].mxu0 %v1526
  %v1650 = vpop.f32.mrb[0].mxu0
  %v1651 = vadd.f32 0.0, %v1650
  %v1652 = vpop.f32.mrb[0].mxu0
  %v1653 = vadd.f32 0.0, %v1652
  %v1654 = vpop.f32.mrb[0].mxu0
  %v1655 = vadd.f32 0.0, %v1654
  %v1656 = vpop.f32.mrb[0].mxu0
  %v1657 = vadd.f32 0.0, %v1656
  %1658 = vdwg.mxu0
  %1659 = vmatprep.subr.bf16.mxu0 %v593
  %1660 = vmatpush1.bf16.msra.mxu0 %v592
  %1661 = vmatprep.subr.bf16.mxu0 %v601
  %1662 = vmatpush1.bf16.msra.mxu0 %v600
  %1663 = vmatprep.subr.bf16.mxu0 %v609
  %1664 = vmatpush1.bf16.msra.mxu0 %v608
  %1665 = vmatprep.subr.bf16.mxu0 %v617
  %1666 = vmatpush1.bf16.msra.mxu0 %v616
  %1667 = vmatprep.subr.bf16.mxu0 %v625
  %1668 = vmatpush1.bf16.msra.mxu0 %v624
  %1669 = vmatprep.subr.bf16.mxu0 %v633
  %1670 = vmatpush1.bf16.msra.mxu0 %v632
  %1671 = vmatprep.subr.bf16.mxu0 %v641
  %1672 = vmatpush1.bf16.msra.mxu0 %v640
  %1673 = vmatprep.subr.bf16.mxu0 %v649
  %1674 = vmatpush1.bf16.msra.mxu0 %v648
  %1675 = vmatprep.subr.bf16.mxu0 %v657
  %1676 = vmatpush1.bf16.msra.mxu0 %v656
  %1677 = vmatprep.subr.bf16.mxu0 %v665
  %1678 = vmatpush1.bf16.msra.mxu0 %v664
  %1679 = vmatprep.subr.bf16.mxu0 %v673
  %1680 = vmatpush1.bf16.msra.mxu0 %v672
  %1681 = vmatprep.subr.bf16.mxu0 %v681
  %1682 = vmatpush1.bf16.msra.mxu0 %v680
  %1683 = vmatprep.subr.bf16.mxu0 %v689
  %1684 = vmatpush1.bf16.msra.mxu0 %v688
  %1685 = vmatprep.subr.bf16.mxu0 %v697
  %1686 = vmatpush1.bf16.msra.mxu0 %v696
  %1687 = vmatprep.subr.bf16.mxu0 %v705
  %1688 = vmatpush1.bf16.msra.mxu0 %v704
  %1689 = vmatprep.subr.bf16.mxu0 %v713
  %1690 = vmatpush1.bf16.msra.mxu0 %v712
  %1691 = vmatprep.mubr.bf16.mxu0 %v1527
  %1692 = vmatmul.mubr.bf16.gmra.mrb[0].mxu0 %v1526
  %v1693 = vpop.f32.mrb[0].mxu0
  %v1694 = vadd.f32 0.0, %v1693
  %v1695 = vpop.f32.mrb[0].mxu0
  %v1696 = vadd.f32 0.0, %v1695
  %v1697 = vpop.f32.mrb[0].mxu0
  %v1698 = vadd.f32 0.0, %v1697
  %v1699 = vpop.f32.mrb[0].mxu0
  %v1700 = vadd.f32 0.0, %v1699
  %1701 = vdwg.mxu0
  %1708 = vrot.lane.b32.xlu0 %v1567, 8
  %v1709 = vpop.permute.xlu0 %1708
  %1710 = vrot.lane.b32.xlu0 %v1608, 8
  %v1711 = vpop.permute.xlu0 %1710
  %1712 = vrot.lane.b32.xlu0 %v1610, 8
  %v1713 = vpop.permute.xlu0 %1712
  %1714 = vrot.lane.b32.xlu0 %v1571, 8
  %v1715 = vpop.permute.xlu0 %1714
  %1716 = vrot.lane.b32.xlu0 %v1612, 8
  %v1717 = vpop.permute.xlu0 %1716
  %1718 = vrot.lane.b32.xlu0 %v1614, 8
  %v1719 = vpop.permute.xlu0 %1718
  %v1720 = vsel %vm1032, %v1709, %v1711
  %v1721 = vsel %vm1032, %v1711, %v1713
  %v1722 = vsel %vm1032, %v1715, %v1717
  %v1723 = vsel %vm1032, %v1717, %v1719
  %v1728 = vmax.f32 %v1565, %v1720
  %v1729 = vmax.f32 %v1567, %v1721
  %v1730 = vmax.f32 %v1569, %v1722
  %v1731 = vmax.f32 %v1571, %v1723
  %1738 = vrot.lane.b32.xlu0 %v1653, 8
  %v1739 = vpop.permute.xlu0 %1738
  %1740 = vrot.lane.b32.xlu0 %v1694, 8
  %v1741 = vpop.permute.xlu0 %1740
  %1742 = vrot.lane.b32.xlu0 %v1696, 8
  %v1743 = vpop.permute.xlu0 %1742
  %1744 = vrot.lane.b32.xlu0 %v1657, 8
  %v1745 = vpop.permute.xlu0 %1744
  %1746 = vrot.lane.b32.xlu0 %v1698, 8
  %v1747 = vpop.permute.xlu0 %1746
  %1748 = vrot.lane.b32.xlu0 %v1700, 8
  %v1749 = vpop.permute.xlu0 %1748
  %v1750 = vsel %vm1032, %v1739, %v1741
  %v1751 = vsel %vm1032, %v1741, %v1743
  %v1752 = vsel %vm1032, %v1745, %v1747
  %v1753 = vsel %vm1032, %v1747, %v1749
  %v1760 = vmax.f32 %v1610, %v1739
  %v1761 = vmax.f32 %v1651, %v1750
  %v1762 = vmax.f32 %v1653, %v1751
  %v1763 = vmax.f32 %v1614, %v1745
  %v1764 = vmax.f32 %v1655, %v1752
  %v1765 = vmax.f32 %v1657, %v1753
  %1772 = vrot.lane.b32.xlu0 %v1760, 16
  %v1773 = vpop.permute.xlu0 %1772
  %1774 = vrot.lane.b32.xlu0 %v1761, 16
  %v1775 = vpop.permute.xlu0 %1774
  %1776 = vrot.lane.b32.xlu0 %v1762, 16
  %v1777 = vpop.permute.xlu0 %1776
  %1778 = vrot.lane.b32.xlu0 %v1763, 16
  %v1779 = vpop.permute.xlu0 %1778
  %1780 = vrot.lane.b32.xlu0 %v1764, 16
  %v1781 = vpop.permute.xlu0 %1780
  %1782 = vrot.lane.b32.xlu0 %v1765, 16
  %v1783 = vpop.permute.xlu0 %1782
  %v1784 = vsel %vm1097, %v1773, %v1775
  %v1785 = vsel %vm1097, %v1775, %v1777
  %v1786 = vsel %vm1097, %v1779, %v1781
  %v1787 = vsel %vm1097, %v1781, %v1783
  %v1792 = vmax.f32 %v1728, %v1784
  %v1793 = vmax.f32 %v1729, %v1785
  %v1794 = vmax.f32 %v1730, %v1786
  %v1795 = vmax.f32 %v1731, %v1787
  %v1796 = vadd.f32 %v1792, %v1114
  %v1797 = vadd.f32 %v1793, %v1118
  %v1798 = vadd.f32 %v1794, %v1114
  %v1799 = vadd.f32 %v1795, %v1118
  %v1800 = vmax.f32 %v1796, 0.0
  %v1801 = vmax.f32 %v1797, 0.0
  %v1802 = vmax.f32 %v1798, 0.0
  %v1803 = vmax.f32 %v1799, 0.0
  %1808 = vrot.lane.b32.xlu0 %v1800, 112
  %v1809 = vpop.permute.xlu0 %1808
  %1810 = vrot.lane.b32.xlu0 %v1801, 112
  %v1811 = vpop.permute.xlu0 %1810
  %1812 = vrot.lane.b32.xlu0 %v1802, 112
  %v1813 = vpop.permute.xlu0 %1812
  %1814 = vrot.lane.b32.xlu0 %v1803, 112
  %v1815 = vpop.permute.xlu0 %1814
  %v1816 = vsel %vm1478, %v1809, %v1811
  %v1817 = vsel %vm1478, %v1813, %v1815
  %vm1824 = vcmask 1048448
  %1825 = vst.msk [vmem:[#allocation2 + $0x18] sm:$0xff] %vm1824, %v1809
  %1826 = vst [vmem:[#allocation2 + $0x20] sm:$0xff] %v1816
  %vm1827 = vcmask 850944
  %1828 = vst.msk [vmem:[#allocation2 + $0x28] sm:$0xff] %vm1827, %v1811
  %1829 = vst.msk [vmem:[#allocation2 + $0x58] sm:$0xff] %vm1824, %v1813
  %1830 = vst [vmem:[#allocation2 + $0x60] sm:$0xff] %v1817
  %1831 = vst.msk [vmem:[#allocation2 + $0x68] sm:$0xff] %vm1827, %v1815
  %v1832 = vld [vmem:[%s0 + $0x28] sm:$0xff]
  %v1833 = vld [vmem:[%s0 + $0x30] sm:$0xff]
  %v1834 = vld [vmem:[%s0 + $0x38] sm:$0xff]
  %v1835 = vld [vmem:[%s0 + $0xe8] sm:$0xff]
  %v1836 = vld [vmem:[%s0 + $0xf0] sm:$0xff]
  %v1837 = vld [vmem:[%s0 + $0xf8] sm:$0xff]
  %v1838 = vld [vmem:[%s0 + $0x68] sm:$0xff]
  %v1839 = vld [vmem:[%s0 + $0x70] sm:$0xff]
  %v1840 = vld [vmem:[%s0 + $0x78] sm:$0xff]
  %v1841 = vld [vmem:[%s0 + $0x128] sm:$0xff]
  %v1842 = vld [vmem:[%s0 + $0x130] sm:$0xff]
  %v1843 = vld [vmem:[%s0 + $0x138] sm:$0xff]
  %v1844 = vmax.f32 %v1832, %v1838
  %v1845 = vmax.f32 %v1833, %v1839
  %v1846 = vmax.f32 %v1834, %v1840
  %v1847 = vmax.f32 %v1835, %v1841
  %v1848 = vmax.f32 %v1836, %v1842
  %v1849 = vmax.f32 %v1837, %v1843
  %v1850 = vld [vmem:[%s0 + $0xa8] sm:$0xff]
  %v1851 = vld [vmem:[%s0 + $0xb0] sm:$0xff]
  %v1852 = vld [vmem:[%s0 + $0xb8] sm:$0xff]
  %v1853 = vld [vmem:[%s0 + $0x168] sm:$0xff]
  %v1854 = vld [vmem:[%s0 + $0x170] sm:$0xff]
  %v1855 = vld [vmem:[%s0 + $0x178] sm:$0xff]
  %v1856 = vmax.f32 %v1844, %v1850
  %v1857 = vmax.f32 %v1845, %v1851
  %v1858 = vmax.f32 %v1846, %v1852
  %v1859 = vmax.f32 %v1847, %v1853
  %v1860 = vmax.f32 %v1848, %v1854
  %v1861 = vmax.f32 %v1849, %v1855
  %v1862 = vpack.c.bf16 %v1859, %v1856
  %v1863 = vpack.c.bf16 %v1860, %v1857
  %v1864 = vpack.c.bf16 %v1861, %v1858
  %1868 = vrot.lane.b32.xlu0 %v1862, 24
  %v1869 = vpop.permute.xlu0 %1868
  %1870 = vrot.lane.b32.xlu0 %v1863, 24
  %v1871 = vpop.permute.xlu0 %1870
  %1872 = vrot.lane.b32.xlu0 %v1864, 24
  %v1873 = vpop.permute.xlu0 %1872
  %vm1874 = vcmask 195584
  %v1875 = vsel %vm1874, %v1869, %v1871
  %v1876 = vsel %vm1874, %v1871, %v1873
  %1879 = vmatprep.subr.bf16.mxu0 %v587
  %1880 = vmatpush1.bf16.msra.mxu0 %v586
  %1881 = vmatprep.subr.bf16.mxu0 %v595
  %1882 = vmatpush1.bf16.msra.mxu0 %v594
  %1883 = vmatprep.subr.bf16.mxu0 %v603
  %1884 = vmatpush1.bf16.msra.mxu0 %v602
  %1885 = vmatprep.subr.bf16.mxu0 %v611
  %1886 = vmatpush1.bf16.msra.mxu0 %v610
  %1887 = vmatprep.subr.bf16.mxu0 %v619
  %1888 = vmatpush1.bf16.msra.mxu0 %v618
  %1889 = vmatprep.subr.bf16.mxu0 %v627
  %1890 = vmatpush1.bf16.msra.mxu0 %v626
  %1891 = vmatprep.subr.bf16.mxu0 %v635
  %1892 = vmatpush1.bf16.msra.mxu0 %v634
  %1893 = vmatprep.subr.bf16.mxu0 %v643
  %1894 = vmatpush1.bf16.msra.mxu0 %v642
  %1895 = vmatprep.subr.bf16.mxu0 %v651
  %1896 = vmatpush1.bf16.msra.mxu0 %v650
  %1897 = vmatprep.subr.bf16.mxu0 %v659
  %1898 = vmatpush1.bf16.msra.mxu0 %v658
  %1899 = vmatprep.subr.bf16.mxu0 %v667
  %1900 = vmatpush1.bf16.msra.mxu0 %v666
  %1901 = vmatprep.subr.bf16.mxu0 %v675
  %1902 = vmatpush1.bf16.msra.mxu0 %v674
  %1903 = vmatprep.subr.bf16.mxu0 %v683
  %1904 = vmatpush1.bf16.msra.mxu0 %v682
  %1905 = vmatprep.subr.bf16.mxu0 %v691
  %1906 = vmatpush1.bf16.msra.mxu0 %v690
  %1907 = vmatprep.subr.bf16.mxu0 %v699
  %1908 = vmatpush1.bf16.msra.mxu0 %v698
  %1909 = vmatprep.subr.bf16.mxu0 %v707
  %1910 = vmatpush1.bf16.msra.mxu0 %v706
  %1911 = vmatprep.mubr.bf16.mxu0 %v1876
  %1912 = vmatmul.mubr.bf16.gmra.mrb[0].mxu0 %v1875
  %v1913 = vpop.f32.mrb[0].mxu0
  %v1914 = vadd.f32 0.0, %v1913
  %v1915 = vpop.f32.mrb[0].mxu0
  %v1916 = vadd.f32 0.0, %v1915
  %v1917 = vpop.f32.mrb[0].mxu0
  %v1918 = vadd.f32 0.0, %v1917
  %v1919 = vpop.f32.mrb[0].mxu0
  %v1920 = vadd.f32 0.0, %v1919
  %1921 = vdwg.mxu0
  %1922 = vmatprep.subr.bf16.mxu0 %v589
  %1923 = vmatpush1.bf16.msra.mxu0 %v588
  %1924 = vmatprep.subr.bf16.mxu0 %v597
  %1925 = vmatpush1.bf16.msra.mxu0 %v596
  %1926 = vmatprep.subr.bf16.mxu0 %v605
  %1927 = vmatpush1.bf16.msra.mxu0 %v604
  %1928 = vmatprep.subr.bf16.mxu0 %v613
  %1929 = vmatpush1.bf16.msra.mxu0 %v612
  %1930 = vmatprep.subr.bf16.mxu0 %v621
  %1931 = vmatpush1.bf16.msra.mxu0 %v620
  %1932 = vmatprep.subr.bf16.mxu0 %v629
  %1933 = vmatpush1.bf16.msra.mxu0 %v628
  %1934 = vmatprep.subr.bf16.mxu0 %v637
  %1935 = vmatpush1.bf16.msra.mxu0 %v636
  %1936 = vmatprep.subr.bf16.mxu0 %v645
  %1937 = vmatpush1.bf16.msra.mxu0 %v644
  %1938 = vmatprep.subr.bf16.mxu0 %v653
  %1939 = vmatpush1.bf16.msra.mxu0 %v652
  %1940 = vmatprep.subr.bf16.mxu0 %v661
  %1941 = vmatpush1.bf16.msra.mxu0 %v660
  %1942 = vmatprep.subr.bf16.mxu0 %v669
  %1943 = vmatpush1.bf16.msra.mxu0 %v668
  %1944 = vmatprep.subr.bf16.mxu0 %v677
  %1945 = vmatpush1.bf16.msra.mxu0 %v676
  %1946 = vmatprep.subr.bf16.mxu0 %v685
  %1947 = vmatpush1.bf16.msra.mxu0 %v684
  %1948 = vmatprep.subr.bf16.mxu0 %v693
  %1949 = vmatpush1.bf16.msra.mxu0 %v692
  %1950 = vmatprep.subr.bf16.mxu0 %v701
  %1951 = vmatpush1.bf16.msra.mxu0 %v700
  %1952 = vmatprep.subr.bf16.mxu0 %v709
  %1953 = vmatpush1.bf16.msra.mxu0 %v708
  %1954 = vmatprep.mubr.bf16.mxu0 %v1876
  %1955 = vmatmul.mubr.bf16.gmra.mrb[0].mxu0 %v1875
  %v1956 = vpop.f32.mrb[0].mxu0
  %v1957 = vadd.f32 0.0, %v1956
  %v1958 = vpop.f32.mrb[0].mxu0
  %v1959 = vadd.f32 0.0, %v1958
  %v1960 = vpop.f32.mrb[0].mxu0
  %v1961 = vadd.f32 0.0, %v1960
  %v1962 = vpop.f32.mrb[0].mxu0
  %v1963 = vadd.f32 0.0, %v1962
  %1964 = vdwg.mxu0
  %1965 = vmatprep.subr.bf16.mxu0 %v591
  %1966 = vmatpush1.bf16.msra.mxu0 %v590
  %1967 = vmatprep.subr.bf16.mxu0 %v599
  %1968 = vmatpush1.bf16.msra.mxu0 %v598
  %1969 = vmatprep.subr.bf16.mxu0 %v607
  %1970 = vmatpush1.bf16.msra.mxu0 %v606
  %1971 = vmatprep.subr.bf16.mxu0 %v615
  %1972 = vmatpush1.bf16.msra.mxu0 %v614
  %1973 = vmatprep.subr.bf16.mxu0 %v623
  %1974 = vmatpush1.bf16.msra.mxu0 %v622
  %1975 = vmatprep.subr.bf16.mxu0 %v631
  %1976 = vmatpush1.bf16.msra.mxu0 %v630
  %1977 = vmatprep.subr.bf16.mxu0 %v639
  %1978 = vmatpush1.bf16.msra.mxu0 %v638
  %1979 = vmatprep.subr.bf16.mxu0 %v647
  %1980 = vmatpush1.bf16.msra.mxu0 %v646
  %1981 = vmatprep.subr.bf16.mxu0 %v655
  %1982 = vmatpush1.bf16.msra.mxu0 %v654
  %1983 = vmatprep.subr.bf16.mxu0 %v663
  %1984 = vmatpush1.bf16.msra.mxu0 %v662
  %1985 = vmatprep.subr.bf16.mxu0 %v671
  %1986 = vmatpush1.bf16.msra.mxu0 %v670
  %1987 = vmatprep.subr.bf16.mxu0 %v679
  %1988 = vmatpush1.bf16.msra.mxu0 %v678
  %1989 = vmatprep.subr.bf16.mxu0 %v687
  %1990 = vmatpush1.bf16.msra.mxu0 %v686
  %1991 = vmatprep.subr.bf16.mxu0 %v695
  %1992 = vmatpush1.bf16.msra.mxu0 %v694
  %1993 = vmatprep.subr.bf16.mxu0 %v703
  %1994 = vmatpush1.bf16.msra.mxu0 %v702
  %1995 = vmatprep.subr.bf16.mxu0 %v711
  %1996 = vmatpush1.bf16.msra.mxu0 %v710
  %1997 = vmatprep.mubr.bf16.mxu0 %v1876
  %1998 = vmatmul.mubr.bf16.gmra.mrb[0].mxu0 %v1875
  %v1999 = vpop.f32.mrb[0].mxu0
  %v2000 = vadd.f32 0.0, %v1999
  %v2001 = vpop.f32.mrb[0].mxu0
  %v2002 = vadd.f32 0.0, %v2001
  %v2003 = vpop.f32.mrb[0].mxu0
  %v2004 = vadd.f32 0.0, %v2003
  %v2005 = vpop.f32.mrb[0].mxu0
  %v2006 = vadd.f32 0.0, %v2005
  %2007 = vdwg.mxu0
  %2008 = vmatprep.subr.bf16.mxu0 %v593
  %2009 = vmatpush1.bf16.msra.mxu0 %v592
  %2010 = vmatprep.subr.bf16.mxu0 %v601
  %2011 = vmatpush1.bf16.msra.mxu0 %v600
  %2012 = vmatprep.subr.bf16.mxu0 %v609
  %2013 = vmatpush1.bf16.msra.mxu0 %v608
  %2014 = vmatprep.subr.bf16.mxu0 %v617
  %2015 = vmatpush1.bf16.msra.mxu0 %v616
  %2016 = vmatprep.subr.bf16.mxu0 %v625
  %2017 = vmatpush1.bf16.msra.mxu0 %v624
  %2018 = vmatprep.subr.bf16.mxu0 %v633
  %2019 = vmatpush1.bf16.msra.mxu0 %v632
  %2020 = vmatprep.subr.bf16.mxu0 %v641
  %2021 = vmatpush1.bf16.msra.mxu0 %v640
  %2022 = vmatprep.subr.bf16.mxu0 %v649
  %2023 = vmatpush1.bf16.msra.mxu0 %v648
  %2024 = vmatprep.subr.bf16.mxu0 %v657
  %2025 = vmatpush1.bf16.msra.mxu0 %v656
  %2026 = vmatprep.subr.bf16.mxu0 %v665
  %2027 = vmatpush1.bf16.msra.mxu0 %v664
  %2028 = vmatprep.subr.bf16.mxu0 %v673
  %2029 = vmatpush1.bf16.msra.mxu0 %v672
  %2030 = vmatprep.subr.bf16.mxu0 %v681
  %2031 = vmatpush1.bf16.msra.mxu0 %v680
  %2032 = vmatprep.subr.bf16.mxu0 %v689
  %2033 = vmatpush1.bf16.msra.mxu0 %v688
  %2034 = vmatprep.subr.bf16.mxu0 %v697
  %2035 = vmatpush1.bf16.msra.mxu0 %v696
  %2036 = vmatprep.subr.bf16.mxu0 %v705
  %2037 = vmatpush1.bf16.msra.mxu0 %v704
  %2038 = vmatprep.subr.bf16.mxu0 %v713
  %2039 = vmatpush1.bf16.msra.mxu0 %v712
  %2040 = vmatprep.mubr.bf16.mxu0 %v1876
  %2041 = vmatmul.mubr.bf16.gmra.mrb[0].mxu0 %v1875
  %v2042 = vpop.f32.mrb[0].mxu0
  %v2043 = vadd.f32 0.0, %v2042
  %v2044 = vpop.f32.mrb[0].mxu0
  %v2045 = vadd.f32 0.0, %v2044
  %v2046 = vpop.f32.mrb[0].mxu0
  %v2047 = vadd.f32 0.0, %v2046
  %v2048 = vpop.f32.mrb[0].mxu0
  %v2049 = vadd.f32 0.0, %v2048
  %2050 = vdwg.mxu0
  %2057 = vrot.lane.b32.xlu0 %v1916, 8
  %v2058 = vpop.permute.xlu0 %2057
  %2059 = vrot.lane.b32.xlu0 %v1957, 8
  %v2060 = vpop.permute.xlu0 %2059
  %2061 = vrot.lane.b32.xlu0 %v1959, 8
  %v2062 = vpop.permute.xlu0 %2061
  %2063 = vrot.lane.b32.xlu0 %v1920, 8
  %v2064 = vpop.permute.xlu0 %2063
  %2065 = vrot.lane.b32.xlu0 %v1961, 8
  %v2066 = vpop.permute.xlu0 %2065
  %2067 = vrot.lane.b32.xlu0 %v1963, 8
  %v2068 = vpop.permute.xlu0 %2067
  %v2069 = vsel %vm1032, %v2058, %v2060
  %v2070 = vsel %vm1032, %v2060, %v2062
  %v2071 = vsel %vm1032, %v2064, %v2066
  %v2072 = vsel %vm1032, %v2066, %v2068
  %v2077 = vmax.f32 %v1914, %v2069
  %v2078 = vmax.f32 %v1916, %v2070
  %v2079 = vmax.f32 %v1918, %v2071
  %v2080 = vmax.f32 %v1920, %v2072
  %2087 = vrot.lane.b32.xlu0 %v2002, 8
  %v2088 = vpop.permute.xlu0 %2087
  %2089 = vrot.lane.b32.xlu0 %v2043, 8
  %v2090 = vpop.permute.xlu0 %2089
  %2091 = vrot.lane.b32.xlu0 %v2045, 8
  %v2092 = vpop.permute.xlu0 %2091
  %2093 = vrot.lane.b32.xlu0 %v2006, 8
  %v2094 = vpop.permute.xlu0 %2093
  %2095 = vrot.lane.b32.xlu0 %v2047, 8
  %v2096 = vpop.permute.xlu0 %2095
  %2097 = vrot.lane.b32.xlu0 %v2049, 8
  %v2098 = vpop.permute.xlu0 %2097
  %v2099 = vsel %vm1032, %v2088, %v2090
  %v2100 = vsel %vm1032, %v2090, %v2092
  %v2101 = vsel %vm1032, %v2094, %v2096
  %v2102 = vsel %vm1032, %v2096, %v2098
  %v2109 = vmax.f32 %v1959, %v2088
  %v2110 = vmax.f32 %v2000, %v2099
  %v2111 = vmax.f32 %v2002, %v2100
  %v2112 = vmax.f32 %v1963, %v2094
  %v2113 = vmax.f32 %v2004, %v2101
  %v2114 = vmax.f32 %v2006, %v2102
  %2121 = vrot.lane.b32.xlu0 %v2109, 16
  %v2122 = vpop.permute.xlu0 %2121
  %2123 = vrot.lane.b32.xlu0 %v2110, 16
  %v2124 = vpop.permute.xlu0 %2123
  %2125 = vrot.lane.b32.xlu0 %v2111, 16
  %v2126 = vpop.permute.xlu0 %2125
  %2127 = vrot.lane.b32.xlu0 %v2112, 16
  %v2128 = vpop.permute.xlu0 %2127
  %2129 = vrot.lane.b32.xlu0 %v2113, 16
  %v2130 = vpop.permute.xlu0 %2129
  %2131 = vrot.lane.b32.xlu0 %v2114, 16
  %v2132 = vpop.permute.xlu0 %2131
  %v2133 = vsel %vm1097, %v2122, %v2124
  %v2134 = vsel %vm1097, %v2124, %v2126
  %v2135 = vsel %vm1097, %v2128, %v2130
  %v2136 = vsel %vm1097, %v2130, %v2132
  %v2141 = vmax.f32 %v2077, %v2133
  %v2142 = vmax.f32 %v2078, %v2134
  %v2143 = vmax.f32 %v2079, %v2135
  %v2144 = vmax.f32 %v2080, %v2136
  %v2145 = vadd.f32 %v2141, %v1114
  %v2146 = vadd.f32 %v2142, %v1118
  %v2147 = vadd.f32 %v2143, %v1114
  %v2148 = vadd.f32 %v2144, %v1118
  %v2149 = vmax.f32 %v2145, 0.0
  %v2150 = vmax.f32 %v2146, 0.0
  %v2151 = vmax.f32 %v2147, 0.0
  %v2152 = vmax.f32 %v2148, 0.0
  %2157 = vrot.lane.b32.xlu0 %v2149, 104
  %v2158 = vpop.permute.xlu0 %2157
  %2159 = vrot.lane.b32.xlu0 %v2150, 104
  %v2160 = vpop.permute.xlu0 %2159
  %2161 = vrot.lane.b32.xlu0 %v2151, 104
  %v2162 = vpop.permute.xlu0 %2161
  %2163 = vrot.lane.b32.xlu0 %v2152, 104
  %v2164 = vpop.permute.xlu0 %2163
  %v2165 = vsel %vm1827, %v2158, %v2160
  %v2166 = vsel %vm1827, %v2162, %v2164
  %vm2173 = vcmask 1048384
  %2174 = vst.msk [vmem:[#allocation2 + $0x28] sm:$0xff] %vm2173, %v2158
  %2175 = vst [vmem:[#allocation2 + $0x30] sm:$0xff] %v2165
  %vm2176 = vcmask 785408
  %2177 = vst.msk [vmem:[#allocation2 + $0x38] sm:$0xff] %vm2176, %v2160
  %2178 = vst.msk [vmem:[#allocation2 + $0x68] sm:$0xff] %vm2173, %v2162
  %2179 = vst [vmem:[#allocation2 + $0x70] sm:$0xff] %v2166
  %2180 = vst.msk [vmem:[#allocation2 + $0x78] sm:$0xff] %vm2176, %v2164
  %v2181 = vld [vmem:[%s4] sm:$0xff]
  %v2182 = vld [vmem:[%s4 + $0x8] sm:$0xff]
  %v2183 = vld [vmem:[%s4 + $0x10] sm:$0xff]
  %v2184 = vld [vmem:[%s4 + $0x18] sm:$0xff]
  %v2185 = vld [vmem:[%s4 + $0x20] sm:$0xff]
  %v2186 = vld [vmem:[%s4 + $0x28] sm:$0xff]
  %v2187 = vld [vmem:[%s4 + $0x30] sm:$0xff]
  %v2188 = vld [vmem:[%s4 + $0x38] sm:$0xff]
  %v2189 = vld [vmem:[%s4 + $0x40] sm:$0xff]
  %v2190 = vld [vmem:[%s4 + $0x48] sm:$0xff]
  %v2191 = vld [vmem:[%s4 + $0x50] sm:$0xff]
  %v2192 = vld [vmem:[%s4 + $0x58] sm:$0xff]
  %v2193 = vld [vmem:[%s4 + $0x60] sm:$0xff]
  %v2194 = vld [vmem:[%s4 + $0x68] sm:$0xff]
  %v2195 = vld [vmem:[%s4 + $0x70] sm:$0xff]
  %v2196 = vld [vmem:[%s4 + $0x78] sm:$0xff]
  %v2197 = vld [vmem:[%s4 + $0x80] sm:$0xff]
  %v2198 = vld [vmem:[%s4 + $0x88] sm:$0xff]
  %v2199 = vld [vmem:[%s4 + $0x90] sm:$0xff]
  %v2200 = vld [vmem:[%s4 + $0x98] sm:$0xff]
  %v2201 = vld [vmem:[%s4 + $0xa0] sm:$0xff]
  %v2202 = vld [vmem:[%s4 + $0xa8] sm:$0xff]
  %v2203 = vld [vmem:[%s4 + $0xb0] sm:$0xff]
  %v2204 = vld [vmem:[%s4 + $0xb8] sm:$0xff]
  %v2205 = vld [vmem:[%s4 + $0xc0] sm:$0xff]
  %v2206 = vld [vmem:[%s4 + $0xc8] sm:$0xff]
  %v2207 = vld [vmem:[%s4 + $0xd0] sm:$0xff]
  %v2208 = vld [vmem:[%s4 + $0xd8] sm:$0xff]
  %v2209 = vld [vmem:[%s4 + $0xe0] sm:$0xff]
  %v2210 = vld [vmem:[%s4 + $0xe8] sm:$0xff]
  %v2211 = vld [vmem:[%s4 + $0xf0] sm:$0xff]
  %v2212 = vld [vmem:[%s4 + $0xf8] sm:$0xff]
  %v2213 = vld [vmem:[%s4 + $0x100] sm:$0xff]
  %v2214 = vld [vmem:[%s4 + $0x108] sm:$0xff]
  %v2215 = vld [vmem:[%s4 + $0x110] sm:$0xff]
  %v2216 = vld [vmem:[%s4 + $0x118] sm:$0xff]
  %v2217 = vld [vmem:[%s4 + $0x120] sm:$0xff]
  %v2218 = vld [vmem:[%s4 + $0x128] sm:$0xff]
  %v2219 = vld [vmem:[%s4 + $0x130] sm:$0xff]
  %v2220 = vld [vmem:[%s4 + $0x138] sm:$0xff]
  %v2221 = vld [vmem:[%s4 + $0x140] sm:$0xff]
  %v2222 = vld [vmem:[%s4 + $0x148] sm:$0xff]
  %v2223 = vld [vmem:[%s4 + $0x150] sm:$0xff]
  %v2224 = vld [vmem:[%s4 + $0x158] sm:$0xff]
  %v2225 = vld [vmem:[%s4 + $0x160] sm:$0xff]
  %v2226 = vld [vmem:[%s4 + $0x168] sm:$0xff]
  %v2227 = vld [vmem:[%s4 + $0x170] sm:$0xff]
  %v2228 = vld [vmem:[%s4 + $0x178] sm:$0xff]
  %v2229 = vld [vmem:[%s4 + $0x180] sm:$0xff]
  %v2230 = vld [vmem:[%s4 + $0x188] sm:$0xff]
  %v2231 = vld [vmem:[%s4 + $0x190] sm:$0xff]
  %v2232 = vld [vmem:[%s4 + $0x198] sm:$0xff]
  %v2233 = vld [vmem:[%s4 + $0x1a0] sm:$0xff]
  %v2234 = vld [vmem:[%s4 + $0x1a8] sm:$0xff]
  %v2235 = vld [vmem:[%s4 + $0x1b0] sm:$0xff]
  %v2236 = vld [vmem:[%s4 + $0x1b8] sm:$0xff]
  %v2237 = vld [vmem:[%s4 + $0x1c0] sm:$0xff]
  %v2238 = vld [vmem:[%s4 + $0x1c8] sm:$0xff]
  %v2239 = vld [vmem:[%s4 + $0x1d0] sm:$0xff]
  %v2240 = vld [vmem:[%s4 + $0x1d8] sm:$0xff]
  %v2241 = vld [vmem:[%s4 + $0x1e0] sm:$0xff]
  %v2242 = vld [vmem:[%s4 + $0x1e8] sm:$0xff]
  %v2243 = vld [vmem:[%s4 + $0x1f0] sm:$0xff]
  %v2244 = vld [vmem:[%s4 + $0x1f8] sm:$0xff]
  %v2245 = vld [vmem:[%s4 + $0x200] sm:$0xff]
  %v2246 = vld [vmem:[%s4 + $0x208] sm:$0xff]
  %v2247 = vld [vmem:[%s4 + $0x210] sm:$0xff]
  %v2248 = vld [vmem:[%s4 + $0x218] sm:$0xff]
  %v2249 = vld [vmem:[%s4 + $0x220] sm:$0xff]
  %v2250 = vld [vmem:[%s4 + $0x228] sm:$0xff]
  %v2251 = vld [vmem:[%s4 + $0x230] sm:$0xff]
  %v2252 = vld [vmem:[%s4 + $0x238] sm:$0xff]
  %v2253 = vld [vmem:[%s4 + $0x240] sm:$0xff]
  %v2254 = vld [vmem:[%s4 + $0x248] sm:$0xff]
  %v2255 = vld [vmem:[%s4 + $0x250] sm:$0xff]
  %v2256 = vld [vmem:[%s4 + $0x258] sm:$0xff]
  %v2257 = vld [vmem:[%s4 + $0x260] sm:$0xff]
  %v2258 = vld [vmem:[%s4 + $0x268] sm:$0xff]
  %v2259 = vld [vmem:[%s4 + $0x270] sm:$0xff]
  %v2260 = vld [vmem:[%s4 + $0x278] sm:$0xff]
  %v2261 = vld [vmem:[%s4 + $0x280] sm:$0xff]
  %v2262 = vld [vmem:[%s4 + $0x288] sm:$0xff]
  %v2263 = vld [vmem:[%s4 + $0x290] sm:$0xff]
  %v2264 = vld [vmem:[%s4 + $0x298] sm:$0xff]
  %v2265 = vld [vmem:[%s4 + $0x2a0] sm:$0xff]
  %v2266 = vld [vmem:[%s4 + $0x2a8] sm:$0xff]
  %v2267 = vld [vmem:[%s4 + $0x2b0] sm:$0xff]
  %v2268 = vld [vmem:[%s4 + $0x2b8] sm:$0xff]
  %v2269 = vld [vmem:[%s4 + $0x2c0] sm:$0xff]
  %v2270 = vld [vmem:[%s4 + $0x2c8] sm:$0xff]
  %v2271 = vld [vmem:[%s4 + $0x2d0] sm:$0xff]
  %v2272 = vld [vmem:[%s4 + $0x2d8] sm:$0xff]
  %v2273 = vld [vmem:[%s4 + $0x2e0] sm:$0xff]
  %v2274 = vld [vmem:[%s4 + $0x2e8] sm:$0xff]
  %v2275 = vld [vmem:[%s4 + $0x2f0] sm:$0xff]
  %v2276 = vld [vmem:[%s4 + $0x2f8] sm:$0xff]
  %v2277 = vld [vmem:[%s4 + $0x300] sm:$0xff]
  %v2278 = vld [vmem:[%s4 + $0x308] sm:$0xff]
  %v2279 = vld [vmem:[%s4 + $0x310] sm:$0xff]
  %v2280 = vld [vmem:[%s4 + $0x318] sm:$0xff]
  %v2281 = vld [vmem:[%s4 + $0x320] sm:$0xff]
  %v2282 = vld [vmem:[%s4 + $0x328] sm:$0xff]
  %v2283 = vld [vmem:[%s4 + $0x330] sm:$0xff]
  %v2284 = vld [vmem:[%s4 + $0x338] sm:$0xff]
  %v2285 = vld [vmem:[%s4 + $0x340] sm:$0xff]
  %v2286 = vld [vmem:[%s4 + $0x348] sm:$0xff]
  %v2287 = vld [vmem:[%s4 + $0x350] sm:$0xff]
  %v2288 = vld [vmem:[%s4 + $0x358] sm:$0xff]
  %v2289 = vld [vmem:[%s4 + $0x360] sm:$0xff]
  %v2290 = vld [vmem:[%s4 + $0x368] sm:$0xff]
  %v2291 = vld [vmem:[%s4 + $0x370] sm:$0xff]
  %v2292 = vld [vmem:[%s4 + $0x378] sm:$0xff]
  %v2293 = vld [vmem:[%s4 + $0x380] sm:$0xff]
  %v2294 = vld [vmem:[%s4 + $0x388] sm:$0xff]
  %v2295 = vld [vmem:[%s4 + $0x390] sm:$0xff]
  %v2296 = vld [vmem:[%s4 + $0x398] sm:$0xff]
  %v2297 = vld [vmem:[%s4 + $0x3a0] sm:$0xff]
  %v2298 = vld [vmem:[%s4 + $0x3a8] sm:$0xff]
  %v2299 = vld [vmem:[%s4 + $0x3b0] sm:$0xff]
  %v2300 = vld [vmem:[%s4 + $0x3b8] sm:$0xff]
  %v2301 = vld [vmem:[%s4 + $0x3c0] sm:$0xff]
  %v2302 = vld [vmem:[%s4 + $0x3c8] sm:$0xff]
  %v2303 = vld [vmem:[%s4 + $0x3d0] sm:$0xff]
  %v2304 = vld [vmem:[%s4 + $0x3d8] sm:$0xff]
  %v2305 = vld [vmem:[%s4 + $0x3e0] sm:$0xff]
  %v2306 = vld [vmem:[%s4 + $0x3e8] sm:$0xff]
  %v2307 = vld [vmem:[%s4 + $0x3f0] sm:$0xff]
  %v2308 = vld [vmem:[%s4 + $0x3f8] sm:$0xff]
  %v2309 = vld [vmem:[%s4 + $0x400] sm:$0xff]
  %v2310 = vld [vmem:[%s4 + $0x408] sm:$0xff]
  %v2311 = vld [vmem:[%s4 + $0x410] sm:$0xff]
  %v2312 = vld [vmem:[%s4 + $0x418] sm:$0xff]
  %v2313 = vld [vmem:[%s4 + $0x420] sm:$0xff]
  %v2314 = vld [vmem:[%s4 + $0x428] sm:$0xff]
  %v2315 = vld [vmem:[%s4 + $0x430] sm:$0xff]
  %v2316 = vld [vmem:[%s4 + $0x438] sm:$0xff]
  %v2317 = vld [vmem:[%s4 + $0x440] sm:$0xff]
  %v2318 = vld [vmem:[%s4 + $0x448] sm:$0xff]
  %v2319 = vld [vmem:[%s4 + $0x450] sm:$0xff]
  %v2320 = vld [vmem:[%s4 + $0x458] sm:$0xff]
  %v2321 = vld [vmem:[%s4 + $0x460] sm:$0xff]
  %v2322 = vld [vmem:[%s4 + $0x468] sm:$0xff]
  %v2323 = vld [vmem:[%s4 + $0x470] sm:$0xff]
  %v2324 = vld [vmem:[%s4 + $0x478] sm:$0xff]
  %v2325 = vld [vmem:[%s4 + $0x480] sm:$0xff]
  %v2326 = vld [vmem:[%s4 + $0x488] sm:$0xff]
  %v2327 = vld [vmem:[%s4 + $0x490] sm:$0xff]
  %v2328 = vld [vmem:[%s4 + $0x498] sm:$0xff]
  %v2329 = vld [vmem:[%s4 + $0x4a0] sm:$0xff]
  %v2330 = vld [vmem:[%s4 + $0x4a8] sm:$0xff]
  %v2331 = vld [vmem:[%s4 + $0x4b0] sm:$0xff]
  %v2332 = vld [vmem:[%s4 + $0x4b8] sm:$0xff]
  %v2333 = vld [vmem:[%s4 + $0x4c0] sm:$0xff]
  %v2334 = vld [vmem:[%s4 + $0x4c8] sm:$0xff]
  %v2335 = vld [vmem:[%s4 + $0x4d0] sm:$0xff]
  %v2336 = vld [vmem:[%s4 + $0x4d8] sm:$0xff]
  %v2337 = vld [vmem:[%s4 + $0x4e0] sm:$0xff]
  %v2338 = vld [vmem:[%s4 + $0x4e8] sm:$0xff]
  %v2339 = vld [vmem:[%s4 + $0x4f0] sm:$0xff]
  %v2340 = vld [vmem:[%s4 + $0x4f8] sm:$0xff]
  %v2341 = vld [vmem:[%s4 + $0x500] sm:$0xff]
  %v2342 = vld [vmem:[%s4 + $0x508] sm:$0xff]
  %v2343 = vld [vmem:[%s4 + $0x510] sm:$0xff]
  %v2344 = vld [vmem:[%s4 + $0x518] sm:$0xff]
  %v2345 = vld [vmem:[%s4 + $0x520] sm:$0xff]
  %v2346 = vld [vmem:[%s4 + $0x528] sm:$0xff]
  %v2347 = vld [vmem:[%s4 + $0x530] sm:$0xff]
  %v2348 = vld [vmem:[%s4 + $0x538] sm:$0xff]
  %v2349 = vld [vmem:[%s4 + $0x540] sm:$0xff]
  %v2350 = vld [vmem:[%s4 + $0x548] sm:$0xff]
  %v2351 = vld [vmem:[%s4 + $0x550] sm:$0xff]
  %v2352 = vld [vmem:[%s4 + $0x558] sm:$0xff]
  %v2353 = vld [vmem:[%s4 + $0x560] sm:$0xff]
  %v2354 = vld [vmem:[%s4 + $0x568] sm:$0xff]
  %v2355 = vld [vmem:[%s4 + $0x570] sm:$0xff]
  %v2356 = vld [vmem:[%s4 + $0x578] sm:$0xff]
  %v2357 = vld [vmem:[%s4 + $0x580] sm:$0xff]
  %v2358 = vld [vmem:[%s4 + $0x588] sm:$0xff]
  %v2359 = vld [vmem:[%s4 + $0x590] sm:$0xff]
  %v2360 = vld [vmem:[%s4 + $0x598] sm:$0xff]
  %v2361 = vld [vmem:[%s4 + $0x5a0] sm:$0xff]
  %v2362 = vld [vmem:[%s4 + $0x5a8] sm:$0xff]
  %v2363 = vld [vmem:[%s4 + $0x5b0] sm:$0xff]
  %v2364 = vld [vmem:[%s4 + $0x5b8] sm:$0xff]
  %v2365 = vld [vmem:[%s4 + $0x5c0] sm:$0xff]
  %v2366 = vld [vmem:[%s4 + $0x5c8] sm:$0xff]
  %v2367 = vld [vmem:[%s4 + $0x5d0] sm:$0xff]
  %v2368 = vld [vmem:[%s4 + $0x5d8] sm:$0xff]
  %v2369 = vld [vmem:[%s4 + $0x5e0] sm:$0xff]
  %v2370 = vld [vmem:[%s4 + $0x5e8] sm:$0xff]
  %v2371 = vld [vmem:[%s4 + $0x5f0] sm:$0xff]
  %v2372 = vld [vmem:[%s4 + $0x5f8] sm:$0xff]
  %v2373 = vld [vmem:[%s4 + $0x600] sm:$0xff]
  %v2374 = vld [vmem:[%s4 + $0x608] sm:$0xff]
  %v2375 = vld [vmem:[%s4 + $0x610] sm:$0xff]
  %v2376 = vld [vmem:[%s4 + $0x618] sm:$0xff]
  %v2377 = vld [vmem:[%s4 + $0x620] sm:$0xff]
  %v2378 = vld [vmem:[%s4 + $0x628] sm:$0xff]
  %v2379 = vld [vmem:[%s4 + $0x630] sm:$0xff]
  %v2380 = vld [vmem:[%s4 + $0x638] sm:$0xff]
  %v2381 = vld [vmem:[%s4 + $0x640] sm:$0xff]
  %v2382 = vld [vmem:[%s4 + $0x648] sm:$0xff]
  %v2383 = vld [vmem:[%s4 + $0x650] sm:$0xff]
  %v2384 = vld [vmem:[%s4 + $0x658] sm:$0xff]
  %v2385 = vld [vmem:[%s4 + $0x660] sm:$0xff]
  %v2386 = vld [vmem:[%s4 + $0x668] sm:$0xff]
  %v2387 = vld [vmem:[%s4 + $0x670] sm:$0xff]
  %v2388 = vld [vmem:[%s4 + $0x678] sm:$0xff]
  %v2389 = vld [vmem:[%s4 + $0x680] sm:$0xff]
  %v2390 = vld [vmem:[%s4 + $0x688] sm:$0xff]
  %v2391 = vld [vmem:[%s4 + $0x690] sm:$0xff]
  %v2392 = vld [vmem:[%s4 + $0x698] sm:$0xff]
  %v2393 = vld [vmem:[%s4 + $0x6a0] sm:$0xff]
  %v2394 = vld [vmem:[%s4 + $0x6a8] sm:$0xff]
  %v2395 = vld [vmem:[%s4 + $0x6b0] sm:$0xff]
  %v2396 = vld [vmem:[%s4 + $0x6b8] sm:$0xff]
  %v2397 = vld [vmem:[%s4 + $0x6c0] sm:$0xff]
  %v2398 = vld [vmem:[%s4 + $0x6c8] sm:$0xff]
  %v2399 = vld [vmem:[%s4 + $0x6d0] sm:$0xff]
  %v2400 = vld [vmem:[%s4 + $0x6d8] sm:$0xff]
  %v2401 = vld [vmem:[%s4 + $0x6e0] sm:$0xff]
  %v2402 = vld [vmem:[%s4 + $0x6e8] sm:$0xff]
  %v2403 = vld [vmem:[%s4 + $0x6f0] sm:$0xff]
  %v2404 = vld [vmem:[%s4 + $0x6f8] sm:$0xff]
  %v2405 = vld [vmem:[%s4 + $0x700] sm:$0xff]
  %v2406 = vld [vmem:[%s4 + $0x708] sm:$0xff]
  %v2407 = vld [vmem:[%s4 + $0x710] sm:$0xff]
  %v2408 = vld [vmem:[%s4 + $0x718] sm:$0xff]
  %v2409 = vld [vmem:[%s4 + $0x720] sm:$0xff]
  %v2410 = vld [vmem:[%s4 + $0x728] sm:$0xff]
  %v2411 = vld [vmem:[%s4 + $0x730] sm:$0xff]
  %v2412 = vld [vmem:[%s4 + $0x738] sm:$0xff]
  %v2413 = vld [vmem:[%s4 + $0x740] sm:$0xff]
  %v2414 = vld [vmem:[%s4 + $0x748] sm:$0xff]
  %v2415 = vld [vmem:[%s4 + $0x750] sm:$0xff]
  %v2416 = vld [vmem:[%s4 + $0x758] sm:$0xff]
  %v2417 = vld [vmem:[%s4 + $0x760] sm:$0xff]
  %v2418 = vld [vmem:[%s4 + $0x768] sm:$0xff]
  %v2419 = vld [vmem:[%s4 + $0x770] sm:$0xff]
  %v2420 = vld [vmem:[%s4 + $0x778] sm:$0xff]
  %v2421 = vld [vmem:[%s4 + $0x780] sm:$0xff]
  %v2422 = vld [vmem:[%s4 + $0x788] sm:$0xff]
  %v2423 = vld [vmem:[%s4 + $0x790] sm:$0xff]
  %v2424 = vld [vmem:[%s4 + $0x798] sm:$0xff]
  %v2425 = vld [vmem:[%s4 + $0x7a0] sm:$0xff]
  %v2426 = vld [vmem:[%s4 + $0x7a8] sm:$0xff]
  %v2427 = vld [vmem:[%s4 + $0x7b0] sm:$0xff]
  %v2428 = vld [vmem:[%s4 + $0x7b8] sm:$0xff]
  %v2429 = vld [vmem:[%s4 + $0x7c0] sm:$0xff]
  %v2430 = vld [vmem:[%s4 + $0x7c8] sm:$0xff]
  %v2431 = vld [vmem:[%s4 + $0x7d0] sm:$0xff]
  %v2432 = vld [vmem:[%s4 + $0x7d8] sm:$0xff]
  %v2433 = vld [vmem:[%s4 + $0x7e0] sm:$0xff]
  %v2434 = vld [vmem:[%s4 + $0x7e8] sm:$0xff]
  %v2435 = vld [vmem:[%s4 + $0x7f0] sm:$0xff]
  %v2436 = vld [vmem:[%s4 + $0x7f8] sm:$0xff]
  %v2437 = vld [vmem:[%s4 + $0x800] sm:$0xff]
  %v2438 = vld [vmem:[%s4 + $0x808] sm:$0xff]
  %v2439 = vld [vmem:[%s4 + $0x810] sm:$0xff]
  %v2440 = vld [vmem:[%s4 + $0x818] sm:$0xff]
  %v2441 = vld [vmem:[%s4 + $0x820] sm:$0xff]
  %v2442 = vld [vmem:[%s4 + $0x828] sm:$0xff]
  %v2443 = vld [vmem:[%s4 + $0x830] sm:$0xff]
  %v2444 = vld [vmem:[%s4 + $0x838] sm:$0xff]
  %v2445 = vld [vmem:[%s5] sm:$0xff]
  %v2446 = vld [vmem:[#allocation2] sm:$0xff]
  %v2447 = vld [vmem:[#allocation2 + $0x8] sm:$0xff]
  %v2448 = vld [vmem:[#allocation2 + $0x10] sm:$0xff]
  %v2449 = vld [vmem:[#allocation2 + $0x18] sm:$0xff]
  %v2450 = vld [vmem:[#allocation2 + $0x20] sm:$0xff]
  %v2451 = vld [vmem:[#allocation2 + $0x40] sm:$0xff]
  %v2452 = vld [vmem:[#allocation2 + $0x48] sm:$0xff]
  %v2453 = vld [vmem:[#allocation2 + $0x50] sm:$0xff]
  %v2454 = vld [vmem:[#allocation2 + $0x58] sm:$0xff]
  %v2455 = vld [vmem:[#allocation2 + $0x60] sm:$0xff]
  %v2456 = vpack.c.bf16 %v2451, %v2446
  %v2457 = vpack.c.bf16 %v2452, %v2447
  %v2458 = vpack.c.bf16 %v2453, %v2448
  %v2459 = vpack.c.bf16 %v2454, %v2449
  %v2460 = vpack.c.bf16 %v2455, %v2450
  %v2462 = vlaneseq
  %v2463 = vshrl.u32 %v2462, 7
  %v2464 = vsub.s32 0, %v2463
  %v2465 = vrot.slane %v2445, %v2464
  %v2466 = vlaneseq
  %v2467 = vshrl.u32 %v2466, 7
  %v2468 = vsub.s32 1, %v2467
  %v2469 = vrot.slane %v2445, %v2468
  %v2470 = vlaneseq
  %v2471 = vshrl.u32 %v2470, 7
  %v2472 = vsub.s32 2, %v2471
  %v2473 = vrot.slane %v2445, %v2472
  %v2474 = vlaneseq
  %v2475 = vshrl.u32 %v2474, 7
  %v2476 = vsub.s32 3, %v2475
  %v2477 = vrot.slane %v2445, %v2476
  %v2478 = vlaneseq
  %v2479 = vshrl.u32 %v2478, 7
  %v2480 = vsub.s32 4, %v2479
  %v2481 = vrot.slane %v2445, %v2480
  %v2482 = vlaneseq
  %v2483 = vshrl.u32 %v2482, 7
  %v2484 = vsub.s32 5, %v2483
  %v2485 = vrot.slane %v2445, %v2484
  %v2486 = vlaneseq
  %v2487 = vshrl.u32 %v2486, 7
  %v2488 = vsub.s32 6, %v2487
  %v2489 = vrot.slane %v2445, %v2488
  %v2490 = vlaneseq
  %v2491 = vshrl.u32 %v2490, 7
  %v2492 = vsub.s32 7, %v2491
  %v2493 = vrot.slane %v2445, %v2492
  %v2766 = vunpack.c.l.b16 %v2181
  %v2767 = vunpack.c.h.b16 %v2181
  %v2768 = vunpack.c.l.b16 %v2182
  %v2769 = vunpack.c.h.b16 %v2182
  %v2770 = vunpack.c.l.b16 %v2183
  %v2771 = vunpack.c.h.b16 %v2183
  %v2772 = vunpack.c.l.b16 %v2184
  %v2773 = vunpack.c.h.b16 %v2184
  %v2774 = vunpack.c.l.b16 %v2185
  %v2775 = vunpack.c.h.b16 %v2185
  %v2776 = vunpack.c.l.b16 %v2186
  %v2777 = vunpack.c.h.b16 %v2186
  %v2778 = vunpack.c.l.b16 %v2187
  %v2779 = vunpack.c.h.b16 %v2187
  %v2780 = vunpack.c.l.b16 %v2188
  %v2781 = vunpack.c.h.b16 %v2188
  %v2782 = vunpack.c.l.b16 %v2189
  %v2783 = vunpack.c.h.b16 %v2189
  %v2784 = vunpack.c.l.b16 %v2190
  %v2785 = vunpack.c.h.b16 %v2190
  %v2786 = vunpack.c.l.b16 %v2191
  %v2787 = vunpack.c.h.b16 %v2191
  %v2788 = vunpack.c.l.b16 %v2192
  %v2789 = vunpack.c.h.b16 %v2192
  %v2790 = vunpack.c.l.b16 %v2193
  %v2791 = vunpack.c.h.b16 %v2193
  %v2792 = vunpack.c.l.b16 %v2194
  %v2793 = vunpack.c.h.b16 %v2194
  %v2794 = vunpack.c.l.b16 %v2195
  %v2795 = vunpack.c.h.b16 %v2195
  %v2796 = vunpack.c.l.b16 %v2196
  %v2797 = vunpack.c.h.b16 %v2196
  %v2798 = vunpack.c.l.b16 %v2197
  %v2799 = vunpack.c.h.b16 %v2197
  %v2800 = vunpack.c.l.b16 %v2198
  %v2801 = vunpack.c.h.b16 %v2198
  %v2802 = vunpack.c.l.b16 %v2199
  %v2803 = vunpack.c.h.b16 %v2199
  %v2804 = vunpack.c.l.b16 %v2200
  %v2805 = vunpack.c.h.b16 %v2200
  %v2806 = vunpack.c.l.b16 %v2201
  %v2807 = vunpack.c.h.b16 %v2201
  %v2808 = vunpack.c.l.b16 %v2202
  %v2809 = vunpack.c.h.b16 %v2202
  %v2810 = vunpack.c.l.b16 %v2203
  %v2811 = vunpack.c.h.b16 %v2203
  %v2812 = vunpack.c.l.b16 %v2204
  %v2813 = vunpack.c.h.b16 %v2204
  %v2814 = vunpack.c.l.b16 %v2205
  %v2815 = vunpack.c.h.b16 %v2205
  %v2816 = vunpack.c.l.b16 %v2206
  %v2817 = vunpack.c.h.b16 %v2206
  %v2818 = vunpack.c.l.b16 %v2207
  %v2819 = vunpack.c.h.b16 %v2207
  %v2820 = vunpack.c.l.b16 %v2208
  %v2821 = vunpack.c.h.b16 %v2208
  %v2822 = vunpack.c.l.b16 %v2209
  %v2823 = vunpack.c.h.b16 %v2209
  %v2824 = vunpack.c.l.b16 %v2210
  %v2825 = vunpack.c.h.b16 %v2210
  %v2826 = vunpack.c.l.b16 %v2211
  %v2827 = vunpack.c.h.b16 %v2211
  %v2828 = vunpack.c.l.b16 %v2212
  %v2829 = vunpack.c.h.b16 %v2212
  %v2830 = vunpack.c.l.b16 %v2213
  %v2831 = vunpack.c.h.b16 %v2213
  %v2832 = vunpack.c.l.b16 %v2214
  %v2833 = vunpack.c.h.b16 %v2214
  %v2834 = vunpack.c.l.b16 %v2215
  %v2835 = vunpack.c.h.b16 %v2215
  %v2836 = vunpack.c.l.b16 %v2216
  %v2837 = vunpack.c.h.b16 %v2216
  %v2838 = vunpack.c.l.b16 %v2217
  %v2839 = vunpack.c.h.b16 %v2217
  %v2840 = vunpack.c.l.b16 %v2218
  %v2841 = vunpack.c.h.b16 %v2218
  %v2842 = vunpack.c.l.b16 %v2219
  %v2843 = vunpack.c.h.b16 %v2219
  %v2844 = vunpack.c.l.b16 %v2220
  %v2845 = vunpack.c.h.b16 %v2220
  %v2846 = vunpack.c.l.b16 %v2221
  %v2847 = vunpack.c.h.b16 %v2221
  %v2848 = vunpack.c.l.b16 %v2222
  %v2849 = vunpack.c.h.b16 %v2222
  %v2850 = vunpack.c.l.b16 %v2223
  %v2851 = vunpack.c.h.b16 %v2223
  %v2852 = vunpack.c.l.b16 %v2224
  %v2853 = vunpack.c.h.b16 %v2224
  %v2854 = vunpack.c.l.b16 %v2225
  %v2855 = vunpack.c.h.b16 %v2225
  %v2856 = vunpack.c.l.b16 %v2226
  %v2857 = vunpack.c.h.b16 %v2226
  %v2858 = vunpack.c.l.b16 %v2227
  %v2859 = vunpack.c.h.b16 %v2227
  %v2860 = vunpack.c.l.b16 %v2228
  %v2861 = vunpack.c.h.b16 %v2228
  %v2862 = vunpack.c.l.b16 %v2229
  %v2863 = vunpack.c.h.b16 %v2229
  %v2864 = vunpack.c.l.b16 %v2230
  %v2865 = vunpack.c.h.b16 %v2230
  %v2866 = vunpack.c.l.b16 %v2231
  %v2867 = vunpack.c.h.b16 %v2231
  %v2868 = vunpack.c.l.b16 %v2232
  %v2869 = vunpack.c.h.b16 %v2232
  %v2870 = vunpack.c.l.b16 %v2233
  %v2871 = vunpack.c.h.b16 %v2233
  %v2872 = vunpack.c.l.b16 %v2234
  %v2873 = vunpack.c.h.b16 %v2234
  %v2874 = vunpack.c.l.b16 %v2235
  %v2875 = vunpack.c.h.b16 %v2235
  %v2876 = vunpack.c.l.b16 %v2236
  %v2877 = vunpack.c.h.b16 %v2236
  %v2878 = vunpack.c.l.b16 %v2237
  %v2879 = vunpack.c.h.b16 %v2237
  %v2880 = vunpack.c.l.b16 %v2238
  %v2881 = vunpack.c.h.b16 %v2238
  %v2882 = vunpack.c.l.b16 %v2239
  %v2883 = vunpack.c.h.b16 %v2239
  %v2884 = vunpack.c.l.b16 %v2240
  %v2885 = vunpack.c.h.b16 %v2240
  %v2886 = vunpack.c.l.b16 %v2241
  %v2887 = vunpack.c.h.b16 %v2241
  %v2888 = vunpack.c.l.b16 %v2242
  %v2889 = vunpack.c.h.b16 %v2242
  %v2890 = vunpack.c.l.b16 %v2243
  %v2891 = vunpack.c.h.b16 %v2243
  %v2892 = vunpack.c.l.b16 %v2244
  %v2893 = vunpack.c.h.b16 %v2244
  %v2894 = vunpack.c.l.b16 %v2245
  %v2895 = vunpack.c.h.b16 %v2245
  %v2896 = vunpack.c.l.b16 %v2246
  %v2897 = vunpack.c.h.b16 %v2246
  %v2898 = vunpack.c.l.b16 %v2247
  %v2899 = vunpack.c.h.b16 %v2247
  %v2900 = vunpack.c.l.b16 %v2248
  %v2901 = vunpack.c.h.b16 %v2248
  %v2902 = vunpack.c.l.b16 %v2249
  %v2903 = vunpack.c.h.b16 %v2249
  %v2904 = vunpack.c.l.b16 %v2250
  %v2905 = vunpack.c.h.b16 %v2250
  %v2906 = vunpack.c.l.b16 %v2251
  %v2907 = vunpack.c.h.b16 %v2251
  %v2908 = vunpack.c.l.b16 %v2252
  %v2909 = vunpack.c.h.b16 %v2252
  %v2910 = vunpack.c.l.b16 %v2253
  %v2911 = vunpack.c.h.b16 %v2253
  %v2912 = vunpack.c.l.b16 %v2254
  %v2913 = vunpack.c.h.b16 %v2254
  %v2914 = vunpack.c.l.b16 %v2255
  %v2915 = vunpack.c.h.b16 %v2255
  %v2916 = vunpack.c.l.b16 %v2256
  %v2917 = vunpack.c.h.b16 %v2256
  %v2918 = vunpack.c.l.b16 %v2257
  %v2919 = vunpack.c.h.b16 %v2257
  %v2920 = vunpack.c.l.b16 %v2258
  %v2921 = vunpack.c.h.b16 %v2258
  %v2922 = vunpack.c.l.b16 %v2259
  %v2923 = vunpack.c.h.b16 %v2259
  %v2924 = vunpack.c.l.b16 %v2260
  %v2925 = vunpack.c.h.b16 %v2260
  %v2926 = vunpack.c.l.b16 %v2261
  %v2927 = vunpack.c.h.b16 %v2261
  %v2928 = vunpack.c.l.b16 %v2262
  %v2929 = vunpack.c.h.b16 %v2262
  %v2930 = vunpack.c.l.b16 %v2263
  %v2931 = vunpack.c.h.b16 %v2263
  %v2932 = vunpack.c.l.b16 %v2264
  %v2933 = vunpack.c.h.b16 %v2264
  %v2934 = vunpack.c.l.b16 %v2265
  %v2935 = vunpack.c.h.b16 %v2265
  %v2936 = vunpack.c.l.b16 %v2266
  %v2937 = vunpack.c.h.b16 %v2266
  %v2938 = vunpack.c.l.b16 %v2267
  %v2939 = vunpack.c.h.b16 %v2267
  %v2940 = vunpack.c.l.b16 %v2268
  %v2941 = vunpack.c.h.b16 %v2268
  %v2942 = vunpack.c.l.b16 %v2269
  %v2943 = vunpack.c.h.b16 %v2269
  %v2944 = vunpack.c.l.b16 %v2270
  %v2945 = vunpack.c.h.b16 %v2270
  %v2946 = vunpack.c.l.b16 %v2271
  %v2947 = vunpack.c.h.b16 %v2271
  %v2948 = vunpack.c.l.b16 %v2272
  %v2949 = vunpack.c.h.b16 %v2272
  %v2950 = vunpack.c.l.b16 %v2273
  %v2951 = vunpack.c.h.b16 %v2273
  %v2952 = vunpack.c.l.b16 %v2274
  %v2953 = vunpack.c.h.b16 %v2274
  %v2954 = vunpack.c.l.b16 %v2275
  %v2955 = vunpack.c.h.b16 %v2275
  %v2956 = vunpack.c.l.b16 %v2276
  %v2957 = vunpack.c.h.b16 %v2276
  %v2958 = vunpack.c.l.b16 %v2277
  %v2959 = vunpack.c.h.b16 %v2277
  %v2960 = vunpack.c.l.b16 %v2278
  %v2961 = vunpack.c.h.b16 %v2278
  %v2962 = vunpack.c.l.b16 %v2279
  %v2963 = vunpack.c.h.b16 %v2279
  %v2964 = vunpack.c.l.b16 %v2280
  %v2965 = vunpack.c.h.b16 %v2280
  %v2966 = vunpack.c.l.b16 %v2281
  %v2967 = vunpack.c.h.b16 %v2281
  %v2968 = vunpack.c.l.b16 %v2282
  %v2969 = vunpack.c.h.b16 %v2282
  %v2970 = vunpack.c.l.b16 %v2283
  %v2971 = vunpack.c.h.b16 %v2283
  %v2972 = vunpack.c.l.b16 %v2284
  %v2973 = vunpack.c.h.b16 %v2284
  %v2974 = vunpack.c.l.b16 %v2285
  %v2975 = vunpack.c.h.b16 %v2285
  %v2976 = vunpack.c.l.b16 %v2286
  %v2977 = vunpack.c.h.b16 %v2286
  %v2978 = vunpack.c.l.b16 %v2287
  %v2979 = vunpack.c.h.b16 %v2287
  %v2980 = vunpack.c.l.b16 %v2288
  %v2981 = vunpack.c.h.b16 %v2288
  %v2982 = vunpack.c.l.b16 %v2289
  %v2983 = vunpack.c.h.b16 %v2289
  %v2984 = vunpack.c.l.b16 %v2290
  %v2985 = vunpack.c.h.b16 %v2290
  %v2986 = vunpack.c.l.b16 %v2291
  %v2987 = vunpack.c.h.b16 %v2291
  %v2988 = vunpack.c.l.b16 %v2292
  %v2989 = vunpack.c.h.b16 %v2292
  %v2990 = vunpack.c.l.b16 %v2293
  %v2991 = vunpack.c.h.b16 %v2293
  %v2992 = vunpack.c.l.b16 %v2294
  %v2993 = vunpack.c.h.b16 %v2294
  %v2994 = vunpack.c.l.b16 %v2295
  %v2995 = vunpack.c.h.b16 %v2295
  %v2996 = vunpack.c.l.b16 %v2296
  %v2997 = vunpack.c.h.b16 %v2296
  %v2998 = vunpack.c.l.b16 %v2297
  %v2999 = vunpack.c.h.b16 %v2297
  %v3000 = vunpack.c.l.b16 %v2298
  %v3001 = vunpack.c.h.b16 %v2298
  %v3002 = vunpack.c.l.b16 %v2299
  %v3003 = vunpack.c.h.b16 %v2299
  %v3004 = vunpack.c.l.b16 %v2300
  %v3005 = vunpack.c.h.b16 %v2300
  %v3006 = vunpack.c.l.b16 %v2301
  %v3007 = vunpack.c.h.b16 %v2301
  %v3008 = vunpack.c.l.b16 %v2302
  %v3009 = vunpack.c.h.b16 %v2302
  %v3010 = vunpack.c.l.b16 %v2303
  %v3011 = vunpack.c.h.b16 %v2303
  %v3012 = vunpack.c.l.b16 %v2304
  %v3013 = vunpack.c.h.b16 %v2304
  %v3014 = vunpack.c.l.b16 %v2305
  %v3015 = vunpack.c.h.b16 %v2305
  %v3016 = vunpack.c.l.b16 %v2306
  %v3017 = vunpack.c.h.b16 %v2306
  %v3018 = vunpack.c.l.b16 %v2307
  %v3019 = vunpack.c.h.b16 %v2307
  %v3020 = vunpack.c.l.b16 %v2308
  %v3021 = vunpack.c.h.b16 %v2308
  %v3022 = vunpack.c.l.b16 %v2309
  %v3023 = vunpack.c.h.b16 %v2309
  %v3024 = vunpack.c.l.b16 %v2310
  %v3025 = vunpack.c.h.b16 %v2310
  %v3026 = vunpack.c.l.b16 %v2311
  %v3027 = vunpack.c.h.b16 %v2311
  %v3028 = vunpack.c.l.b16 %v2312
  %v3029 = vunpack.c.h.b16 %v2312
  %v3030 = vunpack.c.l.b16 %v2313
  %v3031 = vunpack.c.h.b16 %v2313
  %v3032 = vunpack.c.l.b16 %v2314
  %v3033 = vunpack.c.h.b16 %v2314
  %v3034 = vunpack.c.l.b16 %v2315
  %v3035 = vunpack.c.h.b16 %v2315
  %v3036 = vunpack.c.l.b16 %v2316
  %v3037 = vunpack.c.h.b16 %v2316
  %v3038 = vunpack.c.l.b16 %v2317
  %v3039 = vunpack.c.h.b16 %v2317
  %v3040 = vunpack.c.l.b16 %v2318
  %v3041 = vunpack.c.h.b16 %v2318
  %v3042 = vunpack.c.l.b16 %v2319
  %v3043 = vunpack.c.h.b16 %v2319
  %v3044 = vunpack.c.l.b16 %v2320
  %v3045 = vunpack.c.h.b16 %v2320
  %v3046 = vunpack.c.l.b16 %v2321
  %v3047 = vunpack.c.h.b16 %v2321
  %v3048 = vunpack.c.l.b16 %v2322
  %v3049 = vunpack.c.h.b16 %v2322
  %v3050 = vunpack.c.l.b16 %v2323
  %v3051 = vunpack.c.h.b16 %v2323
  %v3052 = vunpack.c.l.b16 %v2324
  %v3053 = vunpack.c.h.b16 %v2324
  %v3054 = vunpack.c.l.b16 %v2325
  %v3055 = vunpack.c.h.b16 %v2325
  %v3056 = vunpack.c.l.b16 %v2326
  %v3057 = vunpack.c.h.b16 %v2326
  %v3058 = vunpack.c.l.b16 %v2327
  %v3059 = vunpack.c.h.b16 %v2327
  %v3060 = vunpack.c.l.b16 %v2328
  %v3061 = vunpack.c.h.b16 %v2328
  %v3062 = vunpack.c.l.b16 %v2329
  %v3063 = vunpack.c.h.b16 %v2329
  %v3064 = vunpack.c.l.b16 %v2330
  %v3065 = vunpack.c.h.b16 %v2330
  %v3066 = vunpack.c.l.b16 %v2331
  %v3067 = vunpack.c.h.b16 %v2331
  %v3068 = vunpack.c.l.b16 %v2332
  %v3069 = vunpack.c.h.b16 %v2332
  %v3070 = vunpack.c.l.b16 %v2333
  %v3071 = vunpack.c.h.b16 %v2333
  %v3072 = vunpack.c.l.b16 %v2334
  %v3073 = vunpack.c.h.b16 %v2334
  %v3074 = vunpack.c.l.b16 %v2335
  %v3075 = vunpack.c.h.b16 %v2335
  %v3076 = vunpack.c.l.b16 %v2336
  %v3077 = vunpack.c.h.b16 %v2336
  %v3078 = vunpack.c.l.b16 %v2337
  %v3079 = vunpack.c.h.b16 %v2337
  %v3080 = vunpack.c.l.b16 %v2338
  %v3081 = vunpack.c.h.b16 %v2338
  %v3082 = vunpack.c.l.b16 %v2339
  %v3083 = vunpack.c.h.b16 %v2339
  %v3084 = vunpack.c.l.b16 %v2340
  %v3085 = vunpack.c.h.b16 %v2340
  %v3086 = vunpack.c.l.b16 %v2341
  %v3087 = vunpack.c.h.b16 %v2341
  %v3088 = vunpack.c.l.b16 %v2342
  %v3089 = vunpack.c.h.b16 %v2342
  %v3090 = vunpack.c.l.b16 %v2343
  %v3091 = vunpack.c.h.b16 %v2343
  %v3092 = vunpack.c.l.b16 %v2344
  %v3093 = vunpack.c.h.b16 %v2344
  %v3094 = vunpack.c.l.b16 %v2345
  %v3095 = vunpack.c.h.b16 %v2345
  %v3096 = vunpack.c.l.b16 %v2346
  %v3097 = vunpack.c.h.b16 %v2346
  %v3098 = vunpack.c.l.b16 %v2347
  %v3099 = vunpack.c.h.b16 %v2347
  %v3100 = vunpack.c.l.b16 %v2348
  %v3101 = vunpack.c.h.b16 %v2348
  %v3102 = vunpack.c.l.b16 %v2349
  %v3103 = vunpack.c.h.b16 %v2349
  %v3104 = vunpack.c.l.b16 %v2350
  %v3105 = vunpack.c.h.b16 %v2350
  %v3106 = vunpack.c.l.b16 %v2351
  %v3107 = vunpack.c.h.b16 %v2351
  %v3108 = vunpack.c.l.b16 %v2352
  %v3109 = vunpack.c.h.b16 %v2352
  %v3110 = vunpack.c.l.b16 %v2353
  %v3111 = vunpack.c.h.b16 %v2353
  %v3112 = vunpack.c.l.b16 %v2354
  %v3113 = vunpack.c.h.b16 %v2354
  %v3114 = vunpack.c.l.b16 %v2355
  %v3115 = vunpack.c.h.b16 %v2355
  %v3116 = vunpack.c.l.b16 %v2356
  %v3117 = vunpack.c.h.b16 %v2356
  %v3118 = vunpack.c.l.b16 %v2357
  %v3119 = vunpack.c.h.b16 %v2357
  %v3120 = vunpack.c.l.b16 %v2358
  %v3121 = vunpack.c.h.b16 %v2358
  %v3122 = vunpack.c.l.b16 %v2359
  %v3123 = vunpack.c.h.b16 %v2359
  %v3124 = vunpack.c.l.b16 %v2360
  %v3125 = vunpack.c.h.b16 %v2360
  %v3126 = vunpack.c.l.b16 %v2361
  %v3127 = vunpack.c.h.b16 %v2361
  %v3128 = vunpack.c.l.b16 %v2362
  %v3129 = vunpack.c.h.b16 %v2362
  %v3130 = vunpack.c.l.b16 %v2363
  %v3131 = vunpack.c.h.b16 %v2363
  %v3132 = vunpack.c.l.b16 %v2364
  %v3133 = vunpack.c.h.b16 %v2364
  %v3134 = vunpack.c.l.b16 %v2365
  %v3135 = vunpack.c.h.b16 %v2365
  %v3136 = vunpack.c.l.b16 %v2366
  %v3137 = vunpack.c.h.b16 %v2366
  %v3138 = vunpack.c.l.b16 %v2367
  %v3139 = vunpack.c.h.b16 %v2367
  %v3140 = vunpack.c.l.b16 %v2368
  %v3141 = vunpack.c.h.b16 %v2368
  %v3142 = vunpack.c.l.b16 %v2369
  %v3143 = vunpack.c.h.b16 %v2369
  %v3144 = vunpack.c.l.b16 %v2370
  %v3145 = vunpack.c.h.b16 %v2370
  %v3146 = vunpack.c.l.b16 %v2371
  %v3147 = vunpack.c.h.b16 %v2371
  %v3148 = vunpack.c.l.b16 %v2372
  %v3149 = vunpack.c.h.b16 %v2372
  %v3150 = vunpack.c.l.b16 %v2373
  %v3151 = vunpack.c.h.b16 %v2373
  %v3152 = vunpack.c.l.b16 %v2374
  %v3153 = vunpack.c.h.b16 %v2374
  %v3154 = vunpack.c.l.b16 %v2375
  %v3155 = vunpack.c.h.b16 %v2375
  %v3156 = vunpack.c.l.b16 %v2376
  %v3157 = vunpack.c.h.b16 %v2376
  %v3158 = vunpack.c.l.b16 %v2377
  %v3159 = vunpack.c.h.b16 %v2377
  %v3160 = vunpack.c.l.b16 %v2378
  %v3161 = vunpack.c.h.b16 %v2378
  %v3162 = vunpack.c.l.b16 %v2379
  %v3163 = vunpack.c.h.b16 %v2379
  %v3164 = vunpack.c.l.b16 %v2380
  %v3165 = vunpack.c.h.b16 %v2380
  %v3166 = vunpack.c.l.b16 %v2381
  %v3167 = vunpack.c.h.b16 %v2381
  %v3168 = vunpack.c.l.b16 %v2382
  %v3169 = vunpack.c.h.b16 %v2382
  %v3170 = vunpack.c.l.b16 %v2383
  %v3171 = vunpack.c.h.b16 %v2383
  %v3172 = vunpack.c.l.b16 %v2384
  %v3173 = vunpack.c.h.b16 %v2384
  %v3174 = vunpack.c.l.b16 %v2385
  %v3175 = vunpack.c.h.b16 %v2385
  %v3176 = vunpack.c.l.b16 %v2386
  %v3177 = vunpack.c.h.b16 %v2386
  %v3178 = vunpack.c.l.b16 %v2387
  %v3179 = vunpack.c.h.b16 %v2387
  %v3180 = vunpack.c.l.b16 %v2388
  %v3181 = vunpack.c.h.b16 %v2388
  %v3182 = vunpack.c.l.b16 %v2389
  %v3183 = vunpack.c.h.b16 %v2389
  %v3184 = vunpack.c.l.b16 %v2390
  %v3185 = vunpack.c.h.b16 %v2390
  %v3186 = vunpack.c.l.b16 %v2391
  %v3187 = vunpack.c.h.b16 %v2391
  %v3188 = vunpack.c.l.b16 %v2392
  %v3189 = vunpack.c.h.b16 %v2392
  %v3190 = vunpack.c.l.b16 %v2393
  %v3191 = vunpack.c.h.b16 %v2393
  %v3192 = vunpack.c.l.b16 %v2394
  %v3193 = vunpack.c.h.b16 %v2394
  %v3194 = vunpack.c.l.b16 %v2395
  %v3195 = vunpack.c.h.b16 %v2395
  %v3196 = vunpack.c.l.b16 %v2396
  %v3197 = vunpack.c.h.b16 %v2396
  %v3198 = vunpack.c.l.b16 %v2397
  %v3199 = vunpack.c.h.b16 %v2397
  %v3200 = vunpack.c.l.b16 %v2398
  %v3201 = vunpack.c.h.b16 %v2398
  %v3202 = vunpack.c.l.b16 %v2399
  %v3203 = vunpack.c.h.b16 %v2399
  %v3204 = vunpack.c.l.b16 %v2400
  %v3205 = vunpack.c.h.b16 %v2400
  %v3206 = vunpack.c.l.b16 %v2401
  %v3207 = vunpack.c.h.b16 %v2401
  %v3208 = vunpack.c.l.b16 %v2402
  %v3209 = vunpack.c.h.b16 %v2402
  %v3210 = vunpack.c.l.b16 %v2403
  %v3211 = vunpack.c.h.b16 %v2403
  %v3212 = vunpack.c.l.b16 %v2404
  %v3213 = vunpack.c.h.b16 %v2404
  %v3214 = vunpack.c.l.b16 %v2405
  %v3215 = vunpack.c.h.b16 %v2405
  %v3216 = vunpack.c.l.b16 %v2406
  %v3217 = vunpack.c.h.b16 %v2406
  %v3218 = vunpack.c.l.b16 %v2407
  %v3219 = vunpack.c.h.b16 %v2407
  %v3220 = vunpack.c.l.b16 %v2408
  %v3221 = vunpack.c.h.b16 %v2408
  %v3222 = vunpack.c.l.b16 %v2409
  %v3223 = vunpack.c.h.b16 %v2409
  %v3224 = vunpack.c.l.b16 %v2410
  %v3225 = vunpack.c.h.b16 %v2410
  %v3226 = vunpack.c.l.b16 %v2411
  %v3227 = vunpack.c.h.b16 %v2411
  %v3228 = vunpack.c.l.b16 %v2412
  %v3229 = vunpack.c.h.b16 %v2412
  %v3230 = vunpack.c.l.b16 %v2413
  %v3231 = vunpack.c.h.b16 %v2413
  %v3232 = vunpack.c.l.b16 %v2414
  %v3233 = vunpack.c.h.b16 %v2414
  %v3234 = vunpack.c.l.b16 %v2415
  %v3235 = vunpack.c.h.b16 %v2415
  %v3236 = vunpack.c.l.b16 %v2416
  %v3237 = vunpack.c.h.b16 %v2416
  %v3238 = vunpack.c.l.b16 %v2417
  %v3239 = vunpack.c.h.b16 %v2417
  %v3240 = vunpack.c.l.b16 %v2418
  %v3241 = vunpack.c.h.b16 %v2418
  %v3242 = vunpack.c.l.b16 %v2419
  %v3243 = vunpack.c.h.b16 %v2419
  %v3244 = vunpack.c.l.b16 %v2420
  %v3245 = vunpack.c.h.b16 %v2420
  %v3246 = vunpack.c.l.b16 %v2421
  %v3247 = vunpack.c.h.b16 %v2421
  %v3248 = vunpack.c.l.b16 %v2422
  %v3249 = vunpack.c.h.b16 %v2422
  %v3250 = vunpack.c.l.b16 %v2423
  %v3251 = vunpack.c.h.b16 %v2423
  %v3252 = vunpack.c.l.b16 %v2424
  %v3253 = vunpack.c.h.b16 %v2424
  %v3254 = vunpack.c.l.b16 %v2425
  %v3255 = vunpack.c.h.b16 %v2425
  %v3256 = vunpack.c.l.b16 %v2426
  %v3257 = vunpack.c.h.b16 %v2426
  %v3258 = vunpack.c.l.b16 %v2427
  %v3259 = vunpack.c.h.b16 %v2427
  %v3260 = vunpack.c.l.b16 %v2428
  %v3261 = vunpack.c.h.b16 %v2428
  %v3262 = vunpack.c.l.b16 %v2429
  %v3263 = vunpack.c.h.b16 %v2429
  %v3264 = vunpack.c.l.b16 %v2430
  %v3265 = vunpack.c.h.b16 %v2430
  %v3266 = vunpack.c.l.b16 %v2431
  %v3267 = vunpack.c.h.b16 %v2431
  %v3268 = vunpack.c.l.b16 %v2432
  %v3269 = vunpack.c.h.b16 %v2432
  %v3270 = vunpack.c.l.b16 %v2433
  %v3271 = vunpack.c.h.b16 %v2433
  %v3272 = vunpack.c.l.b16 %v2434
  %v3273 = vunpack.c.h.b16 %v2434
  %v3274 = vunpack.c.l.b16 %v2435
  %v3275 = vunpack.c.h.b16 %v2435
  %v3276 = vunpack.c.l.b16 %v2436
  %v3277 = vunpack.c.h.b16 %v2436
  %v3278 = vunpack.c.l.b16 %v2437
  %v3279 = vunpack.c.h.b16 %v2437
  %v3280 = vunpack.c.l.b16 %v2438
  %v3281 = vunpack.c.h.b16 %v2438
  %v3282 = vunpack.c.l.b16 %v2439
  %v3283 = vunpack.c.h.b16 %v2439
  %v3284 = vunpack.c.l.b16 %v2440
  %v3285 = vunpack.c.h.b16 %v2440
  %v3286 = vunpack.c.l.b16 %v2441
  %v3287 = vunpack.c.h.b16 %v2441
  %v3288 = vunpack.c.l.b16 %v2442
  %v3289 = vunpack.c.h.b16 %v2442
  %v3290 = vunpack.c.l.b16 %v2443
  %v3291 = vunpack.c.h.b16 %v2443
  %v3292 = vunpack.c.l.b16 %v2444
  %v3293 = vunpack.c.h.b16 %v2444
  %v3294 = vpack.c.b16 %v2774, %v2766
  %v3295 = vpack.c.b16 %v2775, %v2767
  %v3296 = vpack.c.b16 %v2776, %v2768
  %v3297 = vpack.c.b16 %v2777, %v2769
  %v3298 = vpack.c.b16 %v2778, %v2770
  %v3299 = vpack.c.b16 %v2779, %v2771
  %v3300 = vpack.c.b16 %v2780, %v2772
  %v3301 = vpack.c.b16 %v2781, %v2773
  %v3302 = vpack.c.b16 %v2790, %v2782
  %v3303 = vpack.c.b16 %v2791, %v2783
  %v3304 = vpack.c.b16 %v2792, %v2784
  %v3305 = vpack.c.b16 %v2793, %v2785
  %v3306 = vpack.c.b16 %v2794, %v2786
  %v3307 = vpack.c.b16 %v2795, %v2787
  %v3308 = vpack.c.b16 %v2796, %v2788
  %v3309 = vpack.c.b16 %v2797, %v2789
  %v3310 = vpack.c.b16 %v2806, %v2798
  %v3311 = vpack.c.b16 %v2807, %v2799
  %v3312 = vpack.c.b16 %v2808, %v2800
  %v3313 = vpack.c.b16 %v2809, %v2801
  %v3314 = vpack.c.b16 %v2810, %v2802
  %v3315 = vpack.c.b16 %v2811, %v2803
  %v3316 = vpack.c.b16 %v2812, %v2804
  %v3317 = vpack.c.b16 %v2813, %v2805
  %v3318 = vpack.c.b16 %v2822, %v2814
  %v3319 = vpack.c.b16 %v2823, %v2815
  %v3320 = vpack.c.b16 %v2824, %v2816
  %v3321 = vpack.c.b16 %v2825, %v2817
  %v3322 = vpack.c.b16 %v2826, %v2818
  %v3323 = vpack.c.b16 %v2827, %v2819
  %v3324 = vpack.c.b16 %v2828, %v2820
  %v3325 = vpack.c.b16 %v2829, %v2821
  %v3326 = vpack.c.b16 %v2838, %v2830
  %v3327 = vpack.c.b16 %v2839, %v2831
  %v3328 = vpack.c.b16 %v2840, %v2832
  %v3329 = vpack.c.b16 %v2841, %v2833
  %v3330 = vpack.c.b16 %v2842, %v2834
  %v3331 = vpack.c.b16 %v2843, %v2835
  %v3332 = vpack.c.b16 %v2844, %v2836
  %v3333 = vpack.c.b16 %v2845, %v2837
  %v3334 = vpack.c.b16 %v2854, %v2846
  %v3335 = vpack.c.b16 %v2855, %v2847
  %v3336 = vpack.c.b16 %v2856, %v2848
  %v3337 = vpack.c.b16 %v2857, %v2849
  %v3338 = vpack.c.b16 %v2858, %v2850
  %v3339 = vpack.c.b16 %v2859, %v2851
  %v3340 = vpack.c.b16 %v2860, %v2852
  %v3341 = vpack.c.b16 %v2861, %v2853
  %v3342 = vpack.c.b16 %v2870, %v2862
  %v3343 = vpack.c.b16 %v2871, %v2863
  %v3344 = vpack.c.b16 %v2872, %v2864
  %v3345 = vpack.c.b16 %v2873, %v2865
  %v3346 = vpack.c.b16 %v2874, %v2866
  %v3347 = vpack.c.b16 %v2875, %v2867
  %v3348 = vpack.c.b16 %v2876, %v2868
  %v3349 = vpack.c.b16 %v2877, %v2869
  %v3350 = vpack.c.b16 %v2886, %v2878
  %v3351 = vpack.c.b16 %v2887, %v2879
  %v3352 = vpack.c.b16 %v2888, %v2880
  %v3353 = vpack.c.b16 %v2889, %v2881
  %v3354 = vpack.c.b16 %v2890, %v2882
  %v3355 = vpack.c.b16 %v2891, %v2883
  %v3356 = vpack.c.b16 %v2892, %v2884
  %v3357 = vpack.c.b16 %v2893, %v2885
  %v3358 = vpack.c.b16 %v2902, %v2894
  %v3359 = vpack.c.b16 %v2903, %v2895
  %v3360 = vpack.c.b16 %v2904, %v2896
  %v3361 = vpack.c.b16 %v2905, %v2897
  %v3362 = vpack.c.b16 %v2906, %v2898
  %v3363 = vpack.c.b16 %v2907, %v2899
  %v3364 = vpack.c.b16 %v2908, %v2900
  %v3365 = vpack.c.b16 %v2909, %v2901
  %v3366 = vpack.c.b16 %v2918, %v2910
  %v3367 = vpack.c.b16 %v2919, %v2911
  %v3368 = vpack.c.b16 %v2920, %v2912
  %v3369 = vpack.c.b16 %v2921, %v2913
  %v3370 = vpack.c.b16 %v2922, %v2914
  %v3371 = vpack.c.b16 %v2923, %v2915
  %v3372 = vpack.c.b16 %v2924, %v2916
  %v3373 = vpack.c.b16 %v2925, %v2917
  %v3374 = vpack.c.b16 %v2934, %v2926
  %v3375 = vpack.c.b16 %v2935, %v2927
  %v3376 = vpack.c.b16 %v2936, %v2928
  %v3377 = vpack.c.b16 %v2937, %v2929
  %v3378 = vpack.c.b16 %v2938, %v2930
  %v3379 = vpack.c.b16 %v2939, %v2931
  %v3380 = vpack.c.b16 %v2940, %v2932
  %v3381 = vpack.c.b16 %v2941, %v2933
  %v3382 = vpack.c.b16 %v2950, %v2942
  %v3383 = vpack.c.b16 %v2951, %v2943
  %v3384 = vpack.c.b16 %v2952, %v2944
  %v3385 = vpack.c.b16 %v2953, %v2945
  %v3386 = vpack.c.b16 %v2954, %v2946
  %v3387 = vpack.c.b16 %v2955, %v2947
  %v3388 = vpack.c.b16 %v2956, %v2948
  %v3389 = vpack.c.b16 %v2957, %v2949
  %v3390 = vpack.c.b16 %v2966, %v2958
  %v3391 = vpack.c.b16 %v2967, %v2959
  %v3392 = vpack.c.b16 %v2968, %v2960
  %v3393 = vpack.c.b16 %v2969, %v2961
  %v3394 = vpack.c.b16 %v2970, %v2962
  %v3395 = vpack.c.b16 %v2971, %v2963
  %v3396 = vpack.c.b16 %v2972, %v2964
  %v3397 = vpack.c.b16 %v2973, %v2965
  %v3398 = vpack.c.b16 %v2982, %v2974
  %v3399 = vpack.c.b16 %v2983, %v2975
  %v3400 = vpack.c.b16 %v2984, %v2976
  %v3401 = vpack.c.b16 %v2985, %v2977
  %v3402 = vpack.c.b16 %v2986, %v2978
  %v3403 = vpack.c.b16 %v2987, %v2979
  %v3404 = vpack.c.b16 %v2988, %v2980
  %v3405 = vpack.c.b16 %v2989, %v2981
  %v3406 = vpack.c.b16 %v2998, %v2990
  %v3407 = vpack.c.b16 %v2999, %v2991
  %v3408 = vpack.c.b16 %v3000, %v2992
  %v3409 = vpack.c.b16 %v3001, %v2993
  %v3410 = vpack.c.b16 %v3002, %v2994
  %v3411 = vpack.c.b16 %v3003, %v2995
  %v3412 = vpack.c.b16 %v3004, %v2996
  %v3413 = vpack.c.b16 %v3005, %v2997
  %v3414 = vpack.c.b16 %v3014, %v3006
  %v3415 = vpack.c.b16 %v3015, %v3007
  %v3416 = vpack.c.b16 %v3016, %v3008
  %v3417 = vpack.c.b16 %v3017, %v3009
  %v3418 = vpack.c.b16 %v3018, %v3010
  %v3419 = vpack.c.b16 %v3019, %v3011
  %v3420 = vpack.c.b16 %v3020, %v3012
  %v3421 = vpack.c.b16 %v3021, %v3013
  %v3422 = vpack.c.b16 %v3030, %v3022
  %v3423 = vpack.c.b16 %v3031, %v3023
  %v3424 = vpack.c.b16 %v3032, %v3024
  %v3425 = vpack.c.b16 %v3033, %v3025
  %v3426 = vpack.c.b16 %v3034, %v3026
  %v3427 = vpack.c.b16 %v3035, %v3027
  %v3428 = vpack.c.b16 %v3036, %v3028
  %v3429 = vpack.c.b16 %v3037, %v3029
  %v3430 = vpack.c.b16 %v3046, %v3038
  %v3431 = vpack.c.b16 %v3047, %v3039
  %v3432 = vpack.c.b16 %v3048, %v3040
  %v3433 = vpack.c.b16 %v3049, %v3041
  %v3434 = vpack.c.b16 %v3050, %v3042
  %v3435 = vpack.c.b16 %v3051, %v3043
  %v3436 = vpack.c.b16 %v3052, %v3044
  %v3437 = vpack.c.b16 %v3053, %v3045
  %v3438 = vpack.c.b16 %v3062, %v3054
  %v3439 = vpack.c.b16 %v3063, %v3055
  %v3440 = vpack.c.b16 %v3064, %v3056
  %v3441 = vpack.c.b16 %v3065, %v3057
  %v3442 = vpack.c.b16 %v3066, %v3058
  %v3443 = vpack.c.b16 %v3067, %v3059
  %v3444 = vpack.c.b16 %v3068, %v3060
  %v3445 = vpack.c.b16 %v3069, %v3061
  %v3446 = vpack.c.b16 %v3078, %v3070
  %v3447 = vpack.c.b16 %v3079, %v3071
  %v3448 = vpack.c.b16 %v3080, %v3072
  %v3449 = vpack.c.b16 %v3081, %v3073
  %v3450 = vpack.c.b16 %v3082, %v3074
  %v3451 = vpack.c.b16 %v3083, %v3075
  %v3452 = vpack.c.b16 %v3084, %v3076
  %v3453 = vpack.c.b16 %v3085, %v3077
  %v3454 = vpack.c.b16 %v3094, %v3086
  %v3455 = vpack.c.b16 %v3095, %v3087
  %v3456 = vpack.c.b16 %v3096, %v3088
  %v3457 = vpack.c.b16 %v3097, %v3089
  %v3458 = vpack.c.b16 %v3098, %v3090
  %v3459 = vpack.c.b16 %v3099, %v3091
  %v3460 = vpack.c.b16 %v3100, %v3092
  %v3461 = vpack.c.b16 %v3101, %v3093
  %v3462 = vpack.c.b16 %v3110, %v3102
  %v3463 = vpack.c.b16 %v3111, %v3103
  %v3464 = vpack.c.b16 %v3112, %v3104
  %v3465 = vpack.c.b16 %v3113, %v3105
  %v3466 = vpack.c.b16 %v3114, %v3106
  %v3467 = vpack.c.b16 %v3115, %v3107
  %v3468 = vpack.c.b16 %v3116, %v3108
  %v3469 = vpack.c.b16 %v3117, %v3109
  %v3470 = vpack.c.b16 %v3126, %v3118
  %v3471 = vpack.c.b16 %v3127, %v3119
  %v3472 = vpack.c.b16 %v3128, %v3120
  %v3473 = vpack.c.b16 %v3129, %v3121
  %v3474 = vpack.c.b16 %v3130, %v3122
  %v3475 = vpack.c.b16 %v3131, %v3123
  %v3476 = vpack.c.b16 %v3132, %v3124
  %v3477 = vpack.c.b16 %v3133, %v3125
  %v3478 = vpack.c.b16 %v3142, %v3134
  %v3479 = vpack.c.b16 %v3143, %v3135
  %v3480 = vpack.c.b16 %v3144, %v3136
  %v3481 = vpack.c.b16 %v3145, %v3137
  %v3482 = vpack.c.b16 %v3146, %v3138
  %v3483 = vpack.c.b16 %v3147, %v3139
  %v3484 = vpack.c.b16 %v3148, %v3140
  %v3485 = vpack.c.b16 %v3149, %v3141
  %v3486 = vpack.c.b16 %v3158, %v3150
  %v3487 = vpack.c.b16 %v3159, %v3151
  %v3488 = vpack.c.b16 %v3160, %v3152
  %v3489 = vpack.c.b16 %v3161, %v3153
  %v3490 = vpack.c.b16 %v3162, %v3154
  %v3491 = vpack.c.b16 %v3163, %v3155
  %v3492 = vpack.c.b16 %v3164, %v3156
  %v3493 = vpack.c.b16 %v3165, %v3157
  %v3494 = vpack.c.b16 %v3174, %v3166
  %v3495 = vpack.c.b16 %v3175, %v3167
  %v3496 = vpack.c.b16 %v3176, %v3168
  %v3497 = vpack.c.b16 %v3177, %v3169
  %v3498 = vpack.c.b16 %v3178, %v3170
  %v3499 = vpack.c.b16 %v3179, %v3171
  %v3500 = vpack.c.b16 %v3180, %v3172
  %v3501 = vpack.c.b16 %v3181, %v3173
  %v3502 = vpack.c.b16 %v3190, %v3182
  %v3503 = vpack.c.b16 %v3191, %v3183
  %v3504 = vpack.c.b16 %v3192, %v3184
  %v3505 = vpack.c.b16 %v3193, %v3185
  %v3506 = vpack.c.b16 %v3194, %v3186
  %v3507 = vpack.c.b16 %v3195, %v3187
  %v3508 = vpack.c.b16 %v3196, %v3188
  %v3509 = vpack.c.b16 %v3197, %v3189
  %v3510 = vpack.c.b16 %v3206, %v3198
  %v3511 = vpack.c.b16 %v3207, %v3199
  %v3512 = vpack.c.b16 %v3208, %v3200
  %v3513 = vpack.c.b16 %v3209, %v3201
  %v3514 = vpack.c.b16 %v3210, %v3202
  %v3515 = vpack.c.b16 %v3211, %v3203
  %v3516 = vpack.c.b16 %v3212, %v3204
  %v3517 = vpack.c.b16 %v3213, %v3205
  %v3518 = vpack.c.b16 %v3222, %v3214
  %v3519 = vpack.c.b16 %v3223, %v3215
  %v3520 = vpack.c.b16 %v3224, %v3216
  %v3521 = vpack.c.b16 %v3225, %v3217
  %v3522 = vpack.c.b16 %v3226, %v3218
  %v3523 = vpack.c.b16 %v3227, %v3219
  %v3524 = vpack.c.b16 %v3228, %v3220
  %v3525 = vpack.c.b16 %v3229, %v3221
  %v3526 = vpack.c.b16 %v3238, %v3230
  %v3527 = vpack.c.b16 %v3239, %v3231
  %v3528 = vpack.c.b16 %v3240, %v3232
  %v3529 = vpack.c.b16 %v3241, %v3233
  %v3530 = vpack.c.b16 %v3242, %v3234
  %v3531 = vpack.c.b16 %v3243, %v3235
  %v3532 = vpack.c.b16 %v3244, %v3236
  %v3533 = vpack.c.b16 %v3245, %v3237
  %v3534 = vpack.c.b16 %v3254, %v3246
  %v3535 = vpack.c.b16 %v3255, %v3247
  %v3536 = vpack.c.b16 %v3256, %v3248
  %v3537 = vpack.c.b16 %v3257, %v3249
  %v3538 = vpack.c.b16 %v3258, %v3250
  %v3539 = vpack.c.b16 %v3259, %v3251
  %v3540 = vpack.c.b16 %v3260, %v3252
  %v3541 = vpack.c.b16 %v3261, %v3253
  %v3542 = vpack.c.b16 %v3270, %v3262
  %v3543 = vpack.c.b16 %v3271, %v3263
  %v3544 = vpack.c.b16 %v3272, %v3264
  %v3545 = vpack.c.b16 %v3273, %v3265
  %v3546 = vpack.c.b16 %v3274, %v3266
  %v3547 = vpack.c.b16 %v3275, %v3267
  %v3548 = vpack.c.b16 %v3276, %v3268
  %v3549 = vpack.c.b16 %v3277, %v3269
  %v3550 = vpack.c.b16 %v3286, %v3278
  %v3551 = vpack.c.b16 %v3287, %v3279
  %v3552 = vpack.c.b16 %v3288, %v3280
  %v3553 = vpack.c.b16 %v3289, %v3281
  %v3554 = vpack.c.b16 %v3290, %v3282
  %v3555 = vpack.c.b16 %v3291, %v3283
  %v3556 = vpack.c.b16 %v3292, %v3284
  %v3557 = vpack.c.b16 %v3293, %v3285
  %v3823 = vsel %vm1097, %v2460, 0
  %3825 = vmatprep.subr.bf16.mxu0 %v3295
  %3826 = vmatpush1.bf16.msra.mxu0 %v3294
  %3827 = vmatprep.subr.bf16.mxu0 %v3303
  %3828 = vmatpush1.bf16.msra.mxu0 %v3302
  %3829 = vmatprep.subr.bf16.mxu0 %v3311
  %3830 = vmatpush1.bf16.msra.mxu0 %v3310
  %3831 = vmatprep.subr.bf16.mxu0 %v3319
  %3832 = vmatpush1.bf16.msra.mxu0 %v3318
  %3833 = vmatprep.subr.bf16.mxu0 %v3327
  %3834 = vmatpush1.bf16.msra.mxu0 %v3326
  %3835 = vmatprep.subr.bf16.mxu0 %v3335
  %3836 = vmatpush1.bf16.msra.mxu0 %v3334
  %3837 = vmatprep.subr.bf16.mxu0 %v3343
  %3838 = vmatpush1.bf16.msra.mxu0 %v3342
  %3839 = vmatprep.subr.bf16.mxu0 %v3351
  %3840 = vmatpush1.bf16.msra.mxu0 %v3350
  %3841 = vmatprep.subr.bf16.mxu0 %v3359
  %3842 = vmatpush1.bf16.msra.mxu0 %v3358
  %3843 = vmatprep.subr.bf16.mxu0 %v3367
  %3844 = vmatpush1.bf16.msra.mxu0 %v3366
  %3845 = vmatprep.subr.bf16.mxu0 %v3375
  %3846 = vmatpush1.bf16.msra.mxu0 %v3374
  %3847 = vmatprep.subr.bf16.mxu0 %v3383
  %3848 = vmatpush1.bf16.msra.mxu0 %v3382
  %3849 = vmatprep.subr.bf16.mxu0 %v3391
  %3850 = vmatpush1.bf16.msra.mxu0 %v3390
  %3851 = vmatprep.subr.bf16.mxu0 %v3399
  %3852 = vmatpush1.bf16.msra.mxu0 %v3398
  %3853 = vmatprep.subr.bf16.mxu0 %v3407
  %3854 = vmatpush1.bf16.msra.mxu0 %v3406
  %3855 = vmatprep.subr.bf16.mxu0 %v3415
  %3856 = vmatpush1.bf16.msra.mxu0 %v3414
  %3857 = vmatprep.mubr.bf16.mxu0 %v2457
  %3858 = vmatmul.mubr.bf16.gmra.mrb[0].mxu0 %v2456
  %v3859 = vpop.f32.mrb[0].mxu0
  %v3860 = vadd.f32 %v2465, %v3859
  %v3861 = vpop.f32.mrb[0].mxu0
  %v3862 = vadd.f32 %v2469, %v3861
  %v3863 = vpop.f32.mrb[0].mxu0
  %v3864 = vadd.f32 %v2465, %v3863
  %v3865 = vpop.f32.mrb[0].mxu0
  %v3866 = vadd.f32 %v2469, %v3865
  %3867 = vdwg.mxu0
  %3868 = vmatprep.subr.bf16.mxu0 %v3423
  %3869 = vmatpush1.bf16.msra.mxu0 %v3422
  %3870 = vmatprep.subr.bf16.mxu0 %v3431
  %3871 = vmatpush1.bf16.msra.mxu0 %v3430
  %3872 = vmatprep.subr.bf16.mxu0 %v3439
  %3873 = vmatpush1.bf16.msra.mxu0 %v3438
  %3874 = vmatprep.subr.bf16.mxu0 %v3447
  %3875 = vmatpush1.bf16.msra.mxu0 %v3446
  %3876 = vmatprep.subr.bf16.mxu0 %v3455
  %3877 = vmatpush1.bf16.msra.mxu0 %v3454
  %3878 = vmatprep.subr.bf16.mxu0 %v3463
  %3879 = vmatpush1.bf16.msra.mxu0 %v3462
  %3880 = vmatprep.subr.bf16.mxu0 %v3471
  %3881 = vmatpush1.bf16.msra.mxu0 %v3470
  %3882 = vmatprep.subr.bf16.mxu0 %v3479
  %3883 = vmatpush1.bf16.msra.mxu0 %v3478
  %3884 = vmatprep.subr.bf16.mxu0 %v3487
  %3885 = vmatpush1.bf16.msra.mxu0 %v3486
  %3886 = vmatprep.subr.bf16.mxu0 %v3495
  %3887 = vmatpush1.bf16.msra.mxu0 %v3494
  %3888 = vmatprep.subr.bf16.mxu0 %v3503
  %3889 = vmatpush1.bf16.msra.mxu0 %v3502
  %3890 = vmatprep.subr.bf16.mxu0 %v3511
  %3891 = vmatpush1.bf16.msra.mxu0 %v3510
  %3892 = vmatprep.subr.bf16.mxu0 %v3519
  %3893 = vmatpush1.bf16.msra.mxu0 %v3518
  %3894 = vmatprep.subr.bf16.mxu0 %v3527
  %3895 = vmatpush1.bf16.msra.mxu0 %v3526
  %3896 = vmatprep.subr.bf16.mxu0 %v3535
  %3897 = vmatpush1.bf16.msra.mxu0 %v3534
  %3898 = vmatprep.subr.bf16.mxu0 %v3543
  %3899 = vmatpush1.bf16.msra.mxu0 %v3542
  %3900 = vmatprep.mubr.bf16.mxu0 %v2459
  %3901 = vmatmul.mubr.bf16.gmra.mrb[0].mxu0 %v2458
  %v3902 = vpop.f32.mrb[0].mxu0
  %v3903 = vadd.f32 %v3860, %v3902
  %v3904 = vpop.f32.mrb[0].mxu0
  %v3905 = vadd.f32 %v3862, %v3904
  %v3906 = vpop.f32.mrb[0].mxu0
  %v3907 = vadd.f32 %v3864, %v3906
  %v3908 = vpop.f32.mrb[0].mxu0
  %v3909 = vadd.f32 %v3866, %v3908
  %3910 = vdwg.mxu0
  %3911 = vmatprep.subr.bf16.mxu0 %v3551
  %3912 = vmatpush1.bf16.msra.mxu0 %v3550
  %3913 = vmatprep.subr.bf16.mxu0 0
  %3914 = vmatpush1.bf16.msra.mxu0 0
  %3915 = vmatprep.subr.bf16.mxu0 0
  %3916 = vmatpush1.bf16.msra.mxu0 0
  %3917 = vmatprep.subr.bf16.mxu0 0
  %3918 = vmatpush1.bf16.msra.mxu0 0
  %3919 = vmatprep.subr.bf16.mxu0 0
  %3920 = vmatpush1.bf16.msra.mxu0 0
  %3921 = vmatprep.subr.bf16.mxu0 0
  %3922 = vmatpush1.bf16.msra.mxu0 0
  %3923 = vmatprep.subr.bf16.mxu0 0
  %3924 = vmatpush1.bf16.msra.mxu0 0
  %3925 = vmatprep.subr.bf16.mxu0 0
  %3926 = vmatpush1.bf16.msra.mxu0 0
  %3927 = vmatprep.subr.bf16.mxu0 0
  %3928 = vmatpush1.bf16.msra.mxu0 0
  %3929 = vmatprep.subr.bf16.mxu0 0
  %3930 = vmatpush1.bf16.msra.mxu0 0
  %3931 = vmatprep.subr.bf16.mxu0 0
  %3932 = vmatpush1.bf16.msra.mxu0 0
  %3933 = vmatprep.subr.bf16.mxu0 0
  %3934 = vmatpush1.bf16.msra.mxu0 0
  %3935 = vmatprep.subr.bf16.mxu0 0
  %3936 = vmatpush1.bf16.msra.mxu0 0
  %3937 = vmatprep.subr.bf16.mxu0 0
  %3938 = vmatpush1.bf16.msra.mxu0 0
  %3939 = vmatprep.subr.bf16.mxu0 0
  %3940 = vmatpush1.bf16.msra.mxu0 0
  %3941 = vmatprep.subr.bf16.mxu0 0
  %3942 = vmatpush1.bf16.msra.mxu0 0
  %3943 = vmatprep.mubr.bf16.mxu0 0
  %3944 = vmatmul.mubr.bf16.gmra.mrb[0].mxu0 %v3823
  %v3945 = vpop.f32.mrb[0].mxu0
  %v3946 = vadd.f32 %v3903, %v3945
  %v3947 = vpop.f32.mrb[0].mxu0
  %v3948 = vadd.f32 %v3905, %v3947
  %v3949 = vpop.f32.mrb[0].mxu0
  %v3950 = vadd.f32 %v3907, %v3949
  %v3951 = vpop.f32.mrb[0].mxu0
  %v3952 = vadd.f32 %v3909, %v3951
  %3953 = vdwg.mxu0
  %3954 = vmatprep.subr.bf16.mxu0 %v3297
  %3955 = vmatpush1.bf16.msra.mxu0 %v3296
  %3956 = vmatprep.subr.bf16.mxu0 %v3305
  %3957 = vmatpush1.bf16.msra.mxu0 %v3304
  %3958 = vmatprep.subr.bf16.mxu0 %v3313
  %3959 = vmatpush1.bf16.msra.mxu0 %v3312
  %3960 = vmatprep.subr.bf16.mxu0 %v3321
  %3961 = vmatpush1.bf16.msra.mxu0 %v3320
  %3962 = vmatprep.subr.bf16.mxu0 %v3329
  %3963 = vmatpush1.bf16.msra.mxu0 %v3328
  %3964 = vmatprep.subr.bf16.mxu0 %v3337
  %3965 = vmatpush1.bf16.msra.mxu0 %v3336
  %3966 = vmatprep.subr.bf16.mxu0 %v3345
  %3967 = vmatpush1.bf16.msra.mxu0 %v3344
  %3968 = vmatprep.subr.bf16.mxu0 %v3353
  %3969 = vmatpush1.bf16.msra.mxu0 %v3352
  %3970 = vmatprep.subr.bf16.mxu0 %v3361
  %3971 = vmatpush1.bf16.msra.mxu0 %v3360
  %3972 = vmatprep.subr.bf16.mxu0 %v3369
  %3973 = vmatpush1.bf16.msra.mxu0 %v3368
  %3974 = vmatprep.subr.bf16.mxu0 %v3377
  %3975 = vmatpush1.bf16.msra.mxu0 %v3376
  %3976 = vmatprep.subr.bf16.mxu0 %v3385
  %3977 = vmatpush1.bf16.msra.mxu0 %v3384
  %3978 = vmatprep.subr.bf16.mxu0 %v3393
  %3979 = vmatpush1.bf16.msra.mxu0 %v3392
  %3980 = vmatprep.subr.bf16.mxu0 %v3401
  %3981 = vmatpush1.bf16.msra.mxu0 %v3400
  %3982 = vmatprep.subr.bf16.mxu0 %v3409
  %3983 = vmatpush1.bf16.msra.mxu0 %v3408
  %3984 = vmatprep.subr.bf16.mxu0 %v3417
  %3985 = vmatpush1.bf16.msra.mxu0 %v3416
  %3986 = vmatprep.mubr.bf16.mxu0 %v2457
  %3987 = vmatmul.mubr.bf16.gmra.mrb[0].mxu0 %v2456
  %v3988 = vpop.f32.mrb[0].mxu0
  %v3989 = vadd.f32 %v2473, %v3988
  %v3990 = vpop.f32.mrb[0].mxu0
  %v3991 = vadd.f32 %v2477, %v3990
  %v3992 = vpop.f32.mrb[0].mxu0
  %v3993 = vadd.f32 %v2473, %v3992
  %v3994 = vpop.f32.mrb[0].mxu0
  %v3995 = vadd.f32 %v2477, %v3994
  %3996 = vdwg.mxu0
  %3997 = vmatprep.subr.bf16.mxu0 %v3425
  %3998 = vmatpush1.bf16.msra.mxu0 %v3424
  %3999 = vmatprep.subr.bf16.mxu0 %v3433
  %4000 = vmatpush1.bf16.msra.mxu0 %v3432
  %4001 = vmatprep.subr.bf16.mxu0 %v3441
  %4002 = vmatpush1.bf16.msra.mxu0 %v3440
  %4003 = vmatprep.subr.bf16.mxu0 %v3449
  %4004 = vmatpush1.bf16.msra.mxu0 %v3448
  %4005 = vmatprep.subr.bf16.mxu0 %v3457
  %4006 = vmatpush1.bf16.msra.mxu0 %v3456
  %4007 = vmatprep.subr.bf16.mxu0 %v3465
  %4008 = vmatpush1.bf16.msra.mxu0 %v3464
  %4009 = vmatprep.subr.bf16.mxu0 %v3473
  %4010 = vmatpush1.bf16.msra.mxu0 %v3472
  %4011 = vmatprep.subr.bf16.mxu0 %v3481
  %4012 = vmatpush1.bf16.msra.mxu0 %v3480
  %4013 = vmatprep.subr.bf16.mxu0 %v3489
  %4014 = vmatpush1.bf16.msra.mxu0 %v3488
  %4015 = vmatprep.subr.bf16.mxu0 %v3497
  %4016 = vmatpush1.bf16.msra.mxu0 %v3496
  %4017 = vmatprep.subr.bf16.mxu0 %v3505
  %4018 = vmatpush1.bf16.msra.mxu0 %v3504
  %4019 = vmatprep.subr.bf16.mxu0 %v3513
  %4020 = vmatpush1.bf16.msra.mxu0 %v3512
  %4021 = vmatprep.subr.bf16.mxu0 %v3521
  %4022 = vmatpush1.bf16.msra.mxu0 %v3520
  %4023 = vmatprep.subr.bf16.mxu0 %v3529
  %4024 = vmatpush1.bf16.msra.mxu0 %v3528
  %4025 = vmatprep.subr.bf16.mxu0 %v3537
  %4026 = vmatpush1.bf16.msra.mxu0 %v3536
  %4027 = vmatprep.subr.bf16.mxu0 %v3545
  %4028 = vmatpush1.bf16.msra.mxu0 %v3544
  %4029 = vmatprep.mubr.bf16.mxu0 %v2459
  %4030 = vmatmul.mubr.bf16.gmra.mrb[0].mxu0 %v2458
  %v4031 = vpop.f32.mrb[0].mxu0
  %v4032 = vadd.f32 %v3989, %v4031
  %v4033 = vpop.f32.mrb[0].mxu0
  %v4034 = vadd.f32 %v3991, %v4033
  %v4035 = vpop.f32.mrb[0].mxu0
  %v4036 = vadd.f32 %v3993, %v4035
  %v4037 = vpop.f32.mrb[0].mxu0
  %v4038 = vadd.f32 %v3995, %v4037
  %4039 = vdwg.mxu0
  %4040 = vmatprep.subr.bf16.mxu0 %v3553
  %4041 = vmatpush1.bf16.msra.mxu0 %v3552
  %4042 = vmatprep.subr.bf16.mxu0 0
  %4043 = vmatpush1.bf16.msra.mxu0 0
  %4044 = vmatprep.subr.bf16.mxu0 0
  %4045 = vmatpush1.bf16.msra.mxu0 0
  %4046 = vmatprep.subr.bf16.mxu0 0
  %4047 = vmatpush1.bf16.msra.mxu0 0
  %4048 = vmatprep.subr.bf16.mxu0 0
  %4049 = vmatpush1.bf16.msra.mxu0 0
  %4050 = vmatprep.subr.bf16.mxu0 0
  %4051 = vmatpush1.bf16.msra.mxu0 0
  %4052 = vmatprep.subr.bf16.mxu0 0
  %4053 = vmatpush1.bf16.msra.mxu0 0
  %4054 = vmatprep.subr.bf16.mxu0 0
  %4055 = vmatpush1.bf16.msra.mxu0 0
  %4056 = vmatprep.subr.bf16.mxu0 0
  %4057 = vmatpush1.bf16.msra.mxu0 0
  %4058 = vmatprep.subr.bf16.mxu0 0
  %4059 = vmatpush1.bf16.msra.mxu0 0
  %4060 = vmatprep.subr.bf16.mxu0 0
  %4061 = vmatpush1.bf16.msra.mxu0 0
  %4062 = vmatprep.subr.bf16.mxu0 0
  %4063 = vmatpush1.bf16.msra.mxu0 0
  %4064 = vmatprep.subr.bf16.mxu0 0
  %4065 = vmatpush1.bf16.msra.mxu0 0
  %4066 = vmatprep.subr.bf16.mxu0 0
  %4067 = vmatpush1.bf16.msra.mxu0 0
  %4068 = vmatprep.subr.bf16.mxu0 0
  %4069 = vmatpush1.bf16.msra.mxu0 0
  %4070 = vmatprep.subr.bf16.mxu0 0
  %4071 = vmatpush1.bf16.msra.mxu0 0
  %4072 = vmatprep.mubr.bf16.mxu0 0
  %4073 = vmatmul.mubr.bf16.gmra.mrb[0].mxu0 %v3823
  %v4074 = vpop.f32.mrb[0].mxu0
  %v4075 = vadd.f32 %v4032, %v4074
  %v4076 = vpop.f32.mrb[0].mxu0
  %v4077 = vadd.f32 %v4034, %v4076
  %v4078 = vpop.f32.mrb[0].mxu0
  %v4079 = vadd.f32 %v4036, %v4078
  %v4080 = vpop.f32.mrb[0].mxu0
  %v4081 = vadd.f32 %v4038, %v4080
  %4082 = vdwg.mxu0
  %4083 = vmatprep.subr.bf16.mxu0 %v3299
  %4084 = vmatpush1.bf16.msra.mxu0 %v3298
  %4085 = vmatprep.subr.bf16.mxu0 %v3307
  %4086 = vmatpush1.bf16.msra.mxu0 %v3306
  %4087 = vmatprep.subr.bf16.mxu0 %v3315
  %4088 = vmatpush1.bf16.msra.mxu0 %v3314
  %4089 = vmatprep.subr.bf16.mxu0 %v3323
  %4090 = vmatpush1.bf16.msra.mxu0 %v3322
  %4091 = vmatprep.subr.bf16.mxu0 %v3331
  %4092 = vmatpush1.bf16.msra.mxu0 %v3330
  %4093 = vmatprep.subr.bf16.mxu0 %v3339
  %4094 = vmatpush1.bf16.msra.mxu0 %v3338
  %4095 = vmatprep.subr.bf16.mxu0 %v3347
  %4096 = vmatpush1.bf16.msra.mxu0 %v3346
  %4097 = vmatprep.subr.bf16.mxu0 %v3355
  %4098 = vmatpush1.bf16.msra.mxu0 %v3354
  %4099 = vmatprep.subr.bf16.mxu0 %v3363
  %4100 = vmatpush1.bf16.msra.mxu0 %v3362
  %4101 = vmatprep.subr.bf16.mxu0 %v3371
  %4102 = vmatpush1.bf16.msra.mxu0 %v3370
  %4103 = vmatprep.subr.bf16.mxu0 %v3379
  %4104 = vmatpush1.bf16.msra.mxu0 %v3378
  %4105 = vmatprep.subr.bf16.mxu0 %v3387
  %4106 = vmatpush1.bf16.msra.mxu0 %v3386
  %4107 = vmatprep.subr.bf16.mxu0 %v3395
  %4108 = vmatpush1.bf16.msra.mxu0 %v3394
  %4109 = vmatprep.subr.bf16.mxu0 %v3403
  %4110 = vmatpush1.bf16.msra.mxu0 %v3402
  %4111 = vmatprep.subr.bf16.mxu0 %v3411
  %4112 = vmatpush1.bf16.msra.mxu0 %v3410
  %4113 = vmatprep.subr.bf16.mxu0 %v3419
  %4114 = vmatpush1.bf16.msra.mxu0 %v3418
  %4115 = vmatprep.mubr.bf16.mxu0 %v2457
  %4116 = vmatmul.mubr.bf16.gmra.mrb[0].mxu0 %v2456
  %v4117 = vpop.f32.mrb[0].mxu0
  %v4118 = vadd.f32 %v2481, %v4117
  %v4119 = vpop.f32.mrb[0].mxu0
  %v4120 = vadd.f32 %v2485, %v4119
  %v4121 = vpop.f32.mrb[0].mxu0
  %v4122 = vadd.f32 %v2481, %v4121
  %v4123 = vpop.f32.mrb[0].mxu0
  %v4124 = vadd.f32 %v2485, %v4123
  %4125 = vdwg.mxu0
  %4126 = vmatprep.subr.bf16.mxu0 %v3427
  %4127 = vmatpush1.bf16.msra.mxu0 %v3426
  %4128 = vmatprep.subr.bf16.mxu0 %v3435
  %4129 = vmatpush1.bf16.msra.mxu0 %v3434
  %4130 = vmatprep.subr.bf16.mxu0 %v3443
  %4131 = vmatpush1.bf16.msra.mxu0 %v3442
  %4132 = vmatprep.subr.bf16.mxu0 %v3451
  %4133 = vmatpush1.bf16.msra.mxu0 %v3450
  %4134 = vmatprep.subr.bf16.mxu0 %v3459
  %4135 = vmatpush1.bf16.msra.mxu0 %v3458
  %4136 = vmatprep.subr.bf16.mxu0 %v3467
  %4137 = vmatpush1.bf16.msra.mxu0 %v3466
  %4138 = vmatprep.subr.bf16.mxu0 %v3475
  %4139 = vmatpush1.bf16.msra.mxu0 %v3474
  %4140 = vmatprep.subr.bf16.mxu0 %v3483
  %4141 = vmatpush1.bf16.msra.mxu0 %v3482
  %4142 = vmatprep.subr.bf16.mxu0 %v3491
  %4143 = vmatpush1.bf16.msra.mxu0 %v3490
  %4144 = vmatprep.subr.bf16.mxu0 %v3499
  %4145 = vmatpush1.bf16.msra.mxu0 %v3498
  %4146 = vmatprep.subr.bf16.mxu0 %v3507
  %4147 = vmatpush1.bf16.msra.mxu0 %v3506
  %4148 = vmatprep.subr.bf16.mxu0 %v3515
  %4149 = vmatpush1.bf16.msra.mxu0 %v3514
  %4150 = vmatprep.subr.bf16.mxu0 %v3523
  %4151 = vmatpush1.bf16.msra.mxu0 %v3522
  %4152 = vmatprep.subr.bf16.mxu0 %v3531
  %4153 = vmatpush1.bf16.msra.mxu0 %v3530
  %4154 = vmatprep.subr.bf16.mxu0 %v3539
  %4155 = vmatpush1.bf16.msra.mxu0 %v3538
  %4156 = vmatprep.subr.bf16.mxu0 %v3547
  %4157 = vmatpush1.bf16.msra.mxu0 %v3546
  %4158 = vmatprep.mubr.bf16.mxu0 %v2459
  %4159 = vmatmul.mubr.bf16.gmra.mrb[0].mxu0 %v2458
  %v4160 = vpop.f32.mrb[0].mxu0
  %v4161 = vadd.f32 %v4118, %v4160
  %v4162 = vpop.f32.mrb[0].mxu0
  %v4163 = vadd.f32 %v4120, %v4162
  %v4164 = vpop.f32.mrb[0].mxu0
  %v4165 = vadd.f32 %v4122, %v4164
  %v4166 = vpop.f32.mrb[0].mxu0
  %v4167 = vadd.f32 %v4124, %v4166
  %4168 = vdwg.mxu0
  %4169 = vmatprep.subr.bf16.mxu0 %v3555
  %4170 = vmatpush1.bf16.msra.mxu0 %v3554
  %4171 = vmatprep.subr.bf16.mxu0 0
  %4172 = vmatpush1.bf16.msra.mxu0 0
  %4173 = vmatprep.subr.bf16.mxu0 0
  %4174 = vmatpush1.bf16.msra.mxu0 0
  %4175 = vmatprep.subr.bf16.mxu0 0
  %4176 = vmatpush1.bf16.msra.mxu0 0
  %4177 = vmatprep.subr.bf16.mxu0 0
  %4178 = vmatpush1.bf16.msra.mxu0 0
  %4179 = vmatprep.subr.bf16.mxu0 0
  %4180 = vmatpush1.bf16.msra.mxu0 0
  %4181 = vmatprep.subr.bf16.mxu0 0
  %4182 = vmatpush1.bf16.msra.mxu0 0
  %4183 = vmatprep.subr.bf16.mxu0 0
  %4184 = vmatpush1.bf16.msra.mxu0 0
  %4185 = vmatprep.subr.bf16.mxu0 0
  %4186 = vmatpush1.bf16.msra.mxu0 0
  %4187 = vmatprep.subr.bf16.mxu0 0
  %4188 = vmatpush1.bf16.msra.mxu0 0
  %4189 = vmatprep.subr.bf16.mxu0 0
  %4190 = vmatpush1.bf16.msra.mxu0 0
  %4191 = vmatprep.subr.bf16.mxu0 0
  %4192 = vmatpush1.bf16.msra.mxu0 0
  %4193 = vmatprep.subr.bf16.mxu0 0
  %4194 = vmatpush1.bf16.msra.mxu0 0
  %4195 = vmatprep.subr.bf16.mxu0 0
  %4196 = vmatpush1.bf16.msra.mxu0 0
  %4197 = vmatprep.subr.bf16.mxu0 0
  %4198 = vmatpush1.bf16.msra.mxu0 0
  %4199 = vmatprep.subr.bf16.mxu0 0
  %4200 = vmatpush1.bf16.msra.mxu0 0
  %4201 = vmatprep.mubr.bf16.mxu0 0
  %4202 = vmatmul.mubr.bf16.gmra.mrb[0].mxu0 %v3823
  %v4203 = vpop.f32.mrb[0].mxu0
  %v4204 = vadd.f32 %v4161, %v4203
  %v4205 = vpop.f32.mrb[0].mxu0
  %v4206 = vadd.f32 %v4163, %v4205
  %v4207 = vpop.f32.mrb[0].mxu0
  %v4208 = vadd.f32 %v4165, %v4207
  %v4209 = vpop.f32.mrb[0].mxu0
  %v4210 = vadd.f32 %v4167, %v4209
  %4211 = vdwg.mxu0
  %4212 = vmatprep.subr.bf16.mxu0 %v3301
  %4213 = vmatpush1.bf16.msra.mxu0 %v3300
  %4214 = vmatprep.subr.bf16.mxu0 %v3309
  %4215 = vmatpush1.bf16.msra.mxu0 %v3308
  %4216 = vmatprep.subr.bf16.mxu0 %v3317
  %4217 = vmatpush1.bf16.msra.mxu0 %v3316
  %4218 = vmatprep.subr.bf16.mxu0 %v3325
  %4219 = vmatpush1.bf16.msra.mxu0 %v3324
  %4220 = vmatprep.subr.bf16.mxu0 %v3333
  %4221 = vmatpush1.bf16.msra.mxu0 %v3332
  %4222 = vmatprep.subr.bf16.mxu0 %v3341
  %4223 = vmatpush1.bf16.msra.mxu0 %v3340
  %4224 = vmatprep.subr.bf16.mxu0 %v3349
  %4225 = vmatpush1.bf16.msra.mxu0 %v3348
  %4226 = vmatprep.subr.bf16.mxu0 %v3357
  %4227 = vmatpush1.bf16.msra.mxu0 %v3356
  %4228 = vmatprep.subr.bf16.mxu0 %v3365
  %4229 = vmatpush1.bf16.msra.mxu0 %v3364
  %4230 = vmatprep.subr.bf16.mxu0 %v3373
  %4231 = vmatpush1.bf16.msra.mxu0 %v3372
  %4232 = vmatprep.subr.bf16.mxu0 %v3381
  %4233 = vmatpush1.bf16.msra.mxu0 %v3380
  %4234 = vmatprep.subr.bf16.mxu0 %v3389
  %4235 = vmatpush1.bf16.msra.mxu0 %v3388
  %4236 = vmatprep.subr.bf16.mxu0 %v3397
  %4237 = vmatpush1.bf16.msra.mxu0 %v3396
  %4238 = vmatprep.subr.bf16.mxu0 %v3405
  %4239 = vmatpush1.bf16.msra.mxu0 %v3404
  %4240 = vmatprep.subr.bf16.mxu0 %v3413
  %4241 = vmatpush1.bf16.msra.mxu0 %v3412
  %4242 = vmatprep.subr.bf16.mxu0 %v3421
  %4243 = vmatpush1.bf16.msra.mxu0 %v3420
  %4244 = vmatprep.mubr.bf16.mxu0 %v2457
  %4245 = vmatmul.mubr.bf16.gmra.mrb[0].mxu0 %v2456
  %v4246 = vpop.f32.mrb[0].mxu0
  %v4247 = vadd.f32 %v2489, %v4246
  %v4248 = vpop.f32.mrb[0].mxu0
  %v4249 = vadd.f32 %v2493, %v4248
  %v4250 = vpop.f32.mrb[0].mxu0
  %v4251 = vadd.f32 %v2489, %v4250
  %v4252 = vpop.f32.mrb[0].mxu0
  %v4253 = vadd.f32 %v2493, %v4252
  %4254 = vdwg.mxu0
  %4255 = vmatprep.subr.bf16.mxu0 %v3429
  %4256 = vmatpush1.bf16.msra.mxu0 %v3428
  %4257 = vmatprep.subr.bf16.mxu0 %v3437
  %4258 = vmatpush1.bf16.msra.mxu0 %v3436
  %4259 = vmatprep.subr.bf16.mxu0 %v3445
  %4260 = vmatpush1.bf16.msra.mxu0 %v3444
  %4261 = vmatprep.subr.bf16.mxu0 %v3453
  %4262 = vmatpush1.bf16.msra.mxu0 %v3452
  %4263 = vmatprep.subr.bf16.mxu0 %v3461
  %4264 = vmatpush1.bf16.msra.mxu0 %v3460
  %4265 = vmatprep.subr.bf16.mxu0 %v3469
  %4266 = vmatpush1.bf16.msra.mxu0 %v3468
  %4267 = vmatprep.subr.bf16.mxu0 %v3477
  %4268 = vmatpush1.bf16.msra.mxu0 %v3476
  %4269 = vmatprep.subr.bf16.mxu0 %v3485
  %4270 = vmatpush1.bf16.msra.mxu0 %v3484
  %4271 = vmatprep.subr.bf16.mxu0 %v3493
  %4272 = vmatpush1.bf16.msra.mxu0 %v3492
  %4273 = vmatprep.subr.bf16.mxu0 %v3501
  %4274 = vmatpush1.bf16.msra.mxu0 %v3500
  %4275 = vmatprep.subr.bf16.mxu0 %v3509
  %4276 = vmatpush1.bf16.msra.mxu0 %v3508
  %4277 = vmatprep.subr.bf16.mxu0 %v3517
  %4278 = vmatpush1.bf16.msra.mxu0 %v3516
  %4279 = vmatprep.subr.bf16.mxu0 %v3525
  %4280 = vmatpush1.bf16.msra.mxu0 %v3524
  %4281 = vmatprep.subr.bf16.mxu0 %v3533
  %4282 = vmatpush1.bf16.msra.mxu0 %v3532
  %4283 = vmatprep.subr.bf16.mxu0 %v3541
  %4284 = vmatpush1.bf16.msra.mxu0 %v3540
  %4285 = vmatprep.subr.bf16.mxu0 %v3549
  %4286 = vmatpush1.bf16.msra.mxu0 %v3548
  %4287 = vmatprep.mubr.bf16.mxu0 %v2459
  %4288 = vmatmul.mubr.bf16.gmra.mrb[0].mxu0 %v2458
  %v4289 = vpop.f32.mrb[0].mxu0
  %v4290 = vadd.f32 %v4247, %v4289
  %v4291 = vpop.f32.mrb[0].mxu0
  %v4292 = vadd.f32 %v4249, %v4291
  %v4293 = vpop.f32.mrb[0].mxu0
  %v4294 = vadd.f32 %v4251, %v4293
  %v4295 = vpop.f32.mrb[0].mxu0
  %v4296 = vadd.f32 %v4253, %v4295
  %4297 = vdwg.mxu0
  %4298 = vmatprep.subr.bf16.mxu0 %v3557
  %4299 = vmatpush1.bf16.msra.mxu0 %v3556
  %4300 = vmatprep.subr.bf16.mxu0 0
  %4301 = vmatpush1.bf16.msra.mxu0 0
  %4302 = vmatprep.subr.bf16.mxu0 0
  %4303 = vmatpush1.bf16.msra.mxu0 0
  %4304 = vmatprep.subr.bf16.mxu0 0
  %4305 = vmatpush1.bf16.msra.mxu0 0
  %4306 = vmatprep.subr.bf16.mxu0 0
  %4307 = vmatpush1.bf16.msra.mxu0 0
  %4308 = vmatprep.subr.bf16.mxu0 0
  %4309 = vmatpush1.bf16.msra.mxu0 0
  %4310 = vmatprep.subr.bf16.mxu0 0
  %4311 = vmatpush1.bf16.msra.mxu0 0
  %4312 = vmatprep.subr.bf16.mxu0 0
  %4313 = vmatpush1.bf16.msra.mxu0 0
  %4314 = vmatprep.subr.bf16.mxu0 0
  %4315 = vmatpush1.bf16.msra.mxu0 0
  %4316 = vmatprep.subr.bf16.mxu0 0
  %4317 = vmatpush1.bf16.msra.mxu0 0
  %4318 = vmatprep.subr.bf16.mxu0 0
  %4319 = vmatpush1.bf16.msra.mxu0 0
  %4320 = vmatprep.subr.bf16.mxu0 0
  %4321 = vmatpush1.bf16.msra.mxu0 0
  %4322 = vmatprep.subr.bf16.mxu0 0
  %4323 = vmatpush1.bf16.msra.mxu0 0
  %4324 = vmatprep.subr.bf16.mxu0 0
  %4325 = vmatpush1.bf16.msra.mxu0 0
  %4326 = vmatprep.subr.bf16.mxu0 0
  %4327 = vmatpush1.bf16.msra.mxu0 0
  %4328 = vmatprep.subr.bf16.mxu0 0
  %4329 = vmatpush1.bf16.msra.mxu0 0
  %4330 = vmatprep.mubr.bf16.mxu0 0
  %4331 = vmatmul.mubr.bf16.gmra.mrb[0].mxu0 %v3823
  %v4332 = vpop.f32.mrb[0].mxu0
  %v4333 = vadd.f32 %v4290, %v4332
  %v4334 = vpop.f32.mrb[0].mxu0
  %v4335 = vadd.f32 %v4292, %v4334
  %v4336 = vpop.f32.mrb[0].mxu0
  %v4337 = vadd.f32 %v4294, %v4336
  %v4338 = vpop.f32.mrb[0].mxu0
  %v4339 = vadd.f32 %v4296, %v4338
  %4340 = vdwg.mxu0
  %v4341 = vmax.f32 %v3946, 0.0
  %v4342 = vmax.f32 %v3948, 0.0
  %v4343 = vmax.f32 %v4075, 0.0
  %v4344 = vmax.f32 %v4077, 0.0
  %v4345 = vmax.f32 %v4204, 0.0
  %v4346 = vmax.f32 %v4206, 0.0
  %v4347 = vmax.f32 %v4333, 0.0
  %v4348 = vmax.f32 %v4335, 0.0
  %v4349 = vmax.f32 %v3950, 0.0
  %v4350 = vmax.f32 %v3952, 0.0
  %v4351 = vmax.f32 %v4079, 0.0
  %v4352 = vmax.f32 %v4081, 0.0
  %v4353 = vmax.f32 %v4208, 0.0
  %v4354 = vmax.f32 %v4210, 0.0
  %v4355 = vmax.f32 %v4337, 0.0
  %v4356 = vmax.f32 %v4339, 0.0
  %4357 = vst [vmem:[#allocation3] sm:$0xff] %v4341
  %4358 = vst [vmem:[#allocation3 + $0x8] sm:$0xff] %v4342
  %4359 = vst [vmem:[#allocation3 + $0x10] sm:$0xff] %v4343
  %4360 = vst [vmem:[#allocation3 + $0x18] sm:$0xff] %v4344
  %4361 = vst [vmem:[#allocation3 + $0x20] sm:$0xff] %v4345
  %4362 = vst [vmem:[#allocation3 + $0x28] sm:$0xff] %v4346
  %4363 = vst [vmem:[#allocation3 + $0x30] sm:$0xff] %v4347
  %vm4364 = vcmask 261120
  %4365 = vst.msk [vmem:[#allocation3 + $0x38] sm:$0xff] %vm4364, %v4348
  %4366 = vst [vmem:[#allocation3 + $0x78] sm:$0xff] %v4349
  %4367 = vst [vmem:[#allocation3 + $0x80] sm:$0xff] %v4350
  %4368 = vst [vmem:[#allocation3 + $0x88] sm:$0xff] %v4351
  %4369 = vst [vmem:[#allocation3 + $0x90] sm:$0xff] %v4352
  %4370 = vst [vmem:[#allocation3 + $0x98] sm:$0xff] %v4353
  %4371 = vst [vmem:[#allocation3 + $0xa0] sm:$0xff] %v4354
  %4372 = vst [vmem:[#allocation3 + $0xa8] sm:$0xff] %v4355
  %4373 = vst.msk [vmem:[#allocation3 + $0xb0] sm:$0xff] %vm4364, %v4356
  %v4374 = vld [vmem:[#allocation2 + $0x18] sm:$0xff]
  %v4375 = vld [vmem:[#allocation2 + $0x20] sm:$0xff]
  %v4376 = vld [vmem:[#allocation2 + $0x28] sm:$0xff]
  %v4377 = vld [vmem:[#allocation2 + $0x30] sm:$0xff]
  %v4378 = vld [vmem:[#allocation2 + $0x38] sm:$0xff]
  %v4379 = vld [vmem:[#allocation2 + $0x58] sm:$0xff]
  %v4380 = vld [vmem:[#allocation2 + $0x60] sm:$0xff]
  %v4381 = vld [vmem:[#allocation2 + $0x68] sm:$0xff]
  %v4382 = vld [vmem:[#allocation2 + $0x70] sm:$0xff]
  %v4383 = vld [vmem:[#allocation2 + $0x78] sm:$0xff]
  %v4384 = vpack.c.bf16 %v4379, %v4374
  %v4385 = vpack.c.bf16 %v4380, %v4375
  %v4386 = vpack.c.bf16 %v4381, %v4376
  %v4387 = vpack.c.bf16 %v4382, %v4377
  %v4388 = vpack.c.bf16 %v4383, %v4378
  %4394 = vrot.lane.b32.xlu0 %v4384, 48
  %v4395 = vpop.permute.xlu0 %4394
  %4396 = vrot.lane.b32.xlu0 %v4385, 48
  %v4397 = vpop.permute.xlu0 %4396
  %4398 = vrot.lane.b32.xlu0 %v4386, 48
  %v4399 = vpop.permute.xlu0 %4398
  %4400 = vrot.lane.b32.xlu0 %v4387, 48
  %v4401 = vpop.permute.xlu0 %4400
  %4402 = vrot.lane.b32.xlu0 %v4388, 48
  %v4403 = vpop.permute.xlu0 %4402
  %vm4404 = vcmask 392192
  %v4405 = vsel %vm4404, %v4395, %v4397
  %v4406 = vsel %vm4404, %v4397, %v4399
  %v4407 = vsel %vm4404, %v4399, %v4401
  %v4408 = vsel %vm4404, %v4401, %v4403
  %v4414 = vsel %vm1097, %v4403, 0
  %4416 = vmatprep.subr.bf16.mxu0 %v3295
  %4417 = vmatpush1.bf16.msra.mxu0 %v3294
  %4418 = vmatprep.subr.bf16.mxu0 %v3303
  %4419 = vmatpush1.bf16.msra.mxu0 %v3302
  %4420 = vmatprep.subr.bf16.mxu0 %v3311
  %4421 = vmatpush1.bf16.msra.mxu0 %v3310
  %4422 = vmatprep.subr.bf16.mxu0 %v3319
  %4423 = vmatpush1.bf16.msra.mxu0 %v3318
  %4424 = vmatprep.subr.bf16.mxu0 %v3327
  %4425 = vmatpush1.bf16.msra.mxu0 %v3326
  %4426 = vmatprep.subr.bf16.mxu0 %v3335
  %4427 = vmatpush1.bf16.msra.mxu0 %v3334
  %4428 = vmatprep.subr.bf16.mxu0 %v3343
  %4429 = vmatpush1.bf16.msra.mxu0 %v3342
  %4430 = vmatprep.subr.bf16.mxu0 %v3351
  %4431 = vmatpush1.bf16.msra.mxu0 %v3350
  %4432 = vmatprep.subr.bf16.mxu0 %v3359
  %4433 = vmatpush1.bf16.msra.mxu0 %v3358
  %4434 = vmatprep.subr.bf16.mxu0 %v3367
  %4435 = vmatpush1.bf16.msra.mxu0 %v3366
  %4436 = vmatprep.subr.bf16.mxu0 %v3375
  %4437 = vmatpush1.bf16.msra.mxu0 %v3374
  %4438 = vmatprep.subr.bf16.mxu0 %v3383
  %4439 = vmatpush1.bf16.msra.mxu0 %v3382
  %4440 = vmatprep.subr.bf16.mxu0 %v3391
  %4441 = vmatpush1.bf16.msra.mxu0 %v3390
  %4442 = vmatprep.subr.bf16.mxu0 %v3399
  %4443 = vmatpush1.bf16.msra.mxu0 %v3398
  %4444 = vmatprep.subr.bf16.mxu0 %v3407
  %4445 = vmatpush1.bf16.msra.mxu0 %v3406
  %4446 = vmatprep.subr.bf16.mxu0 %v3415
  %4447 = vmatpush1.bf16.msra.mxu0 %v3414
  %4448 = vmatprep.mubr.bf16.mxu0 %v4406
  %4449 = vmatmul.mubr.bf16.gmra.mrb[0].mxu0 %v4405
  %v4450 = vpop.f32.mrb[0].mxu0
  %v4451 = vadd.f32 %v2465, %v4450
  %v4452 = vpop.f32.mrb[0].mxu0
  %v4453 = vadd.f32 %v2469, %v4452
  %v4454 = vpop.f32.mrb[0].mxu0
  %v4455 = vadd.f32 %v2465, %v4454
  %v4456 = vpop.f32.mrb[0].mxu0
  %v4457 = vadd.f32 %v2469, %v4456
  %4458 = vdwg.mxu0
  %4459 = vmatprep.subr.bf16.mxu0 %v3423
  %4460 = vmatpush1.bf16.msra.mxu0 %v3422
  %4461 = vmatprep.subr.bf16.mxu0 %v3431
  %4462 = vmatpush1.bf16.msra.mxu0 %v3430
  %4463 = vmatprep.subr.bf16.mxu0 %v3439
  %4464 = vmatpush1.bf16.msra.mxu0 %v3438
  %4465 = vmatprep.subr.bf16.mxu0 %v3447
  %4466 = vmatpush1.bf16.msra.mxu0 %v3446
  %4467 = vmatprep.subr.bf16.mxu0 %v3455
  %4468 = vmatpush1.bf16.msra.mxu0 %v3454
  %4469 = vmatprep.subr.bf16.mxu0 %v3463
  %4470 = vmatpush1.bf16.msra.mxu0 %v3462
  %4471 = vmatprep.subr.bf16.mxu0 %v3471
  %4472 = vmatpush1.bf16.msra.mxu0 %v3470
  %4473 = vmatprep.subr.bf16.mxu0 %v3479
  %4474 = vmatpush1.bf16.msra.mxu0 %v3478
  %4475 = vmatprep.subr.bf16.mxu0 %v3487
  %4476 = vmatpush1.bf16.msra.mxu0 %v3486
  %4477 = vmatprep.subr.bf16.mxu0 %v3495
  %4478 = vmatpush1.bf16.msra.mxu0 %v3494
  %4479 = vmatprep.subr.bf16.mxu0 %v3503
  %4480 = vmatpush1.bf16.msra.mxu0 %v3502
  %4481 = vmatprep.subr.bf16.mxu0 %v3511
  %4482 = vmatpush1.bf16.msra.mxu0 %v3510
  %4483 = vmatprep.subr.bf16.mxu0 %v3519
  %4484 = vmatpush1.bf16.msra.mxu0 %v3518
  %4485 = vmatprep.subr.bf16.mxu0 %v3527
  %4486 = vmatpush1.bf16.msra.mxu0 %v3526
  %4487 = vmatprep.subr.bf16.mxu0 %v3535
  %4488 = vmatpush1.bf16.msra.mxu0 %v3534
  %4489 = vmatprep.subr.bf16.mxu0 %v3543
  %4490 = vmatpush1.bf16.msra.mxu0 %v3542
  %4491 = vmatprep.mubr.bf16.mxu0 %v4408
  %4492 = vmatmul.mubr.bf16.gmra.mrb[0].mxu0 %v4407
  %v4493 = vpop.f32.mrb[0].mxu0
  %v4494 = vadd.f32 %v4451, %v4493
  %v4495 = vpop.f32.mrb[0].mxu0
  %v4496 = vadd.f32 %v4453, %v4495
  %v4497 = vpop.f32.mrb[0].mxu0
  %v4498 = vadd.f32 %v4455, %v4497
  %v4499 = vpop.f32.mrb[0].mxu0
  %v4500 = vadd.f32 %v4457, %v4499
  %4501 = vdwg.mxu0
  %4502 = vmatprep.subr.bf16.mxu0 %v3551
  %4503 = vmatpush1.bf16.msra.mxu0 %v3550
  %4504 = vmatprep.subr.bf16.mxu0 0
  %4505 = vmatpush1.bf16.msra.mxu0 0
  %4506 = vmatprep.subr.bf16.mxu0 0
  %4507 = vmatpush1.bf16.msra.mxu0 0
  %4508 = vmatprep.subr.bf16.mxu0 0
  %4509 = vmatpush1.bf16.msra.mxu0 0
  %4510 = vmatprep.subr.bf16.mxu0 0
  %4511 = vmatpush1.bf16.msra.mxu0 0
  %4512 = vmatprep.subr.bf16.mxu0 0
  %4513 = vmatpush1.bf16.msra.mxu0 0
  %4514 = vmatprep.subr.bf16.mxu0 0
  %4515 = vmatpush1.bf16.msra.mxu0 0
  %4516 = vmatprep.subr.bf16.mxu0 0
  %4517 = vmatpush1.bf16.msra.mxu0 0
  %4518 = vmatprep.subr.bf16.mxu0 0
  %4519 = vmatpush1.bf16.msra.mxu0 0
  %4520 = vmatprep.subr.bf16.mxu0 0
  %4521 = vmatpush1.bf16.msra.mxu0 0
  %4522 = vmatprep.subr.bf16.mxu0 0
  %4523 = vmatpush1.bf16.msra.mxu0 0
  %4524 = vmatprep.subr.bf16.mxu0 0
  %4525 = vmatpush1.bf16.msra.mxu0 0
  %4526 = vmatprep.subr.bf16.mxu0 0
  %4527 = vmatpush1.bf16.msra.mxu0 0
  %4528 = vmatprep.subr.bf16.mxu0 0
  %4529 = vmatpush1.bf16.msra.mxu0 0
  %4530 = vmatprep.subr.bf16.mxu0 0
  %4531 = vmatpush1.bf16.msra.mxu0 0
  %4532 = vmatprep.subr.bf16.mxu0 0
  %4533 = vmatpush1.bf16.msra.mxu0 0
  %4534 = vmatprep.mubr.bf16.mxu0 0
  %4535 = vmatmul.mubr.bf16.gmra.mrb[0].mxu0 %v4414
  %v4536 = vpop.f32.mrb[0].mxu0
  %v4537 = vadd.f32 %v4494, %v4536
  %v4538 = vpop.f32.mrb[0].mxu0
  %v4539 = vadd.f32 %v4496, %v4538
  %v4540 = vpop.f32.mrb[0].mxu0
  %v4541 = vadd.f32 %v4498, %v4540
  %v4542 = vpop.f32.mrb[0].mxu0
  %v4543 = vadd.f32 %v4500, %v4542
  %4544 = vdwg.mxu0
  %4545 = vmatprep.subr.bf16.mxu0 %v3297
  %4546 = vmatpush1.bf16.msra.mxu0 %v3296
  %4547 = vmatprep.subr.bf16.mxu0 %v3305
  %4548 = vmatpush1.bf16.msra.mxu0 %v3304
  %4549 = vmatprep.subr.bf16.mxu0 %v3313
  %4550 = vmatpush1.bf16.msra.mxu0 %v3312
  %4551 = vmatprep.subr.bf16.mxu0 %v3321
  %4552 = vmatpush1.bf16.msra.mxu0 %v3320
  %4553 = vmatprep.subr.bf16.mxu0 %v3329
  %4554 = vmatpush1.bf16.msra.mxu0 %v3328
  %4555 = vmatprep.subr.bf16.mxu0 %v3337
  %4556 = vmatpush1.bf16.msra.mxu0 %v3336
  %4557 = vmatprep.subr.bf16.mxu0 %v3345
  %4558 = vmatpush1.bf16.msra.mxu0 %v3344
  %4559 = vmatprep.subr.bf16.mxu0 %v3353
  %4560 = vmatpush1.bf16.msra.mxu0 %v3352
  %4561 = vmatprep.subr.bf16.mxu0 %v3361
  %4562 = vmatpush1.bf16.msra.mxu0 %v3360
  %4563 = vmatprep.subr.bf16.mxu0 %v3369
  %4564 = vmatpush1.bf16.msra.mxu0 %v3368
  %4565 = vmatprep.subr.bf16.mxu0 %v3377
  %4566 = vmatpush1.bf16.msra.mxu0 %v3376
  %4567 = vmatprep.subr.bf16.mxu0 %v3385
  %4568 = vmatpush1.bf16.msra.mxu0 %v3384
  %4569 = vmatprep.subr.bf16.mxu0 %v3393
  %4570 = vmatpush1.bf16.msra.mxu0 %v3392
  %4571 = vmatprep.subr.bf16.mxu0 %v3401
  %4572 = vmatpush1.bf16.msra.mxu0 %v3400
  %4573 = vmatprep.subr.bf16.mxu0 %v3409
  %4574 = vmatpush1.bf16.msra.mxu0 %v3408
  %4575 = vmatprep.subr.bf16.mxu0 %v3417
  %4576 = vmatpush1.bf16.msra.mxu0 %v3416
  %4577 = vmatprep.mubr.bf16.mxu0 %v4406
  %4578 = vmatmul.mubr.bf16.gmra.mrb[0].mxu0 %v4405
  %v4579 = vpop.f32.mrb[0].mxu0
  %v4580 = vadd.f32 %v2473, %v4579
  %v4581 = vpop.f32.mrb[0].mxu0
  %v4582 = vadd.f32 %v2477, %v4581
  %v4583 = vpop.f32.mrb[0].mxu0
  %v4584 = vadd.f32 %v2473, %v4583
  %v4585 = vpop.f32.mrb[0].mxu0
  %v4586 = vadd.f32 %v2477, %v4585
  %4587 = vdwg.mxu0
  %4588 = vmatprep.subr.bf16.mxu0 %v3425
  %4589 = vmatpush1.bf16.msra.mxu0 %v3424
  %4590 = vmatprep.subr.bf16.mxu0 %v3433
  %4591 = vmatpush1.bf16.msra.mxu0 %v3432
  %4592 = vmatprep.subr.bf16.mxu0 %v3441
  %4593 = vmatpush1.bf16.msra.mxu0 %v3440
  %4594 = vmatprep.subr.bf16.mxu0 %v3449
  %4595 = vmatpush1.bf16.msra.mxu0 %v3448
  %4596 = vmatprep.subr.bf16.mxu0 %v3457
  %4597 = vmatpush1.bf16.msra.mxu0 %v3456
  %4598 = vmatprep.subr.bf16.mxu0 %v3465
  %4599 = vmatpush1.bf16.msra.mxu0 %v3464
  %4600 = vmatprep.subr.bf16.mxu0 %v3473
  %4601 = vmatpush1.bf16.msra.mxu0 %v3472
  %4602 = vmatprep.subr.bf16.mxu0 %v3481
  %4603 = vmatpush1.bf16.msra.mxu0 %v3480
  %4604 = vmatprep.subr.bf16.mxu0 %v3489
  %4605 = vmatpush1.bf16.msra.mxu0 %v3488
  %4606 = vmatprep.subr.bf16.mxu0 %v3497
  %4607 = vmatpush1.bf16.msra.mxu0 %v3496
  %4608 = vmatprep.subr.bf16.mxu0 %v3505
  %4609 = vmatpush1.bf16.msra.mxu0 %v3504
  %4610 = vmatprep.subr.bf16.mxu0 %v3513
  %4611 = vmatpush1.bf16.msra.mxu0 %v3512
  %4612 = vmatprep.subr.bf16.mxu0 %v3521
  %4613 = vmatpush1.bf16.msra.mxu0 %v3520
  %4614 = vmatprep.subr.bf16.mxu0 %v3529
  %4615 = vmatpush1.bf16.msra.mxu0 %v3528
  %4616 = vmatprep.subr.bf16.mxu0 %v3537
  %4617 = vmatpush1.bf16.msra.mxu0 %v3536
  %4618 = vmatprep.subr.bf16.mxu0 %v3545
  %4619 = vmatpush1.bf16.msra.mxu0 %v3544
  %4620 = vmatprep.mubr.bf16.mxu0 %v4408
  %4621 = vmatmul.mubr.bf16.gmra.mrb[0].mxu0 %v4407
  %v4622 = vpop.f32.mrb[0].mxu0
  %v4623 = vadd.f32 %v4580, %v4622
  %v4624 = vpop.f32.mrb[0].mxu0
  %v4625 = vadd.f32 %v4582, %v4624
  %v4626 = vpop.f32.mrb[0].mxu0
  %v4627 = vadd.f32 %v4584, %v4626
  %v4628 = vpop.f32.mrb[0].mxu0
  %v4629 = vadd.f32 %v4586, %v4628
  %4630 = vdwg.mxu0
  %4631 = vmatprep.subr.bf16.mxu0 %v3553
  %4632 = vmatpush1.bf16.msra.mxu0 %v3552
  %4633 = vmatprep.subr.bf16.mxu0 0
  %4634 = vmatpush1.bf16.msra.mxu0 0
  %4635 = vmatprep.subr.bf16.mxu0 0
  %4636 = vmatpush1.bf16.msra.mxu0 0
  %4637 = vmatprep.subr.bf16.mxu0 0
  %4638 = vmatpush1.bf16.msra.mxu0 0
  %4639 = vmatprep.subr.bf16.mxu0 0
  %4640 = vmatpush1.bf16.msra.mxu0 0
  %4641 = vmatprep.subr.bf16.mxu0 0
  %4642 = vmatpush1.bf16.msra.mxu0 0
  %4643 = vmatprep.subr.bf16.mxu0 0
  %4644 = vmatpush1.bf16.msra.mxu0 0
  %4645 = vmatprep.subr.bf16.mxu0 0
  %4646 = vmatpush1.bf16.msra.mxu0 0
  %4647 = vmatprep.subr.bf16.mxu0 0
  %4648 = vmatpush1.bf16.msra.mxu0 0
  %4649 = vmatprep.subr.bf16.mxu0 0
  %4650 = vmatpush1.bf16.msra.mxu0 0
  %4651 = vmatprep.subr.bf16.mxu0 0
  %4652 = vmatpush1.bf16.msra.mxu0 0
  %4653 = vmatprep.subr.bf16.mxu0 0
  %4654 = vmatpush1.bf16.msra.mxu0 0
  %4655 = vmatprep.subr.bf16.mxu0 0
  %4656 = vmatpush1.bf16.msra.mxu0 0
  %4657 = vmatprep.subr.bf16.mxu0 0
  %4658 = vmatpush1.bf16.msra.mxu0 0
  %4659 = vmatprep.subr.bf16.mxu0 0
  %4660 = vmatpush1.bf16.msra.mxu0 0
  %4661 = vmatprep.subr.bf16.mxu0 0
  %4662 = vmatpush1.bf16.msra.mxu0 0
  %4663 = vmatprep.mubr.bf16.mxu0 0
  %4664 = vmatmul.mubr.bf16.gmra.mrb[0].mxu0 %v4414
  %v4665 = vpop.f32.mrb[0].mxu0
  %v4666 = vadd.f32 %v4623, %v4665
  %v4667 = vpop.f32.mrb[0].mxu0
  %v4668 = vadd.f32 %v4625, %v4667
  %v4669 = vpop.f32.mrb[0].mxu0
  %v4670 = vadd.f32 %v4627, %v4669
  %v4671 = vpop.f32.mrb[0].mxu0
  %v4672 = vadd.f32 %v4629, %v4671
  %4673 = vdwg.mxu0
  %4674 = vmatprep.subr.bf16.mxu0 %v3299
  %4675 = vmatpush1.bf16.msra.mxu0 %v3298
  %4676 = vmatprep.subr.bf16.mxu0 %v3307
  %4677 = vmatpush1.bf16.msra.mxu0 %v3306
  %4678 = vmatprep.subr.bf16.mxu0 %v3315
  %4679 = vmatpush1.bf16.msra.mxu0 %v3314
  %4680 = vmatprep.subr.bf16.mxu0 %v3323
  %4681 = vmatpush1.bf16.msra.mxu0 %v3322
  %4682 = vmatprep.subr.bf16.mxu0 %v3331
  %4683 = vmatpush1.bf16.msra.mxu0 %v3330
  %4684 = vmatprep.subr.bf16.mxu0 %v3339
  %4685 = vmatpush1.bf16.msra.mxu0 %v3338
  %4686 = vmatprep.subr.bf16.mxu0 %v3347
  %4687 = vmatpush1.bf16.msra.mxu0 %v3346
  %4688 = vmatprep.subr.bf16.mxu0 %v3355
  %4689 = vmatpush1.bf16.msra.mxu0 %v3354
  %4690 = vmatprep.subr.bf16.mxu0 %v3363
  %4691 = vmatpush1.bf16.msra.mxu0 %v3362
  %4692 = vmatprep.subr.bf16.mxu0 %v3371
  %4693 = vmatpush1.bf16.msra.mxu0 %v3370
  %4694 = vmatprep.subr.bf16.mxu0 %v3379
  %4695 = vmatpush1.bf16.msra.mxu0 %v3378
  %4696 = vmatprep.subr.bf16.mxu0 %v3387
  %4697 = vmatpush1.bf16.msra.mxu0 %v3386
  %4698 = vmatprep.subr.bf16.mxu0 %v3395
  %4699 = vmatpush1.bf16.msra.mxu0 %v3394
  %4700 = vmatprep.subr.bf16.mxu0 %v3403
  %4701 = vmatpush1.bf16.msra.mxu0 %v3402
  %4702 = vmatprep.subr.bf16.mxu0 %v3411
  %4703 = vmatpush1.bf16.msra.mxu0 %v3410
  %4704 = vmatprep.subr.bf16.mxu0 %v3419
  %4705 = vmatpush1.bf16.msra.mxu0 %v3418
  %4706 = vmatprep.mubr.bf16.mxu0 %v4406
  %4707 = vmatmul.mubr.bf16.gmra.mrb[0].mxu0 %v4405
  %v4708 = vpop.f32.mrb[0].mxu0
  %v4709 = vadd.f32 %v2481, %v4708
  %v4710 = vpop.f32.mrb[0].mxu0
  %v4711 = vadd.f32 %v2485, %v4710
  %v4712 = vpop.f32.mrb[0].mxu0
  %v4713 = vadd.f32 %v2481, %v4712
  %v4714 = vpop.f32.mrb[0].mxu0
  %v4715 = vadd.f32 %v2485, %v4714
  %4716 = vdwg.mxu0
  %4717 = vmatprep.subr.bf16.mxu0 %v3427
  %4718 = vmatpush1.bf16.msra.mxu0 %v3426
  %4719 = vmatprep.subr.bf16.mxu0 %v3435
  %4720 = vmatpush1.bf16.msra.mxu0 %v3434
  %4721 = vmatprep.subr.bf16.mxu0 %v3443
  %4722 = vmatpush1.bf16.msra.mxu0 %v3442
  %4723 = vmatprep.subr.bf16.mxu0 %v3451
  %4724 = vmatpush1.bf16.msra.mxu0 %v3450
  %4725 = vmatprep.subr.bf16.mxu0 %v3459
  %4726 = vmatpush1.bf16.msra.mxu0 %v3458
  %4727 = vmatprep.subr.bf16.mxu0 %v3467
  %4728 = vmatpush1.bf16.msra.mxu0 %v3466
  %4729 = vmatprep.subr.bf16.mxu0 %v3475
  %4730 = vmatpush1.bf16.msra.mxu0 %v3474
  %4731 = vmatprep.subr.bf16.mxu0 %v3483
  %4732 = vmatpush1.bf16.msra.mxu0 %v3482
  %4733 = vmatprep.subr.bf16.mxu0 %v3491
  %4734 = vmatpush1.bf16.msra.mxu0 %v3490
  %4735 = vmatprep.subr.bf16.mxu0 %v3499
  %4736 = vmatpush1.bf16.msra.mxu0 %v3498
  %4737 = vmatprep.subr.bf16.mxu0 %v3507
  %4738 = vmatpush1.bf16.msra.mxu0 %v3506
  %4739 = vmatprep.subr.bf16.mxu0 %v3515
  %4740 = vmatpush1.bf16.msra.mxu0 %v3514
  %4741 = vmatprep.subr.bf16.mxu0 %v3523
  %4742 = vmatpush1.bf16.msra.mxu0 %v3522
  %4743 = vmatprep.subr.bf16.mxu0 %v3531
  %4744 = vmatpush1.bf16.msra.mxu0 %v3530
  %4745 = vmatprep.subr.bf16.mxu0 %v3539
  %4746 = vmatpush1.bf16.msra.mxu0 %v3538
  %4747 = vmatprep.subr.bf16.mxu0 %v3547
  %4748 = vmatpush1.bf16.msra.mxu0 %v3546
  %4749 = vmatprep.mubr.bf16.mxu0 %v4408
  %4750 = vmatmul.mubr.bf16.gmra.mrb[0].mxu0 %v4407
  %v4751 = vpop.f32.mrb[0].mxu0
  %v4752 = vadd.f32 %v4709, %v4751
  %v4753 = vpop.f32.mrb[0].mxu0
  %v4754 = vadd.f32 %v4711, %v4753
  %v4755 = vpop.f32.mrb[0].mxu0
  %v4756 = vadd.f32 %v4713, %v4755
  %v4757 = vpop.f32.mrb[0].mxu0
  %v4758 = vadd.f32 %v4715, %v4757
  %4759 = vdwg.mxu0
  %4760 = vmatprep.subr.bf16.mxu0 %v3555
  %4761 = vmatpush1.bf16.msra.mxu0 %v3554
  %4762 = vmatprep.subr.bf16.mxu0 0
  %4763 = vmatpush1.bf16.msra.mxu0 0
  %4764 = vmatprep.subr.bf16.mxu0 0
  %4765 = vmatpush1.bf16.msra.mxu0 0
  %4766 = vmatprep.subr.bf16.mxu0 0
  %4767 = vmatpush1.bf16.msra.mxu0 0
  %4768 = vmatprep.subr.bf16.mxu0 0
  %4769 = vmatpush1.bf16.msra.mxu0 0
  %4770 = vmatprep.subr.bf16.mxu0 0
  %4771 = vmatpush1.bf16.msra.mxu0 0
  %4772 = vmatprep.subr.bf16.mxu0 0
  %4773 = vmatpush1.bf16.msra.mxu0 0
  %4774 = vmatprep.subr.bf16.mxu0 0
  %4775 = vmatpush1.bf16.msra.mxu0 0
  %4776 = vmatprep.subr.bf16.mxu0 0
  %4777 = vmatpush1.bf16.msra.mxu0 0
  %4778 = vmatprep.subr.bf16.mxu0 0
  %4779 = vmatpush1.bf16.msra.mxu0 0
  %4780 = vmatprep.subr.bf16.mxu0 0
  %4781 = vmatpush1.bf16.msra.mxu0 0
  %4782 = vmatprep.subr.bf16.mxu0 0
  %4783 = vmatpush1.bf16.msra.mxu0 0
  %4784 = vmatprep.subr.bf16.mxu0 0
  %4785 = vmatpush1.bf16.msra.mxu0 0
  %4786 = vmatprep.subr.bf16.mxu0 0
  %4787 = vmatpush1.bf16.msra.mxu0 0
  %4788 = vmatprep.subr.bf16.mxu0 0
  %4789 = vmatpush1.bf16.msra.mxu0 0
  %4790 = vmatprep.subr.bf16.mxu0 0
  %4791 = vmatpush1.bf16.msra.mxu0 0
  %4792 = vmatprep.mubr.bf16.mxu0 0
  %4793 = vmatmul.mubr.bf16.gmra.mrb[0].mxu0 %v4414
  %v4794 = vpop.f32.mrb[0].mxu0
  %v4795 = vadd.f32 %v4752, %v4794
  %v4796 = vpop.f32.mrb[0].mxu0
  %v4797 = vadd.f32 %v4754, %v4796
  %v4798 = vpop.f32.mrb[0].mxu0
  %v4799 = vadd.f32 %v4756, %v4798
  %v4800 = vpop.f32.mrb[0].mxu0
  %v4801 = vadd.f32 %v4758, %v4800
  %4802 = vdwg.mxu0
  %4803 = vmatprep.subr.bf16.mxu0 %v3301
  %4804 = vmatpush1.bf16.msra.mxu0 %v3300
  %4805 = vmatprep.subr.bf16.mxu0 %v3309
  %4806 = vmatpush1.bf16.msra.mxu0 %v3308
  %4807 = vmatprep.subr.bf16.mxu0 %v3317
  %4808 = vmatpush1.bf16.msra.mxu0 %v3316
  %4809 = vmatprep.subr.bf16.mxu0 %v3325
  %4810 = vmatpush1.bf16.msra.mxu0 %v3324
  %4811 = vmatprep.subr.bf16.mxu0 %v3333
  %4812 = vmatpush1.bf16.msra.mxu0 %v3332
  %4813 = vmatprep.subr.bf16.mxu0 %v3341
  %4814 = vmatpush1.bf16.msra.mxu0 %v3340
  %4815 = vmatprep.subr.bf16.mxu0 %v3349
  %4816 = vmatpush1.bf16.msra.mxu0 %v3348
  %4817 = vmatprep.subr.bf16.mxu0 %v3357
  %4818 = vmatpush1.bf16.msra.mxu0 %v3356
  %4819 = vmatprep.subr.bf16.mxu0 %v3365
  %4820 = vmatpush1.bf16.msra.mxu0 %v3364
  %4821 = vmatprep.subr.bf16.mxu0 %v3373
  %4822 = vmatpush1.bf16.msra.mxu0 %v3372
  %4823 = vmatprep.subr.bf16.mxu0 %v3381
  %4824 = vmatpush1.bf16.msra.mxu0 %v3380
  %4825 = vmatprep.subr.bf16.mxu0 %v3389
  %4826 = vmatpush1.bf16.msra.mxu0 %v3388
  %4827 = vmatprep.subr.bf16.mxu0 %v3397
  %4828 = vmatpush1.bf16.msra.mxu0 %v3396
  %4829 = vmatprep.subr.bf16.mxu0 %v3405
  %4830 = vmatpush1.bf16.msra.mxu0 %v3404
  %4831 = vmatprep.subr.bf16.mxu0 %v3413
  %4832 = vmatpush1.bf16.msra.mxu0 %v3412
  %4833 = vmatprep.subr.bf16.mxu0 %v3421
  %4834 = vmatpush1.bf16.msra.mxu0 %v3420
  %4835 = vmatprep.mubr.bf16.mxu0 %v4406
  %4836 = vmatmul.mubr.bf16.gmra.mrb[0].mxu0 %v4405
  %v4837 = vpop.f32.mrb[0].mxu0
  %v4838 = vadd.f32 %v2489, %v4837
  %v4839 = vpop.f32.mrb[0].mxu0
  %v4840 = vadd.f32 %v2493, %v4839
  %v4841 = vpop.f32.mrb[0].mxu0
  %v4842 = vadd.f32 %v2489, %v4841
  %v4843 = vpop.f32.mrb[0].mxu0
  %v4844 = vadd.f32 %v2493, %v4843
  %4845 = vdwg.mxu0
  %4846 = vmatprep.subr.bf16.mxu0 %v3429
  %4847 = vmatpush1.bf16.msra.mxu0 %v3428
  %4848 = vmatprep.subr.bf16.mxu0 %v3437
  %4849 = vmatpush1.bf16.msra.mxu0 %v3436
  %4850 = vmatprep.subr.bf16.mxu0 %v3445
  %4851 = vmatpush1.bf16.msra.mxu0 %v3444
  %4852 = vmatprep.subr.bf16.mxu0 %v3453
  %4853 = vmatpush1.bf16.msra.mxu0 %v3452
  %4854 = vmatprep.subr.bf16.mxu0 %v3461
  %4855 = vmatpush1.bf16.msra.mxu0 %v3460
  %4856 = vmatprep.subr.bf16.mxu0 %v3469
  %4857 = vmatpush1.bf16.msra.mxu0 %v3468
  %4858 = vmatprep.subr.bf16.mxu0 %v3477
  %4859 = vmatpush1.bf16.msra.mxu0 %v3476
  %4860 = vmatprep.subr.bf16.mxu0 %v3485
  %4861 = vmatpush1.bf16.msra.mxu0 %v3484
  %4862 = vmatprep.subr.bf16.mxu0 %v3493
  %4863 = vmatpush1.bf16.msra.mxu0 %v3492
  %4864 = vmatprep.subr.bf16.mxu0 %v3501
  %4865 = vmatpush1.bf16.msra.mxu0 %v3500
  %4866 = vmatprep.subr.bf16.mxu0 %v3509
  %4867 = vmatpush1.bf16.msra.mxu0 %v3508
  %4868 = vmatprep.subr.bf16.mxu0 %v3517
  %4869 = vmatpush1.bf16.msra.mxu0 %v3516
  %4870 = vmatprep.subr.bf16.mxu0 %v3525
  %4871 = vmatpush1.bf16.msra.mxu0 %v3524
  %4872 = vmatprep.subr.bf16.mxu0 %v3533
  %4873 = vmatpush1.bf16.msra.mxu0 %v3532
  %4874 = vmatprep.subr.bf16.mxu0 %v3541
  %4875 = vmatpush1.bf16.msra.mxu0 %v3540
  %4876 = vmatprep.subr.bf16.mxu0 %v3549
  %4877 = vmatpush1.bf16.msra.mxu0 %v3548
  %4878 = vmatprep.mubr.bf16.mxu0 %v4408
  %4879 = vmatmul.mubr.bf16.gmra.mrb[0].mxu0 %v4407
  %v4880 = vpop.f32.mrb[0].mxu0
  %v4881 = vadd.f32 %v4838, %v4880
  %v4882 = vpop.f32.mrb[0].mxu0
  %v4883 = vadd.f32 %v4840, %v4882
  %v4884 = vpop.f32.mrb[0].mxu0
  %v4885 = vadd.f32 %v4842, %v4884
  %v4886 = vpop.f32.mrb[0].mxu0
  %v4887 = vadd.f32 %v4844, %v4886
  %4888 = vdwg.mxu0
  %4889 = vmatprep.subr.bf16.mxu0 %v3557
  %4890 = vmatpush1.bf16.msra.mxu0 %v3556
  %4891 = vmatprep.subr.bf16.mxu0 0
  %4892 = vmatpush1.bf16.msra.mxu0 0
  %4893 = vmatprep.subr.bf16.mxu0 0
  %4894 = vmatpush1.bf16.msra.mxu0 0
  %4895 = vmatprep.subr.bf16.mxu0 0
  %4896 = vmatpush1.bf16.msra.mxu0 0
  %4897 = vmatprep.subr.bf16.mxu0 0
  %4898 = vmatpush1.bf16.msra.mxu0 0
  %4899 = vmatprep.subr.bf16.mxu0 0
  %4900 = vmatpush1.bf16.msra.mxu0 0
  %4901 = vmatprep.subr.bf16.mxu0 0
  %4902 = vmatpush1.bf16.msra.mxu0 0
  %4903 = vmatprep.subr.bf16.mxu0 0
  %4904 = vmatpush1.bf16.msra.mxu0 0
  %4905 = vmatprep.subr.bf16.mxu0 0
  %4906 = vmatpush1.bf16.msra.mxu0 0
  %4907 = vmatprep.subr.bf16.mxu0 0
  %4908 = vmatpush1.bf16.msra.mxu0 0
  %4909 = vmatprep.subr.bf16.mxu0 0
  %4910 = vmatpush1.bf16.msra.mxu0 0
  %4911 = vmatprep.subr.bf16.mxu0 0
  %4912 = vmatpush1.bf16.msra.mxu0 0
  %4913 = vmatprep.subr.bf16.mxu0 0
  %4914 = vmatpush1.bf16.msra.mxu0 0
  %4915 = vmatprep.subr.bf16.mxu0 0
  %4916 = vmatpush1.bf16.msra.mxu0 0
  %4917 = vmatprep.subr.bf16.mxu0 0
  %4918 = vmatpush1.bf16.msra.mxu0 0
  %4919 = vmatprep.subr.bf16.mxu0 0
  %4920 = vmatpush1.bf16.msra.mxu0 0
  %4921 = vmatprep.mubr.bf16.mxu0 0
  %4922 = vmatmul.mubr.bf16.gmra.mrb[0].mxu0 %v4414
  %v4923 = vpop.f32.mrb[0].mxu0
  %v4924 = vadd.f32 %v4881, %v4923
  %v4925 = vpop.f32.mrb[0].mxu0
  %v4926 = vadd.f32 %v4883, %v4925
  %v4927 = vpop.f32.mrb[0].mxu0
  %v4928 = vadd.f32 %v4885, %v4927
  %v4929 = vpop.f32.mrb[0].mxu0
  %v4930 = vadd.f32 %v4887, %v4929
  %4931 = vdwg.mxu0
  %v4932 = vmax.f32 %v4537, 0.0
  %v4933 = vmax.f32 %v4539, 0.0
  %v4934 = vmax.f32 %v4666, 0.0
  %v4935 = vmax.f32 %v4668, 0.0
  %v4936 = vmax.f32 %v4795, 0.0
  %v4937 = vmax.f32 %v4797, 0.0
  %v4938 = vmax.f32 %v4924, 0.0
  %v4939 = vmax.f32 %v4926, 0.0
  %v4940 = vmax.f32 %v4541, 0.0
  %v4941 = vmax.f32 %v4543, 0.0
  %v4942 = vmax.f32 %v4670, 0.0
  %v4943 = vmax.f32 %v4672, 0.0
  %v4944 = vmax.f32 %v4799, 0.0
  %v4945 = vmax.f32 %v4801, 0.0
  %v4946 = vmax.f32 %v4928, 0.0
  %v4947 = vmax.f32 %v4930, 0.0
  %4964 = vrot.lane.b32.xlu0 %v4932, 32
  %v4965 = vpop.permute.xlu0 %4964
  %4966 = vrot.lane.b32.xlu0 %v4933, 32
  %v4967 = vpop.permute.xlu0 %4966
  %4968 = vrot.lane.b32.xlu0 %v4934, 32
  %v4969 = vpop.permute.xlu0 %4968
  %4970 = vrot.lane.b32.xlu0 %v4935, 32
  %v4971 = vpop.permute.xlu0 %4970
  %4972 = vrot.lane.b32.xlu0 %v4936, 32
  %v4973 = vpop.permute.xlu0 %4972
  %4974 = vrot.lane.b32.xlu0 %v4937, 32
  %v4975 = vpop.permute.xlu0 %4974
  %4976 = vrot.lane.b32.xlu0 %v4938, 32
  %v4977 = vpop.permute.xlu0 %4976
  %4978 = vrot.lane.b32.xlu0 %v4939, 32
  %v4979 = vpop.permute.xlu0 %4978
  %4980 = vrot.lane.b32.xlu0 %v4940, 32
  %v4981 = vpop.permute.xlu0 %4980
  %4982 = vrot.lane.b32.xlu0 %v4941, 32
  %v4983 = vpop.permute.xlu0 %4982
  %4984 = vrot.lane.b32.xlu0 %v4942, 32
  %v4985 = vpop.permute.xlu0 %4984
  %4986 = vrot.lane.b32.xlu0 %v4943, 32
  %v4987 = vpop.permute.xlu0 %4986
  %4988 = vrot.lane.b32.xlu0 %v4944, 32
  %v4989 = vpop.permute.xlu0 %4988
  %4990 = vrot.lane.b32.xlu0 %v4945, 32
  %v4991 = vpop.permute.xlu0 %4990
  %4992 = vrot.lane.b32.xlu0 %v4946, 32
  %v4993 = vpop.permute.xlu0 %4992
  %4994 = vrot.lane.b32.xlu0 %v4947, 32
  %v4995 = vpop.permute.xlu0 %4994
  %v4996 = vsel %vm4364, %v4965, %v4967
  %v4997 = vsel %vm4364, %v4967, %v4969
  %v4998 = vsel %vm4364, %v4969, %v4971
  %v4999 = vsel %vm4364, %v4971, %v4973
  %v5000 = vsel %vm4364, %v4973, %v4975
  %v5001 = vsel %vm4364, %v4975, %v4977
  %v5002 = vsel %vm4364, %v4977, %v4979
  %v5003 = vsel %vm4364, %v4981, %v4983
  %v5004 = vsel %vm4364, %v4983, %v4985
  %v5005 = vsel %vm4364, %v4985, %v4987
  %v5006 = vsel %vm4364, %v4987, %v4989
  %v5007 = vsel %vm4364, %v4989, %v4991
  %v5008 = vsel %vm4364, %v4991, %v4993
  %v5009 = vsel %vm4364, %v4993, %v4995
  %vm5026 = vcmask 1047808
  %5027 = vst.msk [vmem:[#allocation3 + $0x38] sm:$0xff] %vm5026, %v4965
  %5028 = vst [vmem:[#allocation3 + $0x40] sm:$0xff] %v4996
  %5029 = vst [vmem:[#allocation3 + $0x48] sm:$0xff] %v4997
  %5030 = vst [vmem:[#allocation3 + $0x50] sm:$0xff] %v4998
  %5031 = vst [vmem:[#allocation3 + $0x58] sm:$0xff] %v4999
  %5032 = vst [vmem:[#allocation3 + $0x60] sm:$0xff] %v5000
  %5033 = vst [vmem:[#allocation3 + $0x68] sm:$0xff] %v5001
  %vm5034 = vcmask 523264
  %5035 = vst.msk [vmem:[#allocation3 + $0x70] sm:$0xff] %vm5034, %v5002
  %5036 = vst.msk [vmem:[#allocation3 + $0xb0] sm:$0xff] %vm5026, %v4981
  %5037 = vst [vmem:[#allocation3 + $0xb8] sm:$0xff] %v5003
  %5038 = vst [vmem:[#allocation3 + $0xc0] sm:$0xff] %v5004
  %5039 = vst [vmem:[#allocation3 + $0xc8] sm:$0xff] %v5005
  %5040 = vst [vmem:[#allocation3 + $0xd0] sm:$0xff] %v5006
  %5041 = vst [vmem:[#allocation3 + $0xd8] sm:$0xff] %v5007
  %5042 = vst [vmem:[#allocation3 + $0xe0] sm:$0xff] %v5008
  %5043 = vst.msk [vmem:[#allocation3 + $0xe8] sm:$0xff] %vm5034, %v5009
  %v5044 = vld [vmem:[%s6] sm:$0xff]
  %v5045 = vld [vmem:[%s6 + $0x8] sm:$0xff]
  %v5046 = vld [vmem:[%s6 + $0x10] sm:$0xff]
  %v5047 = vld [vmem:[%s6 + $0x18] sm:$0xff]
  %v5048 = vld [vmem:[%s6 + $0x20] sm:$0xff]
  %v5049 = vld [vmem:[%s6 + $0x28] sm:$0xff]
  %v5050 = vld [vmem:[%s6 + $0x30] sm:$0xff]
  %v5051 = vld [vmem:[%s6 + $0x38] sm:$0xff]
  %v5052 = vld [vmem:[%s6 + $0x40] sm:$0xff]
  %v5053 = vld [vmem:[%s6 + $0x48] sm:$0xff]
  %v5054 = vld [vmem:[%s6 + $0x50] sm:$0xff]
  %v5055 = vld [vmem:[%s6 + $0x58] sm:$0xff]
  %v5056 = vld [vmem:[%s6 + $0x60] sm:$0xff]
  %v5057 = vld [vmem:[%s6 + $0x68] sm:$0xff]
  %v5058 = vld [vmem:[%s6 + $0x70] sm:$0xff]
  %v5059 = vld [vmem:[%s6 + $0x78] sm:$0xff]
  %v5060 = vld [vmem:[%s6 + $0x80] sm:$0xff]
  %v5061 = vld [vmem:[%s6 + $0x88] sm:$0xff]
  %v5062 = vld [vmem:[%s6 + $0x90] sm:$0xff]
  %v5063 = vld [vmem:[%s6 + $0x98] sm:$0xff]
  %v5064 = vld [vmem:[%s6 + $0xa0] sm:$0xff]
  %v5065 = vld [vmem:[%s6 + $0xa8] sm:$0xff]
  %v5066 = vld [vmem:[%s6 + $0xb0] sm:$0xff]
  %v5067 = vld [vmem:[%s6 + $0xb8] sm:$0xff]
  %v5068 = vld [vmem:[%s6 + $0xc0] sm:$0xff]
  %v5069 = vld [vmem:[%s6 + $0xc8] sm:$0xff]
  %v5070 = vld [vmem:[%s6 + $0xd0] sm:$0xff]
  %v5071 = vld [vmem:[%s6 + $0xd8] sm:$0xff]
  %v5072 = vld [vmem:[%s6 + $0xe0] sm:$0xff]
  %v5073 = vld [vmem:[%s6 + $0xe8] sm:$0xff]
  %v5074 = vld [vmem:[%s6 + $0xf0] sm:$0xff]
  %v5075 = vld [vmem:[%s6 + $0xf8] sm:$0xff]
  %v5076 = vld [vmem:[%s6 + $0x100] sm:$0xff]
  %v5077 = vld [vmem:[%s6 + $0x108] sm:$0xff]
  %v5078 = vld [vmem:[%s6 + $0x110] sm:$0xff]
  %v5079 = vld [vmem:[%s6 + $0x118] sm:$0xff]
  %v5080 = vld [vmem:[%s6 + $0x120] sm:$0xff]
  %v5081 = vld [vmem:[%s6 + $0x128] sm:$0xff]
  %v5082 = vld [vmem:[%s6 + $0x130] sm:$0xff]
  %v5083 = vld [vmem:[%s6 + $0x138] sm:$0xff]
  %v5084 = vld [vmem:[%s6 + $0x140] sm:$0xff]
  %v5085 = vld [vmem:[%s6 + $0x148] sm:$0xff]
  %v5086 = vld [vmem:[%s6 + $0x150] sm:$0xff]
  %v5087 = vld [vmem:[%s6 + $0x158] sm:$0xff]
  %v5088 = vld [vmem:[%s6 + $0x160] sm:$0xff]
  %v5089 = vld [vmem:[%s6 + $0x168] sm:$0xff]
  %v5090 = vld [vmem:[%s6 + $0x170] sm:$0xff]
  %v5091 = vld [vmem:[%s6 + $0x178] sm:$0xff]
  %v5092 = vld [vmem:[%s6 + $0x180] sm:$0xff]
  %v5093 = vld [vmem:[%s6 + $0x188] sm:$0xff]
  %v5094 = vld [vmem:[%s6 + $0x190] sm:$0xff]
  %v5095 = vld [vmem:[%s6 + $0x198] sm:$0xff]
  %v5096 = vld [vmem:[%s6 + $0x1a0] sm:$0xff]
  %v5097 = vld [vmem:[%s6 + $0x1a8] sm:$0xff]
  %v5098 = vld [vmem:[%s6 + $0x1b0] sm:$0xff]
  %v5099 = vld [vmem:[%s6 + $0x1b8] sm:$0xff]
  %v5100 = vld [vmem:[%s6 + $0x1c0] sm:$0xff]
  %v5101 = vld [vmem:[%s6 + $0x1c8] sm:$0xff]
  %v5102 = vld [vmem:[%s6 + $0x1d0] sm:$0xff]
  %v5103 = vld [vmem:[%s6 + $0x1d8] sm:$0xff]
  %v5104 = vld [vmem:[%s6 + $0x1e0] sm:$0xff]
  %v5105 = vld [vmem:[%s6 + $0x1e8] sm:$0xff]
  %v5106 = vld [vmem:[%s6 + $0x1f0] sm:$0xff]
  %v5107 = vld [vmem:[%s6 + $0x1f8] sm:$0xff]
  %v5108 = vld [vmem:[%s6 + $0x200] sm:$0xff]
  %v5109 = vld [vmem:[%s6 + $0x208] sm:$0xff]
  %v5110 = vld [vmem:[%s6 + $0x210] sm:$0xff]
  %v5111 = vld [vmem:[%s6 + $0x218] sm:$0xff]
  %v5112 = vld [vmem:[%s6 + $0x220] sm:$0xff]
  %v5113 = vld [vmem:[%s6 + $0x228] sm:$0xff]
  %v5114 = vld [vmem:[%s6 + $0x230] sm:$0xff]
  %v5115 = vld [vmem:[%s6 + $0x238] sm:$0xff]
  %v5116 = vld [vmem:[%s7] sm:$0x3]
  %v5117 = vld [vmem:[#allocation3] sm:$0xff]
  %v5118 = vld [vmem:[#allocation3 + $0x8] sm:$0xff]
  %v5119 = vld [vmem:[#allocation3 + $0x10] sm:$0xff]
  %v5120 = vld [vmem:[#allocation3 + $0x18] sm:$0xff]
  %v5121 = vld [vmem:[#allocation3 + $0x20] sm:$0xff]
  %v5122 = vld [vmem:[#allocation3 + $0x78] sm:$0xff]
  %v5123 = vld [vmem:[#allocation3 + $0x80] sm:$0xff]
  %v5124 = vld [vmem:[#allocation3 + $0x88] sm:$0xff]
  %v5125 = vld [vmem:[#allocation3 + $0x90] sm:$0xff]
  %v5126 = vld [vmem:[#allocation3 + $0x98] sm:$0xff]
  %v5127 = vpack.c.bf16 %v5122, %v5117
  %v5128 = vpack.c.bf16 %v5123, %v5118
  %v5129 = vpack.c.bf16 %v5124, %v5119
  %v5130 = vpack.c.bf16 %v5125, %v5120
  %v5131 = vpack.c.bf16 %v5126, %v5121
  %v5133 = vlaneseq
  %v5134 = vshrl.u32 %v5133, 7
  %v5135 = vsub.s32 0, %v5134
  %v5136 = vrot.slane %v5116, %v5135
  %v5137 = vlaneseq
  %v5138 = vshrl.u32 %v5137, 7
  %v5139 = vsub.s32 1, %v5138
  %v5140 = vrot.slane %v5116, %v5139
  %v5215 = vunpack.c.l.b16 %v5044
  %v5216 = vunpack.c.h.b16 %v5044
  %v5217 = vunpack.c.l.b16 %v5045
  %v5218 = vunpack.c.h.b16 %v5045
  %v5219 = vunpack.c.l.b16 %v5046
  %v5220 = vunpack.c.h.b16 %v5046
  %v5221 = vunpack.c.l.b16 %v5047
  %v5222 = vunpack.c.h.b16 %v5047
  %v5223 = vunpack.c.l.b16 %v5048
  %v5224 = vunpack.c.h.b16 %v5048
  %v5225 = vunpack.c.l.b16 %v5049
  %v5226 = vunpack.c.h.b16 %v5049
  %v5227 = vunpack.c.l.b16 %v5050
  %v5228 = vunpack.c.h.b16 %v5050
  %v5229 = vunpack.c.l.b16 %v5051
  %v5230 = vunpack.c.h.b16 %v5051
  %v5231 = vunpack.c.l.b16 %v5052
  %v5232 = vunpack.c.h.b16 %v5052
  %v5233 = vunpack.c.l.b16 %v5053
  %v5234 = vunpack.c.h.b16 %v5053
  %v5235 = vunpack.c.l.b16 %v5054
  %v5236 = vunpack.c.h.b16 %v5054
  %v5237 = vunpack.c.l.b16 %v5055
  %v5238 = vunpack.c.h.b16 %v5055
  %v5239 = vunpack.c.l.b16 %v5056
  %v5240 = vunpack.c.h.b16 %v5056
  %v5241 = vunpack.c.l.b16 %v5057
  %v5242 = vunpack.c.h.b16 %v5057
  %v5243 = vunpack.c.l.b16 %v5058
  %v5244 = vunpack.c.h.b16 %v5058
  %v5245 = vunpack.c.l.b16 %v5059
  %v5246 = vunpack.c.h.b16 %v5059
  %v5247 = vunpack.c.l.b16 %v5060
  %v5248 = vunpack.c.h.b16 %v5060
  %v5249 = vunpack.c.l.b16 %v5061
  %v5250 = vunpack.c.h.b16 %v5061
  %v5251 = vunpack.c.l.b16 %v5062
  %v5252 = vunpack.c.h.b16 %v5062
  %v5253 = vunpack.c.l.b16 %v5063
  %v5254 = vunpack.c.h.b16 %v5063
  %v5255 = vunpack.c.l.b16 %v5064
  %v5256 = vunpack.c.h.b16 %v5064
  %v5257 = vunpack.c.l.b16 %v5065
  %v5258 = vunpack.c.h.b16 %v5065
  %v5259 = vunpack.c.l.b16 %v5066
  %v5260 = vunpack.c.h.b16 %v5066
  %v5261 = vunpack.c.l.b16 %v5067
  %v5262 = vunpack.c.h.b16 %v5067
  %v5263 = vunpack.c.l.b16 %v5068
  %v5264 = vunpack.c.h.b16 %v5068
  %v5265 = vunpack.c.l.b16 %v5069
  %v5266 = vunpack.c.h.b16 %v5069
  %v5267 = vunpack.c.l.b16 %v5070
  %v5268 = vunpack.c.h.b16 %v5070
  %v5269 = vunpack.c.l.b16 %v5071
  %v5270 = vunpack.c.h.b16 %v5071
  %v5271 = vunpack.c.l.b16 %v5072
  %v5272 = vunpack.c.h.b16 %v5072
  %v5273 = vunpack.c.l.b16 %v5073
  %v5274 = vunpack.c.h.b16 %v5073
  %v5275 = vunpack.c.l.b16 %v5074
  %v5276 = vunpack.c.h.b16 %v5074
  %v5277 = vunpack.c.l.b16 %v5075
  %v5278 = vunpack.c.h.b16 %v5075
  %v5279 = vunpack.c.l.b16 %v5076
  %v5280 = vunpack.c.h.b16 %v5076
  %v5281 = vunpack.c.l.b16 %v5077
  %v5282 = vunpack.c.h.b16 %v5077
  %v5283 = vunpack.c.l.b16 %v5078
  %v5284 = vunpack.c.h.b16 %v5078
  %v5285 = vunpack.c.l.b16 %v5079
  %v5286 = vunpack.c.h.b16 %v5079
  %v5287 = vunpack.c.l.b16 %v5080
  %v5288 = vunpack.c.h.b16 %v5080
  %v5289 = vunpack.c.l.b16 %v5081
  %v5290 = vunpack.c.h.b16 %v5081
  %v5291 = vunpack.c.l.b16 %v5082
  %v5292 = vunpack.c.h.b16 %v5082
  %v5293 = vunpack.c.l.b16 %v5083
  %v5294 = vunpack.c.h.b16 %v5083
  %v5295 = vunpack.c.l.b16 %v5084
  %v5296 = vunpack.c.h.b16 %v5084
  %v5297 = vunpack.c.l.b16 %v5085
  %v5298 = vunpack.c.h.b16 %v5085
  %v5299 = vunpack.c.l.b16 %v5086
  %v5300 = vunpack.c.h.b16 %v5086
  %v5301 = vunpack.c.l.b16 %v5087
  %v5302 = vunpack.c.h.b16 %v5087
  %v5303 = vunpack.c.l.b16 %v5088
  %v5304 = vunpack.c.h.b16 %v5088
  %v5305 = vunpack.c.l.b16 %v5089
  %v5306 = vunpack.c.h.b16 %v5089
  %v5307 = vunpack.c.l.b16 %v5090
  %v5308 = vunpack.c.h.b16 %v5090
  %v5309 = vunpack.c.l.b16 %v5091
  %v5310 = vunpack.c.h.b16 %v5091
  %v5311 = vunpack.c.l.b16 %v5092
  %v5312 = vunpack.c.h.b16 %v5092
  %v5313 = vunpack.c.l.b16 %v5093
  %v5314 = vunpack.c.h.b16 %v5093
  %v5315 = vunpack.c.l.b16 %v5094
  %v5316 = vunpack.c.h.b16 %v5094
  %v5317 = vunpack.c.l.b16 %v5095
  %v5318 = vunpack.c.h.b16 %v5095
  %v5319 = vunpack.c.l.b16 %v5096
  %v5320 = vunpack.c.h.b16 %v5096
  %v5321 = vunpack.c.l.b16 %v5097
  %v5322 = vunpack.c.h.b16 %v5097
  %v5323 = vunpack.c.l.b16 %v5098
  %v5324 = vunpack.c.h.b16 %v5098
  %v5325 = vunpack.c.l.b16 %v5099
  %v5326 = vunpack.c.h.b16 %v5099
  %v5327 = vunpack.c.l.b16 %v5100
  %v5328 = vunpack.c.h.b16 %v5100
  %v5329 = vunpack.c.l.b16 %v5101
  %v5330 = vunpack.c.h.b16 %v5101
  %v5331 = vunpack.c.l.b16 %v5102
  %v5332 = vunpack.c.h.b16 %v5102
  %v5333 = vunpack.c.l.b16 %v5103
  %v5334 = vunpack.c.h.b16 %v5103
  %v5335 = vunpack.c.l.b16 %v5104
  %v5336 = vunpack.c.h.b16 %v5104
  %v5337 = vunpack.c.l.b16 %v5105
  %v5338 = vunpack.c.h.b16 %v5105
  %v5339 = vunpack.c.l.b16 %v5106
  %v5340 = vunpack.c.h.b16 %v5106
  %v5341 = vunpack.c.l.b16 %v5107
  %v5342 = vunpack.c.h.b16 %v5107
  %v5343 = vunpack.c.l.b16 %v5108
  %v5344 = vunpack.c.h.b16 %v5108
  %v5345 = vunpack.c.l.b16 %v5109
  %v5346 = vunpack.c.h.b16 %v5109
  %v5347 = vunpack.c.l.b16 %v5110
  %v5348 = vunpack.c.h.b16 %v5110
  %v5349 = vunpack.c.l.b16 %v5111
  %v5350 = vunpack.c.h.b16 %v5111
  %v5351 = vunpack.c.l.b16 %v5112
  %v5352 = vunpack.c.h.b16 %v5112
  %v5353 = vunpack.c.l.b16 %v5113
  %v5354 = vunpack.c.h.b16 %v5113
  %v5355 = vunpack.c.l.b16 %v5114
  %v5356 = vunpack.c.h.b16 %v5114
  %v5357 = vunpack.c.l.b16 %v5115
  %v5358 = vunpack.c.h.b16 %v5115
  %v5359 = vpack.c.b16 %v5217, %v5215
  %v5360 = vpack.c.b16 %v5218, %v5216
  %v5361 = vpack.c.b16 %v5221, %v5219
  %v5362 = vpack.c.b16 %v5222, %v5220
  %v5363 = vpack.c.b16 %v5225, %v5223
  %v5364 = vpack.c.b16 %v5226, %v5224
  %v5365 = vpack.c.b16 %v5229, %v5227
  %v5366 = vpack.c.b16 %v5230, %v5228
  %v5367 = vpack.c.b16 %v5233, %v5231
  %v5368 = vpack.c.b16 %v5234, %v5232
  %v5369 = vpack.c.b16 %v5237, %v5235
  %v5370 = vpack.c.b16 %v5238, %v5236
  %v5371 = vpack.c.b16 %v5241, %v5239
  %v5372 = vpack.c.b16 %v5242, %v5240
  %v5373 = vpack.c.b16 %v5245, %v5243
  %v5374 = vpack.c.b16 %v5246, %v5244
  %v5375 = vpack.c.b16 %v5249, %v5247
  %v5376 = vpack.c.b16 %v5250, %v5248
  %v5377 = vpack.c.b16 %v5253, %v5251
  %v5378 = vpack.c.b16 %v5254, %v5252
  %v5379 = vpack.c.b16 %v5257, %v5255
  %v5380 = vpack.c.b16 %v5258, %v5256
  %v5381 = vpack.c.b16 %v5261, %v5259
  %v5382 = vpack.c.b16 %v5262, %v5260
  %v5383 = vpack.c.b16 %v5265, %v5263
  %v5384 = vpack.c.b16 %v5266, %v5264
  %v5385 = vpack.c.b16 %v5269, %v5267
  %v5386 = vpack.c.b16 %v5270, %v5268
  %v5387 = vpack.c.b16 %v5273, %v5271
  %v5388 = vpack.c.b16 %v5274, %v5272
  %v5389 = vpack.c.b16 %v5277, %v5275
  %v5390 = vpack.c.b16 %v5278, %v5276
  %v5391 = vpack.c.b16 %v5281, %v5279
  %v5392 = vpack.c.b16 %v5282, %v5280
  %v5393 = vpack.c.b16 %v5285, %v5283
  %v5394 = vpack.c.b16 %v5286, %v5284
  %v5395 = vpack.c.b16 %v5289, %v5287
  %v5396 = vpack.c.b16 %v5290, %v5288
  %v5397 = vpack.c.b16 %v5293, %v5291
  %v5398 = vpack.c.b16 %v5294, %v5292
  %v5399 = vpack.c.b16 %v5297, %v5295
  %v5400 = vpack.c.b16 %v5298, %v5296
  %v5401 = vpack.c.b16 %v5301, %v5299
  %v5402 = vpack.c.b16 %v5302, %v5300
  %v5403 = vpack.c.b16 %v5305, %v5303
  %v5404 = vpack.c.b16 %v5306, %v5304
  %v5405 = vpack.c.b16 %v5309, %v5307
  %v5406 = vpack.c.b16 %v5310, %v5308
  %v5407 = vpack.c.b16 %v5313, %v5311
  %v5408 = vpack.c.b16 %v5314, %v5312
  %v5409 = vpack.c.b16 %v5317, %v5315
  %v5410 = vpack.c.b16 %v5318, %v5316
  %v5411 = vpack.c.b16 %v5321, %v5319
  %v5412 = vpack.c.b16 %v5322, %v5320
  %v5413 = vpack.c.b16 %v5325, %v5323
  %v5414 = vpack.c.b16 %v5326, %v5324
  %v5415 = vpack.c.b16 %v5329, %v5327
  %v5416 = vpack.c.b16 %v5330, %v5328
  %v5417 = vpack.c.b16 %v5333, %v5331
  %v5418 = vpack.c.b16 %v5334, %v5332
  %v5419 = vpack.c.b16 %v5337, %v5335
  %v5420 = vpack.c.b16 %v5338, %v5336
  %v5421 = vpack.c.b16 %v5341, %v5339
  %v5422 = vpack.c.b16 %v5342, %v5340
  %v5423 = vpack.c.b16 %v5345, %v5343
  %v5424 = vpack.c.b16 %v5346, %v5344
  %v5425 = vpack.c.b16 %v5349, %v5347
  %v5426 = vpack.c.b16 %v5350, %v5348
  %v5427 = vpack.c.b16 %v5353, %v5351
  %v5428 = vpack.c.b16 %v5354, %v5352
  %v5429 = vpack.c.b16 %v5357, %v5355
  %v5430 = vpack.c.b16 %v5358, %v5356
  %v5504 = vsel %vm5034, %v5131, 0
  %5506 = vmatprep.subr.bf16.mxu0 %v5360
  %5507 = vmatpush1.bf16.msra.mxu0 %v5359
  %5508 = vmatprep.subr.bf16.mxu0 %v5362
  %5509 = vmatpush1.bf16.msra.mxu0 %v5361
  %5510 = vmatprep.subr.bf16.mxu0 %v5364
  %5511 = vmatpush1.bf16.msra.mxu0 %v5363
  %5512 = vmatprep.subr.bf16.mxu0 %v5366
  %5513 = vmatpush1.bf16.msra.mxu0 %v5365
  %5514 = vmatprep.subr.bf16.mxu0 %v5368
  %5515 = vmatpush1.bf16.msra.mxu0 %v5367
  %5516 = vmatprep.subr.bf16.mxu0 %v5370
  %5517 = vmatpush1.bf16.msra.mxu0 %v5369
  %5518 = vmatprep.subr.bf16.mxu0 %v5372
  %5519 = vmatpush1.bf16.msra.mxu0 %v5371
  %5520 = vmatprep.subr.bf16.mxu0 %v5374
  %5521 = vmatpush1.bf16.msra.mxu0 %v5373
  %5522 = vmatprep.subr.bf16.mxu0 %v5376
  %5523 = vmatpush1.bf16.msra.mxu0 %v5375
  %5524 = vmatprep.subr.bf16.mxu0 %v5378
  %5525 = vmatpush1.bf16.msra.mxu0 %v5377
  %5526 = vmatprep.subr.bf16.mxu0 %v5380
  %5527 = vmatpush1.bf16.msra.mxu0 %v5379
  %5528 = vmatprep.subr.bf16.mxu0 %v5382
  %5529 = vmatpush1.bf16.msra.mxu0 %v5381
  %5530 = vmatprep.subr.bf16.mxu0 %v5384
  %5531 = vmatpush1.bf16.msra.mxu0 %v5383
  %5532 = vmatprep.subr.bf16.mxu0 %v5386
  %5533 = vmatpush1.bf16.msra.mxu0 %v5385
  %5534 = vmatprep.subr.bf16.mxu0 %v5388
  %5535 = vmatpush1.bf16.msra.mxu0 %v5387
  %5536 = vmatprep.subr.bf16.mxu0 %v5390
  %5537 = vmatpush1.bf16.msra.mxu0 %v5389
  %5538 = vmatprep.mubr.bf16.mxu0 %v5128
  %5539 = vmatmul.mubr.bf16.gmra.mrb[0].mxu0 %v5127
  %v5540 = vpop.f32.mrb[0].mxu0
  %v5541 = vadd.f32 %v5136, %v5540
  %v5542 = vpop.f32.mrb[0].mxu0
  %v5543 = vadd.f32 %v5140, %v5542
  %v5544 = vpop.f32.mrb[0].mxu0
  %v5545 = vadd.f32 %v5136, %v5544
  %v5546 = vpop.f32.mrb[0].mxu0
  %v5547 = vadd.f32 %v5140, %v5546
  %5548 = vdwg.mxu0
  %5549 = vmatprep.subr.bf16.mxu0 %v5392
  %5550 = vmatpush1.bf16.msra.mxu0 %v5391
  %5551 = vmatprep.subr.bf16.mxu0 %v5394
  %5552 = vmatpush1.bf16.msra.mxu0 %v5393
  %5553 = vmatprep.subr.bf16.mxu0 %v5396
  %5554 = vmatpush1.bf16.msra.mxu0 %v5395
  %5555 = vmatprep.subr.bf16.mxu0 %v5398
  %5556 = vmatpush1.bf16.msra.mxu0 %v5397
  %5557 = vmatprep.subr.bf16.mxu0 %v5400
  %5558 = vmatpush1.bf16.msra.mxu0 %v5399
  %5559 = vmatprep.subr.bf16.mxu0 %v5402
  %5560 = vmatpush1.bf16.msra.mxu0 %v5401
  %5561 = vmatprep.subr.bf16.mxu0 %v5404
  %5562 = vmatpush1.bf16.msra.mxu0 %v5403
  %5563 = vmatprep.subr.bf16.mxu0 %v5406
  %5564 = vmatpush1.bf16.msra.mxu0 %v5405
  %5565 = vmatprep.subr.bf16.mxu0 %v5408
  %5566 = vmatpush1.bf16.msra.mxu0 %v5407
  %5567 = vmatprep.subr.bf16.mxu0 %v5410
  %5568 = vmatpush1.bf16.msra.mxu0 %v5409
  %5569 = vmatprep.subr.bf16.mxu0 %v5412
  %5570 = vmatpush1.bf16.msra.mxu0 %v5411
  %5571 = vmatprep.subr.bf16.mxu0 %v5414
  %5572 = vmatpush1.bf16.msra.mxu0 %v5413
  %5573 = vmatprep.subr.bf16.mxu0 %v5416
  %5574 = vmatpush1.bf16.msra.mxu0 %v5415
  %5575 = vmatprep.subr.bf16.mxu0 %v5418
  %5576 = vmatpush1.bf16.msra.mxu0 %v5417
  %5577 = vmatprep.subr.bf16.mxu0 %v5420
  %5578 = vmatpush1.bf16.msra.mxu0 %v5419
  %5579 = vmatprep.subr.bf16.mxu0 %v5422
  %5580 = vmatpush1.bf16.msra.mxu0 %v5421
  %5581 = vmatprep.mubr.bf16.mxu0 %v5130
  %5582 = vmatmul.mubr.bf16.gmra.mrb[0].mxu0 %v5129
  %v5583 = vpop.f32.mrb[0].mxu0
  %v5584 = vadd.f32 %v5541, %v5583
  %v5585 = vpop.f32.mrb[0].mxu0
  %v5586 = vadd.f32 %v5543, %v5585
  %v5587 = vpop.f32.mrb[0].mxu0
  %v5588 = vadd.f32 %v5545, %v5587
  %v5589 = vpop.f32.mrb[0].mxu0
  %v5590 = vadd.f32 %v5547, %v5589
  %5591 = vdwg.mxu0
  %5592 = vmatprep.subr.bf16.mxu0 %v5424
  %5593 = vmatpush1.bf16.msra.mxu0 %v5423
  %5594 = vmatprep.subr.bf16.mxu0 %v5426
  %5595 = vmatpush1.bf16.msra.mxu0 %v5425
  %5596 = vmatprep.subr.bf16.mxu0 %v5428
  %5597 = vmatpush1.bf16.msra.mxu0 %v5427
  %5598 = vmatprep.subr.bf16.mxu0 %v5430
  %5599 = vmatpush1.bf16.msra.mxu0 %v5429
  %5600 = vmatprep.subr.bf16.mxu0 0
  %5601 = vmatpush1.bf16.msra.mxu0 0
  %5602 = vmatprep.subr.bf16.mxu0 0
  %5603 = vmatpush1.bf16.msra.mxu0 0
  %5604 = vmatprep.subr.bf16.mxu0 0
  %5605 = vmatpush1.bf16.msra.mxu0 0
  %5606 = vmatprep.subr.bf16.mxu0 0
  %5607 = vmatpush1.bf16.msra.mxu0 0
  %5608 = vmatprep.subr.bf16.mxu0 0
  %5609 = vmatpush1.bf16.msra.mxu0 0
  %5610 = vmatprep.subr.bf16.mxu0 0
  %5611 = vmatpush1.bf16.msra.mxu0 0
  %5612 = vmatprep.subr.bf16.mxu0 0
  %5613 = vmatpush1.bf16.msra.mxu0 0
  %5614 = vmatprep.subr.bf16.mxu0 0
  %5615 = vmatpush1.bf16.msra.mxu0 0
  %5616 = vmatprep.subr.bf16.mxu0 0
  %5617 = vmatpush1.bf16.msra.mxu0 0
  %5618 = vmatprep.subr.bf16.mxu0 0
  %5619 = vmatpush1.bf16.msra.mxu0 0
  %5620 = vmatprep.subr.bf16.mxu0 0
  %5621 = vmatpush1.bf16.msra.mxu0 0
  %5622 = vmatprep.subr.bf16.mxu0 0
  %5623 = vmatpush1.bf16.msra.mxu0 0
  %5624 = vmatprep.mubr.bf16.mxu0 0
  %5625 = vmatmul.mubr.bf16.gmra.mrb[0].mxu0 %v5504
  %v5626 = vpop.f32.mrb[0].mxu0
  %v5627 = vadd.f32 %v5584, %v5626
  %v5628 = vpop.f32.mrb[0].mxu0
  %v5629 = vadd.f32 %v5586, %v5628
  %v5630 = vpop.f32.mrb[0].mxu0
  %v5631 = vadd.f32 %v5588, %v5630
  %v5632 = vpop.f32.mrb[0].mxu0
  %v5633 = vadd.f32 %v5590, %v5632
  %5634 = vdwg.mxu0
  %v5635 = vmax.f32 %v5627, 0.0
  %v5636 = vmax.f32 %v5629, 0.0
  %v5637 = vmax.f32 %v5631, 0.0
  %v5638 = vmax.f32 %v5633, 0.0
  %5639 = vst [vmem:[#allocation4] sm:$0xff] %v5635
  %5640 = vst.msk [vmem:[#allocation4 + $0x8] sm:$0xff] %vm4364, %v5636
  %5641 = vst [vmem:[#allocation4 + $0x38] sm:$0xff] %v5637
  %5642 = vst.msk [vmem:[#allocation4 + $0x40] sm:$0xff] %vm4364, %v5638
  %v5643 = vld [vmem:[#allocation3 + $0x10] sm:$0xff]
  %v5644 = vld [vmem:[#allocation3 + $0x18] sm:$0xff]
  %v5645 = vld [vmem:[#allocation3 + $0x20] sm:$0xff]
  %v5646 = vld [vmem:[#allocation3 + $0x28] sm:$0xff]
  %v5647 = vld [vmem:[#allocation3 + $0x30] sm:$0xff]
  %v5648 = vld [vmem:[#allocation3 + $0x88] sm:$0xff]
  %v5649 = vld [vmem:[#allocation3 + $0x90] sm:$0xff]
  %v5650 = vld [vmem:[#allocation3 + $0x98] sm:$0xff]
  %v5651 = vld [vmem:[#allocation3 + $0xa0] sm:$0xff]
  %v5652 = vld [vmem:[#allocation3 + $0xa8] sm:$0xff]
  %v5653 = vpack.c.bf16 %v5648, %v5643
  %v5654 = vpack.c.bf16 %v5649, %v5644
  %v5655 = vpack.c.bf16 %v5650, %v5645
  %v5656 = vpack.c.bf16 %v5651, %v5646
  %v5657 = vpack.c.bf16 %v5652, %v5647
  %5663 = vrot.lane.b32.xlu0 %v5653, 64
  %v5664 = vpop.permute.xlu0 %5663
  %5665 = vrot.lane.b32.xlu0 %v5654, 64
  %v5666 = vpop.permute.xlu0 %5665
  %5667 = vrot.lane.b32.xlu0 %v5655, 64
  %v5668 = vpop.permute.xlu0 %5667
  %5669 = vrot.lane.b32.xlu0 %v5656, 64
  %v5670 = vpop.permute.xlu0 %5669
  %5671 = vrot.lane.b32.xlu0 %v5657, 64
  %v5672 = vpop.permute.xlu0 %5671
  %vm5673 = vcmask 523264
  %v5674 = vsel %vm5673, %v5664, %v5666
  %v5675 = vsel %vm5673, %v5666, %v5668
  %v5676 = vsel %vm5673, %v5668, %v5670
  %v5677 = vsel %vm5673, %v5670, %v5672
  %v5683 = vsel %vm5034, %v5672, 0
  %5685 = vmatprep.subr.bf16.mxu0 %v5360
  %5686 = vmatpush1.bf16.msra.mxu0 %v5359
  %5687 = vmatprep.subr.bf16.mxu0 %v5362
  %5688 = vmatpush1.bf16.msra.mxu0 %v5361
  %5689 = vmatprep.subr.bf16.mxu0 %v5364
  %5690 = vmatpush1.bf16.msra.mxu0 %v5363
  %5691 = vmatprep.subr.bf16.mxu0 %v5366
  %5692 = vmatpush1.bf16.msra.mxu0 %v5365
  %5693 = vmatprep.subr.bf16.mxu0 %v5368
  %5694 = vmatpush1.bf16.msra.mxu0 %v5367
  %5695 = vmatprep.subr.bf16.mxu0 %v5370
  %5696 = vmatpush1.bf16.msra.mxu0 %v5369
  %5697 = vmatprep.subr.bf16.mxu0 %v5372
  %5698 = vmatpush1.bf16.msra.mxu0 %v5371
  %5699 = vmatprep.subr.bf16.mxu0 %v5374
  %5700 = vmatpush1.bf16.msra.mxu0 %v5373
  %5701 = vmatprep.subr.bf16.mxu0 %v5376
  %5702 = vmatpush1.bf16.msra.mxu0 %v5375
  %5703 = vmatprep.subr.bf16.mxu0 %v5378
  %5704 = vmatpush1.bf16.msra.mxu0 %v5377
  %5705 = vmatprep.subr.bf16.mxu0 %v5380
  %5706 = vmatpush1.bf16.msra.mxu0 %v5379
  %5707 = vmatprep.subr.bf16.mxu0 %v5382
  %5708 = vmatpush1.bf16.msra.mxu0 %v5381
  %5709 = vmatprep.subr.bf16.mxu0 %v5384
  %5710 = vmatpush1.bf16.msra.mxu0 %v5383
  %5711 = vmatprep.subr.bf16.mxu0 %v5386
  %5712 = vmatpush1.bf16.msra.mxu0 %v5385
  %5713 = vmatprep.subr.bf16.mxu0 %v5388
  %5714 = vmatpush1.bf16.msra.mxu0 %v5387
  %5715 = vmatprep.subr.bf16.mxu0 %v5390
  %5716 = vmatpush1.bf16.msra.mxu0 %v5389
  %5717 = vmatprep.mubr.bf16.mxu0 %v5675
  %5718 = vmatmul.mubr.bf16.gmra.mrb[0].mxu0 %v5674
  %v5719 = vpop.f32.mrb[0].mxu0
  %v5720 = vadd.f32 %v5136, %v5719
  %v5721 = vpop.f32.mrb[0].mxu0
  %v5722 = vadd.f32 %v5140, %v5721
  %v5723 = vpop.f32.mrb[0].mxu0
  %v5724 = vadd.f32 %v5136, %v5723
  %v5725 = vpop.f32.mrb[0].mxu0
  %v5726 = vadd.f32 %v5140, %v5725
  %5727 = vdwg.mxu0
  %5728 = vmatprep.subr.bf16.mxu0 %v5392
  %5729 = vmatpush1.bf16.msra.mxu0 %v5391
  %5730 = vmatprep.subr.bf16.mxu0 %v5394
  %5731 = vmatpush1.bf16.msra.mxu0 %v5393
  %5732 = vmatprep.subr.bf16.mxu0 %v5396
  %5733 = vmatpush1.bf16.msra.mxu0 %v5395
  %5734 = vmatprep.subr.bf16.mxu0 %v5398
  %5735 = vmatpush1.bf16.msra.mxu0 %v5397
  %5736 = vmatprep.subr.bf16.mxu0 %v5400
  %5737 = vmatpush1.bf16.msra.mxu0 %v5399
  %5738 = vmatprep.subr.bf16.mxu0 %v5402
  %5739 = vmatpush1.bf16.msra.mxu0 %v5401
  %5740 = vmatprep.subr.bf16.mxu0 %v5404
  %5741 = vmatpush1.bf16.msra.mxu0 %v5403
  %5742 = vmatprep.subr.bf16.mxu0 %v5406
  %5743 = vmatpush1.bf16.msra.mxu0 %v5405
  %5744 = vmatprep.subr.bf16.mxu0 %v5408
  %5745 = vmatpush1.bf16.msra.mxu0 %v5407
  %5746 = vmatprep.subr.bf16.mxu0 %v5410
  %5747 = vmatpush1.bf16.msra.mxu0 %v5409
  %5748 = vmatprep.subr.bf16.mxu0 %v5412
  %5749 = vmatpush1.bf16.msra.mxu0 %v5411
  %5750 = vmatprep.subr.bf16.mxu0 %v5414
  %5751 = vmatpush1.bf16.msra.mxu0 %v5413
  %5752 = vmatprep.subr.bf16.mxu0 %v5416
  %5753 = vmatpush1.bf16.msra.mxu0 %v5415
  %5754 = vmatprep.subr.bf16.mxu0 %v5418
  %5755 = vmatpush1.bf16.msra.mxu0 %v5417
  %5756 = vmatprep.subr.bf16.mxu0 %v5420
  %5757 = vmatpush1.bf16.msra.mxu0 %v5419
  %5758 = vmatprep.subr.bf16.mxu0 %v5422
  %5759 = vmatpush1.bf16.msra.mxu0 %v5421
  %5760 = vmatprep.mubr.bf16.mxu0 %v5677
  %5761 = vmatmul.mubr.bf16.gmra.mrb[0].mxu0 %v5676
  %v5762 = vpop.f32.mrb[0].mxu0
  %v5763 = vadd.f32 %v5720, %v5762
  %v5764 = vpop.f32.mrb[0].mxu0
  %v5765 = vadd.f32 %v5722, %v5764
  %v5766 = vpop.f32.mrb[0].mxu0
  %v5767 = vadd.f32 %v5724, %v5766
  %v5768 = vpop.f32.mrb[0].mxu0
  %v5769 = vadd.f32 %v5726, %v5768
  %5770 = vdwg.mxu0
  %5771 = vmatprep.subr.bf16.mxu0 %v5424
  %5772 = vmatpush1.bf16.msra.mxu0 %v5423
  %5773 = vmatprep.subr.bf16.mxu0 %v5426
  %5774 = vmatpush1.bf16.msra.mxu0 %v5425
  %5775 = vmatprep.subr.bf16.mxu0 %v5428
  %5776 = vmatpush1.bf16.msra.mxu0 %v5427
  %5777 = vmatprep.subr.bf16.mxu0 %v5430
  %5778 = vmatpush1.bf16.msra.mxu0 %v5429
  %5779 = vmatprep.subr.bf16.mxu0 0
  %5780 = vmatpush1.bf16.msra.mxu0 0
  %5781 = vmatprep.subr.bf16.mxu0 0
  %5782 = vmatpush1.bf16.msra.mxu0 0
  %5783 = vmatprep.subr.bf16.mxu0 0
  %5784 = vmatpush1.bf16.msra.mxu0 0
  %5785 = vmatprep.subr.bf16.mxu0 0
  %5786 = vmatpush1.bf16.msra.mxu0 0
  %5787 = vmatprep.subr.bf16.mxu0 0
  %5788 = vmatpush1.bf16.msra.mxu0 0
  %5789 = vmatprep.subr.bf16.mxu0 0
  %5790 = vmatpush1.bf16.msra.mxu0 0
  %5791 = vmatprep.subr.bf16.mxu0 0
  %5792 = vmatpush1.bf16.msra.mxu0 0
  %5793 = vmatprep.subr.bf16.mxu0 0
  %5794 = vmatpush1.bf16.msra.mxu0 0
  %5795 = vmatprep.subr.bf16.mxu0 0
  %5796 = vmatpush1.bf16.msra.mxu0 0
  %5797 = vmatprep.subr.bf16.mxu0 0
  %5798 = vmatpush1.bf16.msra.mxu0 0
  %5799 = vmatprep.subr.bf16.mxu0 0
  %5800 = vmatpush1.bf16.msra.mxu0 0
  %5801 = vmatprep.subr.bf16.mxu0 0
  %5802 = vmatpush1.bf16.msra.mxu0 0
  %5803 = vmatprep.mubr.bf16.mxu0 0
  %5804 = vmatmul.mubr.bf16.gmra.mrb[0].mxu0 %v5683
  %v5805 = vpop.f32.mrb[0].mxu0
  %v5806 = vadd.f32 %v5763, %v5805
  %v5807 = vpop.f32.mrb[0].mxu0
  %v5808 = vadd.f32 %v5765, %v5807
  %v5809 = vpop.f32.mrb[0].mxu0
  %v5810 = vadd.f32 %v5767, %v5809
  %v5811 = vpop.f32.mrb[0].mxu0
  %v5812 = vadd.f32 %v5769, %v5811
  %5813 = vdwg.mxu0
  %v5814 = vmax.f32 %v5806, 0.0
  %v5815 = vmax.f32 %v5808, 0.0
  %v5816 = vmax.f32 %v5810, 0.0
  %v5817 = vmax.f32 %v5812, 0.0
  %5822 = vrot.lane.b32.xlu0 %v5814, 32
  %v5823 = vpop.permute.xlu0 %5822
  %5824 = vrot.lane.b32.xlu0 %v5815, 32
  %v5825 = vpop.permute.xlu0 %5824
  %5826 = vrot.lane.b32.xlu0 %v5816, 32
  %v5827 = vpop.permute.xlu0 %5826
  %5828 = vrot.lane.b32.xlu0 %v5817, 32
  %v5829 = vpop.permute.xlu0 %5828
  %v5830 = vsel %vm4364, %v5823, %v5825
  %v5831 = vsel %vm4364, %v5827, %v5829
  %5836 = vst.msk [vmem:[#allocation4 + $0x8] sm:$0xff] %vm5026, %v5823
  %5837 = vst.msk [vmem:[#allocation4 + $0x10] sm:$0xff] %vm5034, %v5830
  %5838 = vst.msk [vmem:[#allocation4 + $0x40] sm:$0xff] %vm5026, %v5827
  %5839 = vst.msk [vmem:[#allocation4 + $0x48] sm:$0xff] %vm5034, %v5831
  %v5840 = vld [vmem:[#allocation3 + $0x28] sm:$0xff]
  %v5841 = vld [vmem:[#allocation3 + $0x30] sm:$0xff]
  %v5842 = vld [vmem:[#allocation3 + $0x38] sm:$0xff]
  %v5843 = vld [vmem:[#allocation3 + $0x40] sm:$0xff]
  %v5844 = vld [vmem:[#allocation3 + $0x48] sm:$0xff]
  %v5845 = vld [vmem:[#allocation3 + $0xa0] sm:$0xff]
  %v5846 = vld [vmem:[#allocation3 + $0xa8] sm:$0xff]
  %v5847 = vld [vmem:[#allocation3 + $0xb0] sm:$0xff]
  %v5848 = vld [vmem:[#allocation3 + $0xb8] sm:$0xff]
  %v5849 = vld [vmem:[#allocation3 + $0xc0] sm:$0xff]
  %v5850 = vpack.c.bf16 %v5845, %v5840
  %v5851 = vpack.c.bf16 %v5846, %v5841
  %v5852 = vpack.c.bf16 %v5847, %v5842
  %v5853 = vpack.c.bf16 %v5848, %v5843
  %v5854 = vpack.c.bf16 %v5849, %v5844
  %v5856 = vsel %vm5034, %v5854, 0
  %5858 = vmatprep.subr.bf16.mxu0 %v5360
  %5859 = vmatpush1.bf16.msra.mxu0 %v5359
  %5860 = vmatprep.subr.bf16.mxu0 %v5362
  %5861 = vmatpush1.bf16.msra.mxu0 %v5361
  %5862 = vmatprep.subr.bf16.mxu0 %v5364
  %5863 = vmatpush1.bf16.msra.mxu0 %v5363
  %5864 = vmatprep.subr.bf16.mxu0 %v5366
  %5865 = vmatpush1.bf16.msra.mxu0 %v5365
  %5866 = vmatprep.subr.bf16.mxu0 %v5368
  %5867 = vmatpush1.bf16.msra.mxu0 %v5367
  %5868 = vmatprep.subr.bf16.mxu0 %v5370
  %5869 = vmatpush1.bf16.msra.mxu0 %v5369
  %5870 = vmatprep.subr.bf16.mxu0 %v5372
  %5871 = vmatpush1.bf16.msra.mxu0 %v5371
  %5872 = vmatprep.subr.bf16.mxu0 %v5374
  %5873 = vmatpush1.bf16.msra.mxu0 %v5373
  %5874 = vmatprep.subr.bf16.mxu0 %v5376
  %5875 = vmatpush1.bf16.msra.mxu0 %v5375
  %5876 = vmatprep.subr.bf16.mxu0 %v5378
  %5877 = vmatpush1.bf16.msra.mxu0 %v5377
  %5878 = vmatprep.subr.bf16.mxu0 %v5380
  %5879 = vmatpush1.bf16.msra.mxu0 %v5379
  %5880 = vmatprep.subr.bf16.mxu0 %v5382
  %5881 = vmatpush1.bf16.msra.mxu0 %v5381
  %5882 = vmatprep.subr.bf16.mxu0 %v5384
  %5883 = vmatpush1.bf16.msra.mxu0 %v5383
  %5884 = vmatprep.subr.bf16.mxu0 %v5386
  %5885 = vmatpush1.bf16.msra.mxu0 %v5385
  %5886 = vmatprep.subr.bf16.mxu0 %v5388
  %5887 = vmatpush1.bf16.msra.mxu0 %v5387
  %5888 = vmatprep.subr.bf16.mxu0 %v5390
  %5889 = vmatpush1.bf16.msra.mxu0 %v5389
  %5890 = vmatprep.mubr.bf16.mxu0 %v5851
  %5891 = vmatmul.mubr.bf16.gmra.mrb[0].mxu0 %v5850
  %v5892 = vpop.f32.mrb[0].mxu0
  %v5893 = vadd.f32 %v5136, %v5892
  %v5894 = vpop.f32.mrb[0].mxu0
  %v5895 = vadd.f32 %v5140, %v5894
  %v5896 = vpop.f32.mrb[0].mxu0
  %v5897 = vadd.f32 %v5136, %v5896
  %v5898 = vpop.f32.mrb[0].mxu0
  %v5899 = vadd.f32 %v5140, %v5898
  %5900 = vdwg.mxu0
  %5901 = vmatprep.subr.bf16.mxu0 %v5392
  %5902 = vmatpush1.bf16.msra.mxu0 %v5391
  %5903 = vmatprep.subr.bf16.mxu0 %v5394
  %5904 = vmatpush1.bf16.msra.mxu0 %v5393
  %5905 = vmatprep.subr.bf16.mxu0 %v5396
  %5906 = vmatpush1.bf16.msra.mxu0 %v5395
  %5907 = vmatprep.subr.bf16.mxu0 %v5398
  %5908 = vmatpush1.bf16.msra.mxu0 %v5397
  %5909 = vmatprep.subr.bf16.mxu0 %v5400
  %5910 = vmatpush1.bf16.msra.mxu0 %v5399
  %5911 = vmatprep.subr.bf16.mxu0 %v5402
  %5912 = vmatpush1.bf16.msra.mxu0 %v5401
  %5913 = vmatprep.subr.bf16.mxu0 %v5404
  %5914 = vmatpush1.bf16.msra.mxu0 %v5403
  %5915 = vmatprep.subr.bf16.mxu0 %v5406
  %5916 = vmatpush1.bf16.msra.mxu0 %v5405
  %5917 = vmatprep.subr.bf16.mxu0 %v5408
  %5918 = vmatpush1.bf16.msra.mxu0 %v5407
  %5919 = vmatprep.subr.bf16.mxu0 %v5410
  %5920 = vmatpush1.bf16.msra.mxu0 %v5409
  %5921 = vmatprep.subr.bf16.mxu0 %v5412
  %5922 = vmatpush1.bf16.msra.mxu0 %v5411
  %5923 = vmatprep.subr.bf16.mxu0 %v5414
  %5924 = vmatpush1.bf16.msra.mxu0 %v5413
  %5925 = vmatprep.subr.bf16.mxu0 %v5416
  %5926 = vmatpush1.bf16.msra.mxu0 %v5415
  %5927 = vmatprep.subr.bf16.mxu0 %v5418
  %5928 = vmatpush1.bf16.msra.mxu0 %v5417
  %5929 = vmatprep.subr.bf16.mxu0 %v5420
  %5930 = vmatpush1.bf16.msra.mxu0 %v5419
  %5931 = vmatprep.subr.bf16.mxu0 %v5422
  %5932 = vmatpush1.bf16.msra.mxu0 %v5421
  %5933 = vmatprep.mubr.bf16.mxu0 %v5853
  %5934 = vmatmul.mubr.bf16.gmra.mrb[0].mxu0 %v5852
  %v5935 = vpop.f32.mrb[0].mxu0
  %v5936 = vadd.f32 %v5893, %v5935
  %v5937 = vpop.f32.mrb[0].mxu0
  %v5938 = vadd.f32 %v5895, %v5937
  %v5939 = vpop.f32.mrb[0].mxu0
  %v5940 = vadd.f32 %v5897, %v5939
  %v5941 = vpop.f32.mrb[0].mxu0
  %v5942 = vadd.f32 %v5899, %v5941
  %5943 = vdwg.mxu0
  %5944 = vmatprep.subr.bf16.mxu0 %v5424
  %5945 = vmatpush1.bf16.msra.mxu0 %v5423
  %5946 = vmatprep.subr.bf16.mxu0 %v5426
  %5947 = vmatpush1.bf16.msra.mxu0 %v5425
  %5948 = vmatprep.subr.bf16.mxu0 %v5428
  %5949 = vmatpush1.bf16.msra.mxu0 %v5427
  %5950 = vmatprep.subr.bf16.mxu0 %v5430
  %5951 = vmatpush1.bf16.msra.mxu0 %v5429
  %5952 = vmatprep.subr.bf16.mxu0 0
  %5953 = vmatpush1.bf16.msra.mxu0 0
  %5954 = vmatprep.subr.bf16.mxu0 0
  %5955 = vmatpush1.bf16.msra.mxu0 0
  %5956 = vmatprep.subr.bf16.mxu0 0
  %5957 = vmatpush1.bf16.msra.mxu0 0
  %5958 = vmatprep.subr.bf16.mxu0 0
  %5959 = vmatpush1.bf16.msra.mxu0 0
  %5960 = vmatprep.subr.bf16.mxu0 0
  %5961 = vmatpush1.bf16.msra.mxu0 0
  %5962 = vmatprep.subr.bf16.mxu0 0
  %5963 = vmatpush1.bf16.msra.mxu0 0
  %5964 = vmatprep.subr.bf16.mxu0 0
  %5965 = vmatpush1.bf16.msra.mxu0 0
  %5966 = vmatprep.subr.bf16.mxu0 0
  %5967 = vmatpush1.bf16.msra.mxu0 0
  %5968 = vmatprep.subr.bf16.mxu0 0
  %5969 = vmatpush1.bf16.msra.mxu0 0
  %5970 = vmatprep.subr.bf16.mxu0 0
  %5971 = vmatpush1.bf16.msra.mxu0 0
  %5972 = vmatprep.subr.bf16.mxu0 0
  %5973 = vmatpush1.bf16.msra.mxu0 0
  %5974 = vmatprep.subr.bf16.mxu0 0
  %5975 = vmatpush1.bf16.msra.mxu0 0
  %5976 = vmatprep.mubr.bf16.mxu0 0
  %5977 = vmatmul.mubr.bf16.gmra.mrb[0].mxu0 %v5856
  %v5978 = vpop.f32.mrb[0].mxu0
  %v5979 = vadd.f32 %v5936, %v5978
  %v5980 = vpop.f32.mrb[0].mxu0
  %v5981 = vadd.f32 %v5938, %v5980
  %v5982 = vpop.f32.mrb[0].mxu0
  %v5983 = vadd.f32 %v5940, %v5982
  %v5984 = vpop.f32.mrb[0].mxu0
  %v5985 = vadd.f32 %v5942, %v5984
  %5986 = vdwg.mxu0
  %v5987 = vmax.f32 %v5979, 0.0
  %v5988 = vmax.f32 %v5981, 0.0
  %v5989 = vmax.f32 %v5983, 0.0
  %v5990 = vmax.f32 %v5985, 0.0
  %5995 = vrot.lane.b32.xlu0 %v5987, 64
  %v5996 = vpop.permute.xlu0 %5995
  %5997 = vrot.lane.b32.xlu0 %v5988, 64
  %v5998 = vpop.permute.xlu0 %5997
  %5999 = vrot.lane.b32.xlu0 %v5989, 64
  %v6000 = vpop.permute.xlu0 %5999
  %6001 = vrot.lane.b32.xlu0 %v5990, 64
  %v6002 = vpop.permute.xlu0 %6001
  %v6003 = vsel %vm5034, %v5996, %v5998
  %v6004 = vsel %vm5034, %v6000, %v6002
  %vm6009 = vcmask 1048064
  %6010 = vst.msk [vmem:[#allocation4 + $0x10] sm:$0xff] %vm6009, %v5996
  %6011 = vst.msk [vmem:[#allocation4 + $0x18] sm:$0xff] %vm2176, %v6003
  %6012 = vst.msk [vmem:[#allocation4 + $0x48] sm:$0xff] %vm6009, %v6000
  %6013 = vst.msk [vmem:[#allocation4 + $0x50] sm:$0xff] %vm2176, %v6004
  %v6014 = vld [vmem:[#allocation3 + $0x38] sm:$0xff]
  %v6015 = vld [vmem:[#allocation3 + $0x40] sm:$0xff]
  %v6016 = vld [vmem:[#allocation3 + $0x48] sm:$0xff]
  %v6017 = vld [vmem:[#allocation3 + $0x50] sm:$0xff]
  %v6018 = vld [vmem:[#allocation3 + $0x58] sm:$0xff]
  %v6019 = vld [vmem:[#allocation3 + $0xb0] sm:$0xff]
  %v6020 = vld [vmem:[#allocation3 + $0xb8] sm:$0xff]
  %v6021 = vld [vmem:[#allocation3 + $0xc0] sm:$0xff]
  %v6022 = vld [vmem:[#allocation3 + $0xc8] sm:$0xff]
  %v6023 = vld [vmem:[#allocation3 + $0xd0] sm:$0xff]
  %v6024 = vpack.c.bf16 %v6019, %v6014
  %v6025 = vpack.c.bf16 %v6020, %v6015
  %v6026 = vpack.c.bf16 %v6021, %v6016
  %v6027 = vpack.c.bf16 %v6022, %v6017
  %v6028 = vpack.c.bf16 %v6023, %v6018
  %6034 = vrot.lane.b32.xlu0 %v6024, 64
  %v6035 = vpop.permute.xlu0 %6034
  %6036 = vrot.lane.b32.xlu0 %v6025, 64
  %v6037 = vpop.permute.xlu0 %6036
  %6038 = vrot.lane.b32.xlu0 %v6026, 64
  %v6039 = vpop.permute.xlu0 %6038
  %6040 = vrot.lane.b32.xlu0 %v6027, 64
  %v6041 = vpop.permute.xlu0 %6040
  %6042 = vrot.lane.b32.xlu0 %v6028, 64
  %v6043 = vpop.permute.xlu0 %6042
  %v6044 = vsel %vm5673, %v6035, %v6037
  %v6045 = vsel %vm5673, %v6037, %v6039
  %v6046 = vsel %vm5673, %v6039, %v6041
  %v6047 = vsel %vm5673, %v6041, %v6043
  %v6053 = vsel %vm5034, %v6043, 0
  %6055 = vmatprep.subr.bf16.mxu0 %v5360
  %6056 = vmatpush1.bf16.msra.mxu0 %v5359
  %6057 = vmatprep.subr.bf16.mxu0 %v5362
  %6058 = vmatpush1.bf16.msra.mxu0 %v5361
  %6059 = vmatprep.subr.bf16.mxu0 %v5364
  %6060 = vmatpush1.bf16.msra.mxu0 %v5363
  %6061 = vmatprep.subr.bf16.mxu0 %v5366
  %6062 = vmatpush1.bf16.msra.mxu0 %v5365
  %6063 = vmatprep.subr.bf16.mxu0 %v5368
  %6064 = vmatpush1.bf16.msra.mxu0 %v5367
  %6065 = vmatprep.subr.bf16.mxu0 %v5370
  %6066 = vmatpush1.bf16.msra.mxu0 %v5369
  %6067 = vmatprep.subr.bf16.mxu0 %v5372
  %6068 = vmatpush1.bf16.msra.mxu0 %v5371
  %6069 = vmatprep.subr.bf16.mxu0 %v5374
  %6070 = vmatpush1.bf16.msra.mxu0 %v5373
  %6071 = vmatprep.subr.bf16.mxu0 %v5376
  %6072 = vmatpush1.bf16.msra.mxu0 %v5375
  %6073 = vmatprep.subr.bf16.mxu0 %v5378
  %6074 = vmatpush1.bf16.msra.mxu0 %v5377
  %6075 = vmatprep.subr.bf16.mxu0 %v5380
  %6076 = vmatpush1.bf16.msra.mxu0 %v5379
  %6077 = vmatprep.subr.bf16.mxu0 %v5382
  %6078 = vmatpush1.bf16.msra.mxu0 %v5381
  %6079 = vmatprep.subr.bf16.mxu0 %v5384
  %6080 = vmatpush1.bf16.msra.mxu0 %v5383
  %6081 = vmatprep.subr.bf16.mxu0 %v5386
  %6082 = vmatpush1.bf16.msra.mxu0 %v5385
  %6083 = vmatprep.subr.bf16.mxu0 %v5388
  %6084 = vmatpush1.bf16.msra.mxu0 %v5387
  %6085 = vmatprep.subr.bf16.mxu0 %v5390
  %6086 = vmatpush1.bf16.msra.mxu0 %v5389
  %6087 = vmatprep.mubr.bf16.mxu0 %v6045
  %6088 = vmatmul.mubr.bf16.gmra.mrb[0].mxu0 %v6044
  %v6089 = vpop.f32.mrb[0].mxu0
  %v6090 = vadd.f32 %v5136, %v6089
  %v6091 = vpop.f32.mrb[0].mxu0
  %v6092 = vadd.f32 %v5140, %v6091
  %v6093 = vpop.f32.mrb[0].mxu0
  %v6094 = vadd.f32 %v5136, %v6093
  %v6095 = vpop.f32.mrb[0].mxu0
  %v6096 = vadd.f32 %v5140, %v6095
  %6097 = vdwg.mxu0
  %6098 = vmatprep.subr.bf16.mxu0 %v5392
  %6099 = vmatpush1.bf16.msra.mxu0 %v5391
  %6100 = vmatprep.subr.bf16.mxu0 %v5394
  %6101 = vmatpush1.bf16.msra.mxu0 %v5393
  %6102 = vmatprep.subr.bf16.mxu0 %v5396
  %6103 = vmatpush1.bf16.msra.mxu0 %v5395
  %6104 = vmatprep.subr.bf16.mxu0 %v5398
  %6105 = vmatpush1.bf16.msra.mxu0 %v5397
  %6106 = vmatprep.subr.bf16.mxu0 %v5400
  %6107 = vmatpush1.bf16.msra.mxu0 %v5399
  %6108 = vmatprep.subr.bf16.mxu0 %v5402
  %6109 = vmatpush1.bf16.msra.mxu0 %v5401
  %6110 = vmatprep.subr.bf16.mxu0 %v5404
  %6111 = vmatpush1.bf16.msra.mxu0 %v5403
  %6112 = vmatprep.subr.bf16.mxu0 %v5406
  %6113 = vmatpush1.bf16.msra.mxu0 %v5405
  %6114 = vmatprep.subr.bf16.mxu0 %v5408
  %6115 = vmatpush1.bf16.msra.mxu0 %v5407
  %6116 = vmatprep.subr.bf16.mxu0 %v5410
  %6117 = vmatpush1.bf16.msra.mxu0 %v5409
  %6118 = vmatprep.subr.bf16.mxu0 %v5412
  %6119 = vmatpush1.bf16.msra.mxu0 %v5411
  %6120 = vmatprep.subr.bf16.mxu0 %v5414
  %6121 = vmatpush1.bf16.msra.mxu0 %v5413
  %6122 = vmatprep.subr.bf16.mxu0 %v5416
  %6123 = vmatpush1.bf16.msra.mxu0 %v5415
  %6124 = vmatprep.subr.bf16.mxu0 %v5418
  %6125 = vmatpush1.bf16.msra.mxu0 %v5417
  %6126 = vmatprep.subr.bf16.mxu0 %v5420
  %6127 = vmatpush1.bf16.msra.mxu0 %v5419
  %6128 = vmatprep.subr.bf16.mxu0 %v5422
  %6129 = vmatpush1.bf16.msra.mxu0 %v5421
  %6130 = vmatprep.mubr.bf16.mxu0 %v6047
  %6131 = vmatmul.mubr.bf16.gmra.mrb[0].mxu0 %v6046
  %v6132 = vpop.f32.mrb[0].mxu0
  %v6133 = vadd.f32 %v6090, %v6132
  %v6134 = vpop.f32.mrb[0].mxu0
  %v6135 = vadd.f32 %v6092, %v6134
  %v6136 = vpop.f32.mrb[0].mxu0
  %v6137 = vadd.f32 %v6094, %v6136
  %v6138 = vpop.f32.mrb[0].mxu0
  %v6139 = vadd.f32 %v6096, %v6138
  %6140 = vdwg.mxu0
  %6141 = vmatprep.subr.bf16.mxu0 %v5424
  %6142 = vmatpush1.bf16.msra.mxu0 %v5423
  %6143 = vmatprep.subr.bf16.mxu0 %v5426
  %6144 = vmatpush1.bf16.msra.mxu0 %v5425
  %6145 = vmatprep.subr.bf16.mxu0 %v5428
  %6146 = vmatpush1.bf16.msra.mxu0 %v5427
  %6147 = vmatprep.subr.bf16.mxu0 %v5430
  %6148 = vmatpush1.bf16.msra.mxu0 %v5429
  %6149 = vmatprep.subr.bf16.mxu0 0
  %6150 = vmatpush1.bf16.msra.mxu0 0
  %6151 = vmatprep.subr.bf16.mxu0 0
  %6152 = vmatpush1.bf16.msra.mxu0 0
  %6153 = vmatprep.subr.bf16.mxu0 0
  %6154 = vmatpush1.bf16.msra.mxu0 0
  %6155 = vmatprep.subr.bf16.mxu0 0
  %6156 = vmatpush1.bf16.msra.mxu0 0
  %6157 = vmatprep.subr.bf16.mxu0 0
  %6158 = vmatpush1.bf16.msra.mxu0 0
  %6159 = vmatprep.subr.bf16.mxu0 0
  %6160 = vmatpush1.bf16.msra.mxu0 0
  %6161 = vmatprep.subr.bf16.mxu0 0
  %6162 = vmatpush1.bf16.msra.mxu0 0
  %6163 = vmatprep.subr.bf16.mxu0 0
  %6164 = vmatpush1.bf16.msra.mxu0 0
  %6165 = vmatprep.subr.bf16.mxu0 0
  %6166 = vmatpush1.bf16.msra.mxu0 0
  %6167 = vmatprep.subr.bf16.mxu0 0
  %6168 = vmatpush1.bf16.msra.mxu0 0
  %6169 = vmatprep.subr.bf16.mxu0 0
  %6170 = vmatpush1.bf16.msra.mxu0 0
  %6171 = vmatprep.subr.bf16.mxu0 0
  %6172 = vmatpush1.bf16.msra.mxu0 0
  %6173 = vmatprep.mubr.bf16.mxu0 0
  %6174 = vmatmul.mubr.bf16.gmra.mrb[0].mxu0 %v6053
  %v6175 = vpop.f32.mrb[0].mxu0
  %v6176 = vadd.f32 %v6133, %v6175
  %v6177 = vpop.f32.mrb[0].mxu0
  %v6178 = vadd.f32 %v6135, %v6177
  %v6179 = vpop.f32.mrb[0].mxu0
  %v6180 = vadd.f32 %v6137, %v6179
  %v6181 = vpop.f32.mrb[0].mxu0
  %v6182 = vadd.f32 %v6139, %v6181
  %6183 = vdwg.mxu0
  %v6184 = vmax.f32 %v6176, 0.0
  %v6185 = vmax.f32 %v6178, 0.0
  %v6186 = vmax.f32 %v6180, 0.0
  %v6187 = vmax.f32 %v6182, 0.0
  %6192 = vrot.lane.b32.xlu0 %v6184, 96
  %v6193 = vpop.permute.xlu0 %6192
  %6194 = vrot.lane.b32.xlu0 %v6185, 96
  %v6195 = vpop.permute.xlu0 %6194
  %6196 = vrot.lane.b32.xlu0 %v6186, 96
  %v6197 = vpop.permute.xlu0 %6196
  %6198 = vrot.lane.b32.xlu0 %v6187, 96
  %v6199 = vpop.permute.xlu0 %6198
  %v6200 = vsel %vm2176, %v6193, %v6195
  %v6201 = vsel %vm2176, %v6197, %v6199
  %vm6206 = vcmask 1048320
  %6207 = vst.msk [vmem:[#allocation4 + $0x18] sm:$0xff] %vm6206, %v6193
  %6208 = vst [vmem:[#allocation4 + $0x20] sm:$0xff] %v6200
  %6209 = vst.msk [vmem:[#allocation4 + $0x50] sm:$0xff] %vm6206, %v6197
  %6210 = vst [vmem:[#allocation4 + $0x58] sm:$0xff] %v6201
  %v6211 = vld [vmem:[#allocation3 + $0x50] sm:$0xff]
  %v6212 = vld [vmem:[#allocation3 + $0x58] sm:$0xff]
  %v6213 = vld [vmem:[#allocation3 + $0x60] sm:$0xff]
  %v6214 = vld [vmem:[#allocation3 + $0x68] sm:$0xff]
  %v6215 = vld [vmem:[#allocation3 + $0x70] sm:$0xff]
  %v6216 = vld [vmem:[#allocation3 + $0xc8] sm:$0xff]
  %v6217 = vld [vmem:[#allocation3 + $0xd0] sm:$0xff]
  %v6218 = vld [vmem:[#allocation3 + $0xd8] sm:$0xff]
  %v6219 = vld [vmem:[#allocation3 + $0xe0] sm:$0xff]
  %v6220 = vld [vmem:[#allocation3 + $0xe8] sm:$0xff]
  %v6221 = vpack.c.bf16 %v6216, %v6211
  %v6222 = vpack.c.bf16 %v6217, %v6212
  %v6223 = vpack.c.bf16 %v6218, %v6213
  %v6224 = vpack.c.bf16 %v6219, %v6214
  %v6225 = vpack.c.bf16 %v6220, %v6215
  %v6227 = vsel %vm5034, %v6225, 0
  %6229 = vmatprep.subr.bf16.mxu0 %v5360
  %6230 = vmatpush1.bf16.msra.mxu0 %v5359
  %6231 = vmatprep.subr.bf16.mxu0 %v5362
  %6232 = vmatpush1.bf16.msra.mxu0 %v5361
  %6233 = vmatprep.subr.bf16.mxu0 %v5364
  %6234 = vmatpush1.bf16.msra.mxu0 %v5363
  %6235 = vmatprep.subr.bf16.mxu0 %v5366
  %6236 = vmatpush1.bf16.msra.mxu0 %v5365
  %6237 = vmatprep.subr.bf16.mxu0 %v5368
  %6238 = vmatpush1.bf16.msra.mxu0 %v5367
  %6239 = vmatprep.subr.bf16.mxu0 %v5370
  %6240 = vmatpush1.bf16.msra.mxu0 %v5369
  %6241 = vmatprep.subr.bf16.mxu0 %v5372
  %6242 = vmatpush1.bf16.msra.mxu0 %v5371
  %6243 = vmatprep.subr.bf16.mxu0 %v5374
  %6244 = vmatpush1.bf16.msra.mxu0 %v5373
  %6245 = vmatprep.subr.bf16.mxu0 %v5376
  %6246 = vmatpush1.bf16.msra.mxu0 %v5375
  %6247 = vmatprep.subr.bf16.mxu0 %v5378
  %6248 = vmatpush1.bf16.msra.mxu0 %v5377
  %6249 = vmatprep.subr.bf16.mxu0 %v5380
  %6250 = vmatpush1.bf16.msra.mxu0 %v5379
  %6251 = vmatprep.subr.bf16.mxu0 %v5382
  %6252 = vmatpush1.bf16.msra.mxu0 %v5381
  %6253 = vmatprep.subr.bf16.mxu0 %v5384
  %6254 = vmatpush1.bf16.msra.mxu0 %v5383
  %6255 = vmatprep.subr.bf16.mxu0 %v5386
  %6256 = vmatpush1.bf16.msra.mxu0 %v5385
  %6257 = vmatprep.subr.bf16.mxu0 %v5388
  %6258 = vmatpush1.bf16.msra.mxu0 %v5387
  %6259 = vmatprep.subr.bf16.mxu0 %v5390
  %6260 = vmatpush1.bf16.msra.mxu0 %v5389
  %6261 = vmatprep.mubr.bf16.mxu0 %v6222
  %6262 = vmatmul.mubr.bf16.gmra.mrb[0].mxu0 %v6221
  %v6263 = vpop.f32.mrb[0].mxu0
  %v6264 = vadd.f32 %v5136, %v6263
  %v6265 = vpop.f32.mrb[0].mxu0
  %v6266 = vadd.f32 %v5140, %v6265
  %v6267 = vpop.f32.mrb[0].mxu0
  %v6268 = vadd.f32 %v5136, %v6267
  %v6269 = vpop.f32.mrb[0].mxu0
  %v6270 = vadd.f32 %v5140, %v6269
  %6271 = vdwg.mxu0
  %6272 = vmatprep.subr.bf16.mxu0 %v5392
  %6273 = vmatpush1.bf16.msra.mxu0 %v5391
  %6274 = vmatprep.subr.bf16.mxu0 %v5394
  %6275 = vmatpush1.bf16.msra.mxu0 %v5393
  %6276 = vmatprep.subr.bf16.mxu0 %v5396
  %6277 = vmatpush1.bf16.msra.mxu0 %v5395
  %6278 = vmatprep.subr.bf16.mxu0 %v5398
  %6279 = vmatpush1.bf16.msra.mxu0 %v5397
  %6280 = vmatprep.subr.bf16.mxu0 %v5400
  %6281 = vmatpush1.bf16.msra.mxu0 %v5399
  %6282 = vmatprep.subr.bf16.mxu0 %v5402
  %6283 = vmatpush1.bf16.msra.mxu0 %v5401
  %6284 = vmatprep.subr.bf16.mxu0 %v5404
  %6285 = vmatpush1.bf16.msra.mxu0 %v5403
  %6286 = vmatprep.subr.bf16.mxu0 %v5406
  %6287 = vmatpush1.bf16.msra.mxu0 %v5405
  %6288 = vmatprep.subr.bf16.mxu0 %v5408
  %6289 = vmatpush1.bf16.msra.mxu0 %v5407
  %6290 = vmatprep.subr.bf16.mxu0 %v5410
  %6291 = vmatpush1.bf16.msra.mxu0 %v5409
  %6292 = vmatprep.subr.bf16.mxu0 %v5412
  %6293 = vmatpush1.bf16.msra.mxu0 %v5411
  %6294 = vmatprep.subr.bf16.mxu0 %v5414
  %6295 = vmatpush1.bf16.msra.mxu0 %v5413
  %6296 = vmatprep.subr.bf16.mxu0 %v5416
  %6297 = vmatpush1.bf16.msra.mxu0 %v5415
  %6298 = vmatprep.subr.bf16.mxu0 %v5418
  %6299 = vmatpush1.bf16.msra.mxu0 %v5417
  %6300 = vmatprep.subr.bf16.mxu0 %v5420
  %6301 = vmatpush1.bf16.msra.mxu0 %v5419
  %6302 = vmatprep.subr.bf16.mxu0 %v5422
  %6303 = vmatpush1.bf16.msra.mxu0 %v5421
  %6304 = vmatprep.mubr.bf16.mxu0 %v6224
  %6305 = vmatmul.mubr.bf16.gmra.mrb[0].mxu0 %v6223
  %v6306 = vpop.f32.mrb[0].mxu0
  %v6307 = vadd.f32 %v6264, %v6306
  %v6308 = vpop.f32.mrb[0].mxu0
  %v6309 = vadd.f32 %v6266, %v6308
  %v6310 = vpop.f32.mrb[0].mxu0
  %v6311 = vadd.f32 %v6268, %v6310
  %v6312 = vpop.f32.mrb[0].mxu0
  %v6313 = vadd.f32 %v6270, %v6312
  %6314 = vdwg.mxu0
  %6315 = vmatprep.subr.bf16.mxu0 %v5424
  %6316 = vmatpush1.bf16.msra.mxu0 %v5423
  %6317 = vmatprep.subr.bf16.mxu0 %v5426
  %6318 = vmatpush1.bf16.msra.mxu0 %v5425
  %6319 = vmatprep.subr.bf16.mxu0 %v5428
  %6320 = vmatpush1.bf16.msra.mxu0 %v5427
  %6321 = vmatprep.subr.bf16.mxu0 %v5430
  %6322 = vmatpush1.bf16.msra.mxu0 %v5429
  %6323 = vmatprep.subr.bf16.mxu0 0
  %6324 = vmatpush1.bf16.msra.mxu0 0
  %6325 = vmatprep.subr.bf16.mxu0 0
  %6326 = vmatpush1.bf16.msra.mxu0 0
  %6327 = vmatprep.subr.bf16.mxu0 0
  %6328 = vmatpush1.bf16.msra.mxu0 0
  %6329 = vmatprep.subr.bf16.mxu0 0
  %6330 = vmatpush1.bf16.msra.mxu0 0
  %6331 = vmatprep.subr.bf16.mxu0 0
  %6332 = vmatpush1.bf16.msra.mxu0 0
  %6333 = vmatprep.subr.bf16.mxu0 0
  %6334 = vmatpush1.bf16.msra.mxu0 0
  %6335 = vmatprep.subr.bf16.mxu0 0
  %6336 = vmatpush1.bf16.msra.mxu0 0
  %6337 = vmatprep.subr.bf16.mxu0 0
  %6338 = vmatpush1.bf16.msra.mxu0 0
  %6339 = vmatprep.subr.bf16.mxu0 0
  %6340 = vmatpush1.bf16.msra.mxu0 0
  %6341 = vmatprep.subr.bf16.mxu0 0
  %6342 = vmatpush1.bf16.msra.mxu0 0
  %6343 = vmatprep.subr.bf16.mxu0 0
  %6344 = vmatpush1.bf16.msra.mxu0 0
  %6345 = vmatprep.subr.bf16.mxu0 0
  %6346 = vmatpush1.bf16.msra.mxu0 0
  %6347 = vmatprep.mubr.bf16.mxu0 0
  %6348 = vmatmul.mubr.bf16.gmra.mrb[0].mxu0 %v6227
  %v6349 = vpop.f32.mrb[0].mxu0
  %v6350 = vadd.f32 %v6307, %v6349
  %v6351 = vpop.f32.mrb[0].mxu0
  %v6352 = vadd.f32 %v6309, %v6351
  %v6353 = vpop.f32.mrb[0].mxu0
  %v6354 = vadd.f32 %v6311, %v6353
  %v6355 = vpop.f32.mrb[0].mxu0
  %v6356 = vadd.f32 %v6313, %v6355
  %6357 = vdwg.mxu0
  %v6358 = vmax.f32 %v6350, 0.0
  %v6359 = vmax.f32 %v6352, 0.0
  %v6360 = vmax.f32 %v6354, 0.0
  %v6361 = vmax.f32 %v6356, 0.0
  %6362 = vst [vmem:[#allocation4 + $0x28] sm:$0xff] %v6358
  %6363 = vst.msk [vmem:[#allocation4 + $0x30] sm:$0xff] %vm4364, %v6359
  %6364 = vst [vmem:[#allocation4 + $0x60] sm:$0xff] %v6360
  %6365 = vst.msk [vmem:[#allocation4 + $0x68] sm:$0xff] %vm4364, %v6361
  %v6366 = vld [vmem:[#allocation4] sm:$0xff]
  %v6367 = vld [vmem:[#allocation4 + $0x8] sm:$0xff]
  %v6368 = vld [vmem:[#allocation4 + $0x10] sm:$0xff]
  %v6369 = vld [vmem:[#allocation4 + $0x18] sm:$0xff]
  %v6370 = vld [vmem:[#allocation4 + $0x20] sm:$0xff]
  %v6371 = vld [vmem:[#allocation4 + $0x28] sm:$0xff]
  %v6372 = vld [vmem:[#allocation4 + $0x30] sm:$0xff]
  %v6373 = vld [vmem:[#allocation4 + $0x38] sm:$0xff]
  %v6374 = vld [vmem:[#allocation4 + $0x40] sm:$0xff]
  %v6375 = vld [vmem:[#allocation4 + $0x48] sm:$0xff]
  %v6376 = vld [vmem:[#allocation4 + $0x50] sm:$0xff]
  %v6377 = vld [vmem:[#allocation4 + $0x58] sm:$0xff]
  %v6378 = vld [vmem:[#allocation4 + $0x60] sm:$0xff]
  %v6379 = vld [vmem:[#allocation4 + $0x68] sm:$0xff]
  %v6380 = vpack.c.bf16 %v6373, %v6366
  %v6381 = vpack.c.bf16 %v6374, %v6367
  %v6382 = vpack.c.bf16 %v6375, %v6368
  %v6383 = vpack.c.bf16 %v6376, %v6369
  %v6384 = vpack.c.bf16 %v6377, %v6370
  %v6385 = vpack.c.bf16 %v6378, %v6371
  %v6386 = vpack.c.bf16 %v6379, %v6372
  %v6387 = vld [vmem:[%s8] sm:$0xff]
  %v6388 = vld [vmem:[%s8 + $0x8] sm:$0xff]
  %v6389 = vld [vmem:[%s8 + $0x10] sm:$0xff]
  %v6390 = vld [vmem:[%s8 + $0x18] sm:$0xff]
  %v6391 = vld [vmem:[%s8 + $0x20] sm:$0xff]
  %v6392 = vld [vmem:[%s8 + $0x28] sm:$0xff]
  %v6393 = vld [vmem:[%s8 + $0x30] sm:$0xff]
  %v6394 = vld [vmem:[%s8 + $0x38] sm:$0xff]
  %v6395 = vld [vmem:[%s8 + $0x40] sm:$0xff]
  %v6396 = vld [vmem:[%s8 + $0x48] sm:$0xff]
  %v6397 = vld [vmem:[%s8 + $0x50] sm:$0xff]
  %v6398 = vld [vmem:[%s8 + $0x58] sm:$0xff]
  %v6399 = vld [vmem:[%s8 + $0x60] sm:$0xff]
  %v6400 = vld [vmem:[%s8 + $0x68] sm:$0xff]
  %v6401 = vld [vmem:[%s8 + $0x70] sm:$0xff]
  %v6402 = vld [vmem:[%s8 + $0x78] sm:$0xff]
  %v6403 = vld [vmem:[%s8 + $0x80] sm:$0xff]
  %v6404 = vld [vmem:[%s8 + $0x88] sm:$0xff]
  %v6405 = vld [vmem:[%s8 + $0x90] sm:$0xff]
  %v6406 = vld [vmem:[%s8 + $0x98] sm:$0xff]
  %v6407 = vld [vmem:[%s8 + $0xa0] sm:$0xff]
  %v6408 = vld [vmem:[%s8 + $0xa8] sm:$0xff]
  %v6409 = vld [vmem:[%s8 + $0xb0] sm:$0xff]
  %v6410 = vld [vmem:[%s8 + $0xb8] sm:$0xff]
  %v6411 = vld [vmem:[%s8 + $0xc0] sm:$0xff]
  %v6412 = vld [vmem:[%s8 + $0xc8] sm:$0xff]
  %v6413 = vld [vmem:[%s8 + $0xd0] sm:$0xff]
  %v6414 = vld [vmem:[%s8 + $0xd8] sm:$0xff]
  %v6415 = vld [vmem:[%s8 + $0xe0] sm:$0xff]
  %v6416 = vld [vmem:[%s8 + $0xe8] sm:$0xff]
  %v6417 = vld [vmem:[%s8 + $0xf0] sm:$0xff]
  %v6418 = vld [vmem:[%s8 + $0xf8] sm:$0xff]
  %v6419 = vld [vmem:[%s8 + $0x100] sm:$0xff]
  %v6420 = vld [vmem:[%s8 + $0x108] sm:$0xff]
  %v6421 = vld [vmem:[%s8 + $0x110] sm:$0xff]
  %v6422 = vld [vmem:[%s8 + $0x118] sm:$0xff]
  %v6423 = vld [vmem:[%s8 + $0x120] sm:$0xff]
  %v6424 = vld [vmem:[%s8 + $0x128] sm:$0xff]
  %v6425 = vld [vmem:[%s8 + $0x130] sm:$0xff]
  %v6426 = vld [vmem:[%s8 + $0x138] sm:$0xff]
  %v6427 = vld [vmem:[%s8 + $0x140] sm:$0xff]
  %v6428 = vld [vmem:[%s8 + $0x148] sm:$0xff]
  %v6429 = vld [vmem:[%s8 + $0x150] sm:$0xff]
  %v6430 = vld [vmem:[%s8 + $0x158] sm:$0xff]
  %v6431 = vld [vmem:[%s8 + $0x160] sm:$0xff]
  %v6432 = vld [vmem:[%s8 + $0x168] sm:$0xff]
  %v6433 = vld [vmem:[%s8 + $0x170] sm:$0xff]
  %v6434 = vld [vmem:[%s8 + $0x178] sm:$0xff]
  %v6435 = vld [vmem:[%s8 + $0x180] sm:$0xff]
  %v6436 = vld [vmem:[%s8 + $0x188] sm:$0xff]
  %v6437 = vld [vmem:[%s8 + $0x190] sm:$0xff]
  %v6438 = vld [vmem:[%s8 + $0x198] sm:$0xff]
  %v6439 = vld [vmem:[%s8 + $0x1a0] sm:$0xff]
  %v6440 = vld [vmem:[%s8 + $0x1a8] sm:$0xff]
  %v6441 = vld [vmem:[%s8 + $0x1b0] sm:$0xff]
  %v6442 = vld [vmem:[%s8 + $0x1b8] sm:$0xff]
  %v6443 = vld [vmem:[%s8 + $0x1c0] sm:$0xff]
  %v6444 = vld [vmem:[%s8 + $0x1c8] sm:$0xff]
  %v6445 = vld [vmem:[%s8 + $0x1d0] sm:$0xff]
  %v6446 = vld [vmem:[%s8 + $0x1d8] sm:$0xff]
  %v6447 = vld [vmem:[%s8 + $0x1e0] sm:$0xff]
  %v6448 = vld [vmem:[%s8 + $0x1e8] sm:$0xff]
  %v6449 = vld [vmem:[%s8 + $0x1f0] sm:$0xff]
  %v6450 = vld [vmem:[%s8 + $0x1f8] sm:$0xff]
  %v6451 = vld [vmem:[%s8 + $0x200] sm:$0xff]
  %v6452 = vld [vmem:[%s8 + $0x208] sm:$0xff]
  %v6453 = vld [vmem:[%s8 + $0x210] sm:$0xff]
  %v6454 = vld [vmem:[%s8 + $0x218] sm:$0xff]
  %v6455 = vld [vmem:[%s8 + $0x220] sm:$0xff]
  %v6456 = vld [vmem:[%s8 + $0x228] sm:$0xff]
  %v6457 = vld [vmem:[%s8 + $0x230] sm:$0xff]
  %v6458 = vld [vmem:[%s8 + $0x238] sm:$0xff]
  %v6459 = vld [vmem:[%s8 + $0x240] sm:$0xff]
  %v6460 = vld [vmem:[%s8 + $0x248] sm:$0xff]
  %v6461 = vld [vmem:[%s8 + $0x250] sm:$0xff]
  %v6462 = vld [vmem:[%s8 + $0x258] sm:$0xff]
  %v6463 = vld [vmem:[%s8 + $0x260] sm:$0xff]
  %v6464 = vld [vmem:[%s8 + $0x268] sm:$0xff]
  %v6465 = vld [vmem:[%s8 + $0x270] sm:$0xff]
  %v6466 = vld [vmem:[%s8 + $0x278] sm:$0xff]
  %v6467 = vld [vmem:[%s8 + $0x280] sm:$0xff]
  %v6468 = vld [vmem:[%s8 + $0x288] sm:$0xff]
  %v6469 = vld [vmem:[%s8 + $0x290] sm:$0xff]
  %v6470 = vld [vmem:[%s8 + $0x298] sm:$0xff]
  %v6471 = vld [vmem:[%s8 + $0x2a0] sm:$0xff]
  %v6472 = vld [vmem:[%s8 + $0x2a8] sm:$0xff]
  %v6473 = vld [vmem:[%s8 + $0x2b0] sm:$0xff]
  %v6474 = vld [vmem:[%s8 + $0x2b8] sm:$0xff]
  %v6475 = vld [vmem:[%s8 + $0x2c0] sm:$0xff]
  %v6476 = vld [vmem:[%s8 + $0x2c8] sm:$0xff]
  %v6477 = vld [vmem:[%s8 + $0x2d0] sm:$0xff]
  %v6478 = vld [vmem:[%s8 + $0x2d8] sm:$0xff]
  %v6479 = vld [vmem:[%s8 + $0x2e0] sm:$0xff]
  %v6480 = vld [vmem:[%s8 + $0x2e8] sm:$0xff]
  %v6481 = vld [vmem:[%s8 + $0x2f0] sm:$0xff]
  %v6482 = vld [vmem:[%s8 + $0x2f8] sm:$0xff]
  %v6483 = vld [vmem:[%s8 + $0x300] sm:$0xff]
  %v6484 = vld [vmem:[%s8 + $0x308] sm:$0xff]
  %v6485 = vld [vmem:[%s8 + $0x310] sm:$0xff]
  %v6486 = vld [vmem:[%s8 + $0x318] sm:$0xff]
  %v6487 = vld [vmem:[%s8 + $0x320] sm:$0xff]
  %v6488 = vld [vmem:[%s8 + $0x328] sm:$0xff]
  %v6489 = vld [vmem:[%s8 + $0x330] sm:$0xff]
  %v6490 = vld [vmem:[%s8 + $0x338] sm:$0xff]
  %v6491 = vld [vmem:[%s8 + $0x340] sm:$0xff]
  %v6492 = vld [vmem:[%s8 + $0x348] sm:$0xff]
  %v6493 = vld [vmem:[%s8 + $0x350] sm:$0xff]
  %v6494 = vld [vmem:[%s8 + $0x358] sm:$0xff]
  %v6495 = vld [vmem:[%s8 + $0x360] sm:$0xff]
  %v6496 = vld [vmem:[%s8 + $0x368] sm:$0xff]
  %v6497 = vld [vmem:[%s8 + $0x370] sm:$0xff]
  %v6498 = vld [vmem:[%s8 + $0x378] sm:$0xff]
  %v6499 = vld [vmem:[%s8 + $0x380] sm:$0xff]
  %v6500 = vld [vmem:[%s8 + $0x388] sm:$0xff]
  %v6501 = vld [vmem:[%s8 + $0x390] sm:$0xff]
  %v6502 = vld [vmem:[%s8 + $0x398] sm:$0xff]
  %v6503 = vld [vmem:[%s8 + $0x3a0] sm:$0xff]
  %v6504 = vld [vmem:[%s8 + $0x3a8] sm:$0xff]
  %v6505 = vld [vmem:[%s8 + $0x3b0] sm:$0xff]
  %v6506 = vld [vmem:[%s8 + $0x3b8] sm:$0xff]
  %v6507 = vld [vmem:[%s8 + $0x3c0] sm:$0xff]
  %v6508 = vld [vmem:[%s8 + $0x3c8] sm:$0xff]
  %v6509 = vld [vmem:[%s8 + $0x3d0] sm:$0xff]
  %v6510 = vld [vmem:[%s8 + $0x3d8] sm:$0xff]
  %v6511 = vld [vmem:[%s8 + $0x3e0] sm:$0xff]
  %v6512 = vld [vmem:[%s8 + $0x3e8] sm:$0xff]
  %v6513 = vld [vmem:[%s8 + $0x3f0] sm:$0xff]
  %v6514 = vld [vmem:[%s8 + $0x3f8] sm:$0xff]
  %v6515 = vld [vmem:[%s8 + $0x400] sm:$0xff]
  %v6516 = vld [vmem:[%s8 + $0x408] sm:$0xff]
  %v6517 = vld [vmem:[%s8 + $0x410] sm:$0xff]
  %v6518 = vld [vmem:[%s8 + $0x418] sm:$0xff]
  %v6519 = vld [vmem:[%s8 + $0x420] sm:$0xff]
  %v6520 = vld [vmem:[%s8 + $0x428] sm:$0xff]
  %v6521 = vld [vmem:[%s8 + $0x430] sm:$0xff]
  %v6522 = vld [vmem:[%s8 + $0x438] sm:$0xff]
  %v6523 = vld [vmem:[%s8 + $0x440] sm:$0xff]
  %v6524 = vld [vmem:[%s8 + $0x448] sm:$0xff]
  %v6525 = vld [vmem:[%s8 + $0x450] sm:$0xff]
  %v6526 = vld [vmem:[%s8 + $0x458] sm:$0xff]
  %v6527 = vld [vmem:[%s8 + $0x460] sm:$0xff]
  %v6528 = vld [vmem:[%s8 + $0x468] sm:$0xff]
  %v6529 = vld [vmem:[%s8 + $0x470] sm:$0xff]
  %v6530 = vld [vmem:[%s8 + $0x478] sm:$0xff]
  %v6531 = vld [vmem:[%s8 + $0x480] sm:$0xff]
  %v6532 = vld [vmem:[%s8 + $0x488] sm:$0xff]
  %v6533 = vld [vmem:[%s8 + $0x490] sm:$0xff]
  %v6534 = vld [vmem:[%s8 + $0x498] sm:$0xff]
  %v6535 = vld [vmem:[%s8 + $0x4a0] sm:$0xff]
  %v6536 = vld [vmem:[%s8 + $0x4a8] sm:$0xff]
  %v6537 = vld [vmem:[%s8 + $0x4b0] sm:$0xff]
  %v6538 = vld [vmem:[%s8 + $0x4b8] sm:$0xff]
  %v6539 = vld [vmem:[%s8 + $0x4c0] sm:$0xff]
  %v6540 = vld [vmem:[%s8 + $0x4c8] sm:$0xff]
  %v6541 = vld [vmem:[%s8 + $0x4d0] sm:$0xff]
  %v6542 = vld [vmem:[%s8 + $0x4d8] sm:$0xff]
  %v6543 = vld [vmem:[%s8 + $0x4e0] sm:$0xff]
  %v6544 = vld [vmem:[%s8 + $0x4e8] sm:$0xff]
  %v6545 = vld [vmem:[%s8 + $0x4f0] sm:$0xff]
  %v6546 = vld [vmem:[%s8 + $0x4f8] sm:$0xff]
  %v6547 = vld [vmem:[%s8 + $0x500] sm:$0xff]
  %v6548 = vld [vmem:[%s8 + $0x508] sm:$0xff]
  %v6549 = vld [vmem:[%s8 + $0x510] sm:$0xff]
  %v6550 = vld [vmem:[%s8 + $0x518] sm:$0xff]
  %v6551 = vld [vmem:[%s8 + $0x520] sm:$0xff]
  %v6552 = vld [vmem:[%s8 + $0x528] sm:$0xff]
  %v6553 = vld [vmem:[%s8 + $0x530] sm:$0xff]
  %v6554 = vld [vmem:[%s8 + $0x538] sm:$0xff]
  %v6555 = vld [vmem:[%s8 + $0x540] sm:$0xff]
  %v6556 = vld [vmem:[%s8 + $0x548] sm:$0xff]
  %v6557 = vld [vmem:[%s8 + $0x550] sm:$0xff]
  %v6558 = vld [vmem:[%s8 + $0x558] sm:$0xff]
  %v6559 = vld [vmem:[%s8 + $0x560] sm:$0xff]
  %v6560 = vld [vmem:[%s8 + $0x568] sm:$0xff]
  %v6561 = vld [vmem:[%s8 + $0x570] sm:$0xff]
  %v6562 = vld [vmem:[%s8 + $0x578] sm:$0xff]
  %v6563 = vld [vmem:[%s8 + $0x580] sm:$0xff]
  %v6564 = vld [vmem:[%s8 + $0x588] sm:$0xff]
  %v6565 = vld [vmem:[%s8 + $0x590] sm:$0xff]
  %v6566 = vld [vmem:[%s8 + $0x598] sm:$0xff]
  %v6567 = vld [vmem:[%s8 + $0x5a0] sm:$0xff]
  %v6568 = vld [vmem:[%s8 + $0x5a8] sm:$0xff]
  %v6569 = vld [vmem:[%s8 + $0x5b0] sm:$0xff]
  %v6570 = vld [vmem:[%s8 + $0x5b8] sm:$0xff]
  %v6571 = vld [vmem:[%s8 + $0x5c0] sm:$0xff]
  %v6572 = vld [vmem:[%s8 + $0x5c8] sm:$0xff]
  %v6573 = vld [vmem:[%s8 + $0x5d0] sm:$0xff]
  %v6574 = vld [vmem:[%s8 + $0x5d8] sm:$0xff]
  %v6575 = vld [vmem:[%s8 + $0x5e0] sm:$0xff]
  %v6576 = vld [vmem:[%s8 + $0x5e8] sm:$0xff]
  %v6577 = vld [vmem:[%s8 + $0x5f0] sm:$0xff]
  %v6578 = vld [vmem:[%s8 + $0x5f8] sm:$0xff]
  %v6579 = vld [vmem:[%s8 + $0x600] sm:$0xff]
  %v6580 = vld [vmem:[%s8 + $0x608] sm:$0xff]
  %v6581 = vld [vmem:[%s8 + $0x610] sm:$0xff]
  %v6582 = vld [vmem:[%s8 + $0x618] sm:$0xff]
  %v6583 = vld [vmem:[%s8 + $0x620] sm:$0xff]
  %v6584 = vld [vmem:[%s8 + $0x628] sm:$0xff]
  %v6585 = vld [vmem:[%s8 + $0x630] sm:$0xff]
  %v6586 = vld [vmem:[%s8 + $0x638] sm:$0xff]
  %v6587 = vld [vmem:[%s9] sm:$0xf]
  %v6589 = vlaneseq
  %v6590 = vshrl.u32 %v6589, 7
  %v6591 = vsub.s32 0, %v6590
  %v6592 = vrot.slane %v6587, %v6591
  %v6593 = vlaneseq
  %v6594 = vshrl.u32 %v6593, 7
  %v6595 = vsub.s32 1, %v6594
  %v6596 = vrot.slane %v6587, %v6595
  %v6597 = vlaneseq
  %v6598 = vshrl.u32 %v6597, 7
  %v6599 = vsub.s32 2, %v6598
  %v6600 = vrot.slane %v6587, %v6599
  %v6601 = vlaneseq
  %v6602 = vshrl.u32 %v6601, 7
  %v6603 = vsub.s32 3, %v6602
  %v6604 = vrot.slane %v6587, %v6603
  %v6809 = vunpack.c.l.b16 %v6387
  %v6810 = vunpack.c.h.b16 %v6387
  %v6811 = vunpack.c.l.b16 %v6388
  %v6812 = vunpack.c.h.b16 %v6388
  %v6813 = vunpack.c.l.b16 %v6389
  %v6814 = vunpack.c.h.b16 %v6389
  %v6815 = vunpack.c.l.b16 %v6390
  %v6816 = vunpack.c.h.b16 %v6390
  %v6817 = vunpack.c.l.b16 %v6391
  %v6818 = vunpack.c.h.b16 %v6391
  %v6819 = vunpack.c.l.b16 %v6392
  %v6820 = vunpack.c.h.b16 %v6392
  %v6821 = vunpack.c.l.b16 %v6393
  %v6822 = vunpack.c.h.b16 %v6393
  %v6823 = vunpack.c.l.b16 %v6394
  %v6824 = vunpack.c.h.b16 %v6394
  %v6825 = vunpack.c.l.b16 %v6395
  %v6826 = vunpack.c.h.b16 %v6395
  %v6827 = vunpack.c.l.b16 %v6396
  %v6828 = vunpack.c.h.b16 %v6396
  %v6829 = vunpack.c.l.b16 %v6397
  %v6830 = vunpack.c.h.b16 %v6397
  %v6831 = vunpack.c.l.b16 %v6398
  %v6832 = vunpack.c.h.b16 %v6398
  %v6833 = vunpack.c.l.b16 %v6399
  %v6834 = vunpack.c.h.b16 %v6399
  %v6835 = vunpack.c.l.b16 %v6400
  %v6836 = vunpack.c.h.b16 %v6400
  %v6837 = vunpack.c.l.b16 %v6401
  %v6838 = vunpack.c.h.b16 %v6401
  %v6839 = vunpack.c.l.b16 %v6402
  %v6840 = vunpack.c.h.b16 %v6402
  %v6841 = vunpack.c.l.b16 %v6403
  %v6842 = vunpack.c.h.b16 %v6403
  %v6843 = vunpack.c.l.b16 %v6404
  %v6844 = vunpack.c.h.b16 %v6404
  %v6845 = vunpack.c.l.b16 %v6405
  %v6846 = vunpack.c.h.b16 %v6405
  %v6847 = vunpack.c.l.b16 %v6406
  %v6848 = vunpack.c.h.b16 %v6406
  %v6849 = vunpack.c.l.b16 %v6407
  %v6850 = vunpack.c.h.b16 %v6407
  %v6851 = vunpack.c.l.b16 %v6408
  %v6852 = vunpack.c.h.b16 %v6408
  %v6853 = vunpack.c.l.b16 %v6409
  %v6854 = vunpack.c.h.b16 %v6409
  %v6855 = vunpack.c.l.b16 %v6410
  %v6856 = vunpack.c.h.b16 %v6410
  %v6857 = vunpack.c.l.b16 %v6411
  %v6858 = vunpack.c.h.b16 %v6411
  %v6859 = vunpack.c.l.b16 %v6412
  %v6860 = vunpack.c.h.b16 %v6412
  %v6861 = vunpack.c.l.b16 %v6413
  %v6862 = vunpack.c.h.b16 %v6413
  %v6863 = vunpack.c.l.b16 %v6414
  %v6864 = vunpack.c.h.b16 %v6414
  %v6865 = vunpack.c.l.b16 %v6415
  %v6866 = vunpack.c.h.b16 %v6415
  %v6867 = vunpack.c.l.b16 %v6416
  %v6868 = vunpack.c.h.b16 %v6416
  %v6869 = vunpack.c.l.b16 %v6417
  %v6870 = vunpack.c.h.b16 %v6417
  %v6871 = vunpack.c.l.b16 %v6418
  %v6872 = vunpack.c.h.b16 %v6418
  %v6873 = vunpack.c.l.b16 %v6419
  %v6874 = vunpack.c.h.b16 %v6419
  %v6875 = vunpack.c.l.b16 %v6420
  %v6876 = vunpack.c.h.b16 %v6420
  %v6877 = vunpack.c.l.b16 %v6421
  %v6878 = vunpack.c.h.b16 %v6421
  %v6879 = vunpack.c.l.b16 %v6422
  %v6880 = vunpack.c.h.b16 %v6422
  %v6881 = vunpack.c.l.b16 %v6423
  %v6882 = vunpack.c.h.b16 %v6423
  %v6883 = vunpack.c.l.b16 %v6424
  %v6884 = vunpack.c.h.b16 %v6424
  %v6885 = vunpack.c.l.b16 %v6425
  %v6886 = vunpack.c.h.b16 %v6425
  %v6887 = vunpack.c.l.b16 %v6426
  %v6888 = vunpack.c.h.b16 %v6426
  %v6889 = vunpack.c.l.b16 %v6427
  %v6890 = vunpack.c.h.b16 %v6427
  %v6891 = vunpack.c.l.b16 %v6428
  %v6892 = vunpack.c.h.b16 %v6428
  %v6893 = vunpack.c.l.b16 %v6429
  %v6894 = vunpack.c.h.b16 %v6429
  %v6895 = vunpack.c.l.b16 %v6430
  %v6896 = vunpack.c.h.b16 %v6430
  %v6897 = vunpack.c.l.b16 %v6431
  %v6898 = vunpack.c.h.b16 %v6431
  %v6899 = vunpack.c.l.b16 %v6432
  %v6900 = vunpack.c.h.b16 %v6432
  %v6901 = vunpack.c.l.b16 %v6433
  %v6902 = vunpack.c.h.b16 %v6433
  %v6903 = vunpack.c.l.b16 %v6434
  %v6904 = vunpack.c.h.b16 %v6434
  %v6905 = vunpack.c.l.b16 %v6435
  %v6906 = vunpack.c.h.b16 %v6435
  %v6907 = vunpack.c.l.b16 %v6436
  %v6908 = vunpack.c.h.b16 %v6436
  %v6909 = vunpack.c.l.b16 %v6437
  %v6910 = vunpack.c.h.b16 %v6437
  %v6911 = vunpack.c.l.b16 %v6438
  %v6912 = vunpack.c.h.b16 %v6438
  %v6913 = vunpack.c.l.b16 %v6439
  %v6914 = vunpack.c.h.b16 %v6439
  %v6915 = vunpack.c.l.b16 %v6440
  %v6916 = vunpack.c.h.b16 %v6440
  %v6917 = vunpack.c.l.b16 %v6441
  %v6918 = vunpack.c.h.b16 %v6441
  %v6919 = vunpack.c.l.b16 %v6442
  %v6920 = vunpack.c.h.b16 %v6442
  %v6921 = vunpack.c.l.b16 %v6443
  %v6922 = vunpack.c.h.b16 %v6443
  %v6923 = vunpack.c.l.b16 %v6444
  %v6924 = vunpack.c.h.b16 %v6444
  %v6925 = vunpack.c.l.b16 %v6445
  %v6926 = vunpack.c.h.b16 %v6445
  %v6927 = vunpack.c.l.b16 %v6446
  %v6928 = vunpack.c.h.b16 %v6446
  %v6929 = vunpack.c.l.b16 %v6447
  %v6930 = vunpack.c.h.b16 %v6447
  %v6931 = vunpack.c.l.b16 %v6448
  %v6932 = vunpack.c.h.b16 %v6448
  %v6933 = vunpack.c.l.b16 %v6449
  %v6934 = vunpack.c.h.b16 %v6449
  %v6935 = vunpack.c.l.b16 %v6450
  %v6936 = vunpack.c.h.b16 %v6450
  %v6937 = vunpack.c.l.b16 %v6451
  %v6938 = vunpack.c.h.b16 %v6451
  %v6939 = vunpack.c.l.b16 %v6452
  %v6940 = vunpack.c.h.b16 %v6452
  %v6941 = vunpack.c.l.b16 %v6453
  %v6942 = vunpack.c.h.b16 %v6453
  %v6943 = vunpack.c.l.b16 %v6454
  %v6944 = vunpack.c.h.b16 %v6454
  %v6945 = vunpack.c.l.b16 %v6455
  %v6946 = vunpack.c.h.b16 %v6455
  %v6947 = vunpack.c.l.b16 %v6456
  %v6948 = vunpack.c.h.b16 %v6456
  %v6949 = vunpack.c.l.b16 %v6457
  %v6950 = vunpack.c.h.b16 %v6457
  %v6951 = vunpack.c.l.b16 %v6458
  %v6952 = vunpack.c.h.b16 %v6458
  %v6953 = vunpack.c.l.b16 %v6459
  %v6954 = vunpack.c.h.b16 %v6459
  %v6955 = vunpack.c.l.b16 %v6460
  %v6956 = vunpack.c.h.b16 %v6460
  %v6957 = vunpack.c.l.b16 %v6461
  %v6958 = vunpack.c.h.b16 %v6461
  %v6959 = vunpack.c.l.b16 %v6462
  %v6960 = vunpack.c.h.b16 %v6462
  %v6961 = vunpack.c.l.b16 %v6463
  %v6962 = vunpack.c.h.b16 %v6463
  %v6963 = vunpack.c.l.b16 %v6464
  %v6964 = vunpack.c.h.b16 %v6464
  %v6965 = vunpack.c.l.b16 %v6465
  %v6966 = vunpack.c.h.b16 %v6465
  %v6967 = vunpack.c.l.b16 %v6466
  %v6968 = vunpack.c.h.b16 %v6466
  %v6969 = vunpack.c.l.b16 %v6467
  %v6970 = vunpack.c.h.b16 %v6467
  %v6971 = vunpack.c.l.b16 %v6468
  %v6972 = vunpack.c.h.b16 %v6468
  %v6973 = vunpack.c.l.b16 %v6469
  %v6974 = vunpack.c.h.b16 %v6469
  %v6975 = vunpack.c.l.b16 %v6470
  %v6976 = vunpack.c.h.b16 %v6470
  %v6977 = vunpack.c.l.b16 %v6471
  %v6978 = vunpack.c.h.b16 %v6471
  %v6979 = vunpack.c.l.b16 %v6472
  %v6980 = vunpack.c.h.b16 %v6472
  %v6981 = vunpack.c.l.b16 %v6473
  %v6982 = vunpack.c.h.b16 %v6473
  %v6983 = vunpack.c.l.b16 %v6474
  %v6984 = vunpack.c.h.b16 %v6474
  %v6985 = vunpack.c.l.b16 %v6475
  %v6986 = vunpack.c.h.b16 %v6475
  %v6987 = vunpack.c.l.b16 %v6476
  %v6988 = vunpack.c.h.b16 %v6476
  %v6989 = vunpack.c.l.b16 %v6477
  %v6990 = vunpack.c.h.b16 %v6477
  %v6991 = vunpack.c.l.b16 %v6478
  %v6992 = vunpack.c.h.b16 %v6478
  %v6993 = vunpack.c.l.b16 %v6479
  %v6994 = vunpack.c.h.b16 %v6479
  %v6995 = vunpack.c.l.b16 %v6480
  %v6996 = vunpack.c.h.b16 %v6480
  %v6997 = vunpack.c.l.b16 %v6481
  %v6998 = vunpack.c.h.b16 %v6481
  %v6999 = vunpack.c.l.b16 %v6482
  %v7000 = vunpack.c.h.b16 %v6482
  %v7001 = vunpack.c.l.b16 %v6483
  %v7002 = vunpack.c.h.b16 %v6483
  %v7003 = vunpack.c.l.b16 %v6484
  %v7004 = vunpack.c.h.b16 %v6484
  %v7005 = vunpack.c.l.b16 %v6485
  %v7006 = vunpack.c.h.b16 %v6485
  %v7007 = vunpack.c.l.b16 %v6486
  %v7008 = vunpack.c.h.b16 %v6486
  %v7009 = vunpack.c.l.b16 %v6487
  %v7010 = vunpack.c.h.b16 %v6487
  %v7011 = vunpack.c.l.b16 %v6488
  %v7012 = vunpack.c.h.b16 %v6488
  %v7013 = vunpack.c.l.b16 %v6489
  %v7014 = vunpack.c.h.b16 %v6489
  %v7015 = vunpack.c.l.b16 %v6490
  %v7016 = vunpack.c.h.b16 %v6490
  %v7017 = vunpack.c.l.b16 %v6491
  %v7018 = vunpack.c.h.b16 %v6491
  %v7019 = vunpack.c.l.b16 %v6492
  %v7020 = vunpack.c.h.b16 %v6492
  %v7021 = vunpack.c.l.b16 %v6493
  %v7022 = vunpack.c.h.b16 %v6493
  %v7023 = vunpack.c.l.b16 %v6494
  %v7024 = vunpack.c.h.b16 %v6494
  %v7025 = vunpack.c.l.b16 %v6495
  %v7026 = vunpack.c.h.b16 %v6495
  %v7027 = vunpack.c.l.b16 %v6496
  %v7028 = vunpack.c.h.b16 %v6496
  %v7029 = vunpack.c.l.b16 %v6497
  %v7030 = vunpack.c.h.b16 %v6497
  %v7031 = vunpack.c.l.b16 %v6498
  %v7032 = vunpack.c.h.b16 %v6498
  %v7033 = vunpack.c.l.b16 %v6499
  %v7034 = vunpack.c.h.b16 %v6499
  %v7035 = vunpack.c.l.b16 %v6500
  %v7036 = vunpack.c.h.b16 %v6500
  %v7037 = vunpack.c.l.b16 %v6501
  %v7038 = vunpack.c.h.b16 %v6501
  %v7039 = vunpack.c.l.b16 %v6502
  %v7040 = vunpack.c.h.b16 %v6502
  %v7041 = vunpack.c.l.b16 %v6503
  %v7042 = vunpack.c.h.b16 %v6503
  %v7043 = vunpack.c.l.b16 %v6504
  %v7044 = vunpack.c.h.b16 %v6504
  %v7045 = vunpack.c.l.b16 %v6505
  %v7046 = vunpack.c.h.b16 %v6505
  %v7047 = vunpack.c.l.b16 %v6506
  %v7048 = vunpack.c.h.b16 %v6506
  %v7049 = vunpack.c.l.b16 %v6507
  %v7050 = vunpack.c.h.b16 %v6507
  %v7051 = vunpack.c.l.b16 %v6508
  %v7052 = vunpack.c.h.b16 %v6508
  %v7053 = vunpack.c.l.b16 %v6509
  %v7054 = vunpack.c.h.b16 %v6509
  %v7055 = vunpack.c.l.b16 %v6510
  %v7056 = vunpack.c.h.b16 %v6510
  %v7057 = vunpack.c.l.b16 %v6511
  %v7058 = vunpack.c.h.b16 %v6511
  %v7059 = vunpack.c.l.b16 %v6512
  %v7060 = vunpack.c.h.b16 %v6512
  %v7061 = vunpack.c.l.b16 %v6513
  %v7062 = vunpack.c.h.b16 %v6513
  %v7063 = vunpack.c.l.b16 %v6514
  %v7064 = vunpack.c.h.b16 %v6514
  %v7065 = vunpack.c.l.b16 %v6515
  %v7066 = vunpack.c.h.b16 %v6515
  %v7067 = vunpack.c.l.b16 %v6516
  %v7068 = vunpack.c.h.b16 %v6516
  %v7069 = vunpack.c.l.b16 %v6517
  %v7070 = vunpack.c.h.b16 %v6517
  %v7071 = vunpack.c.l.b16 %v6518
  %v7072 = vunpack.c.h.b16 %v6518
  %v7073 = vunpack.c.l.b16 %v6519
  %v7074 = vunpack.c.h.b16 %v6519
  %v7075 = vunpack.c.l.b16 %v6520
  %v7076 = vunpack.c.h.b16 %v6520
  %v7077 = vunpack.c.l.b16 %v6521
  %v7078 = vunpack.c.h.b16 %v6521
  %v7079 = vunpack.c.l.b16 %v6522
  %v7080 = vunpack.c.h.b16 %v6522
  %v7081 = vunpack.c.l.b16 %v6523
  %v7082 = vunpack.c.h.b16 %v6523
  %v7083 = vunpack.c.l.b16 %v6524
  %v7084 = vunpack.c.h.b16 %v6524
  %v7085 = vunpack.c.l.b16 %v6525
  %v7086 = vunpack.c.h.b16 %v6525
  %v7087 = vunpack.c.l.b16 %v6526
  %v7088 = vunpack.c.h.b16 %v6526
  %v7089 = vunpack.c.l.b16 %v6527
  %v7090 = vunpack.c.h.b16 %v6527
  %v7091 = vunpack.c.l.b16 %v6528
  %v7092 = vunpack.c.h.b16 %v6528
  %v7093 = vunpack.c.l.b16 %v6529
  %v7094 = vunpack.c.h.b16 %v6529
  %v7095 = vunpack.c.l.b16 %v6530
  %v7096 = vunpack.c.h.b16 %v6530
  %v7097 = vunpack.c.l.b16 %v6531
  %v7098 = vunpack.c.h.b16 %v6531
  %v7099 = vunpack.c.l.b16 %v6532
  %v7100 = vunpack.c.h.b16 %v6532
  %v7101 = vunpack.c.l.b16 %v6533
  %v7102 = vunpack.c.h.b16 %v6533
  %v7103 = vunpack.c.l.b16 %v6534
  %v7104 = vunpack.c.h.b16 %v6534
  %v7105 = vunpack.c.l.b16 %v6535
  %v7106 = vunpack.c.h.b16 %v6535
  %v7107 = vunpack.c.l.b16 %v6536
  %v7108 = vunpack.c.h.b16 %v6536
  %v7109 = vunpack.c.l.b16 %v6537
  %v7110 = vunpack.c.h.b16 %v6537
  %v7111 = vunpack.c.l.b16 %v6538
  %v7112 = vunpack.c.h.b16 %v6538
  %v7113 = vunpack.c.l.b16 %v6539
  %v7114 = vunpack.c.h.b16 %v6539
  %v7115 = vunpack.c.l.b16 %v6540
  %v7116 = vunpack.c.h.b16 %v6540
  %v7117 = vunpack.c.l.b16 %v6541
  %v7118 = vunpack.c.h.b16 %v6541
  %v7119 = vunpack.c.l.b16 %v6542
  %v7120 = vunpack.c.h.b16 %v6542
  %v7121 = vunpack.c.l.b16 %v6543
  %v7122 = vunpack.c.h.b16 %v6543
  %v7123 = vunpack.c.l.b16 %v6544
  %v7124 = vunpack.c.h.b16 %v6544
  %v7125 = vunpack.c.l.b16 %v6545
  %v7126 = vunpack.c.h.b16 %v6545
  %v7127 = vunpack.c.l.b16 %v6546
  %v7128 = vunpack.c.h.b16 %v6546
  %v7129 = vunpack.c.l.b16 %v6547
  %v7130 = vunpack.c.h.b16 %v6547
  %v7131 = vunpack.c.l.b16 %v6548
  %v7132 = vunpack.c.h.b16 %v6548
  %v7133 = vunpack.c.l.b16 %v6549
  %v7134 = vunpack.c.h.b16 %v6549
  %v7135 = vunpack.c.l.b16 %v6550
  %v7136 = vunpack.c.h.b16 %v6550
  %v7137 = vunpack.c.l.b16 %v6551
  %v7138 = vunpack.c.h.b16 %v6551
  %v7139 = vunpack.c.l.b16 %v6552
  %v7140 = vunpack.c.h.b16 %v6552
  %v7141 = vunpack.c.l.b16 %v6553
  %v7142 = vunpack.c.h.b16 %v6553
  %v7143 = vunpack.c.l.b16 %v6554
  %v7144 = vunpack.c.h.b16 %v6554
  %v7145 = vunpack.c.l.b16 %v6555
  %v7146 = vunpack.c.h.b16 %v6555
  %v7147 = vunpack.c.l.b16 %v6556
  %v7148 = vunpack.c.h.b16 %v6556
  %v7149 = vunpack.c.l.b16 %v6557
  %v7150 = vunpack.c.h.b16 %v6557
  %v7151 = vunpack.c.l.b16 %v6558
  %v7152 = vunpack.c.h.b16 %v6558
  %v7153 = vunpack.c.l.b16 %v6559
  %v7154 = vunpack.c.h.b16 %v6559
  %v7155 = vunpack.c.l.b16 %v6560
  %v7156 = vunpack.c.h.b16 %v6560
  %v7157 = vunpack.c.l.b16 %v6561
  %v7158 = vunpack.c.h.b16 %v6561
  %v7159 = vunpack.c.l.b16 %v6562
  %v7160 = vunpack.c.h.b16 %v6562
  %v7161 = vunpack.c.l.b16 %v6563
  %v7162 = vunpack.c.h.b16 %v6563
  %v7163 = vunpack.c.l.b16 %v6564
  %v7164 = vunpack.c.h.b16 %v6564
  %v7165 = vunpack.c.l.b16 %v6565
  %v7166 = vunpack.c.h.b16 %v6565
  %v7167 = vunpack.c.l.b16 %v6566
  %v7168 = vunpack.c.h.b16 %v6566
  %v7169 = vunpack.c.l.b16 %v6567
  %v7170 = vunpack.c.h.b16 %v6567
  %v7171 = vunpack.c.l.b16 %v6568
  %v7172 = vunpack.c.h.b16 %v6568
  %v7173 = vunpack.c.l.b16 %v6569
  %v7174 = vunpack.c.h.b16 %v6569
  %v7175 = vunpack.c.l.b16 %v6570
  %v7176 = vunpack.c.h.b16 %v6570
  %v7177 = vunpack.c.l.b16 %v6571
  %v7178 = vunpack.c.h.b16 %v6571
  %v7179 = vunpack.c.l.b16 %v6572
  %v7180 = vunpack.c.h.b16 %v6572
  %v7181 = vunpack.c.l.b16 %v6573
  %v7182 = vunpack.c.h.b16 %v6573
  %v7183 = vunpack.c.l.b16 %v6574
  %v7184 = vunpack.c.h.b16 %v6574
  %v7185 = vunpack.c.l.b16 %v6575
  %v7186 = vunpack.c.h.b16 %v6575
  %v7187 = vunpack.c.l.b16 %v6576
  %v7188 = vunpack.c.h.b16 %v6576
  %v7189 = vunpack.c.l.b16 %v6577
  %v7190 = vunpack.c.h.b16 %v6577
  %v7191 = vunpack.c.l.b16 %v6578
  %v7192 = vunpack.c.h.b16 %v6578
  %v7193 = vunpack.c.l.b16 %v6579
  %v7194 = vunpack.c.h.b16 %v6579
  %v7195 = vunpack.c.l.b16 %v6580
  %v7196 = vunpack.c.h.b16 %v6580
  %v7197 = vunpack.c.l.b16 %v6581
  %v7198 = vunpack.c.h.b16 %v6581
  %v7199 = vunpack.c.l.b16 %v6582
  %v7200 = vunpack.c.h.b16 %v6582
  %v7201 = vunpack.c.l.b16 %v6583
  %v7202 = vunpack.c.h.b16 %v6583
  %v7203 = vunpack.c.l.b16 %v6584
  %v7204 = vunpack.c.h.b16 %v6584
  %v7205 = vunpack.c.l.b16 %v6585
  %v7206 = vunpack.c.h.b16 %v6585
  %v7207 = vunpack.c.l.b16 %v6586
  %v7208 = vunpack.c.h.b16 %v6586
  %v7209 = vpack.c.b16 %v6813, %v6809
  %v7210 = vpack.c.b16 %v6814, %v6810
  %v7211 = vpack.c.b16 %v6815, %v6811
  %v7212 = vpack.c.b16 %v6816, %v6812
  %v7213 = vpack.c.b16 %v6821, %v6817
  %v7214 = vpack.c.b16 %v6822, %v6818
  %v7215 = vpack.c.b16 %v6823, %v6819
  %v7216 = vpack.c.b16 %v6824, %v6820
  %v7217 = vpack.c.b16 %v6829, %v6825
  %v7218 = vpack.c.b16 %v6830, %v6826
  %v7219 = vpack.c.b16 %v6831, %v6827
  %v7220 = vpack.c.b16 %v6832, %v6828
  %v7221 = vpack.c.b16 %v6837, %v6833
  %v7222 = vpack.c.b16 %v6838, %v6834
  %v7223 = vpack.c.b16 %v6839, %v6835
  %v7224 = vpack.c.b16 %v6840, %v6836
  %v7225 = vpack.c.b16 %v6845, %v6841
  %v7226 = vpack.c.b16 %v6846, %v6842
  %v7227 = vpack.c.b16 %v6847, %v6843
  %v7228 = vpack.c.b16 %v6848, %v6844
  %v7229 = vpack.c.b16 %v6853, %v6849
  %v7230 = vpack.c.b16 %v6854, %v6850
  %v7231 = vpack.c.b16 %v6855, %v6851
  %v7232 = vpack.c.b16 %v6856, %v6852
  %v7233 = vpack.c.b16 %v6861, %v6857
  %v7234 = vpack.c.b16 %v6862, %v6858
  %v7235 = vpack.c.b16 %v6863, %v6859
  %v7236 = vpack.c.b16 %v6864, %v6860
  %v7237 = vpack.c.b16 %v6869, %v6865
  %v7238 = vpack.c.b16 %v6870, %v6866
  %v7239 = vpack.c.b16 %v6871, %v6867
  %v7240 = vpack.c.b16 %v6872, %v6868
  %v7241 = vpack.c.b16 %v6877, %v6873
  %v7242 = vpack.c.b16 %v6878, %v6874
  %v7243 = vpack.c.b16 %v6879, %v6875
  %v7244 = vpack.c.b16 %v6880, %v6876
  %v7245 = vpack.c.b16 %v6885, %v6881
  %v7246 = vpack.c.b16 %v6886, %v6882
  %v7247 = vpack.c.b16 %v6887, %v6883
  %v7248 = vpack.c.b16 %v6888, %v6884
  %v7249 = vpack.c.b16 %v6893, %v6889
  %v7250 = vpack.c.b16 %v6894, %v6890
  %v7251 = vpack.c.b16 %v6895, %v6891
  %v7252 = vpack.c.b16 %v6896, %v6892
  %v7253 = vpack.c.b16 %v6901, %v6897
  %v7254 = vpack.c.b16 %v6902, %v6898
  %v7255 = vpack.c.b16 %v6903, %v6899
  %v7256 = vpack.c.b16 %v6904, %v6900
  %v7257 = vpack.c.b16 %v6909, %v6905
  %v7258 = vpack.c.b16 %v6910, %v6906
  %v7259 = vpack.c.b16 %v6911, %v6907
  %v7260 = vpack.c.b16 %v6912, %v6908
  %v7261 = vpack.c.b16 %v6917, %v6913
  %v7262 = vpack.c.b16 %v6918, %v6914
  %v7263 = vpack.c.b16 %v6919, %v6915
  %v7264 = vpack.c.b16 %v6920, %v6916
  %v7265 = vpack.c.b16 %v6925, %v6921
  %v7266 = vpack.c.b16 %v6926, %v6922
  %v7267 = vpack.c.b16 %v6927, %v6923
  %v7268 = vpack.c.b16 %v6928, %v6924
  %v7269 = vpack.c.b16 %v6933, %v6929
  %v7270 = vpack.c.b16 %v6934, %v6930
  %v7271 = vpack.c.b16 %v6935, %v6931
  %v7272 = vpack.c.b16 %v6936, %v6932
  %v7273 = vpack.c.b16 %v6941, %v6937
  %v7274 = vpack.c.b16 %v6942, %v6938
  %v7275 = vpack.c.b16 %v6943, %v6939
  %v7276 = vpack.c.b16 %v6944, %v6940
  %v7277 = vpack.c.b16 %v6949, %v6945
  %v7278 = vpack.c.b16 %v6950, %v6946
  %v7279 = vpack.c.b16 %v6951, %v6947
  %v7280 = vpack.c.b16 %v6952, %v6948
  %v7281 = vpack.c.b16 %v6957, %v6953
  %v7282 = vpack.c.b16 %v6958, %v6954
  %v7283 = vpack.c.b16 %v6959, %v6955
  %v7284 = vpack.c.b16 %v6960, %v6956
  %v7285 = vpack.c.b16 %v6965, %v6961
  %v7286 = vpack.c.b16 %v6966, %v6962
  %v7287 = vpack.c.b16 %v6967, %v6963
  %v7288 = vpack.c.b16 %v6968, %v6964
  %v7289 = vpack.c.b16 %v6973, %v6969
  %v7290 = vpack.c.b16 %v6974, %v6970
  %v7291 = vpack.c.b16 %v6975, %v6971
  %v7292 = vpack.c.b16 %v6976, %v6972
  %v7293 = vpack.c.b16 %v6981, %v6977
  %v7294 = vpack.c.b16 %v6982, %v6978
  %v7295 = vpack.c.b16 %v6983, %v6979
  %v7296 = vpack.c.b16 %v6984, %v6980
  %v7297 = vpack.c.b16 %v6989, %v6985
  %v7298 = vpack.c.b16 %v6990, %v6986
  %v7299 = vpack.c.b16 %v6991, %v6987
  %v7300 = vpack.c.b16 %v6992, %v6988
  %v7301 = vpack.c.b16 %v6997, %v6993
  %v7302 = vpack.c.b16 %v6998, %v6994
  %v7303 = vpack.c.b16 %v6999, %v6995
  %v7304 = vpack.c.b16 %v7000, %v6996
  %v7305 = vpack.c.b16 %v7005, %v7001
  %v7306 = vpack.c.b16 %v7006, %v7002
  %v7307 = vpack.c.b16 %v7007, %v7003
  %v7308 = vpack.c.b16 %v7008, %v7004
  %v7309 = vpack.c.b16 %v7013, %v7009
  %v7310 = vpack.c.b16 %v7014, %v7010
  %v7311 = vpack.c.b16 %v7015, %v7011
  %v7312 = vpack.c.b16 %v7016, %v7012
  %v7313 = vpack.c.b16 %v7021, %v7017
  %v7314 = vpack.c.b16 %v7022, %v7018
  %v7315 = vpack.c.b16 %v7023, %v7019
  %v7316 = vpack.c.b16 %v7024, %v7020
  %v7317 = vpack.c.b16 %v7029, %v7025
  %v7318 = vpack.c.b16 %v7030, %v7026
  %v7319 = vpack.c.b16 %v7031, %v7027
  %v7320 = vpack.c.b16 %v7032, %v7028
  %v7321 = vpack.c.b16 %v7037, %v7033
  %v7322 = vpack.c.b16 %v7038, %v7034
  %v7323 = vpack.c.b16 %v7039, %v7035
  %v7324 = vpack.c.b16 %v7040, %v7036
  %v7325 = vpack.c.b16 %v7045, %v7041
  %v7326 = vpack.c.b16 %v7046, %v7042
  %v7327 = vpack.c.b16 %v7047, %v7043
  %v7328 = vpack.c.b16 %v7048, %v7044
  %v7329 = vpack.c.b16 %v7053, %v7049
  %v7330 = vpack.c.b16 %v7054, %v7050
  %v7331 = vpack.c.b16 %v7055, %v7051
  %v7332 = vpack.c.b16 %v7056, %v7052
  %v7333 = vpack.c.b16 %v7061, %v7057
  %v7334 = vpack.c.b16 %v7062, %v7058
  %v7335 = vpack.c.b16 %v7063, %v7059
  %v7336 = vpack.c.b16 %v7064, %v7060
  %v7337 = vpack.c.b16 %v7069, %v7065
  %v7338 = vpack.c.b16 %v7070, %v7066
  %v7339 = vpack.c.b16 %v7071, %v7067
  %v7340 = vpack.c.b16 %v7072, %v7068
  %v7341 = vpack.c.b16 %v7077, %v7073
  %v7342 = vpack.c.b16 %v7078, %v7074
  %v7343 = vpack.c.b16 %v7079, %v7075
  %v7344 = vpack.c.b16 %v7080, %v7076
  %v7345 = vpack.c.b16 %v7085, %v7081
  %v7346 = vpack.c.b16 %v7086, %v7082
  %v7347 = vpack.c.b16 %v7087, %v7083
  %v7348 = vpack.c.b16 %v7088, %v7084
  %v7349 = vpack.c.b16 %v7093, %v7089
  %v7350 = vpack.c.b16 %v7094, %v7090
  %v7351 = vpack.c.b16 %v7095, %v7091
  %v7352 = vpack.c.b16 %v7096, %v7092
  %v7353 = vpack.c.b16 %v7101, %v7097
  %v7354 = vpack.c.b16 %v7102, %v7098
  %v7355 = vpack.c.b16 %v7103, %v7099
  %v7356 = vpack.c.b16 %v7104, %v7100
  %v7357 = vpack.c.b16 %v7109, %v7105
  %v7358 = vpack.c.b16 %v7110, %v7106
  %v7359 = vpack.c.b16 %v7111, %v7107
  %v7360 = vpack.c.b16 %v7112, %v7108
  %v7361 = vpack.c.b16 %v7117, %v7113
  %v7362 = vpack.c.b16 %v7118, %v7114
  %v7363 = vpack.c.b16 %v7119, %v7115
  %v7364 = vpack.c.b16 %v7120, %v7116
  %v7365 = vpack.c.b16 %v7125, %v7121
  %v7366 = vpack.c.b16 %v7126, %v7122
  %v7367 = vpack.c.b16 %v7127, %v7123
  %v7368 = vpack.c.b16 %v7128, %v7124
  %v7369 = vpack.c.b16 %v7133, %v7129
  %v7370 = vpack.c.b16 %v7134, %v7130
  %v7371 = vpack.c.b16 %v7135, %v7131
  %v7372 = vpack.c.b16 %v7136, %v7132
  %v7373 = vpack.c.b16 %v7141, %v7137
  %v7374 = vpack.c.b16 %v7142, %v7138
  %v7375 = vpack.c.b16 %v7143, %v7139
  %v7376 = vpack.c.b16 %v7144, %v7140
  %v7377 = vpack.c.b16 %v7149, %v7145
  %v7378 = vpack.c.b16 %v7150, %v7146
  %v7379 = vpack.c.b16 %v7151, %v7147
  %v7380 = vpack.c.b16 %v7152, %v7148
  %v7381 = vpack.c.b16 %v7157, %v7153
  %v7382 = vpack.c.b16 %v7158, %v7154
  %v7383 = vpack.c.b16 %v7159, %v7155
  %v7384 = vpack.c.b16 %v7160, %v7156
  %v7385 = vpack.c.b16 %v7165, %v7161
  %v7386 = vpack.c.b16 %v7166, %v7162
  %v7387 = vpack.c.b16 %v7167, %v7163
  %v7388 = vpack.c.b16 %v7168, %v7164
  %v7389 = vpack.c.b16 %v7173, %v7169
  %v7390 = vpack.c.b16 %v7174, %v7170
  %v7391 = vpack.c.b16 %v7175, %v7171
  %v7392 = vpack.c.b16 %v7176, %v7172
  %v7393 = vpack.c.b16 %v7181, %v7177
  %v7394 = vpack.c.b16 %v7182, %v7178
  %v7395 = vpack.c.b16 %v7183, %v7179
  %v7396 = vpack.c.b16 %v7184, %v7180
  %v7397 = vpack.c.b16 %v7189, %v7185
  %v7398 = vpack.c.b16 %v7190, %v7186
  %v7399 = vpack.c.b16 %v7191, %v7187
  %v7400 = vpack.c.b16 %v7192, %v7188
  %v7401 = vpack.c.b16 %v7197, %v7193
  %v7402 = vpack.c.b16 %v7198, %v7194
  %v7403 = vpack.c.b16 %v7199, %v7195
  %v7404 = vpack.c.b16 %v7200, %v7196
  %v7405 = vpack.c.b16 %v7205, %v7201
  %v7406 = vpack.c.b16 %v7206, %v7202
  %v7407 = vpack.c.b16 %v7207, %v7203
  %v7408 = vpack.c.b16 %v7208, %v7204
  %v7610 = vsel %vm4364, %v6386, 0
  %7612 = vmatprep.subr.bf16.mxu0 %v7210
  %7613 = vmatpush1.bf16.msra.mxu0 %v7209
  %7614 = vmatprep.subr.bf16.mxu0 %v7214
  %7615 = vmatpush1.bf16.msra.mxu0 %v7213
  %7616 = vmatprep.subr.bf16.mxu0 %v7218
  %7617 = vmatpush1.bf16.msra.mxu0 %v7217
  %7618 = vmatprep.subr.bf16.mxu0 %v7222
  %7619 = vmatpush1.bf16.msra.mxu0 %v7221
  %7620 = vmatprep.subr.bf16.mxu0 %v7226
  %7621 = vmatpush1.bf16.msra.mxu0 %v7225
  %7622 = vmatprep.subr.bf16.mxu0 %v7230
  %7623 = vmatpush1.bf16.msra.mxu0 %v7229
  %7624 = vmatprep.subr.bf16.mxu0 %v7234
  %7625 = vmatpush1.bf16.msra.mxu0 %v7233
  %7626 = vmatprep.subr.bf16.mxu0 %v7238
  %7627 = vmatpush1.bf16.msra.mxu0 %v7237
  %7628 = vmatprep.subr.bf16.mxu0 %v7242
  %7629 = vmatpush1.bf16.msra.mxu0 %v7241
  %7630 = vmatprep.subr.bf16.mxu0 %v7246
  %7631 = vmatpush1.bf16.msra.mxu0 %v7245
  %7632 = vmatprep.subr.bf16.mxu0 %v7250
  %7633 = vmatpush1.bf16.msra.mxu0 %v7249
  %7634 = vmatprep.subr.bf16.mxu0 %v7254
  %7635 = vmatpush1.bf16.msra.mxu0 %v7253
  %7636 = vmatprep.subr.bf16.mxu0 %v7258
  %7637 = vmatpush1.bf16.msra.mxu0 %v7257
  %7638 = vmatprep.subr.bf16.mxu0 %v7262
  %7639 = vmatpush1.bf16.msra.mxu0 %v7261
  %7640 = vmatprep.subr.bf16.mxu0 %v7266
  %7641 = vmatpush1.bf16.msra.mxu0 %v7265
  %7642 = vmatprep.subr.bf16.mxu0 %v7270
  %7643 = vmatpush1.bf16.msra.mxu0 %v7269
  %7644 = vmatprep.mubr.bf16.mxu0 %v6381
  %7645 = vmatmul.mubr.bf16.gmra.mrb[0].mxu0 %v6380
  %v7646 = vpop.f32.mrb[0].mxu0
  %v7647 = vadd.f32 %v6592, %v7646
  %v7648 = vpop.f32.mrb[0].mxu0
  %v7649 = vadd.f32 %v6596, %v7648
  %v7650 = vpop.f32.mrb[0].mxu0
  %v7651 = vadd.f32 %v6592, %v7650
  %v7652 = vpop.f32.mrb[0].mxu0
  %v7653 = vadd.f32 %v6596, %v7652
  %7654 = vdwg.mxu0
  %7655 = vmatprep.subr.bf16.mxu0 %v7274
  %7656 = vmatpush1.bf16.msra.mxu0 %v7273
  %7657 = vmatprep.subr.bf16.mxu0 %v7278
  %7658 = vmatpush1.bf16.msra.mxu0 %v7277
  %7659 = vmatprep.subr.bf16.mxu0 %v7282
  %7660 = vmatpush1.bf16.msra.mxu0 %v7281
  %7661 = vmatprep.subr.bf16.mxu0 %v7286
  %7662 = vmatpush1.bf16.msra.mxu0 %v7285
  %7663 = vmatprep.subr.bf16.mxu0 %v7290
  %7664 = vmatpush1.bf16.msra.mxu0 %v7289
  %7665 = vmatprep.subr.bf16.mxu0 %v7294
  %7666 = vmatpush1.bf16.msra.mxu0 %v7293
  %7667 = vmatprep.subr.bf16.mxu0 %v7298
  %7668 = vmatpush1.bf16.msra.mxu0 %v7297
  %7669 = vmatprep.subr.bf16.mxu0 %v7302
  %7670 = vmatpush1.bf16.msra.mxu0 %v7301
  %7671 = vmatprep.subr.bf16.mxu0 %v7306
  %7672 = vmatpush1.bf16.msra.mxu0 %v7305
  %7673 = vmatprep.subr.bf16.mxu0 %v7310
  %7674 = vmatpush1.bf16.msra.mxu0 %v7309
  %7675 = vmatprep.subr.bf16.mxu0 %v7314
  %7676 = vmatpush1.bf16.msra.mxu0 %v7313
  %7677 = vmatprep.subr.bf16.mxu0 %v7318
  %7678 = vmatpush1.bf16.msra.mxu0 %v7317
  %7679 = vmatprep.subr.bf16.mxu0 %v7322
  %7680 = vmatpush1.bf16.msra.mxu0 %v7321
  %7681 = vmatprep.subr.bf16.mxu0 %v7326
  %7682 = vmatpush1.bf16.msra.mxu0 %v7325
  %7683 = vmatprep.subr.bf16.mxu0 %v7330
  %7684 = vmatpush1.bf16.msra.mxu0 %v7329
  %7685 = vmatprep.subr.bf16.mxu0 %v7334
  %7686 = vmatpush1.bf16.msra.mxu0 %v7333
  %7687 = vmatprep.mubr.bf16.mxu0 %v6383
  %7688 = vmatmul.mubr.bf16.gmra.mrb[0].mxu0 %v6382
  %v7689 = vpop.f32.mrb[0].mxu0
  %v7690 = vadd.f32 %v7647, %v7689
  %v7691 = vpop.f32.mrb[0].mxu0
  %v7692 = vadd.f32 %v7649, %v7691
  %v7693 = vpop.f32.mrb[0].mxu0
  %v7694 = vadd.f32 %v7651, %v7693
  %v7695 = vpop.f32.mrb[0].mxu0
  %v7696 = vadd.f32 %v7653, %v7695
  %7697 = vdwg.mxu0
  %7698 = vmatprep.subr.bf16.mxu0 %v7338
  %7699 = vmatpush1.bf16.msra.mxu0 %v7337
  %7700 = vmatprep.subr.bf16.mxu0 %v7342
  %7701 = vmatpush1.bf16.msra.mxu0 %v7341
  %7702 = vmatprep.subr.bf16.mxu0 %v7346
  %7703 = vmatpush1.bf16.msra.mxu0 %v7345
  %7704 = vmatprep.subr.bf16.mxu0 %v7350
  %7705 = vmatpush1.bf16.msra.mxu0 %v7349
  %7706 = vmatprep.subr.bf16.mxu0 %v7354
  %7707 = vmatpush1.bf16.msra.mxu0 %v7353
  %7708 = vmatprep.subr.bf16.mxu0 %v7358
  %7709 = vmatpush1.bf16.msra.mxu0 %v7357
  %7710 = vmatprep.subr.bf16.mxu0 %v7362
  %7711 = vmatpush1.bf16.msra.mxu0 %v7361
  %7712 = vmatprep.subr.bf16.mxu0 %v7366
  %7713 = vmatpush1.bf16.msra.mxu0 %v7365
  %7714 = vmatprep.subr.bf16.mxu0 %v7370
  %7715 = vmatpush1.bf16.msra.mxu0 %v7369
  %7716 = vmatprep.subr.bf16.mxu0 %v7374
  %7717 = vmatpush1.bf16.msra.mxu0 %v7373
  %7718 = vmatprep.subr.bf16.mxu0 %v7378
  %7719 = vmatpush1.bf16.msra.mxu0 %v7377
  %7720 = vmatprep.subr.bf16.mxu0 %v7382
  %7721 = vmatpush1.bf16.msra.mxu0 %v7381
  %7722 = vmatprep.subr.bf16.mxu0 %v7386
  %7723 = vmatpush1.bf16.msra.mxu0 %v7385
  %7724 = vmatprep.subr.bf16.mxu0 %v7390
  %7725 = vmatpush1.bf16.msra.mxu0 %v7389
  %7726 = vmatprep.subr.bf16.mxu0 %v7394
  %7727 = vmatpush1.bf16.msra.mxu0 %v7393
  %7728 = vmatprep.subr.bf16.mxu0 %v7398
  %7729 = vmatpush1.bf16.msra.mxu0 %v7397
  %7730 = vmatprep.mubr.bf16.mxu0 %v6385
  %7731 = vmatmul.mubr.bf16.gmra.mrb[0].mxu0 %v6384
  %v7732 = vpop.f32.mrb[0].mxu0
  %v7733 = vadd.f32 %v7690, %v7732
  %v7734 = vpop.f32.mrb[0].mxu0
  %v7735 = vadd.f32 %v7692, %v7734
  %v7736 = vpop.f32.mrb[0].mxu0
  %v7737 = vadd.f32 %v7694, %v7736
  %v7738 = vpop.f32.mrb[0].mxu0
  %v7739 = vadd.f32 %v7696, %v7738
  %7740 = vdwg.mxu0
  %7741 = vmatprep.subr.bf16.mxu0 %v7402
  %7742 = vmatpush1.bf16.msra.mxu0 %v7401
  %7743 = vmatprep.subr.bf16.mxu0 %v7406
  %7744 = vmatpush1.bf16.msra.mxu0 %v7405
  %7745 = vmatprep.subr.bf16.mxu0 0
  %7746 = vmatpush1.bf16.msra.mxu0 0
  %7747 = vmatprep.subr.bf16.mxu0 0
  %7748 = vmatpush1.bf16.msra.mxu0 0
  %7749 = vmatprep.subr.bf16.mxu0 0
  %7750 = vmatpush1.bf16.msra.mxu0 0
  %7751 = vmatprep.subr.bf16.mxu0 0
  %7752 = vmatpush1.bf16.msra.mxu0 0
  %7753 = vmatprep.subr.bf16.mxu0 0
  %7754 = vmatpush1.bf16.msra.mxu0 0
  %7755 = vmatprep.subr.bf16.mxu0 0
  %7756 = vmatpush1.bf16.msra.mxu0 0
  %7757 = vmatprep.subr.bf16.mxu0 0
  %7758 = vmatpush1.bf16.msra.mxu0 0
  %7759 = vmatprep.subr.bf16.mxu0 0
  %7760 = vmatpush1.bf16.msra.mxu0 0
  %7761 = vmatprep.subr.bf16.mxu0 0
  %7762 = vmatpush1.bf16.msra.mxu0 0
  %7763 = vmatprep.subr.bf16.mxu0 0
  %7764 = vmatpush1.bf16.msra.mxu0 0
  %7765 = vmatprep.subr.bf16.mxu0 0
  %7766 = vmatpush1.bf16.msra.mxu0 0
  %7767 = vmatprep.subr.bf16.mxu0 0
  %7768 = vmatpush1.bf16.msra.mxu0 0
  %7769 = vmatprep.subr.bf16.mxu0 0
  %7770 = vmatpush1.bf16.msra.mxu0 0
  %7771 = vmatprep.subr.bf16.mxu0 0
  %7772 = vmatpush1.bf16.msra.mxu0 0
  %7773 = vmatprep.mubr.bf16.mxu0 0
  %7774 = vmatmul.mubr.bf16.gmra.mrb[0].mxu0 %v7610
  %v7775 = vpop.f32.mrb[0].mxu0
  %v7776 = vadd.f32 %v7733, %v7775
  %v7777 = vpop.f32.mrb[0].mxu0
  %v7778 = vadd.f32 %v7735, %v7777
  %v7779 = vpop.f32.mrb[0].mxu0
  %v7780 = vadd.f32 %v7737, %v7779
  %v7781 = vpop.f32.mrb[0].mxu0
  %v7782 = vadd.f32 %v7739, %v7781
  %7783 = vdwg.mxu0
  %7784 = vmatprep.subr.bf16.mxu0 %v7212
  %7785 = vmatpush1.bf16.msra.mxu0 %v7211
  %7786 = vmatprep.subr.bf16.mxu0 %v7216
  %7787 = vmatpush1.bf16.msra.mxu0 %v7215
  %7788 = vmatprep.subr.bf16.mxu0 %v7220
  %7789 = vmatpush1.bf16.msra.mxu0 %v7219
  %7790 = vmatprep.subr.bf16.mxu0 %v7224
  %7791 = vmatpush1.bf16.msra.mxu0 %v7223
  %7792 = vmatprep.subr.bf16.mxu0 %v7228
  %7793 = vmatpush1.bf16.msra.mxu0 %v7227
  %7794 = vmatprep.subr.bf16.mxu0 %v7232
  %7795 = vmatpush1.bf16.msra.mxu0 %v7231
  %7796 = vmatprep.subr.bf16.mxu0 %v7236
  %7797 = vmatpush1.bf16.msra.mxu0 %v7235
  %7798 = vmatprep.subr.bf16.mxu0 %v7240
  %7799 = vmatpush1.bf16.msra.mxu0 %v7239
  %7800 = vmatprep.subr.bf16.mxu0 %v7244
  %7801 = vmatpush1.bf16.msra.mxu0 %v7243
  %7802 = vmatprep.subr.bf16.mxu0 %v7248
  %7803 = vmatpush1.bf16.msra.mxu0 %v7247
  %7804 = vmatprep.subr.bf16.mxu0 %v7252
  %7805 = vmatpush1.bf16.msra.mxu0 %v7251
  %7806 = vmatprep.subr.bf16.mxu0 %v7256
  %7807 = vmatpush1.bf16.msra.mxu0 %v7255
  %7808 = vmatprep.subr.bf16.mxu0 %v7260
  %7809 = vmatpush1.bf16.msra.mxu0 %v7259
  %7810 = vmatprep.subr.bf16.mxu0 %v7264
  %7811 = vmatpush1.bf16.msra.mxu0 %v7263
  %7812 = vmatprep.subr.bf16.mxu0 %v7268
  %7813 = vmatpush1.bf16.msra.mxu0 %v7267
  %7814 = vmatprep.subr.bf16.mxu0 %v7272
  %7815 = vmatpush1.bf16.msra.mxu0 %v7271
  %7816 = vmatprep.mubr.bf16.mxu0 %v6381
  %7817 = vmatmul.mubr.bf16.gmra.mrb[0].mxu0 %v6380
  %v7818 = vpop.f32.mrb[0].mxu0
  %v7819 = vadd.f32 %v6600, %v7818
  %v7820 = vpop.f32.mrb[0].mxu0
  %v7821 = vadd.f32 %v6604, %v7820
  %v7822 = vpop.f32.mrb[0].mxu0
  %v7823 = vadd.f32 %v6600, %v7822
  %v7824 = vpop.f32.mrb[0].mxu0
  %v7825 = vadd.f32 %v6604, %v7824
  %7826 = vdwg.mxu0
  %7827 = vmatprep.subr.bf16.mxu0 %v7276
  %7828 = vmatpush1.bf16.msra.mxu0 %v7275
  %7829 = vmatprep.subr.bf16.mxu0 %v7280
  %7830 = vmatpush1.bf16.msra.mxu0 %v7279
  %7831 = vmatprep.subr.bf16.mxu0 %v7284
  %7832 = vmatpush1.bf16.msra.mxu0 %v7283
  %7833 = vmatprep.subr.bf16.mxu0 %v7288
  %7834 = vmatpush1.bf16.msra.mxu0 %v7287
  %7835 = vmatprep.subr.bf16.mxu0 %v7292
  %7836 = vmatpush1.bf16.msra.mxu0 %v7291
  %7837 = vmatprep.subr.bf16.mxu0 %v7296
  %7838 = vmatpush1.bf16.msra.mxu0 %v7295
  %7839 = vmatprep.subr.bf16.mxu0 %v7300
  %7840 = vmatpush1.bf16.msra.mxu0 %v7299
  %7841 = vmatprep.subr.bf16.mxu0 %v7304
  %7842 = vmatpush1.bf16.msra.mxu0 %v7303
  %7843 = vmatprep.subr.bf16.mxu0 %v7308
  %7844 = vmatpush1.bf16.msra.mxu0 %v7307
  %7845 = vmatprep.subr.bf16.mxu0 %v7312
  %7846 = vmatpush1.bf16.msra.mxu0 %v7311
  %7847 = vmatprep.subr.bf16.mxu0 %v7316
  %7848 = vmatpush1.bf16.msra.mxu0 %v7315
  %7849 = vmatprep.subr.bf16.mxu0 %v7320
  %7850 = vmatpush1.bf16.msra.mxu0 %v7319
  %7851 = vmatprep.subr.bf16.mxu0 %v7324
  %7852 = vmatpush1.bf16.msra.mxu0 %v7323
  %7853 = vmatprep.subr.bf16.mxu0 %v7328
  %7854 = vmatpush1.bf16.msra.mxu0 %v7327
  %7855 = vmatprep.subr.bf16.mxu0 %v7332
  %7856 = vmatpush1.bf16.msra.mxu0 %v7331
  %7857 = vmatprep.subr.bf16.mxu0 %v7336
  %7858 = vmatpush1.bf16.msra.mxu0 %v7335
  %7859 = vmatprep.mubr.bf16.mxu0 %v6383
  %7860 = vmatmul.mubr.bf16.gmra.mrb[0].mxu0 %v6382
  %v7861 = vpop.f32.mrb[0].mxu0
  %v7862 = vadd.f32 %v7819, %v7861
  %v7863 = vpop.f32.mrb[0].mxu0
  %v7864 = vadd.f32 %v7821, %v7863
  %v7865 = vpop.f32.mrb[0].mxu0
  %v7866 = vadd.f32 %v7823, %v7865
  %v7867 = vpop.f32.mrb[0].mxu0
  %v7868 = vadd.f32 %v7825, %v7867
  %7869 = vdwg.mxu0
  %7870 = vmatprep.subr.bf16.mxu0 %v7340
  %7871 = vmatpush1.bf16.msra.mxu0 %v7339
  %7872 = vmatprep.subr.bf16.mxu0 %v7344
  %7873 = vmatpush1.bf16.msra.mxu0 %v7343
  %7874 = vmatprep.subr.bf16.mxu0 %v7348
  %7875 = vmatpush1.bf16.msra.mxu0 %v7347
  %7876 = vmatprep.subr.bf16.mxu0 %v7352
  %7877 = vmatpush1.bf16.msra.mxu0 %v7351
  %7878 = vmatprep.subr.bf16.mxu0 %v7356
  %7879 = vmatpush1.bf16.msra.mxu0 %v7355
  %7880 = vmatprep.subr.bf16.mxu0 %v7360
  %7881 = vmatpush1.bf16.msra.mxu0 %v7359
  %7882 = vmatprep.subr.bf16.mxu0 %v7364
  %7883 = vmatpush1.bf16.msra.mxu0 %v7363
  %7884 = vmatprep.subr.bf16.mxu0 %v7368
  %7885 = vmatpush1.bf16.msra.mxu0 %v7367
  %7886 = vmatprep.subr.bf16.mxu0 %v7372
  %7887 = vmatpush1.bf16.msra.mxu0 %v7371
  %7888 = vmatprep.subr.bf16.mxu0 %v7376
  %7889 = vmatpush1.bf16.msra.mxu0 %v7375
  %7890 = vmatprep.subr.bf16.mxu0 %v7380
  %7891 = vmatpush1.bf16.msra.mxu0 %v7379
  %7892 = vmatprep.subr.bf16.mxu0 %v7384
  %7893 = vmatpush1.bf16.msra.mxu0 %v7383
  %7894 = vmatprep.subr.bf16.mxu0 %v7388
  %7895 = vmatpush1.bf16.msra.mxu0 %v7387
  %7896 = vmatprep.subr.bf16.mxu0 %v7392
  %7897 = vmatpush1.bf16.msra.mxu0 %v7391
  %7898 = vmatprep.subr.bf16.mxu0 %v7396
  %7899 = vmatpush1.bf16.msra.mxu0 %v7395
  %7900 = vmatprep.subr.bf16.mxu0 %v7400
  %7901 = vmatpush1.bf16.msra.mxu0 %v7399
  %7902 = vmatprep.mubr.bf16.mxu0 %v6385
  %7903 = vmatmul.mubr.bf16.gmra.mrb[0].mxu0 %v6384
  %v7904 = vpop.f32.mrb[0].mxu0
  %v7905 = vadd.f32 %v7862, %v7904
  %v7906 = vpop.f32.mrb[0].mxu0
  %v7907 = vadd.f32 %v7864, %v7906
  %v7908 = vpop.f32.mrb[0].mxu0
  %v7909 = vadd.f32 %v7866, %v7908
  %v7910 = vpop.f32.mrb[0].mxu0
  %v7911 = vadd.f32 %v7868, %v7910
  %7912 = vdwg.mxu0
  %7913 = vmatprep.subr.bf16.mxu0 %v7404
  %7914 = vmatpush1.bf16.msra.mxu0 %v7403
  %7915 = vmatprep.subr.bf16.mxu0 %v7408
  %7916 = vmatpush1.bf16.msra.mxu0 %v7407
  %7917 = vmatprep.subr.bf16.mxu0 0
  %7918 = vmatpush1.bf16.msra.mxu0 0
  %7919 = vmatprep.subr.bf16.mxu0 0
  %7920 = vmatpush1.bf16.msra.mxu0 0
  %7921 = vmatprep.subr.bf16.mxu0 0
  %7922 = vmatpush1.bf16.msra.mxu0 0
  %7923 = vmatprep.subr.bf16.mxu0 0
  %7924 = vmatpush1.bf16.msra.mxu0 0
  %7925 = vmatprep.subr.bf16.mxu0 0
  %7926 = vmatpush1.bf16.msra.mxu0 0
  %7927 = vmatprep.subr.bf16.mxu0 0
  %7928 = vmatpush1.bf16.msra.mxu0 0
  %7929 = vmatprep.subr.bf16.mxu0 0
  %7930 = vmatpush1.bf16.msra.mxu0 0
  %7931 = vmatprep.subr.bf16.mxu0 0
  %7932 = vmatpush1.bf16.msra.mxu0 0
  %7933 = vmatprep.subr.bf16.mxu0 0
  %7934 = vmatpush1.bf16.msra.mxu0 0
  %7935 = vmatprep.subr.bf16.mxu0 0
  %7936 = vmatpush1.bf16.msra.mxu0 0
  %7937 = vmatprep.subr.bf16.mxu0 0
  %7938 = vmatpush1.bf16.msra.mxu0 0
  %7939 = vmatprep.subr.bf16.mxu0 0
  %7940 = vmatpush1.bf16.msra.mxu0 0
  %7941 = vmatprep.subr.bf16.mxu0 0
  %7942 = vmatpush1.bf16.msra.mxu0 0
  %7943 = vmatprep.subr.bf16.mxu0 0
  %7944 = vmatpush1.bf16.msra.mxu0 0
  %7945 = vmatprep.mubr.bf16.mxu0 0
  %7946 = vmatmul.mubr.bf16.gmra.mrb[0].mxu0 %v7610
  %v7947 = vpop.f32.mrb[0].mxu0
  %v7948 = vadd.f32 %v7905, %v7947
  %v7949 = vpop.f32.mrb[0].mxu0
  %v7950 = vadd.f32 %v7907, %v7949
  %v7951 = vpop.f32.mrb[0].mxu0
  %v7952 = vadd.f32 %v7909, %v7951
  %v7953 = vpop.f32.mrb[0].mxu0
  %v7954 = vadd.f32 %v7911, %v7953
  %7955 = vdwg.mxu0
  %v7956 = vmax.f32 %v7776, 0.0
  %v7957 = vmax.f32 %v7778, 0.0
  %v7958 = vmax.f32 %v7948, 0.0
  %v7959 = vmax.f32 %v7950, 0.0
  %v7960 = vmax.f32 %v7780, 0.0
  %v7961 = vmax.f32 %v7782, 0.0
  %v7962 = vmax.f32 %v7952, 0.0
  %v7963 = vmax.f32 %v7954, 0.0
  %v7964 = vpack.c.bf16 %v7960, %v7956
  %v7965 = vpack.c.bf16 %v7961, %v7957
  %v7966 = vpack.c.bf16 %v7962, %v7958
  %v7967 = vpack.c.bf16 %v7963, %v7959
  %v7968 = vld [vmem:[%s10] sm:$0xf]
  %v7969 = vld [vmem:[%s10 + $0x4] sm:$0xf]
  %v7970 = vld [vmem:[%s10 + $0x8] sm:$0xf]
  %v7971 = vld [vmem:[%s10 + $0xc] sm:$0xf]
  %v7972 = vld [vmem:[%s10 + $0x10] sm:$0xf]
  %v7973 = vld [vmem:[%s10 + $0x14] sm:$0xf]
  %v7974 = vld [vmem:[%s10 + $0x18] sm:$0xf]
  %v7975 = vld [vmem:[%s10 + $0x1c] sm:$0xf]
  %v7976 = vld [vmem:[%s10 + $0x20] sm:$0xf]
  %v7977 = vld [vmem:[%s10 + $0x24] sm:$0xf]
  %v7978 = vld [vmem:[%s10 + $0x28] sm:$0xf]
  %v7979 = vld [vmem:[%s10 + $0x2c] sm:$0xf]
  %v7980 = vld [vmem:[%s10 + $0x30] sm:$0xf]
  %v7981 = vld [vmem:[%s10 + $0x34] sm:$0xf]
  %v7982 = vld [vmem:[%s10 + $0x38] sm:$0xf]
  %v7983 = vld [vmem:[%s10 + $0x3c] sm:$0xf]
  %v7984 = vld [vmem:[%s10 + $0x40] sm:$0xf]
  %v7985 = vld [vmem:[%s10 + $0x44] sm:$0xf]
  %v7986 = vld [vmem:[%s10 + $0x48] sm:$0xf]
  %v7987 = vld [vmem:[%s10 + $0x4c] sm:$0xf]
  %v7988 = vld [vmem:[%s10 + $0x50] sm:$0xf]
  %v7989 = vld [vmem:[%s10 + $0x54] sm:$0xf]
  %v7990 = vld [vmem:[%s10 + $0x58] sm:$0xf]
  %v7991 = vld [vmem:[%s10 + $0x5c] sm:$0xf]
  %v7992 = vld [vmem:[%s10 + $0x60] sm:$0xf]
  %v7993 = vld [vmem:[%s10 + $0x64] sm:$0xf]
  %v7994 = vld [vmem:[%s10 + $0x68] sm:$0xf]
  %v7995 = vld [vmem:[%s10 + $0x6c] sm:$0xf]
  %v7996 = vld [vmem:[%s10 + $0x70] sm:$0xf]
  %v7997 = vld [vmem:[%s10 + $0x74] sm:$0xf]
  %v7998 = vld [vmem:[%s10 + $0x78] sm:$0xf]
  %v7999 = vld [vmem:[%s10 + $0x7c] sm:$0xf]
  %v8000 = vld [vmem:[%s10 + $0x80] sm:$0xf]
  %v8001 = vld [vmem:[%s10 + $0x84] sm:$0xf]
  %v8002 = vld [vmem:[%s10 + $0x88] sm:$0xf]
  %v8003 = vld [vmem:[%s10 + $0x8c] sm:$0xf]
  %v8004 = vld [vmem:[%s10 + $0x90] sm:$0xf]
  %v8005 = vld [vmem:[%s10 + $0x94] sm:$0xf]
  %v8006 = vld [vmem:[%s10 + $0x98] sm:$0xf]
  %v8007 = vld [vmem:[%s10 + $0x9c] sm:$0xf]
  %v8008 = vld [vmem:[%s10 + $0xa0] sm:$0xf]
  %v8009 = vld [vmem:[%s10 + $0xa4] sm:$0xf]
  %v8010 = vld [vmem:[%s10 + $0xa8] sm:$0xf]
  %v8011 = vld [vmem:[%s10 + $0xac] sm:$0xf]
  %v8012 = vld [vmem:[%s10 + $0xb0] sm:$0xf]
  %v8013 = vld [vmem:[%s10 + $0xb4] sm:$0xf]
  %v8014 = vld [vmem:[%s10 + $0xb8] sm:$0xf]
  %v8015 = vld [vmem:[%s10 + $0xbc] sm:$0xf]
  %v8016 = vld [vmem:[%s10 + $0xc0] sm:$0xf]
  %v8017 = vld [vmem:[%s10 + $0xc4] sm:$0xf]
  %v8018 = vld [vmem:[%s11] sm:$0x1]
  %v8020 = vlaneseq
  %v8021 = vshrl.u32 %v8020, 7
  %v8022 = vsub.s32 0, %v8021
  %v8023 = vrot.slane %v8018, %v8022
  %v8075 = vunpack.c.l.b16 %v7968
  %v8076 = vunpack.c.l.b16 %v7969
  %v8077 = vunpack.c.l.b16 %v7970
  %v8078 = vunpack.c.l.b16 %v7971
  %v8079 = vunpack.c.l.b16 %v7972
  %v8080 = vunpack.c.l.b16 %v7973
  %v8081 = vunpack.c.l.b16 %v7974
  %v8082 = vunpack.c.l.b16 %v7975
  %v8083 = vunpack.c.l.b16 %v7976
  %v8084 = vunpack.c.l.b16 %v7977
  %v8085 = vunpack.c.l.b16 %v7978
  %v8086 = vunpack.c.l.b16 %v7979
  %v8087 = vunpack.c.l.b16 %v7980
  %v8088 = vunpack.c.l.b16 %v7981
  %v8089 = vunpack.c.l.b16 %v7982
  %v8090 = vunpack.c.l.b16 %v7983
  %v8091 = vunpack.c.l.b16 %v7984
  %v8092 = vunpack.c.l.b16 %v7985
  %v8093 = vunpack.c.l.b16 %v7986
  %v8094 = vunpack.c.l.b16 %v7987
  %v8095 = vunpack.c.l.b16 %v7988
  %v8096 = vunpack.c.l.b16 %v7989
  %v8097 = vunpack.c.l.b16 %v7990
  %v8098 = vunpack.c.l.b16 %v7991
  %v8099 = vunpack.c.l.b16 %v7992
  %v8100 = vunpack.c.l.b16 %v7993
  %v8101 = vunpack.c.l.b16 %v7994
  %v8102 = vunpack.c.l.b16 %v7995
  %v8103 = vunpack.c.l.b16 %v7996
  %v8104 = vunpack.c.l.b16 %v7997
  %v8105 = vunpack.c.l.b16 %v7998
  %v8106 = vunpack.c.l.b16 %v7999
  %v8107 = vunpack.c.l.b16 %v8000
  %v8108 = vunpack.c.l.b16 %v8001
  %v8109 = vunpack.c.l.b16 %v8002
  %v8110 = vunpack.c.l.b16 %v8003
  %v8111 = vunpack.c.l.b16 %v8004
  %v8112 = vunpack.c.l.b16 %v8005
  %v8113 = vunpack.c.l.b16 %v8006
  %v8114 = vunpack.c.l.b16 %v8007
  %v8115 = vunpack.c.l.b16 %v8008
  %v8116 = vunpack.c.l.b16 %v8009
  %v8117 = vunpack.c.l.b16 %v8010
  %v8118 = vunpack.c.l.b16 %v8011
  %v8119 = vunpack.c.l.b16 %v8012
  %v8120 = vunpack.c.l.b16 %v8013
  %v8121 = vunpack.c.l.b16 %v8014
  %v8122 = vunpack.c.l.b16 %v8015
  %v8123 = vunpack.c.l.b16 %v8016
  %v8124 = vunpack.c.l.b16 %v8017
  %v8125 = vpack.c.b16 %v8076, %v8075
  %v8126 = vpack.c.b16 %v8078, %v8077
  %v8127 = vpack.c.b16 %v8080, %v8079
  %v8128 = vpack.c.b16 %v8082, %v8081
  %v8129 = vpack.c.b16 %v8084, %v8083
  %v8130 = vpack.c.b16 %v8086, %v8085
  %v8131 = vpack.c.b16 %v8088, %v8087
  %v8132 = vpack.c.b16 %v8090, %v8089
  %v8133 = vpack.c.b16 %v8092, %v8091
  %v8134 = vpack.c.b16 %v8094, %v8093
  %v8135 = vpack.c.b16 %v8096, %v8095
  %v8136 = vpack.c.b16 %v8098, %v8097
  %v8137 = vpack.c.b16 %v8100, %v8099
  %v8138 = vpack.c.b16 %v8102, %v8101
  %v8139 = vpack.c.b16 %v8104, %v8103
  %v8140 = vpack.c.b16 %v8106, %v8105
  %v8141 = vpack.c.b16 %v8108, %v8107
  %v8142 = vpack.c.b16 %v8110, %v8109
  %v8143 = vpack.c.b16 %v8112, %v8111
  %v8144 = vpack.c.b16 %v8114, %v8113
  %v8145 = vpack.c.b16 %v8116, %v8115
  %v8146 = vpack.c.b16 %v8118, %v8117
  %v8147 = vpack.c.b16 %v8120, %v8119
  %v8148 = vpack.c.b16 %v8122, %v8121
  %v8149 = vpack.c.b16 %v8124, %v8123
  %v8176 = vsel %vm1097, %v7967, 0
  %8178 = vmatprep.subr.bf16.mxu0 0
  %8179 = vmatpush1.bf16.msra.mxu0 %v8125
  %8180 = vmatprep.subr.bf16.mxu0 0
  %8181 = vmatpush1.bf16.msra.mxu0 %v8126
  %8182 = vmatprep.subr.bf16.mxu0 0
  %8183 = vmatpush1.bf16.msra.mxu0 %v8127
  %8184 = vmatprep.subr.bf16.mxu0 0
  %8185 = vmatpush1.bf16.msra.mxu0 %v8128
  %8186 = vmatprep.subr.bf16.mxu0 0
  %8187 = vmatpush1.bf16.msra.mxu0 %v8129
  %8188 = vmatprep.subr.bf16.mxu0 0
  %8189 = vmatpush1.bf16.msra.mxu0 %v8130
  %8190 = vmatprep.subr.bf16.mxu0 0
  %8191 = vmatpush1.bf16.msra.mxu0 %v8131
  %8192 = vmatprep.subr.bf16.mxu0 0
  %8193 = vmatpush1.bf16.msra.mxu0 %v8132
  %8194 = vmatprep.subr.bf16.mxu0 0
  %8195 = vmatpush1.bf16.msra.mxu0 %v8133
  %8196 = vmatprep.subr.bf16.mxu0 0
  %8197 = vmatpush1.bf16.msra.mxu0 %v8134
  %8198 = vmatprep.subr.bf16.mxu0 0
  %8199 = vmatpush1.bf16.msra.mxu0 %v8135
  %8200 = vmatprep.subr.bf16.mxu0 0
  %8201 = vmatpush1.bf16.msra.mxu0 %v8136
  %8202 = vmatprep.subr.bf16.mxu0 0
  %8203 = vmatpush1.bf16.msra.mxu0 %v8137
  %8204 = vmatprep.subr.bf16.mxu0 0
  %8205 = vmatpush1.bf16.msra.mxu0 %v8138
  %8206 = vmatprep.subr.bf16.mxu0 0
  %8207 = vmatpush1.bf16.msra.mxu0 %v8139
  %8208 = vmatprep.subr.bf16.mxu0 0
  %8209 = vmatpush1.bf16.msra.mxu0 %v8140
  %8210 = vmatprep.mubr.bf16.mxu0 %v7965
  %8211 = vmatmul.mubr.bf16.gmra.mrb[0].mxu0 %v7964
  %v8212 = vpop.f32.mrb[0].mxu0
  %v8213 = vadd.f32 %v8023, %v8212
  %v8214 = vpop.f32.mrb[0].mxu0
  %v8215 = vpop.f32.mrb[0].mxu0
  %v8216 = vadd.f32 %v8023, %v8215
  %v8217 = vpop.f32.mrb[0].mxu0
  %8218 = vdwg.mxu0
  %8219 = vmatprep.subr.bf16.mxu0 0
  %8220 = vmatpush1.bf16.msra.mxu0 %v8141
  %8221 = vmatprep.subr.bf16.mxu0 0
  %8222 = vmatpush1.bf16.msra.mxu0 %v8142
  %8223 = vmatprep.subr.bf16.mxu0 0
  %8224 = vmatpush1.bf16.msra.mxu0 %v8143
  %8225 = vmatprep.subr.bf16.mxu0 0
  %8226 = vmatpush1.bf16.msra.mxu0 %v8144
  %8227 = vmatprep.subr.bf16.mxu0 0
  %8228 = vmatpush1.bf16.msra.mxu0 %v8145
  %8229 = vmatprep.subr.bf16.mxu0 0
  %8230 = vmatpush1.bf16.msra.mxu0 %v8146
  %8231 = vmatprep.subr.bf16.mxu0 0
  %8232 = vmatpush1.bf16.msra.mxu0 %v8147
  %8233 = vmatprep.subr.bf16.mxu0 0
  %8234 = vmatpush1.bf16.msra.mxu0 %v8148
  %8235 = vmatprep.subr.bf16.mxu0 0
  %8236 = vmatpush1.bf16.msra.mxu0 %v8149
  %8237 = vmatprep.subr.bf16.mxu0 0
  %8238 = vmatpush1.bf16.msra.mxu0 0
  %8239 = vmatprep.subr.bf16.mxu0 0
  %8240 = vmatpush1.bf16.msra.mxu0 0
  %8241 = vmatprep.subr.bf16.mxu0 0
  %8242 = vmatpush1.bf16.msra.mxu0 0
  %8243 = vmatprep.subr.bf16.mxu0 0
  %8244 = vmatpush1.bf16.msra.mxu0 0
  %8245 = vmatprep.subr.bf16.mxu0 0
  %8246 = vmatpush1.bf16.msra.mxu0 0
  %8247 = vmatprep.subr.bf16.mxu0 0
  %8248 = vmatpush1.bf16.msra.mxu0 0
  %8249 = vmatprep.subr.bf16.mxu0 0
  %8250 = vmatpush1.bf16.msra.mxu0 0
  %8251 = vmatprep.mubr.bf16.mxu0 %v8176
  %8252 = vmatmul.mubr.bf16.gmra.mrb[0].mxu0 %v7966
  %v8253 = vpop.f32.mrb[0].mxu0
  %v8254 = vadd.f32 %v8213, %v8253
  %v8255 = vpop.f32.mrb[0].mxu0
  %v8256 = vpop.f32.mrb[0].mxu0
  %v8257 = vadd.f32 %v8216, %v8256
  %v8258 = vpop.f32.mrb[0].mxu0
  %8259 = vdwg.mxu0
  %v8260 = vmax.f32 %v8254, 0.0
  %v8261 = vmax.f32 %v8257, 0.0
  %v8262 = vld [vmem:[%s12] sm:$0xff]
  %v8263 = vld [vmem:[%s12 + $0x8] sm:$0xff]
  %v8264 = vld [vmem:[%s12 + $0x10] sm:$0xff]
  %v8265 = vld [vmem:[%s12 + $0x18] sm:$0xff]
  %v8266 = vld [vmem:[%s1] sm:$0xff]
  %v8267 = vld [vmem:[%s1 + $0x8] sm:$0xff]
  %v8268 = vld [vmem:[%s13] sm:$0x1]
  %8270 = vset.pattern.permute.xlu0 0
  %8271 = vperm.xlu0 %8270, %v8266
  %v8272 = vpop.permute.xlu0 %8271
  %8275 = vset.pattern.permute.xlu0 0
  %8276 = vperm.xlu0 %8275, %v8267
  %v8277 = vpop.permute.xlu0 %8276
  %v8280 = vlaneseq
  %v8281 = vshrl.u32 %v8280, 7
  %v8282 = vsub.s32 0, %v8281
  %v8283 = vrot.slane %v8268, %v8282
  %v8285 = vmul.f32 %v8272, %v8283
  %v8286 = vmul.f32 %v8277, %v8283
  %v8288 = vsel %vm4364, %v8260, 0
  %v8291 = vsel %vm4364, %v8261, 0
  %8293 = vmatprep.subr.mxu0 0.0
  %8294 = vmatpush1.msra.mxu0 %v8262
  %8295 = vmatprep.subr.mxu0 0.0
  %8296 = vmatpush1.msra.mxu0 %v8263
  %8297 = vmatprep.subr.mxu0 0.0
  %8298 = vmatpush1.msra.mxu0 %v8264
  %8299 = vmatprep.subr.mxu0 0.0
  %8300 = vmatpush1.msra.mxu0 %v8265
  %8301 = vmatprep.subr.mxu0 0.0
  %8302 = vmatpush1.msra.mxu0 0.0
  %8303 = vmatprep.subr.mxu0 0.0
  %8304 = vmatpush1.msra.mxu0 0.0
  %8305 = vmatprep.subr.mxu0 0.0
  %8306 = vmatpush1.msra.mxu0 0.0
  %8307 = vmatprep.subr.mxu0 0.0
  %8308 = vmatpush1.msra.mxu0 0.0
  %8309 = vmatprep.subr.mxu0 0.0
  %8310 = vmatpush1.msra.mxu0 0.0
  %8311 = vmatprep.subr.mxu0 0.0
  %8312 = vmatpush1.msra.mxu0 0.0
  %8313 = vmatprep.subr.mxu0 0.0
  %8314 = vmatpush1.msra.mxu0 0.0
  %8315 = vmatprep.subr.mxu0 0.0
  %8316 = vmatpush1.msra.mxu0 0.0
  %8317 = vmatprep.subr.mxu0 0.0
  %8318 = vmatpush1.msra.mxu0 0.0
  %8319 = vmatprep.subr.mxu0 0.0
  %8320 = vmatpush1.msra.mxu0 0.0
  %8321 = vmatprep.subr.mxu0 0.0
  %8322 = vmatpush1.msra.mxu0 0.0
  %8323 = vmatprep.subr.mxu0 0.0
  %8324 = vmatpush1.msra.mxu0 0.0
  %8325 = vmatprep.subr.mxu0 0.0
  %8326 = vmatpush1.msra.mxu0 0.0
  %8327 = vmatprep.subr.mxu0 0.0
  %8328 = vmatpush1.msra.mxu0 0.0
  %8329 = vmatprep.subr.mxu0 0.0
  %8330 = vmatpush1.msra.mxu0 0.0
  %8331 = vmatprep.subr.mxu0 0.0
  %8332 = vmatpush1.msra.mxu0 0.0
  %8333 = vmatprep.subr.mxu0 0.0
  %8334 = vmatpush1.msra.mxu0 0.0
  %8335 = vmatprep.subr.mxu0 0.0
  %8336 = vmatpush1.msra.mxu0 0.0
  %8337 = vmatprep.subr.mxu0 0.0
  %8338 = vmatpush1.msra.mxu0 0.0
  %8339 = vmatprep.subr.mxu0 0.0
  %8340 = vmatpush1.msra.mxu0 0.0
  %8341 = vmatprep.subr.mxu0 0.0
  %8342 = vmatpush1.msra.mxu0 0.0
  %8343 = vmatprep.subr.mxu0 0.0
  %8344 = vmatpush1.msra.mxu0 0.0
  %8345 = vmatprep.subr.mxu0 0.0
  %8346 = vmatpush1.msra.mxu0 0.0
  %8347 = vmatprep.subr.mxu0 0.0
  %8348 = vmatpush1.msra.mxu0 0.0
  %8349 = vmatprep.subr.mxu0 0.0
  %8350 = vmatpush1.msra.mxu0 0.0
  %8351 = vmatprep.subr.mxu0 0.0
  %8352 = vmatpush1.msra.mxu0 0.0
  %8353 = vmatprep.subr.mxu0 0.0
  %8354 = vmatpush1.msra.mxu0 0.0
  %8355 = vmatprep.subr.mxu0 0.0
  %8356 = vmatpush1.msra.mxu0 0.0
  %8357 = vmatprep.mubr.f32.mxu0 0.0
  %8358 = vmatmul.mubr.f32.gmra.mrb[0].mxu0 %v8288
  %v8359 = vpop.f32.mrb[0].mxu0
  %v8360 = vadd.f32 %v8285, %v8359
  %v8361 = vpop.f32.mrb[0].mxu0
  %8362 = vmatprep.mubr.f32.mxu0 0.0
  %8363 = vmatmul.mubr.f32.gmra.mrb[0].mxu0 %v8291
  %v8364 = vpop.f32.mrb[0].mxu0
  %v8365 = vadd.f32 %v8286, %v8364
  %v8366 = vpop.f32.mrb[0].mxu0
  %8367 = vdwg.mxu0
  %v8368 = vld [vmem:[%s14] sm:$0x1]
  %v8370 = vlaneseq
  %v8371 = vshrl.u32 %v8370, 7
  %v8372 = vsub.s32 0, %v8371
  %v8373 = vrot.slane %v8368, %v8372
  %v8375 = vadd.f32 %v8360, %v8373
  %v8376 = vadd.f32 %v8365, %v8373
  %v8377 = vmax.f32 %v8375, 0.0
  %v8378 = vmax.f32 %v8376, 0.0
  %vm8379 = vcmask 15360
  %8380 = vst.msk [vmem:[%s15] sm:$0xff] %vm8379, %v8377
  %8381 = vst.msk [vmem:[%s15 + $0x8] sm:$0xff] %vm8379, %v8378
  // Predicated region
  $region62: #{forward.1} parent=0 // pred_check
    _
  $region63: #{forward.1} parent=0 // pred_check_branch
    %8383 = sbr.rel (0) target = $region65
  $region64: #{forward.1} parent=0 // pred_region
    _
  $region65: #{forward.1} parent=0 // pred_fallthru
    _
  // Predicated region
  $region66: #{forward.1} parent=0 // pred_check
    _
  $region67: #{forward.1} parent=0 // pred_check_branch
    %8385 = sbr.rel (0) target = $region69
  $region68: #{forward.1} parent=0 // pred_region
    _
  $region69: #{forward.1} parent=0 // pred_fallthru
    _

</llo_original>
